<compile_context>
chip_gen: v5e
topology: v5e:2x2
jax: 0.10.0
libtpu: 0.0.40
codegen_flags: <defaults>
</compile_context>

<pallas_src>
import jax
import jax.numpy as jnp
from jax import lax
from jax.experimental import pallas as pl
from jax.experimental.pallas import tpu as pltpu


# -----------------------------------------------------------------------------
# Fused kernel: activations -> frequency response -> real IDFT -> Toeplitz conv
# -----------------------------------------------------------------------------
def _fused_biquad_fsm_kernel(
    bcoef_ref,   # (1, K, 3)        raw feedforward coeffs for this batch elem
    a1_ref,      # (1, K, 1)        pre-activation a1
    a2_ref,      # (1, K, 1)        pre-activation a2
    cos_ref,     # (3, F)           cos(w_f * c), delays c = 0, 1, 2
    sin_ref,     # (3, F)           sin(w_f * c)
    idftc_ref,   # (fir_len, F)     real-IDFT cosine table (incl. 1/N weights)
    idfts_ref,   # (fir_len, F)     real-IDFT sine table
    x_ref,       # (1, C, TL)       input time tile
    o_ref,       # (1, C, TL)       output time tile
    tcur_ref,    # (128, 128) VMEM  banded Toeplitz, current-chunk taps
    tprev_ref,   # (128, 128) VMEM  banded Toeplitz, previous-chunk taps
    xprev_ref,   # (C, 128)   VMEM  last 128 samples of the previous tile
):
    lt = pl.program_id(1)

    # ---- once per batch element: coefficients -> FIR -> Toeplitz matrices ----
    @pl.when(lt == 0)
    def _init():
        fir_len = idftc_ref.shape[0]

        # feedforward path with the "b0 + 1" quirk
        b = bcoef_ref[0]                                  # (K, 3)
        b0 = b[:, 0:1] + 1.0
        b1 = b[:, 1:2]
        b2 = b[:, 2:3]

        # stabilized feedback path (Nercessian activations)
        a1 = 2.0 * jnp.tanh(a1_ref[0])                    # (K, 1)
        a1_abs = jnp.abs(a1)
        a2 = ((2.0 - a1_abs) * jnp.tanh(a2_ref[0]) + a1_abs) * 0.5

        cos0, cos1, cos2 = cos_ref[0:1], cos_ref[1:2], cos_ref[2:3]   # (1, F)
        sin0, sin1, sin2 = sin_ref[0:1], sin_ref[1:2], sin_ref[2:3]

        # H_k(w) = (b0 + b1 z^-1 + b2 z^-2) / (1 + a1 z^-1 + a2 z^-2),
        # z^-c = cos(w c) - j sin(w c)
        num_re = b0 * cos0 + b1 * cos1 + b2 * cos2        # (K, F)
        num_im = -(b0 * sin0 + b1 * sin1 + b2 * sin2)
        den_re = cos0 + a1 * cos1 + a2 * cos2
        den_im = -(sin0 + a1 * sin1 + a2 * sin2)

        den_mag = den_re * den_re + den_im * den_im
        inv = pl.reciprocal(den_mag, approx=True)         # EUP slot
        inv = inv * (2.0 - den_mag * inv)                 # one Newton step
        h_re = (num_re * den_re + num_im * den_im) * inv  # (K, F)
        h_im = (num_im * den_re - num_re * den_im) * inv

        # product over the K serial biquads (K is a small compile-time const)
        pr = jnp.ones_like(h_re[0:1])                     # (1, F)
        pi = jnp.zeros_like(h_im[0:1])
        for k in range(h_re.shape[0]):
            rk, ik = h_re[k:k + 1], h_im[k:k + 1]
            pr, pi = pr * rk - pi * ik, pr * ik + pi * rk

        # explicit real inverse DFT (replaces jnp.fft.irfft): lane-reduce over F
        fir_col = jnp.sum(pr * idftc_ref[...] + pi * idfts_ref[...],
                          axis=1, keepdims=True)          # (fir_len, 1)

        # banded Toeplitz matrices for the MXU conv:
        #   T_cur[p, m]  = h[m - p]        for 0 <= m - p  < fir_len
        #   T_prev[p, m] = h[m + 128 - p]  for 0 <  m + 128 - p < fir_len
        sub = lax.broadcasted_iota(jnp.int32, (128, 128), 0)
        lane = lax.broadcasted_iota(jnp.int32, (128, 128), 1)
        d = lane - sub                                    # d[p, m] = m - p
        tcur = jnp.zeros((128, 128), jnp.float32)
        tprev = jnp.zeros((128, 128), jnp.float32)
        for tau in range(fir_len):                        # static unroll
            h_tau = fir_col[tau:tau + 1, :]               # (1, 1)
            tcur = jnp.where(d == tau, h_tau, tcur)
            if tau >= 1:
                tprev = jnp.where(d == tau - 128, h_tau, tprev)
        tcur_ref[...] = tcur
        tprev_ref[...] = tprev
        # zero halo: correct causal boundary for the first tile (no jnp.pad)
        xprev_ref[...] = jnp.zeros_like(xprev_ref)

    # ---- FIR conv of this time tile as block-Toeplitz MXU matmuls ------------
    n_chunks = o_ref.shape[2] // 128                      # static
    tcur = tcur_ref[...]
    tprev = tprev_ref[...]
    xj = None
    for j in range(n_chunks):                             # static unroll
        xj = x_ref[0, :, j * 128:(j + 1) * 128]           # (C, 128)
        if j == 0:
            xp = xprev_ref[...]                           # halo from prev tile
        else:
            xp = x_ref[0, :, (j - 1) * 128:j * 128]
        yj = (jnp.dot(xj, tcur, preferred_element_type=jnp.float32)
              + jnp.dot(xp, tprev, preferred_element_type=jnp.float32))
        o_ref[0, :, j * 128:(j + 1) * 128] = yj.astype(o_ref.dtype)

    # carry the last 128 samples as the halo for the next tile of this batch
    xprev_ref[...] = xj


# -----------------------------------------------------------------------------
# Wrapper: host-side constant tables, time tiling, pallas_call plumbing
# -----------------------------------------------------------------------------
def biquad_filter(x, Bs, A1_pre, A2_pre, A0=None, *, normalized=False,
                  fsm_fir_len=64, time_tile=2048):
    # TODO(synk): only the default normalized=False path is implemented (the
    # reference multiplies As by A0 only when normalized == True).
    assert not normalized, "normalized=True path not implemented"
    # TODO(synk): the two-matrix block-Toeplitz scheme assumes fir_len <= 128;
    # longer FSM FIRs (module default 8192) need cdiv(fir_len, 128) + 1
    # Toeplitz blocks / a deeper halo carry.
    assert fsm_fir_len % 2 == 0 and 2 <= fsm_fir_len <= 128

    B, C, L = x.shape
    _, K, _ = Bs.shape
    F = fsm_fir_len // 2 + 1

    # ---- tiny host-precomputed trig / inverse-DFT tables ----------------------
    f = jnp.arange(F, dtype=jnp.float32)
    c = jnp.arange(3, dtype=jnp.float32)
    wfc = 2.0 * jnp.pi * c[:, None] * f[None, :] / fsm_fir_len
    cos_tab = jnp.cos(wfc).astype(jnp.float32)                     # (3, F)
    sin_tab = jnp.sin(wfc).astype(jnp.float32)

    n = jnp.arange(fsm_fir_len, dtype=jnp.float32)[:, None]        # (fir_len, 1)
    ang = 2.0 * jnp.pi * n * f[None, :] / fsm_fir_len
    wgt = jnp.where((f == 0) | (f == fsm_fir_len // 2), 1.0, 2.0) / fsm_fir_len
    idft_cos = (wgt[None, :] * jnp.cos(ang)).astype(jnp.float32)   # (fir_len, F)
    idft_sin = (-wgt[None, :] * jnp.sin(ang)).astype(jnp.float32)

    # ---- time tiling: TL a multiple of 128 lanes ------------------------------
    l128 = 128 * ((L + 127) // 128)
    tl = max(128, min((int(time_tile) // 128) * 128, l128))
    nt = (l128 + tl - 1) // tl
    l_pad = nt * tl

    xf = x.astype(jnp.float32)
    if l_pad != L:
        # TODO(synk): tail-only pad (<= TL-1 samples) so the grid divides
        # evenly; a masked last tile would avoid even this copy.
        xf = jnp.pad(xf, ((0, 0), (0, 0), (0, l_pad - L)))

    a1 = A1_pre[:, :, None].astype(jnp.float32)                    # (B, K, 1)
    a2 = A2_pre[:, :, None].astype(jnp.float32)

    y = pl.pallas_call(
        _fused_biquad_fsm_kernel,
        out_shape=jax.ShapeDtypeStruct((B, C, l_pad), x.dtype),
        grid=(B, nt),
        in_specs=[
            pl.BlockSpec((1, K, 3), lambda b, t: (b, 0, 0)),
            pl.BlockSpec((1, K, 1), lambda b, t: (b, 0, 0)),
            pl.BlockSpec((1, K, 1), lambda b, t: (b, 0, 0)),
            pl.BlockSpec((3, F), lambda b, t: (0, 0)),
            pl.BlockSpec((3, F), lambda b, t: (0, 0)),
            pl.BlockSpec((fsm_fir_len, F), lambda b, t: (0, 0)),
            pl.BlockSpec((fsm_fir_len, F), lambda b, t: (0, 0)),
            pl.BlockSpec((1, C, tl), lambda b, t: (b, 0, t)),
        ],
        out_specs=pl.BlockSpec((1, C, tl), lambda b, t: (b, 0, t)),
        scratch_shapes=[
            pltpu.VMEM((128, 128), jnp.float32),   # T_cur
            pltpu.VMEM((128, 128), jnp.float32),   # T_prev
            pltpu.VMEM((C, 128), jnp.float32),     # halo carry
        ],
        compiler_params=pltpu.CompilerParams(
            dimension_semantics=("parallel", "arbitrary")),
    )(Bs.astype(jnp.float32), a1, a2, cos_tab, sin_tab, idft_cos, idft_sin, xf)

    if l_pad != L:
        y = y[..., :L]
    return y


# -----------------------------------------------------------------------------
# Pure-JAX reference (same FSM semantics) for the correctness check
# -----------------------------------------------------------------------------
def biquad_filter_ref(x, Bs, A1_pre, A2_pre, *, fsm_fir_len=64):
    A1 = 2.0 * jnp.tanh(A1_pre)
    A1_abs = jnp.abs(A1)
    A2 = ((2.0 - A1_abs) * jnp.tanh(A2_pre) + A1_abs) / 2.0
    As = jnp.stack([jnp.ones_like(A1), A1, A2], axis=-1)           # (B, K, 3)
    Bm = Bs.at[:, :, 0].add(1.0)                                   # b0 + 1 quirk

    Fbins = fsm_fir_len // 2 + 1
    w = 2.0 * jnp.pi * jnp.arange(Fbins) / fsm_fir_len
    z = jnp.exp(-1j * w)
    zp = jnp.stack([z ** 0, z ** 1, z ** 2], axis=0)               # (3, F)
    num = jnp.einsum("bkc,cf->bkf", Bm.astype(jnp.complex64), zp)
    den = jnp.einsum("bkc,cf->bkf", As.astype(jnp.complex64), zp)
    H = jnp.prod(num / den, axis=1)                                # (B, F)
    fir = jnp.fft.irfft(H, n=fsm_fir_len, axis=-1)                 # (B, fir_len)

    Ltot = x.shape[-1] + fsm_fir_len - 1
    Y = (jnp.fft.rfft(x, n=Ltot, axis=-1)
         * jnp.fft.rfft(fir, n=Ltot, axis=-1)[:, None, :])
    y = jnp.fft.irfft(Y, n=Ltot, axis=-1)[..., :x.shape[-1]]
    return y.astype(x.dtype)


if __name__ == "__main__":
    B, C, L, K = 2, 8, 512, 2
    FIR_LEN = 64

    key = jax.random.PRNGKey(0)
    k1, k2, k3, k4 = jax.random.split(key, 4)
    x = jax.random.normal(k1, (B, C, L), jnp.float32)
    Bs = 0.1 * jax.random.normal(k2, (B, K, 3), jnp.float32)
    A1_pre = 0.5 * jax.random.normal(k3, (B, K), jnp.float32)
    A2_pre = 0.5 * jax.random.normal(k4, (B, K), jnp.float32)

    # time_tile=256 exercises both the in-tile chunk halo and the cross-tile
    # scratch carry (grid = (B, 2), 2 x 128-lane chunks per tile).
    y = biquad_filter(x, Bs, A1_pre, A2_pre, fsm_fir_len=FIR_LEN, time_tile=256)
    y = jax.block_until_ready(y)

    y_ref = biquad_filter_ref(x, Bs, A1_pre, A2_pre, fsm_fir_len=FIR_LEN)
    peak = jnp.maximum(1.0, jnp.max(jnp.abs(y_ref)))
    err = float(jnp.max(jnp.abs(y - y_ref)) / peak)
    assert y.shape == (B, C, L)
    assert err < 1e-3, f"max (peak-normalized) err {err}"
    print("KERNEL_OK")
</pallas_src>

<mosaic_0001>
module attributes {stable_mosaic.version = 11 : i64} {
  func.func @_fused_biquad_fsm_kernel(%arg0: i32, %arg1: i32, %arg2: memref<1x2x3xf32, #tpu.memory_space<vmem>>, %arg3: memref<1x2x1xf32, #tpu.memory_space<vmem>>, %arg4: memref<1x2x1xf32, #tpu.memory_space<vmem>>, %arg5: memref<3x33xf32, #tpu.memory_space<vmem>>, %arg6: memref<3x33xf32, #tpu.memory_space<vmem>>, %arg7: memref<64x33xf32, #tpu.memory_space<vmem>>, %arg8: memref<64x33xf32, #tpu.memory_space<vmem>>, %arg9: memref<1x8x256xf32, #tpu.memory_space<vmem>>, %arg10: memref<1x8x256xf32, #tpu.memory_space<vmem>>, %arg11: memref<128x128xf32, #tpu.memory_space<vmem>>, %arg12: memref<128x128xf32, #tpu.memory_space<vmem>>, %arg13: memref<8x128xf32, #tpu.memory_space<vmem>>) attributes {dimension_semantics = [#tpu.dimension_semantics<parallel>, #tpu.dimension_semantics<arbitrary>], iteration_bounds = array<i64: 2, 2>, scalar_prefetch = 0 : i64, scratch_operands = 3 : i64, tpu.core_type = #tpu.core_type<tc>, window_params = [{transform_indices = @transform_0, window_bounds = array<i64: 1, 2, 3>}, {transform_indices = @transform_1, window_bounds = array<i64: 1, 2, 1>}, {transform_indices = @transform_2, window_bounds = array<i64: 1, 2, 1>}, {pipeline_mode = #tpu.pipeline_mode<synchronous>, transform_indices = @transform_3, window_bounds = array<i64: 3, 33>}, {pipeline_mode = #tpu.pipeline_mode<synchronous>, transform_indices = @transform_4, window_bounds = array<i64: 3, 33>}, {pipeline_mode = #tpu.pipeline_mode<synchronous>, transform_indices = @transform_5, window_bounds = array<i64: 64, 33>}, {pipeline_mode = #tpu.pipeline_mode<synchronous>, transform_indices = @transform_6, window_bounds = array<i64: 64, 33>}, {transform_indices = @transform_7, window_bounds = array<i64: 1, 8, 256>}, {transform_indices = @transform_8, window_bounds = array<i64: 1, 8, 256>}]} {
    %c0_i32 = arith.constant 0 : i32
    %0 = arith.cmpi eq, %arg1, %c0_i32 : i32
    %1 = arith.extui %0 : i1 to i32
    %c0_i32_0 = arith.constant 0 : i32
    %2 = arith.cmpi ne, %1, %c0_i32_0 : i32
    scf.if %2 {
      %c0_25 = arith.constant 0 : index
      %c0_26 = arith.constant 0 : index
      %c0_27 = arith.constant 0 : index
      %25 = vector.load %arg2[%c0_25, %c0_26, %c0_27] : memref<1x2x3xf32, #tpu.memory_space<vmem>>, vector<1x2x3xf32>
      %26 = vector.shape_cast %25 : vector<1x2x3xf32> to vector<2x3xf32>
      %27 = vector.extract_strided_slice %26 {offsets = [0, 0], sizes = [2, 1], strides = [1, 1]} : vector<2x3xf32> to vector<2x1xf32>
      %cst_28 = arith.constant 1.000000e+00 : f32
      %28 = vector.broadcast %cst_28 : f32 to vector<2x1xf32>
      %29 = arith.addf %27, %28 : vector<2x1xf32>
      %30 = vector.extract_strided_slice %26 {offsets = [0, 1], sizes = [2, 1], strides = [1, 1]} : vector<2x3xf32> to vector<2x1xf32>
      %31 = vector.extract_strided_slice %26 {offsets = [0, 2], sizes = [2, 1], strides = [1, 1]} : vector<2x3xf32> to vector<2x1xf32>
      %c0_29 = arith.constant 0 : index
      %c0_30 = arith.constant 0 : index
      %c0_31 = arith.constant 0 : index
      %32 = vector.load %arg3[%c0_29, %c0_30, %c0_31] : memref<1x2x1xf32, #tpu.memory_space<vmem>>, vector<1x2x1xf32>
      %33 = vector.shape_cast %32 : vector<1x2x1xf32> to vector<2x1xf32>
      %34 = math.tanh %33 : vector<2x1xf32>
      %cst_32 = arith.constant 2.000000e+00 : f32
      %35 = vector.broadcast %cst_32 : f32 to vector<2x1xf32>
      %36 = arith.mulf %35, %34 : vector<2x1xf32>
      %37 = math.absf %36 : vector<2x1xf32>
      %cst_33 = arith.constant 2.000000e+00 : f32
      %38 = vector.broadcast %cst_33 : f32 to vector<2x1xf32>
      %39 = arith.subf %38, %37 : vector<2x1xf32>
      %c0_34 = arith.constant 0 : index
      %c0_35 = arith.constant 0 : index
      %c0_36 = arith.constant 0 : index
      %40 = vector.load %arg4[%c0_34, %c0_35, %c0_36] : memref<1x2x1xf32, #tpu.memory_space<vmem>>, vector<1x2x1xf32>
      %41 = vector.shape_cast %40 : vector<1x2x1xf32> to vector<2x1xf32>
      %42 = math.tanh %41 : vector<2x1xf32>
      %43 = arith.mulf %39, %42 : vector<2x1xf32>
      %44 = arith.addf %43, %37 : vector<2x1xf32>
      %cst_37 = arith.constant 5.000000e-01 : f32
      %45 = vector.broadcast %cst_37 : f32 to vector<2x1xf32>
      %46 = arith.mulf %44, %45 : vector<2x1xf32>
      %c0_38 = arith.constant 0 : index
      %c0_39 = arith.constant 0 : index
      %47 = vector.load %arg5[%c0_38, %c0_39] : memref<3x33xf32, #tpu.memory_space<vmem>>, vector<1x33xf32>
      %c1 = arith.constant 1 : index
      %c0_40 = arith.constant 0 : index
      %48 = vector.load %arg5[%c1, %c0_40] : memref<3x33xf32, #tpu.memory_space<vmem>>, vector<1x33xf32>
      %c2 = arith.constant 2 : index
      %c0_41 = arith.constant 0 : index
      %49 = vector.load %arg5[%c2, %c0_41] : memref<3x33xf32, #tpu.memory_space<vmem>>, vector<1x33xf32>
      %c0_42 = arith.constant 0 : index
      %c0_43 = arith.constant 0 : index
      %50 = vector.load %arg6[%c0_42, %c0_43] : memref<3x33xf32, #tpu.memory_space<vmem>>, vector<1x33xf32>
      %c1_44 = arith.constant 1 : index
      %c0_45 = arith.constant 0 : index
      %51 = vector.load %arg6[%c1_44, %c0_45] : memref<3x33xf32, #tpu.memory_space<vmem>>, vector<1x33xf32>
      %c2_46 = arith.constant 2 : index
      %c0_47 = arith.constant 0 : index
      %52 = vector.load %arg6[%c2_46, %c0_47] : memref<3x33xf32, #tpu.memory_space<vmem>>, vector<1x33xf32>
      %53 = vector.broadcast %29 : vector<2x1xf32> to vector<2x33xf32>
      %54 = vector.broadcast %47 : vector<1x33xf32> to vector<2x33xf32>
      %55 = arith.mulf %53, %54 : vector<2x33xf32>
      %56 = vector.broadcast %30 : vector<2x1xf32> to vector<2x33xf32>
      %57 = vector.broadcast %48 : vector<1x33xf32> to vector<2x33xf32>
      %58 = arith.mulf %56, %57 : vector<2x33xf32>
      %59 = arith.addf %55, %58 : vector<2x33xf32>
      %60 = vector.broadcast %31 : vector<2x1xf32> to vector<2x33xf32>
      %61 = vector.broadcast %49 : vector<1x33xf32> to vector<2x33xf32>
      %62 = arith.mulf %60, %61 : vector<2x33xf32>
      %63 = arith.addf %59, %62 : vector<2x33xf32>
      %64 = vector.broadcast %29 : vector<2x1xf32> to vector<2x33xf32>
      %65 = vector.broadcast %50 : vector<1x33xf32> to vector<2x33xf32>
      %66 = arith.mulf %64, %65 : vector<2x33xf32>
      %67 = vector.broadcast %30 : vector<2x1xf32> to vector<2x33xf32>
      %68 = vector.broadcast %51 : vector<1x33xf32> to vector<2x33xf32>
      %69 = arith.mulf %67, %68 : vector<2x33xf32>
      %70 = arith.addf %66, %69 : vector<2x33xf32>
      %71 = vector.broadcast %31 : vector<2x1xf32> to vector<2x33xf32>
      %72 = vector.broadcast %52 : vector<1x33xf32> to vector<2x33xf32>
      %73 = arith.mulf %71, %72 : vector<2x33xf32>
      %74 = arith.addf %70, %73 : vector<2x33xf32>
      %cst_48 = arith.constant 0.000000e+00 : f32
      %75 = vector.broadcast %cst_48 : f32 to vector<2x33xf32>
      %76 = arith.subf %75, %74 : vector<2x33xf32>
      %77 = vector.broadcast %36 : vector<2x1xf32> to vector<2x33xf32>
      %78 = vector.broadcast %48 : vector<1x33xf32> to vector<2x33xf32>
      %79 = arith.mulf %77, %78 : vector<2x33xf32>
      %80 = vector.broadcast %47 : vector<1x33xf32> to vector<2x33xf32>
      %81 = arith.addf %80, %79 : vector<2x33xf32>
      %82 = vector.broadcast %46 : vector<2x1xf32> to vector<2x33xf32>
      %83 = vector.broadcast %49 : vector<1x33xf32> to vector<2x33xf32>
      %84 = arith.mulf %82, %83 : vector<2x33xf32>
      %85 = arith.addf %81, %84 : vector<2x33xf32>
      %86 = vector.broadcast %36 : vector<2x1xf32> to vector<2x33xf32>
      %87 = vector.broadcast %51 : vector<1x33xf32> to vector<2x33xf32>
      %88 = arith.mulf %86, %87 : vector<2x33xf32>
      %89 = vector.broadcast %50 : vector<1x33xf32> to vector<2x33xf32>
      %90 = arith.addf %89, %88 : vector<2x33xf32>
      %91 = vector.broadcast %46 : vector<2x1xf32> to vector<2x33xf32>
      %92 = vector.broadcast %52 : vector<1x33xf32> to vector<2x33xf32>
      %93 = arith.mulf %91, %92 : vector<2x33xf32>
      %94 = arith.addf %90, %93 : vector<2x33xf32>
      %cst_49 = arith.constant 0.000000e+00 : f32
      %95 = vector.broadcast %cst_49 : f32 to vector<2x33xf32>
      %96 = arith.subf %95, %94 : vector<2x33xf32>
      %97 = arith.mulf %85, %85 : vector<2x33xf32>
      %98 = arith.mulf %96, %96 : vector<2x33xf32>
      %99 = arith.addf %97, %98 : vector<2x33xf32>
      %100 = tpu.reciprocal %99 {approx = true} : vector<2x33xf32> -> vector<2x33xf32>
      %101 = arith.mulf %99, %100 : vector<2x33xf32>
      %cst_50 = arith.constant 2.000000e+00 : f32
      %102 = vector.broadcast %cst_50 : f32 to vector<2x33xf32>
      %103 = arith.subf %102, %101 : vector<2x33xf32>
      %104 = arith.mulf %100, %103 : vector<2x33xf32>
      %105 = arith.mulf %63, %85 : vector<2x33xf32>
      %106 = arith.mulf %76, %96 : vector<2x33xf32>
      %107 = arith.addf %105, %106 : vector<2x33xf32>
      %108 = arith.mulf %107, %104 : vector<2x33xf32>
      %109 = arith.mulf %76, %85 : vector<2x33xf32>
      %110 = arith.mulf %63, %96 : vector<2x33xf32>
      %111 = arith.subf %109, %110 : vector<2x33xf32>
      %112 = arith.mulf %111, %104 : vector<2x33xf32>
      %cst_51 = arith.constant 1.000000e+00 : f32
      %113 = vector.broadcast %cst_51 : f32 to vector<1x33xf32>
      %cst_52 = arith.constant 0.000000e+00 : f32
      %114 = vector.broadcast %cst_52 : f32 to vector<1x33xf32>
      %115 = vector.extract_strided_slice %108 {offsets = [0, 0], sizes = [1, 33], strides = [1, 1]} : vector<2x33xf32> to vector<1x33xf32>
      %116 = vector.extract_strided_slice %112 {offsets = [0, 0], sizes = [1, 33], strides = [1, 1]} : vector<2x33xf32> to vector<1x33xf32>
      %117 = arith.mulf %113, %115 : vector<1x33xf32>
      %118 = arith.mulf %114, %116 : vector<1x33xf32>
      %119 = arith.subf %117, %118 : vector<1x33xf32>
      %120 = arith.mulf %113, %116 : vector<1x33xf32>
      %121 = arith.mulf %114, %115 : vector<1x33xf32>
      %122 = arith.addf %120, %121 : vector<1x33xf32>
      %123 = vector.extract_strided_slice %108 {offsets = [1, 0], sizes = [1, 33], strides = [1, 1]} : vector<2x33xf32> to vector<1x33xf32>
      %124 = vector.extract_strided_slice %112 {offsets = [1, 0], sizes = [1, 33], strides = [1, 1]} : vector<2x33xf32> to vector<1x33xf32>
      %125 = arith.mulf %119, %123 : vector<1x33xf32>
      %126 = arith.mulf %122, %124 : vector<1x33xf32>
      %127 = arith.subf %125, %126 : vector<1x33xf32>
      %128 = arith.mulf %119, %124 : vector<1x33xf32>
      %129 = arith.mulf %122, %123 : vector<1x33xf32>
      %130 = arith.addf %128, %129 : vector<1x33xf32>
      %c0_53 = arith.constant 0 : index
      %c0_54 = arith.constant 0 : index
      %131 = vector.load %arg7[%c0_53, %c0_54] : memref<64x33xf32, #tpu.memory_space<vmem>>, vector<64x33xf32>
      %132 = vector.broadcast %127 : vector<1x33xf32> to vector<64x33xf32>
      %133 = arith.mulf %132, %131 : vector<64x33xf32>
      %c0_55 = arith.constant 0 : index
      %c0_56 = arith.constant 0 : index
      %134 = vector.load %arg8[%c0_55, %c0_56] : memref<64x33xf32, #tpu.memory_space<vmem>>, vector<64x33xf32>
      %135 = vector.broadcast %130 : vector<1x33xf32> to vector<64x33xf32>
      %136 = arith.mulf %135, %134 : vector<64x33xf32>
      %137 = arith.addf %133, %136 : vector<64x33xf32>
      %cst_57 = arith.constant dense<0.000000e+00> : vector<64xf32>
      %138 = vector.multi_reduction <add>, %137, %cst_57 [1] : vector<64x33xf32> to vector<64xf32>
      %139 = vector.shape_cast %138 : vector<64xf32> to vector<64x1xf32>
      %140 = tpu.iota {dimensions = array<i32: 0>} : vector<128x128xi32>
      %141 = tpu.iota {dimensions = array<i32: 1>} : vector<128x128xi32>
      %142 = arith.subi %141, %140 : vector<128x128xi32>
      %cst_58 = arith.constant 0.000000e+00 : f32
      %143 = vector.broadcast %cst_58 : f32 to vector<128x128xf32>
      %cst_59 = arith.constant 0.000000e+00 : f32
      %144 = vector.broadcast %cst_59 : f32 to vector<128x128xf32>
      %145 = vector.extract_strided_slice %139 {offsets = [0, 0], sizes = [1, 1], strides = [1, 1]} : vector<64x1xf32> to vector<1x1xf32>
      %c0_i32_60 = arith.constant 0 : i32
      %146 = vector.broadcast %c0_i32_60 : i32 to vector<128x128xi32>
      %147 = arith.cmpi eq, %142, %146 : vector<128x128xi32>
      %148 = vector.shape_cast %145 : vector<1x1xf32> to vector<1x1xf32>
      %149 = vector.broadcast %148 : vector<1x1xf32> to vector<128x128xf32>
      %150 = arith.select %147, %149, %143 : vector<128x128xi1>, vector<128x128xf32>
      %151 = vector.extract_strided_slice %139 {offsets = [1, 0], sizes = [1, 1], strides = [1, 1]} : vector<64x1xf32> to vector<1x1xf32>
      %c1_i32 = arith.constant 1 : i32
      %152 = vector.broadcast %c1_i32 : i32 to vector<128x128xi32>
      %153 = arith.cmpi eq, %142, %152 : vector<128x128xi32>
      %154 = vector.shape_cast %151 : vector<1x1xf32> to vector<1x1xf32>
      %155 = vector.broadcast %154 : vector<1x1xf32> to vector<128x128xf32>
      %156 = arith.select %153, %155, %150 : vector<128x128xi1>, vector<128x128xf32>
      %c-127_i32 = arith.constant -127 : i32
      %157 = vector.broadcast %c-127_i32 : i32 to vector<128x128xi32>
      %158 = arith.cmpi eq, %142, %157 : vector<128x128xi32>
      %159 = vector.shape_cast %151 : vector<1x1xf32> to vector<1x1xf32>
      %160 = vector.broadcast %159 : vector<1x1xf32> to vector<128x128xf32>
      %161 = arith.select %158, %160, %144 : vector<128x128xi1>, vector<128x128xf32>
      %162 = vector.extract_strided_slice %139 {offsets = [2, 0], sizes = [1, 1], strides = [1, 1]} : vector<64x1xf32> to vector<1x1xf32>
      %c2_i32 = arith.constant 2 : i32
      %163 = vector.broadcast %c2_i32 : i32 to vector<128x128xi32>
      %164 = arith.cmpi eq, %142, %163 : vector<128x128xi32>
      %165 = vector.shape_cast %162 : vector<1x1xf32> to vector<1x1xf32>
      %166 = vector.broadcast %165 : vector<1x1xf32> to vector<128x128xf32>
      %167 = arith.select %164, %166, %156 : vector<128x128xi1>, vector<128x128xf32>
      %c-126_i32 = arith.constant -126 : i32
      %168 = vector.broadcast %c-126_i32 : i32 to vector<128x128xi32>
      %169 = arith.cmpi eq, %142, %168 : vector<128x128xi32>
      %170 = vector.shape_cast %162 : vector<1x1xf32> to vector<1x1xf32>
      %171 = vector.broadcast %170 : vector<1x1xf32> to vector<128x128xf32>
      %172 = arith.select %169, %171, %161 : vector<128x128xi1>, vector<128x128xf32>
      %173 = vector.extract_strided_slice %139 {offsets = [3, 0], sizes = [1, 1], strides = [1, 1]} : vector<64x1xf32> to vector<1x1xf32>
      %c3_i32 = arith.constant 3 : i32
      %174 = vector.broadcast %c3_i32 : i32 to vector<128x128xi32>
      %175 = arith.cmpi eq, %142, %174 : vector<128x128xi32>
      %176 = vector.shape_cast %173 : vector<1x1xf32> to vector<1x1xf32>
      %177 = vector.broadcast %176 : vector<1x1xf32> to vector<128x128xf32>
      %178 = arith.select %175, %177, %167 : vector<128x128xi1>, vector<128x128xf32>
      %c-125_i32 = arith.constant -125 : i32
      %179 = vector.broadcast %c-125_i32 : i32 to vector<128x128xi32>
      %180 = arith.cmpi eq, %142, %179 : vector<128x128xi32>
      %181 = vector.shape_cast %173 : vector<1x1xf32> to vector<1x1xf32>
      %182 = vector.broadcast %181 : vector<1x1xf32> to vector<128x128xf32>
      %183 = arith.select %180, %182, %172 : vector<128x128xi1>, vector<128x128xf32>
      %184 = vector.extract_strided_slice %139 {offsets = [4, 0], sizes = [1, 1], strides = [1, 1]} : vector<64x1xf32> to vector<1x1xf32>
      %c4_i32 = arith.constant 4 : i32
      %185 = vector.broadcast %c4_i32 : i32 to vector<128x128xi32>
      %186 = arith.cmpi eq, %142, %185 : vector<128x128xi32>
      %187 = vector.shape_cast %184 : vector<1x1xf32> to vector<1x1xf32>
      %188 = vector.broadcast %187 : vector<1x1xf32> to vector<128x128xf32>
      %189 = arith.select %186, %188, %178 : vector<128x128xi1>, vector<128x128xf32>
      %c-124_i32 = arith.constant -124 : i32
      %190 = vector.broadcast %c-124_i32 : i32 to vector<128x128xi32>
      %191 = arith.cmpi eq, %142, %190 : vector<128x128xi32>
      %192 = vector.shape_cast %184 : vector<1x1xf32> to vector<1x1xf32>
      %193 = vector.broadcast %192 : vector<1x1xf32> to vector<128x128xf32>
      %194 = arith.select %191, %193, %183 : vector<128x128xi1>, vector<128x128xf32>
      %195 = vector.extract_strided_slice %139 {offsets = [5, 0], sizes = [1, 1], strides = [1, 1]} : vector<64x1xf32> to vector<1x1xf32>
      %c5_i32 = arith.constant 5 : i32
      %196 = vector.broadcast %c5_i32 : i32 to vector<128x128xi32>
      %197 = arith.cmpi eq, %142, %196 : vector<128x128xi32>
      %198 = vector.shape_cast %195 : vector<1x1xf32> to vector<1x1xf32>
      %199 = vector.broadcast %198 : vector<1x1xf32> to vector<128x128xf32>
      %200 = arith.select %197, %199, %189 : vector<128x128xi1>, vector<128x128xf32>
      %c-123_i32 = arith.constant -123 : i32
      %201 = vector.broadcast %c-123_i32 : i32 to vector<128x128xi32>
      %202 = arith.cmpi eq, %142, %201 : vector<128x128xi32>
      %203 = vector.shape_cast %195 : vector<1x1xf32> to vector<1x1xf32>
      %204 = vector.broadcast %203 : vector<1x1xf32> to vector<128x128xf32>
      %205 = arith.select %202, %204, %194 : vector<128x128xi1>, vector<128x128xf32>
      %206 = vector.extract_strided_slice %139 {offsets = [6, 0], sizes = [1, 1], strides = [1, 1]} : vector<64x1xf32> to vector<1x1xf32>
      %c6_i32 = arith.constant 6 : i32
      %207 = vector.broadcast %c6_i32 : i32 to vector<128x128xi32>
      %208 = arith.cmpi eq, %142, %207 : vector<128x128xi32>
      %209 = vector.shape_cast %206 : vector<1x1xf32> to vector<1x1xf32>
      %210 = vector.broadcast %209 : vector<1x1xf32> to vector<128x128xf32>
      %211 = arith.select %208, %210, %200 : vector<128x128xi1>, vector<128x128xf32>
      %c-122_i32 = arith.constant -122 : i32
      %212 = vector.broadcast %c-122_i32 : i32 to vector<128x128xi32>
      %213 = arith.cmpi eq, %142, %212 : vector<128x128xi32>
      %214 = vector.shape_cast %206 : vector<1x1xf32> to vector<1x1xf32>
      %215 = vector.broadcast %214 : vector<1x1xf32> to vector<128x128xf32>
      %216 = arith.select %213, %215, %205 : vector<128x128xi1>, vector<128x128xf32>
      %217 = vector.extract_strided_slice %139 {offsets = [7, 0], sizes = [1, 1], strides = [1, 1]} : vector<64x1xf32> to vector<1x1xf32>
      %c7_i32 = arith.constant 7 : i32
      %218 = vector.broadcast %c7_i32 : i32 to vector<128x128xi32>
      %219 = arith.cmpi eq, %142, %218 : vector<128x128xi32>
      %220 = vector.shape_cast %217 : vector<1x1xf32> to vector<1x1xf32>
      %221 = vector.broadcast %220 : vector<1x1xf32> to vector<128x128xf32>
      %222 = arith.select %219, %221, %211 : vector<128x128xi1>, vector<128x128xf32>
      %c-121_i32 = arith.constant -121 : i32
      %223 = vector.broadcast %c-121_i32 : i32 to vector<128x128xi32>
      %224 = arith.cmpi eq, %142, %223 : vector<128x128xi32>
      %225 = vector.shape_cast %217 : vector<1x1xf32> to vector<1x1xf32>
      %226 = vector.broadcast %225 : vector<1x1xf32> to vector<128x128xf32>
      %227 = arith.select %224, %226, %216 : vector<128x128xi1>, vector<128x128xf32>
      %228 = vector.extract_strided_slice %139 {offsets = [8, 0], sizes = [1, 1], strides = [1, 1]} : vector<64x1xf32> to vector<1x1xf32>
      %c8_i32 = arith.constant 8 : i32
      %229 = vector.broadcast %c8_i32 : i32 to vector<128x128xi32>
      %230 = arith.cmpi eq, %142, %229 : vector<128x128xi32>
      %231 = vector.shape_cast %228 : vector<1x1xf32> to vector<1x1xf32>
      %232 = vector.broadcast %231 : vector<1x1xf32> to vector<128x128xf32>
      %233 = arith.select %230, %232, %222 : vector<128x128xi1>, vector<128x128xf32>
      %c-120_i32 = arith.constant -120 : i32
      %234 = vector.broadcast %c-120_i32 : i32 to vector<128x128xi32>
      %235 = arith.cmpi eq, %142, %234 : vector<128x128xi32>
      %236 = vector.shape_cast %228 : vector<1x1xf32> to vector<1x1xf32>
      %237 = vector.broadcast %236 : vector<1x1xf32> to vector<128x128xf32>
      %238 = arith.select %235, %237, %227 : vector<128x128xi1>, vector<128x128xf32>
      %239 = vector.extract_strided_slice %139 {offsets = [9, 0], sizes = [1, 1], strides = [1, 1]} : vector<64x1xf32> to vector<1x1xf32>
      %c9_i32 = arith.constant 9 : i32
      %240 = vector.broadcast %c9_i32 : i32 to vector<128x128xi32>
      %241 = arith.cmpi eq, %142, %240 : vector<128x128xi32>
      %242 = vector.shape_cast %239 : vector<1x1xf32> to vector<1x1xf32>
      %243 = vector.broadcast %242 : vector<1x1xf32> to vector<128x128xf32>
      %244 = arith.select %241, %243, %233 : vector<128x128xi1>, vector<128x128xf32>
      %c-119_i32 = arith.constant -119 : i32
      %245 = vector.broadcast %c-119_i32 : i32 to vector<128x128xi32>
      %246 = arith.cmpi eq, %142, %245 : vector<128x128xi32>
      %247 = vector.shape_cast %239 : vector<1x1xf32> to vector<1x1xf32>
      %248 = vector.broadcast %247 : vector<1x1xf32> to vector<128x128xf32>
      %249 = arith.select %246, %248, %238 : vector<128x128xi1>, vector<128x128xf32>
      %250 = vector.extract_strided_slice %139 {offsets = [10, 0], sizes = [1, 1], strides = [1, 1]} : vector<64x1xf32> to vector<1x1xf32>
      %c10_i32 = arith.constant 10 : i32
      %251 = vector.broadcast %c10_i32 : i32 to vector<128x128xi32>
      %252 = arith.cmpi eq, %142, %251 : vector<128x128xi32>
      %253 = vector.shape_cast %250 : vector<1x1xf32> to vector<1x1xf32>
      %254 = vector.broadcast %253 : vector<1x1xf32> to vector<128x128xf32>
      %255 = arith.select %252, %254, %244 : vector<128x128xi1>, vector<128x128xf32>
      %c-118_i32 = arith.constant -118 : i32
      %256 = vector.broadcast %c-118_i32 : i32 to vector<128x128xi32>
      %257 = arith.cmpi eq, %142, %256 : vector<128x128xi32>
      %258 = vector.shape_cast %250 : vector<1x1xf32> to vector<1x1xf32>
      %259 = vector.broadcast %258 : vector<1x1xf32> to vector<128x128xf32>
      %260 = arith.select %257, %259, %249 : vector<128x128xi1>, vector<128x128xf32>
      %261 = vector.extract_strided_slice %139 {offsets = [11, 0], sizes = [1, 1], strides = [1, 1]} : vector<64x1xf32> to vector<1x1xf32>
      %c11_i32 = arith.constant 11 : i32
      %262 = vector.broadcast %c11_i32 : i32 to vector<128x128xi32>
      %263 = arith.cmpi eq, %142, %262 : vector<128x128xi32>
      %264 = vector.shape_cast %261 : vector<1x1xf32> to vector<1x1xf32>
      %265 = vector.broadcast %264 : vector<1x1xf32> to vector<128x128xf32>
      %266 = arith.select %263, %265, %255 : vector<128x128xi1>, vector<128x128xf32>
      %c-117_i32 = arith.constant -117 : i32
      %267 = vector.broadcast %c-117_i32 : i32 to vector<128x128xi32>
      %268 = arith.cmpi eq, %142, %267 : vector<128x128xi32>
      %269 = vector.shape_cast %261 : vector<1x1xf32> to vector<1x1xf32>
      %270 = vector.broadcast %269 : vector<1x1xf32> to vector<128x128xf32>
      %271 = arith.select %268, %270, %260 : vector<128x128xi1>, vector<128x128xf32>
      %272 = vector.extract_strided_slice %139 {offsets = [12, 0], sizes = [1, 1], strides = [1, 1]} : vector<64x1xf32> to vector<1x1xf32>
      %c12_i32 = arith.constant 12 : i32
      %273 = vector.broadcast %c12_i32 : i32 to vector<128x128xi32>
      %274 = arith.cmpi eq, %142, %273 : vector<128x128xi32>
      %275 = vector.shape_cast %272 : vector<1x1xf32> to vector<1x1xf32>
      %276 = vector.broadcast %275 : vector<1x1xf32> to vector<128x128xf32>
      %277 = arith.select %274, %276, %266 : vector<128x128xi1>, vector<128x128xf32>
      %c-116_i32 = arith.constant -116 : i32
      %278 = vector.broadcast %c-116_i32 : i32 to vector<128x128xi32>
      %279 = arith.cmpi eq, %142, %278 : vector<128x128xi32>
      %280 = vector.shape_cast %272 : vector<1x1xf32> to vector<1x1xf32>
      %281 = vector.broadcast %280 : vector<1x1xf32> to vector<128x128xf32>
      %282 = arith.select %279, %281, %271 : vector<128x128xi1>, vector<128x128xf32>
      %283 = vector.extract_strided_slice %139 {offsets = [13, 0], sizes = [1, 1], strides = [1, 1]} : vector<64x1xf32> to vector<1x1xf32>
      %c13_i32 = arith.constant 13 : i32
      %284 = vector.broadcast %c13_i32 : i32 to vector<128x128xi32>
      %285 = arith.cmpi eq, %142, %284 : vector<128x128xi32>
      %286 = vector.shape_cast %283 : vector<1x1xf32> to vector<1x1xf32>
      %287 = vector.broadcast %286 : vector<1x1xf32> to vector<128x128xf32>
      %288 = arith.select %285, %287, %277 : vector<128x128xi1>, vector<128x128xf32>
      %c-115_i32 = arith.constant -115 : i32
      %289 = vector.broadcast %c-115_i32 : i32 to vector<128x128xi32>
      %290 = arith.cmpi eq, %142, %289 : vector<128x128xi32>
      %291 = vector.shape_cast %283 : vector<1x1xf32> to vector<1x1xf32>
      %292 = vector.broadcast %291 : vector<1x1xf32> to vector<128x128xf32>
      %293 = arith.select %290, %292, %282 : vector<128x128xi1>, vector<128x128xf32>
      %294 = vector.extract_strided_slice %139 {offsets = [14, 0], sizes = [1, 1], strides = [1, 1]} : vector<64x1xf32> to vector<1x1xf32>
      %c14_i32 = arith.constant 14 : i32
      %295 = vector.broadcast %c14_i32 : i32 to vector<128x128xi32>
      %296 = arith.cmpi eq, %142, %295 : vector<128x128xi32>
      %297 = vector.shape_cast %294 : vector<1x1xf32> to vector<1x1xf32>
      %298 = vector.broadcast %297 : vector<1x1xf32> to vector<128x128xf32>
      %299 = arith.select %296, %298, %288 : vector<128x128xi1>, vector<128x128xf32>
      %c-114_i32 = arith.constant -114 : i32
      %300 = vector.broadcast %c-114_i32 : i32 to vector<128x128xi32>
      %301 = arith.cmpi eq, %142, %300 : vector<128x128xi32>
      %302 = vector.shape_cast %294 : vector<1x1xf32> to vector<1x1xf32>
      %303 = vector.broadcast %302 : vector<1x1xf32> to vector<128x128xf32>
      %304 = arith.select %301, %303, %293 : vector<128x128xi1>, vector<128x128xf32>
      %305 = vector.extract_strided_slice %139 {offsets = [15, 0], sizes = [1, 1], strides = [1, 1]} : vector<64x1xf32> to vector<1x1xf32>
      %c15_i32 = arith.constant 15 : i32
      %306 = vector.broadcast %c15_i32 : i32 to vector<128x128xi32>
      %307 = arith.cmpi eq, %142, %306 : vector<128x128xi32>
      %308 = vector.shape_cast %305 : vector<1x1xf32> to vector<1x1xf32>
      %309 = vector.broadcast %308 : vector<1x1xf32> to vector<128x128xf32>
      %310 = arith.select %307, %309, %299 : vector<128x128xi1>, vector<128x128xf32>
      %c-113_i32 = arith.constant -113 : i32
      %311 = vector.broadcast %c-113_i32 : i32 to vector<128x128xi32>
      %312 = arith.cmpi eq, %142, %311 : vector<128x128xi32>
      %313 = vector.shape_cast %305 : vector<1x1xf32> to vector<1x1xf32>
      %314 = vector.broadcast %313 : vector<1x1xf32> to vector<128x128xf32>
      %315 = arith.select %312, %314, %304 : vector<128x128xi1>, vector<128x128xf32>
      %316 = vector.extract_strided_slice %139 {offsets = [16, 0], sizes = [1, 1], strides = [1, 1]} : vector<64x1xf32> to vector<1x1xf32>
      %c16_i32 = arith.constant 16 : i32
      %317 = vector.broadcast %c16_i32 : i32 to vector<128x128xi32>
      %318 = arith.cmpi eq, %142, %317 : vector<128x128xi32>
      %319 = vector.shape_cast %316 : vector<1x1xf32> to vector<1x1xf32>
      %320 = vector.broadcast %319 : vector<1x1xf32> to vector<128x128xf32>
      %321 = arith.select %318, %320, %310 : vector<128x128xi1>, vector<128x128xf32>
      %c-112_i32 = arith.constant -112 : i32
      %322 = vector.broadcast %c-112_i32 : i32 to vector<128x128xi32>
      %323 = arith.cmpi eq, %142, %322 : vector<128x128xi32>
      %324 = vector.shape_cast %316 : vector<1x1xf32> to vector<1x1xf32>
      %325 = vector.broadcast %324 : vector<1x1xf32> to vector<128x128xf32>
      %326 = arith.select %323, %325, %315 : vector<128x128xi1>, vector<128x128xf32>
      %327 = vector.extract_strided_slice %139 {offsets = [17, 0], sizes = [1, 1], strides = [1, 1]} : vector<64x1xf32> to vector<1x1xf32>
      %c17_i32 = arith.constant 17 : i32
      %328 = vector.broadcast %c17_i32 : i32 to vector<128x128xi32>
      %329 = arith.cmpi eq, %142, %328 : vector<128x128xi32>
      %330 = vector.shape_cast %327 : vector<1x1xf32> to vector<1x1xf32>
      %331 = vector.broadcast %330 : vector<1x1xf32> to vector<128x128xf32>
      %332 = arith.select %329, %331, %321 : vector<128x128xi1>, vector<128x128xf32>
      %c-111_i32 = arith.constant -111 : i32
      %333 = vector.broadcast %c-111_i32 : i32 to vector<128x128xi32>
      %334 = arith.cmpi eq, %142, %333 : vector<128x128xi32>
      %335 = vector.shape_cast %327 : vector<1x1xf32> to vector<1x1xf32>
      %336 = vector.broadcast %335 : vector<1x1xf32> to vector<128x128xf32>
      %337 = arith.select %334, %336, %326 : vector<128x128xi1>, vector<128x128xf32>
      %338 = vector.extract_strided_slice %139 {offsets = [18, 0], sizes = [1, 1], strides = [1, 1]} : vector<64x1xf32> to vector<1x1xf32>
      %c18_i32 = arith.constant 18 : i32
      %339 = vector.broadcast %c18_i32 : i32 to vector<128x128xi32>
      %340 = arith.cmpi eq, %142, %339 : vector<128x128xi32>
      %341 = vector.shape_cast %338 : vector<1x1xf32> to vector<1x1xf32>
      %342 = vector.broadcast %341 : vector<1x1xf32> to vector<128x128xf32>
      %343 = arith.select %340, %342, %332 : vector<128x128xi1>, vector<128x128xf32>
      %c-110_i32 = arith.constant -110 : i32
      %344 = vector.broadcast %c-110_i32 : i32 to vector<128x128xi32>
      %345 = arith.cmpi eq, %142, %344 : vector<128x128xi32>
      %346 = vector.shape_cast %338 : vector<1x1xf32> to vector<1x1xf32>
      %347 = vector.broadcast %346 : vector<1x1xf32> to vector<128x128xf32>
      %348 = arith.select %345, %347, %337 : vector<128x128xi1>, vector<128x128xf32>
      %349 = vector.extract_strided_slice %139 {offsets = [19, 0], sizes = [1, 1], strides = [1, 1]} : vector<64x1xf32> to vector<1x1xf32>
      %c19_i32 = arith.constant 19 : i32
      %350 = vector.broadcast %c19_i32 : i32 to vector<128x128xi32>
      %351 = arith.cmpi eq, %142, %350 : vector<128x128xi32>
      %352 = vector.shape_cast %349 : vector<1x1xf32> to vector<1x1xf32>
      %353 = vector.broadcast %352 : vector<1x1xf32> to vector<128x128xf32>
      %354 = arith.select %351, %353, %343 : vector<128x128xi1>, vector<128x128xf32>
      %c-109_i32 = arith.constant -109 : i32
      %355 = vector.broadcast %c-109_i32 : i32 to vector<128x128xi32>
      %356 = arith.cmpi eq, %142, %355 : vector<128x128xi32>
      %357 = vector.shape_cast %349 : vector<1x1xf32> to vector<1x1xf32>
      %358 = vector.broadcast %357 : vector<1x1xf32> to vector<128x128xf32>
      %359 = arith.select %356, %358, %348 : vector<128x128xi1>, vector<128x128xf32>
      %360 = vector.extract_strided_slice %139 {offsets = [20, 0], sizes = [1, 1], strides = [1, 1]} : vector<64x1xf32> to vector<1x1xf32>
      %c20_i32 = arith.constant 20 : i32
      %361 = vector.broadcast %c20_i32 : i32 to vector<128x128xi32>
      %362 = arith.cmpi eq, %142, %361 : vector<128x128xi32>
      %363 = vector.shape_cast %360 : vector<1x1xf32> to vector<1x1xf32>
      %364 = vector.broadcast %363 : vector<1x1xf32> to vector<128x128xf32>
      %365 = arith.select %362, %364, %354 : vector<128x128xi1>, vector<128x128xf32>
      %c-108_i32 = arith.constant -108 : i32
      %366 = vector.broadcast %c-108_i32 : i32 to vector<128x128xi32>
      %367 = arith.cmpi eq, %142, %366 : vector<128x128xi32>
      %368 = vector.shape_cast %360 : vector<1x1xf32> to vector<1x1xf32>
      %369 = vector.broadcast %368 : vector<1x1xf32> to vector<128x128xf32>
      %370 = arith.select %367, %369, %359 : vector<128x128xi1>, vector<128x128xf32>
      %371 = vector.extract_strided_slice %139 {offsets = [21, 0], sizes = [1, 1], strides = [1, 1]} : vector<64x1xf32> to vector<1x1xf32>
      %c21_i32 = arith.constant 21 : i32
      %372 = vector.broadcast %c21_i32 : i32 to vector<128x128xi32>
      %373 = arith.cmpi eq, %142, %372 : vector<128x128xi32>
      %374 = vector.shape_cast %371 : vector<1x1xf32> to vector<1x1xf32>
      %375 = vector.broadcast %374 : vector<1x1xf32> to vector<128x128xf32>
      %376 = arith.select %373, %375, %365 : vector<128x128xi1>, vector<128x128xf32>
      %c-107_i32 = arith.constant -107 : i32
      %377 = vector.broadcast %c-107_i32 : i32 to vector<128x128xi32>
      %378 = arith.cmpi eq, %142, %377 : vector<128x128xi32>
      %379 = vector.shape_cast %371 : vector<1x1xf32> to vector<1x1xf32>
      %380 = vector.broadcast %379 : vector<1x1xf32> to vector<128x128xf32>
      %381 = arith.select %378, %380, %370 : vector<128x128xi1>, vector<128x128xf32>
      %382 = vector.extract_strided_slice %139 {offsets = [22, 0], sizes = [1, 1], strides = [1, 1]} : vector<64x1xf32> to vector<1x1xf32>
      %c22_i32 = arith.constant 22 : i32
      %383 = vector.broadcast %c22_i32 : i32 to vector<128x128xi32>
      %384 = arith.cmpi eq, %142, %383 : vector<128x128xi32>
      %385 = vector.shape_cast %382 : vector<1x1xf32> to vector<1x1xf32>
      %386 = vector.broadcast %385 : vector<1x1xf32> to vector<128x128xf32>
      %387 = arith.select %384, %386, %376 : vector<128x128xi1>, vector<128x128xf32>
      %c-106_i32 = arith.constant -106 : i32
      %388 = vector.broadcast %c-106_i32 : i32 to vector<128x128xi32>
      %389 = arith.cmpi eq, %142, %388 : vector<128x128xi32>
      %390 = vector.shape_cast %382 : vector<1x1xf32> to vector<1x1xf32>
      %391 = vector.broadcast %390 : vector<1x1xf32> to vector<128x128xf32>
      %392 = arith.select %389, %391, %381 : vector<128x128xi1>, vector<128x128xf32>
      %393 = vector.extract_strided_slice %139 {offsets = [23, 0], sizes = [1, 1], strides = [1, 1]} : vector<64x1xf32> to vector<1x1xf32>
      %c23_i32 = arith.constant 23 : i32
      %394 = vector.broadcast %c23_i32 : i32 to vector<128x128xi32>
      %395 = arith.cmpi eq, %142, %394 : vector<128x128xi32>
      %396 = vector.shape_cast %393 : vector<1x1xf32> to vector<1x1xf32>
      %397 = vector.broadcast %396 : vector<1x1xf32> to vector<128x128xf32>
      %398 = arith.select %395, %397, %387 : vector<128x128xi1>, vector<128x128xf32>
      %c-105_i32 = arith.constant -105 : i32
      %399 = vector.broadcast %c-105_i32 : i32 to vector<128x128xi32>
      %400 = arith.cmpi eq, %142, %399 : vector<128x128xi32>
      %401 = vector.shape_cast %393 : vector<1x1xf32> to vector<1x1xf32>
      %402 = vector.broadcast %401 : vector<1x1xf32> to vector<128x128xf32>
      %403 = arith.select %400, %402, %392 : vector<128x128xi1>, vector<128x128xf32>
      %404 = vector.extract_strided_slice %139 {offsets = [24, 0], sizes = [1, 1], strides = [1, 1]} : vector<64x1xf32> to vector<1x1xf32>
      %c24_i32 = arith.constant 24 : i32
      %405 = vector.broadcast %c24_i32 : i32 to vector<128x128xi32>
      %406 = arith.cmpi eq, %142, %405 : vector<128x128xi32>
      %407 = vector.shape_cast %404 : vector<1x1xf32> to vector<1x1xf32>
      %408 = vector.broadcast %407 : vector<1x1xf32> to vector<128x128xf32>
      %409 = arith.select %406, %408, %398 : vector<128x128xi1>, vector<128x128xf32>
      %c-104_i32 = arith.constant -104 : i32
      %410 = vector.broadcast %c-104_i32 : i32 to vector<128x128xi32>
      %411 = arith.cmpi eq, %142, %410 : vector<128x128xi32>
      %412 = vector.shape_cast %404 : vector<1x1xf32> to vector<1x1xf32>
      %413 = vector.broadcast %412 : vector<1x1xf32> to vector<128x128xf32>
      %414 = arith.select %411, %413, %403 : vector<128x128xi1>, vector<128x128xf32>
      %415 = vector.extract_strided_slice %139 {offsets = [25, 0], sizes = [1, 1], strides = [1, 1]} : vector<64x1xf32> to vector<1x1xf32>
      %c25_i32 = arith.constant 25 : i32
      %416 = vector.broadcast %c25_i32 : i32 to vector<128x128xi32>
      %417 = arith.cmpi eq, %142, %416 : vector<128x128xi32>
      %418 = vector.shape_cast %415 : vector<1x1xf32> to vector<1x1xf32>
      %419 = vector.broadcast %418 : vector<1x1xf32> to vector<128x128xf32>
      %420 = arith.select %417, %419, %409 : vector<128x128xi1>, vector<128x128xf32>
      %c-103_i32 = arith.constant -103 : i32
      %421 = vector.broadcast %c-103_i32 : i32 to vector<128x128xi32>
      %422 = arith.cmpi eq, %142, %421 : vector<128x128xi32>
      %423 = vector.shape_cast %415 : vector<1x1xf32> to vector<1x1xf32>
      %424 = vector.broadcast %423 : vector<1x1xf32> to vector<128x128xf32>
      %425 = arith.select %422, %424, %414 : vector<128x128xi1>, vector<128x128xf32>
      %426 = vector.extract_strided_slice %139 {offsets = [26, 0], sizes = [1, 1], strides = [1, 1]} : vector<64x1xf32> to vector<1x1xf32>
      %c26_i32 = arith.constant 26 : i32
      %427 = vector.broadcast %c26_i32 : i32 to vector<128x128xi32>
      %428 = arith.cmpi eq, %142, %427 : vector<128x128xi32>
      %429 = vector.shape_cast %426 : vector<1x1xf32> to vector<1x1xf32>
      %430 = vector.broadcast %429 : vector<1x1xf32> to vector<128x128xf32>
      %431 = arith.select %428, %430, %420 : vector<128x128xi1>, vector<128x128xf32>
      %c-102_i32 = arith.constant -102 : i32
      %432 = vector.broadcast %c-102_i32 : i32 to vector<128x128xi32>
      %433 = arith.cmpi eq, %142, %432 : vector<128x128xi32>
      %434 = vector.shape_cast %426 : vector<1x1xf32> to vector<1x1xf32>
      %435 = vector.broadcast %434 : vector<1x1xf32> to vector<128x128xf32>
      %436 = arith.select %433, %435, %425 : vector<128x128xi1>, vector<128x128xf32>
      %437 = vector.extract_strided_slice %139 {offsets = [27, 0], sizes = [1, 1], strides = [1, 1]} : vector<64x1xf32> to vector<1x1xf32>
      %c27_i32 = arith.constant 27 : i32
      %438 = vector.broadcast %c27_i32 : i32 to vector<128x128xi32>
      %439 = arith.cmpi eq, %142, %438 : vector<128x128xi32>
      %440 = vector.shape_cast %437 : vector<1x1xf32> to vector<1x1xf32>
      %441 = vector.broadcast %440 : vector<1x1xf32> to vector<128x128xf32>
      %442 = arith.select %439, %441, %431 : vector<128x128xi1>, vector<128x128xf32>
      %c-101_i32 = arith.constant -101 : i32
      %443 = vector.broadcast %c-101_i32 : i32 to vector<128x128xi32>
      %444 = arith.cmpi eq, %142, %443 : vector<128x128xi32>
      %445 = vector.shape_cast %437 : vector<1x1xf32> to vector<1x1xf32>
      %446 = vector.broadcast %445 : vector<1x1xf32> to vector<128x128xf32>
      %447 = arith.select %444, %446, %436 : vector<128x128xi1>, vector<128x128xf32>
      %448 = vector.extract_strided_slice %139 {offsets = [28, 0], sizes = [1, 1], strides = [1, 1]} : vector<64x1xf32> to vector<1x1xf32>
      %c28_i32 = arith.constant 28 : i32
      %449 = vector.broadcast %c28_i32 : i32 to vector<128x128xi32>
      %450 = arith.cmpi eq, %142, %449 : vector<128x128xi32>
      %451 = vector.shape_cast %448 : vector<1x1xf32> to vector<1x1xf32>
      %452 = vector.broadcast %451 : vector<1x1xf32> to vector<128x128xf32>
      %453 = arith.select %450, %452, %442 : vector<128x128xi1>, vector<128x128xf32>
      %c-100_i32 = arith.constant -100 : i32
      %454 = vector.broadcast %c-100_i32 : i32 to vector<128x128xi32>
      %455 = arith.cmpi eq, %142, %454 : vector<128x128xi32>
      %456 = vector.shape_cast %448 : vector<1x1xf32> to vector<1x1xf32>
      %457 = vector.broadcast %456 : vector<1x1xf32> to vector<128x128xf32>
      %458 = arith.select %455, %457, %447 : vector<128x128xi1>, vector<128x128xf32>
      %459 = vector.extract_strided_slice %139 {offsets = [29, 0], sizes = [1, 1], strides = [1, 1]} : vector<64x1xf32> to vector<1x1xf32>
      %c29_i32 = arith.constant 29 : i32
      %460 = vector.broadcast %c29_i32 : i32 to vector<128x128xi32>
      %461 = arith.cmpi eq, %142, %460 : vector<128x128xi32>
      %462 = vector.shape_cast %459 : vector<1x1xf32> to vector<1x1xf32>
      %463 = vector.broadcast %462 : vector<1x1xf32> to vector<128x128xf32>
      %464 = arith.select %461, %463, %453 : vector<128x128xi1>, vector<128x128xf32>
      %c-99_i32 = arith.constant -99 : i32
      %465 = vector.broadcast %c-99_i32 : i32 to vector<128x128xi32>
      %466 = arith.cmpi eq, %142, %465 : vector<128x128xi32>
      %467 = vector.shape_cast %459 : vector<1x1xf32> to vector<1x1xf32>
      %468 = vector.broadcast %467 : vector<1x1xf32> to vector<128x128xf32>
      %469 = arith.select %466, %468, %458 : vector<128x128xi1>, vector<128x128xf32>
      %470 = vector.extract_strided_slice %139 {offsets = [30, 0], sizes = [1, 1], strides = [1, 1]} : vector<64x1xf32> to vector<1x1xf32>
      %c30_i32 = arith.constant 30 : i32
      %471 = vector.broadcast %c30_i32 : i32 to vector<128x128xi32>
      %472 = arith.cmpi eq, %142, %471 : vector<128x128xi32>
      %473 = vector.shape_cast %470 : vector<1x1xf32> to vector<1x1xf32>
      %474 = vector.broadcast %473 : vector<1x1xf32> to vector<128x128xf32>
      %475 = arith.select %472, %474, %464 : vector<128x128xi1>, vector<128x128xf32>
      %c-98_i32 = arith.constant -98 : i32
      %476 = vector.broadcast %c-98_i32 : i32 to vector<128x128xi32>
      %477 = arith.cmpi eq, %142, %476 : vector<128x128xi32>
      %478 = vector.shape_cast %470 : vector<1x1xf32> to vector<1x1xf32>
      %479 = vector.broadcast %478 : vector<1x1xf32> to vector<128x128xf32>
      %480 = arith.select %477, %479, %469 : vector<128x128xi1>, vector<128x128xf32>
      %481 = vector.extract_strided_slice %139 {offsets = [31, 0], sizes = [1, 1], strides = [1, 1]} : vector<64x1xf32> to vector<1x1xf32>
      %c31_i32 = arith.constant 31 : i32
      %482 = vector.broadcast %c31_i32 : i32 to vector<128x128xi32>
      %483 = arith.cmpi eq, %142, %482 : vector<128x128xi32>
      %484 = vector.shape_cast %481 : vector<1x1xf32> to vector<1x1xf32>
      %485 = vector.broadcast %484 : vector<1x1xf32> to vector<128x128xf32>
      %486 = arith.select %483, %485, %475 : vector<128x128xi1>, vector<128x128xf32>
      %c-97_i32 = arith.constant -97 : i32
      %487 = vector.broadcast %c-97_i32 : i32 to vector<128x128xi32>
      %488 = arith.cmpi eq, %142, %487 : vector<128x128xi32>
      %489 = vector.shape_cast %481 : vector<1x1xf32> to vector<1x1xf32>
      %490 = vector.broadcast %489 : vector<1x1xf32> to vector<128x128xf32>
      %491 = arith.select %488, %490, %480 : vector<128x128xi1>, vector<128x128xf32>
      %492 = vector.extract_strided_slice %139 {offsets = [32, 0], sizes = [1, 1], strides = [1, 1]} : vector<64x1xf32> to vector<1x1xf32>
      %c32_i32 = arith.constant 32 : i32
      %493 = vector.broadcast %c32_i32 : i32 to vector<128x128xi32>
      %494 = arith.cmpi eq, %142, %493 : vector<128x128xi32>
      %495 = vector.shape_cast %492 : vector<1x1xf32> to vector<1x1xf32>
      %496 = vector.broadcast %495 : vector<1x1xf32> to vector<128x128xf32>
      %497 = arith.select %494, %496, %486 : vector<128x128xi1>, vector<128x128xf32>
      %c-96_i32 = arith.constant -96 : i32
      %498 = vector.broadcast %c-96_i32 : i32 to vector<128x128xi32>
      %499 = arith.cmpi eq, %142, %498 : vector<128x128xi32>
      %500 = vector.shape_cast %492 : vector<1x1xf32> to vector<1x1xf32>
      %501 = vector.broadcast %500 : vector<1x1xf32> to vector<128x128xf32>
      %502 = arith.select %499, %501, %491 : vector<128x128xi1>, vector<128x128xf32>
      %503 = vector.extract_strided_slice %139 {offsets = [33, 0], sizes = [1, 1], strides = [1, 1]} : vector<64x1xf32> to vector<1x1xf32>
      %c33_i32 = arith.constant 33 : i32
      %504 = vector.broadcast %c33_i32 : i32 to vector<128x128xi32>
      %505 = arith.cmpi eq, %142, %504 : vector<128x128xi32>
      %506 = vector.shape_cast %503 : vector<1x1xf32> to vector<1x1xf32>
      %507 = vector.broadcast %506 : vector<1x1xf32> to vector<128x128xf32>
      %508 = arith.select %505, %507, %497 : vector<128x128xi1>, vector<128x128xf32>
      %c-95_i32 = arith.constant -95 : i32
      %509 = vector.broadcast %c-95_i32 : i32 to vector<128x128xi32>
      %510 = arith.cmpi eq, %142, %509 : vector<128x128xi32>
      %511 = vector.shape_cast %503 : vector<1x1xf32> to vector<1x1xf32>
      %512 = vector.broadcast %511 : vector<1x1xf32> to vector<128x128xf32>
      %513 = arith.select %510, %512, %502 : vector<128x128xi1>, vector<128x128xf32>
      %514 = vector.extract_strided_slice %139 {offsets = [34, 0], sizes = [1, 1], strides = [1, 1]} : vector<64x1xf32> to vector<1x1xf32>
      %c34_i32 = arith.constant 34 : i32
      %515 = vector.broadcast %c34_i32 : i32 to vector<128x128xi32>
      %516 = arith.cmpi eq, %142, %515 : vector<128x128xi32>
      %517 = vector.shape_cast %514 : vector<1x1xf32> to vector<1x1xf32>
      %518 = vector.broadcast %517 : vector<1x1xf32> to vector<128x128xf32>
      %519 = arith.select %516, %518, %508 : vector<128x128xi1>, vector<128x128xf32>
      %c-94_i32 = arith.constant -94 : i32
      %520 = vector.broadcast %c-94_i32 : i32 to vector<128x128xi32>
      %521 = arith.cmpi eq, %142, %520 : vector<128x128xi32>
      %522 = vector.shape_cast %514 : vector<1x1xf32> to vector<1x1xf32>
      %523 = vector.broadcast %522 : vector<1x1xf32> to vector<128x128xf32>
      %524 = arith.select %521, %523, %513 : vector<128x128xi1>, vector<128x128xf32>
      %525 = vector.extract_strided_slice %139 {offsets = [35, 0], sizes = [1, 1], strides = [1, 1]} : vector<64x1xf32> to vector<1x1xf32>
      %c35_i32 = arith.constant 35 : i32
      %526 = vector.broadcast %c35_i32 : i32 to vector<128x128xi32>
      %527 = arith.cmpi eq, %142, %526 : vector<128x128xi32>
      %528 = vector.shape_cast %525 : vector<1x1xf32> to vector<1x1xf32>
      %529 = vector.broadcast %528 : vector<1x1xf32> to vector<128x128xf32>
      %530 = arith.select %527, %529, %519 : vector<128x128xi1>, vector<128x128xf32>
      %c-93_i32 = arith.constant -93 : i32
      %531 = vector.broadcast %c-93_i32 : i32 to vector<128x128xi32>
      %532 = arith.cmpi eq, %142, %531 : vector<128x128xi32>
      %533 = vector.shape_cast %525 : vector<1x1xf32> to vector<1x1xf32>
      %534 = vector.broadcast %533 : vector<1x1xf32> to vector<128x128xf32>
      %535 = arith.select %532, %534, %524 : vector<128x128xi1>, vector<128x128xf32>
      %536 = vector.extract_strided_slice %139 {offsets = [36, 0], sizes = [1, 1], strides = [1, 1]} : vector<64x1xf32> to vector<1x1xf32>
      %c36_i32 = arith.constant 36 : i32
      %537 = vector.broadcast %c36_i32 : i32 to vector<128x128xi32>
      %538 = arith.cmpi eq, %142, %537 : vector<128x128xi32>
      %539 = vector.shape_cast %536 : vector<1x1xf32> to vector<1x1xf32>
      %540 = vector.broadcast %539 : vector<1x1xf32> to vector<128x128xf32>
      %541 = arith.select %538, %540, %530 : vector<128x128xi1>, vector<128x128xf32>
      %c-92_i32 = arith.constant -92 : i32
      %542 = vector.broadcast %c-92_i32 : i32 to vector<128x128xi32>
      %543 = arith.cmpi eq, %142, %542 : vector<128x128xi32>
      %544 = vector.shape_cast %536 : vector<1x1xf32> to vector<1x1xf32>
      %545 = vector.broadcast %544 : vector<1x1xf32> to vector<128x128xf32>
      %546 = arith.select %543, %545, %535 : vector<128x128xi1>, vector<128x128xf32>
      %547 = vector.extract_strided_slice %139 {offsets = [37, 0], sizes = [1, 1], strides = [1, 1]} : vector<64x1xf32> to vector<1x1xf32>
      %c37_i32 = arith.constant 37 : i32
      %548 = vector.broadcast %c37_i32 : i32 to vector<128x128xi32>
      %549 = arith.cmpi eq, %142, %548 : vector<128x128xi32>
      %550 = vector.shape_cast %547 : vector<1x1xf32> to vector<1x1xf32>
      %551 = vector.broadcast %550 : vector<1x1xf32> to vector<128x128xf32>
      %552 = arith.select %549, %551, %541 : vector<128x128xi1>, vector<128x128xf32>
      %c-91_i32 = arith.constant -91 : i32
      %553 = vector.broadcast %c-91_i32 : i32 to vector<128x128xi32>
      %554 = arith.cmpi eq, %142, %553 : vector<128x128xi32>
      %555 = vector.shape_cast %547 : vector<1x1xf32> to vector<1x1xf32>
      %556 = vector.broadcast %555 : vector<1x1xf32> to vector<128x128xf32>
      %557 = arith.select %554, %556, %546 : vector<128x128xi1>, vector<128x128xf32>
      %558 = vector.extract_strided_slice %139 {offsets = [38, 0], sizes = [1, 1], strides = [1, 1]} : vector<64x1xf32> to vector<1x1xf32>
      %c38_i32 = arith.constant 38 : i32
      %559 = vector.broadcast %c38_i32 : i32 to vector<128x128xi32>
      %560 = arith.cmpi eq, %142, %559 : vector<128x128xi32>
      %561 = vector.shape_cast %558 : vector<1x1xf32> to vector<1x1xf32>
      %562 = vector.broadcast %561 : vector<1x1xf32> to vector<128x128xf32>
      %563 = arith.select %560, %562, %552 : vector<128x128xi1>, vector<128x128xf32>
      %c-90_i32 = arith.constant -90 : i32
      %564 = vector.broadcast %c-90_i32 : i32 to vector<128x128xi32>
      %565 = arith.cmpi eq, %142, %564 : vector<128x128xi32>
      %566 = vector.shape_cast %558 : vector<1x1xf32> to vector<1x1xf32>
      %567 = vector.broadcast %566 : vector<1x1xf32> to vector<128x128xf32>
      %568 = arith.select %565, %567, %557 : vector<128x128xi1>, vector<128x128xf32>
      %569 = vector.extract_strided_slice %139 {offsets = [39, 0], sizes = [1, 1], strides = [1, 1]} : vector<64x1xf32> to vector<1x1xf32>
      %c39_i32 = arith.constant 39 : i32
      %570 = vector.broadcast %c39_i32 : i32 to vector<128x128xi32>
      %571 = arith.cmpi eq, %142, %570 : vector<128x128xi32>
      %572 = vector.shape_cast %569 : vector<1x1xf32> to vector<1x1xf32>
      %573 = vector.broadcast %572 : vector<1x1xf32> to vector<128x128xf32>
      %574 = arith.select %571, %573, %563 : vector<128x128xi1>, vector<128x128xf32>
      %c-89_i32 = arith.constant -89 : i32
      %575 = vector.broadcast %c-89_i32 : i32 to vector<128x128xi32>
      %576 = arith.cmpi eq, %142, %575 : vector<128x128xi32>
      %577 = vector.shape_cast %569 : vector<1x1xf32> to vector<1x1xf32>
      %578 = vector.broadcast %577 : vector<1x1xf32> to vector<128x128xf32>
      %579 = arith.select %576, %578, %568 : vector<128x128xi1>, vector<128x128xf32>
      %580 = vector.extract_strided_slice %139 {offsets = [40, 0], sizes = [1, 1], strides = [1, 1]} : vector<64x1xf32> to vector<1x1xf32>
      %c40_i32 = arith.constant 40 : i32
      %581 = vector.broadcast %c40_i32 : i32 to vector<128x128xi32>
      %582 = arith.cmpi eq, %142, %581 : vector<128x128xi32>
      %583 = vector.shape_cast %580 : vector<1x1xf32> to vector<1x1xf32>
      %584 = vector.broadcast %583 : vector<1x1xf32> to vector<128x128xf32>
      %585 = arith.select %582, %584, %574 : vector<128x128xi1>, vector<128x128xf32>
      %c-88_i32 = arith.constant -88 : i32
      %586 = vector.broadcast %c-88_i32 : i32 to vector<128x128xi32>
      %587 = arith.cmpi eq, %142, %586 : vector<128x128xi32>
      %588 = vector.shape_cast %580 : vector<1x1xf32> to vector<1x1xf32>
      %589 = vector.broadcast %588 : vector<1x1xf32> to vector<128x128xf32>
      %590 = arith.select %587, %589, %579 : vector<128x128xi1>, vector<128x128xf32>
      %591 = vector.extract_strided_slice %139 {offsets = [41, 0], sizes = [1, 1], strides = [1, 1]} : vector<64x1xf32> to vector<1x1xf32>
      %c41_i32 = arith.constant 41 : i32
      %592 = vector.broadcast %c41_i32 : i32 to vector<128x128xi32>
      %593 = arith.cmpi eq, %142, %592 : vector<128x128xi32>
      %594 = vector.shape_cast %591 : vector<1x1xf32> to vector<1x1xf32>
      %595 = vector.broadcast %594 : vector<1x1xf32> to vector<128x128xf32>
      %596 = arith.select %593, %595, %585 : vector<128x128xi1>, vector<128x128xf32>
      %c-87_i32 = arith.constant -87 : i32
      %597 = vector.broadcast %c-87_i32 : i32 to vector<128x128xi32>
      %598 = arith.cmpi eq, %142, %597 : vector<128x128xi32>
      %599 = vector.shape_cast %591 : vector<1x1xf32> to vector<1x1xf32>
      %600 = vector.broadcast %599 : vector<1x1xf32> to vector<128x128xf32>
      %601 = arith.select %598, %600, %590 : vector<128x128xi1>, vector<128x128xf32>
      %602 = vector.extract_strided_slice %139 {offsets = [42, 0], sizes = [1, 1], strides = [1, 1]} : vector<64x1xf32> to vector<1x1xf32>
      %c42_i32 = arith.constant 42 : i32
      %603 = vector.broadcast %c42_i32 : i32 to vector<128x128xi32>
      %604 = arith.cmpi eq, %142, %603 : vector<128x128xi32>
      %605 = vector.shape_cast %602 : vector<1x1xf32> to vector<1x1xf32>
      %606 = vector.broadcast %605 : vector<1x1xf32> to vector<128x128xf32>
      %607 = arith.select %604, %606, %596 : vector<128x128xi1>, vector<128x128xf32>
      %c-86_i32 = arith.constant -86 : i32
      %608 = vector.broadcast %c-86_i32 : i32 to vector<128x128xi32>
      %609 = arith.cmpi eq, %142, %608 : vector<128x128xi32>
      %610 = vector.shape_cast %602 : vector<1x1xf32> to vector<1x1xf32>
      %611 = vector.broadcast %610 : vector<1x1xf32> to vector<128x128xf32>
      %612 = arith.select %609, %611, %601 : vector<128x128xi1>, vector<128x128xf32>
      %613 = vector.extract_strided_slice %139 {offsets = [43, 0], sizes = [1, 1], strides = [1, 1]} : vector<64x1xf32> to vector<1x1xf32>
      %c43_i32 = arith.constant 43 : i32
      %614 = vector.broadcast %c43_i32 : i32 to vector<128x128xi32>
      %615 = arith.cmpi eq, %142, %614 : vector<128x128xi32>
      %616 = vector.shape_cast %613 : vector<1x1xf32> to vector<1x1xf32>
      %617 = vector.broadcast %616 : vector<1x1xf32> to vector<128x128xf32>
      %618 = arith.select %615, %617, %607 : vector<128x128xi1>, vector<128x128xf32>
      %c-85_i32 = arith.constant -85 : i32
      %619 = vector.broadcast %c-85_i32 : i32 to vector<128x128xi32>
      %620 = arith.cmpi eq, %142, %619 : vector<128x128xi32>
      %621 = vector.shape_cast %613 : vector<1x1xf32> to vector<1x1xf32>
      %622 = vector.broadcast %621 : vector<1x1xf32> to vector<128x128xf32>
      %623 = arith.select %620, %622, %612 : vector<128x128xi1>, vector<128x128xf32>
      %624 = vector.extract_strided_slice %139 {offsets = [44, 0], sizes = [1, 1], strides = [1, 1]} : vector<64x1xf32> to vector<1x1xf32>
      %c44_i32 = arith.constant 44 : i32
      %625 = vector.broadcast %c44_i32 : i32 to vector<128x128xi32>
      %626 = arith.cmpi eq, %142, %625 : vector<128x128xi32>
      %627 = vector.shape_cast %624 : vector<1x1xf32> to vector<1x1xf32>
      %628 = vector.broadcast %627 : vector<1x1xf32> to vector<128x128xf32>
      %629 = arith.select %626, %628, %618 : vector<128x128xi1>, vector<128x128xf32>
      %c-84_i32 = arith.constant -84 : i32
      %630 = vector.broadcast %c-84_i32 : i32 to vector<128x128xi32>
      %631 = arith.cmpi eq, %142, %630 : vector<128x128xi32>
      %632 = vector.shape_cast %624 : vector<1x1xf32> to vector<1x1xf32>
      %633 = vector.broadcast %632 : vector<1x1xf32> to vector<128x128xf32>
      %634 = arith.select %631, %633, %623 : vector<128x128xi1>, vector<128x128xf32>
      %635 = vector.extract_strided_slice %139 {offsets = [45, 0], sizes = [1, 1], strides = [1, 1]} : vector<64x1xf32> to vector<1x1xf32>
      %c45_i32 = arith.constant 45 : i32
      %636 = vector.broadcast %c45_i32 : i32 to vector<128x128xi32>
      %637 = arith.cmpi eq, %142, %636 : vector<128x128xi32>
      %638 = vector.shape_cast %635 : vector<1x1xf32> to vector<1x1xf32>
      %639 = vector.broadcast %638 : vector<1x1xf32> to vector<128x128xf32>
      %640 = arith.select %637, %639, %629 : vector<128x128xi1>, vector<128x128xf32>
      %c-83_i32 = arith.constant -83 : i32
      %641 = vector.broadcast %c-83_i32 : i32 to vector<128x128xi32>
      %642 = arith.cmpi eq, %142, %641 : vector<128x128xi32>
      %643 = vector.shape_cast %635 : vector<1x1xf32> to vector<1x1xf32>
      %644 = vector.broadcast %643 : vector<1x1xf32> to vector<128x128xf32>
      %645 = arith.select %642, %644, %634 : vector<128x128xi1>, vector<128x128xf32>
      %646 = vector.extract_strided_slice %139 {offsets = [46, 0], sizes = [1, 1], strides = [1, 1]} : vector<64x1xf32> to vector<1x1xf32>
      %c46_i32 = arith.constant 46 : i32
      %647 = vector.broadcast %c46_i32 : i32 to vector<128x128xi32>
      %648 = arith.cmpi eq, %142, %647 : vector<128x128xi32>
      %649 = vector.shape_cast %646 : vector<1x1xf32> to vector<1x1xf32>
      %650 = vector.broadcast %649 : vector<1x1xf32> to vector<128x128xf32>
      %651 = arith.select %648, %650, %640 : vector<128x128xi1>, vector<128x128xf32>
      %c-82_i32 = arith.constant -82 : i32
      %652 = vector.broadcast %c-82_i32 : i32 to vector<128x128xi32>
      %653 = arith.cmpi eq, %142, %652 : vector<128x128xi32>
      %654 = vector.shape_cast %646 : vector<1x1xf32> to vector<1x1xf32>
      %655 = vector.broadcast %654 : vector<1x1xf32> to vector<128x128xf32>
      %656 = arith.select %653, %655, %645 : vector<128x128xi1>, vector<128x128xf32>
      %657 = vector.extract_strided_slice %139 {offsets = [47, 0], sizes = [1, 1], strides = [1, 1]} : vector<64x1xf32> to vector<1x1xf32>
      %c47_i32 = arith.constant 47 : i32
      %658 = vector.broadcast %c47_i32 : i32 to vector<128x128xi32>
      %659 = arith.cmpi eq, %142, %658 : vector<128x128xi32>
      %660 = vector.shape_cast %657 : vector<1x1xf32> to vector<1x1xf32>
      %661 = vector.broadcast %660 : vector<1x1xf32> to vector<128x128xf32>
      %662 = arith.select %659, %661, %651 : vector<128x128xi1>, vector<128x128xf32>
      %c-81_i32 = arith.constant -81 : i32
      %663 = vector.broadcast %c-81_i32 : i32 to vector<128x128xi32>
      %664 = arith.cmpi eq, %142, %663 : vector<128x128xi32>
      %665 = vector.shape_cast %657 : vector<1x1xf32> to vector<1x1xf32>
      %666 = vector.broadcast %665 : vector<1x1xf32> to vector<128x128xf32>
      %667 = arith.select %664, %666, %656 : vector<128x128xi1>, vector<128x128xf32>
      %668 = vector.extract_strided_slice %139 {offsets = [48, 0], sizes = [1, 1], strides = [1, 1]} : vector<64x1xf32> to vector<1x1xf32>
      %c48_i32 = arith.constant 48 : i32
      %669 = vector.broadcast %c48_i32 : i32 to vector<128x128xi32>
      %670 = arith.cmpi eq, %142, %669 : vector<128x128xi32>
      %671 = vector.shape_cast %668 : vector<1x1xf32> to vector<1x1xf32>
      %672 = vector.broadcast %671 : vector<1x1xf32> to vector<128x128xf32>
      %673 = arith.select %670, %672, %662 : vector<128x128xi1>, vector<128x128xf32>
      %c-80_i32 = arith.constant -80 : i32
      %674 = vector.broadcast %c-80_i32 : i32 to vector<128x128xi32>
      %675 = arith.cmpi eq, %142, %674 : vector<128x128xi32>
      %676 = vector.shape_cast %668 : vector<1x1xf32> to vector<1x1xf32>
      %677 = vector.broadcast %676 : vector<1x1xf32> to vector<128x128xf32>
      %678 = arith.select %675, %677, %667 : vector<128x128xi1>, vector<128x128xf32>
      %679 = vector.extract_strided_slice %139 {offsets = [49, 0], sizes = [1, 1], strides = [1, 1]} : vector<64x1xf32> to vector<1x1xf32>
      %c49_i32 = arith.constant 49 : i32
      %680 = vector.broadcast %c49_i32 : i32 to vector<128x128xi32>
      %681 = arith.cmpi eq, %142, %680 : vector<128x128xi32>
      %682 = vector.shape_cast %679 : vector<1x1xf32> to vector<1x1xf32>
      %683 = vector.broadcast %682 : vector<1x1xf32> to vector<128x128xf32>
      %684 = arith.select %681, %683, %673 : vector<128x128xi1>, vector<128x128xf32>
      %c-79_i32 = arith.constant -79 : i32
      %685 = vector.broadcast %c-79_i32 : i32 to vector<128x128xi32>
      %686 = arith.cmpi eq, %142, %685 : vector<128x128xi32>
      %687 = vector.shape_cast %679 : vector<1x1xf32> to vector<1x1xf32>
      %688 = vector.broadcast %687 : vector<1x1xf32> to vector<128x128xf32>
      %689 = arith.select %686, %688, %678 : vector<128x128xi1>, vector<128x128xf32>
      %690 = vector.extract_strided_slice %139 {offsets = [50, 0], sizes = [1, 1], strides = [1, 1]} : vector<64x1xf32> to vector<1x1xf32>
      %c50_i32 = arith.constant 50 : i32
      %691 = vector.broadcast %c50_i32 : i32 to vector<128x128xi32>
      %692 = arith.cmpi eq, %142, %691 : vector<128x128xi32>
      %693 = vector.shape_cast %690 : vector<1x1xf32> to vector<1x1xf32>
      %694 = vector.broadcast %693 : vector<1x1xf32> to vector<128x128xf32>
      %695 = arith.select %692, %694, %684 : vector<128x128xi1>, vector<128x128xf32>
      %c-78_i32 = arith.constant -78 : i32
      %696 = vector.broadcast %c-78_i32 : i32 to vector<128x128xi32>
      %697 = arith.cmpi eq, %142, %696 : vector<128x128xi32>
      %698 = vector.shape_cast %690 : vector<1x1xf32> to vector<1x1xf32>
      %699 = vector.broadcast %698 : vector<1x1xf32> to vector<128x128xf32>
      %700 = arith.select %697, %699, %689 : vector<128x128xi1>, vector<128x128xf32>
      %701 = vector.extract_strided_slice %139 {offsets = [51, 0], sizes = [1, 1], strides = [1, 1]} : vector<64x1xf32> to vector<1x1xf32>
      %c51_i32 = arith.constant 51 : i32
      %702 = vector.broadcast %c51_i32 : i32 to vector<128x128xi32>
      %703 = arith.cmpi eq, %142, %702 : vector<128x128xi32>
      %704 = vector.shape_cast %701 : vector<1x1xf32> to vector<1x1xf32>
      %705 = vector.broadcast %704 : vector<1x1xf32> to vector<128x128xf32>
      %706 = arith.select %703, %705, %695 : vector<128x128xi1>, vector<128x128xf32>
      %c-77_i32 = arith.constant -77 : i32
      %707 = vector.broadcast %c-77_i32 : i32 to vector<128x128xi32>
      %708 = arith.cmpi eq, %142, %707 : vector<128x128xi32>
      %709 = vector.shape_cast %701 : vector<1x1xf32> to vector<1x1xf32>
      %710 = vector.broadcast %709 : vector<1x1xf32> to vector<128x128xf32>
      %711 = arith.select %708, %710, %700 : vector<128x128xi1>, vector<128x128xf32>
      %712 = vector.extract_strided_slice %139 {offsets = [52, 0], sizes = [1, 1], strides = [1, 1]} : vector<64x1xf32> to vector<1x1xf32>
      %c52_i32 = arith.constant 52 : i32
      %713 = vector.broadcast %c52_i32 : i32 to vector<128x128xi32>
      %714 = arith.cmpi eq, %142, %713 : vector<128x128xi32>
      %715 = vector.shape_cast %712 : vector<1x1xf32> to vector<1x1xf32>
      %716 = vector.broadcast %715 : vector<1x1xf32> to vector<128x128xf32>
      %717 = arith.select %714, %716, %706 : vector<128x128xi1>, vector<128x128xf32>
      %c-76_i32 = arith.constant -76 : i32
      %718 = vector.broadcast %c-76_i32 : i32 to vector<128x128xi32>
      %719 = arith.cmpi eq, %142, %718 : vector<128x128xi32>
      %720 = vector.shape_cast %712 : vector<1x1xf32> to vector<1x1xf32>
      %721 = vector.broadcast %720 : vector<1x1xf32> to vector<128x128xf32>
      %722 = arith.select %719, %721, %711 : vector<128x128xi1>, vector<128x128xf32>
      %723 = vector.extract_strided_slice %139 {offsets = [53, 0], sizes = [1, 1], strides = [1, 1]} : vector<64x1xf32> to vector<1x1xf32>
      %c53_i32 = arith.constant 53 : i32
      %724 = vector.broadcast %c53_i32 : i32 to vector<128x128xi32>
      %725 = arith.cmpi eq, %142, %724 : vector<128x128xi32>
      %726 = vector.shape_cast %723 : vector<1x1xf32> to vector<1x1xf32>
      %727 = vector.broadcast %726 : vector<1x1xf32> to vector<128x128xf32>
      %728 = arith.select %725, %727, %717 : vector<128x128xi1>, vector<128x128xf32>
      %c-75_i32 = arith.constant -75 : i32
      %729 = vector.broadcast %c-75_i32 : i32 to vector<128x128xi32>
      %730 = arith.cmpi eq, %142, %729 : vector<128x128xi32>
      %731 = vector.shape_cast %723 : vector<1x1xf32> to vector<1x1xf32>
      %732 = vector.broadcast %731 : vector<1x1xf32> to vector<128x128xf32>
      %733 = arith.select %730, %732, %722 : vector<128x128xi1>, vector<128x128xf32>
      %734 = vector.extract_strided_slice %139 {offsets = [54, 0], sizes = [1, 1], strides = [1, 1]} : vector<64x1xf32> to vector<1x1xf32>
      %c54_i32 = arith.constant 54 : i32
      %735 = vector.broadcast %c54_i32 : i32 to vector<128x128xi32>
      %736 = arith.cmpi eq, %142, %735 : vector<128x128xi32>
      %737 = vector.shape_cast %734 : vector<1x1xf32> to vector<1x1xf32>
      %738 = vector.broadcast %737 : vector<1x1xf32> to vector<128x128xf32>
      %739 = arith.select %736, %738, %728 : vector<128x128xi1>, vector<128x128xf32>
      %c-74_i32 = arith.constant -74 : i32
      %740 = vector.broadcast %c-74_i32 : i32 to vector<128x128xi32>
      %741 = arith.cmpi eq, %142, %740 : vector<128x128xi32>
      %742 = vector.shape_cast %734 : vector<1x1xf32> to vector<1x1xf32>
      %743 = vector.broadcast %742 : vector<1x1xf32> to vector<128x128xf32>
      %744 = arith.select %741, %743, %733 : vector<128x128xi1>, vector<128x128xf32>
      %745 = vector.extract_strided_slice %139 {offsets = [55, 0], sizes = [1, 1], strides = [1, 1]} : vector<64x1xf32> to vector<1x1xf32>
      %c55_i32 = arith.constant 55 : i32
      %746 = vector.broadcast %c55_i32 : i32 to vector<128x128xi32>
      %747 = arith.cmpi eq, %142, %746 : vector<128x128xi32>
      %748 = vector.shape_cast %745 : vector<1x1xf32> to vector<1x1xf32>
      %749 = vector.broadcast %748 : vector<1x1xf32> to vector<128x128xf32>
      %750 = arith.select %747, %749, %739 : vector<128x128xi1>, vector<128x128xf32>
      %c-73_i32 = arith.constant -73 : i32
      %751 = vector.broadcast %c-73_i32 : i32 to vector<128x128xi32>
      %752 = arith.cmpi eq, %142, %751 : vector<128x128xi32>
      %753 = vector.shape_cast %745 : vector<1x1xf32> to vector<1x1xf32>
      %754 = vector.broadcast %753 : vector<1x1xf32> to vector<128x128xf32>
      %755 = arith.select %752, %754, %744 : vector<128x128xi1>, vector<128x128xf32>
      %756 = vector.extract_strided_slice %139 {offsets = [56, 0], sizes = [1, 1], strides = [1, 1]} : vector<64x1xf32> to vector<1x1xf32>
      %c56_i32 = arith.constant 56 : i32
      %757 = vector.broadcast %c56_i32 : i32 to vector<128x128xi32>
      %758 = arith.cmpi eq, %142, %757 : vector<128x128xi32>
      %759 = vector.shape_cast %756 : vector<1x1xf32> to vector<1x1xf32>
      %760 = vector.broadcast %759 : vector<1x1xf32> to vector<128x128xf32>
      %761 = arith.select %758, %760, %750 : vector<128x128xi1>, vector<128x128xf32>
      %c-72_i32 = arith.constant -72 : i32
      %762 = vector.broadcast %c-72_i32 : i32 to vector<128x128xi32>
      %763 = arith.cmpi eq, %142, %762 : vector<128x128xi32>
      %764 = vector.shape_cast %756 : vector<1x1xf32> to vector<1x1xf32>
      %765 = vector.broadcast %764 : vector<1x1xf32> to vector<128x128xf32>
      %766 = arith.select %763, %765, %755 : vector<128x128xi1>, vector<128x128xf32>
      %767 = vector.extract_strided_slice %139 {offsets = [57, 0], sizes = [1, 1], strides = [1, 1]} : vector<64x1xf32> to vector<1x1xf32>
      %c57_i32 = arith.constant 57 : i32
      %768 = vector.broadcast %c57_i32 : i32 to vector<128x128xi32>
      %769 = arith.cmpi eq, %142, %768 : vector<128x128xi32>
      %770 = vector.shape_cast %767 : vector<1x1xf32> to vector<1x1xf32>
      %771 = vector.broadcast %770 : vector<1x1xf32> to vector<128x128xf32>
      %772 = arith.select %769, %771, %761 : vector<128x128xi1>, vector<128x128xf32>
      %c-71_i32 = arith.constant -71 : i32
      %773 = vector.broadcast %c-71_i32 : i32 to vector<128x128xi32>
      %774 = arith.cmpi eq, %142, %773 : vector<128x128xi32>
      %775 = vector.shape_cast %767 : vector<1x1xf32> to vector<1x1xf32>
      %776 = vector.broadcast %775 : vector<1x1xf32> to vector<128x128xf32>
      %777 = arith.select %774, %776, %766 : vector<128x128xi1>, vector<128x128xf32>
      %778 = vector.extract_strided_slice %139 {offsets = [58, 0], sizes = [1, 1], strides = [1, 1]} : vector<64x1xf32> to vector<1x1xf32>
      %c58_i32 = arith.constant 58 : i32
      %779 = vector.broadcast %c58_i32 : i32 to vector<128x128xi32>
      %780 = arith.cmpi eq, %142, %779 : vector<128x128xi32>
      %781 = vector.shape_cast %778 : vector<1x1xf32> to vector<1x1xf32>
      %782 = vector.broadcast %781 : vector<1x1xf32> to vector<128x128xf32>
      %783 = arith.select %780, %782, %772 : vector<128x128xi1>, vector<128x128xf32>
      %c-70_i32 = arith.constant -70 : i32
      %784 = vector.broadcast %c-70_i32 : i32 to vector<128x128xi32>
      %785 = arith.cmpi eq, %142, %784 : vector<128x128xi32>
      %786 = vector.shape_cast %778 : vector<1x1xf32> to vector<1x1xf32>
      %787 = vector.broadcast %786 : vector<1x1xf32> to vector<128x128xf32>
      %788 = arith.select %785, %787, %777 : vector<128x128xi1>, vector<128x128xf32>
      %789 = vector.extract_strided_slice %139 {offsets = [59, 0], sizes = [1, 1], strides = [1, 1]} : vector<64x1xf32> to vector<1x1xf32>
      %c59_i32 = arith.constant 59 : i32
      %790 = vector.broadcast %c59_i32 : i32 to vector<128x128xi32>
      %791 = arith.cmpi eq, %142, %790 : vector<128x128xi32>
      %792 = vector.shape_cast %789 : vector<1x1xf32> to vector<1x1xf32>
      %793 = vector.broadcast %792 : vector<1x1xf32> to vector<128x128xf32>
      %794 = arith.select %791, %793, %783 : vector<128x128xi1>, vector<128x128xf32>
      %c-69_i32 = arith.constant -69 : i32
      %795 = vector.broadcast %c-69_i32 : i32 to vector<128x128xi32>
      %796 = arith.cmpi eq, %142, %795 : vector<128x128xi32>
      %797 = vector.shape_cast %789 : vector<1x1xf32> to vector<1x1xf32>
      %798 = vector.broadcast %797 : vector<1x1xf32> to vector<128x128xf32>
      %799 = arith.select %796, %798, %788 : vector<128x128xi1>, vector<128x128xf32>
      %800 = vector.extract_strided_slice %139 {offsets = [60, 0], sizes = [1, 1], strides = [1, 1]} : vector<64x1xf32> to vector<1x1xf32>
      %c60_i32 = arith.constant 60 : i32
      %801 = vector.broadcast %c60_i32 : i32 to vector<128x128xi32>
      %802 = arith.cmpi eq, %142, %801 : vector<128x128xi32>
      %803 = vector.shape_cast %800 : vector<1x1xf32> to vector<1x1xf32>
      %804 = vector.broadcast %803 : vector<1x1xf32> to vector<128x128xf32>
      %805 = arith.select %802, %804, %794 : vector<128x128xi1>, vector<128x128xf32>
      %c-68_i32 = arith.constant -68 : i32
      %806 = vector.broadcast %c-68_i32 : i32 to vector<128x128xi32>
      %807 = arith.cmpi eq, %142, %806 : vector<128x128xi32>
      %808 = vector.shape_cast %800 : vector<1x1xf32> to vector<1x1xf32>
      %809 = vector.broadcast %808 : vector<1x1xf32> to vector<128x128xf32>
      %810 = arith.select %807, %809, %799 : vector<128x128xi1>, vector<128x128xf32>
      %811 = vector.extract_strided_slice %139 {offsets = [61, 0], sizes = [1, 1], strides = [1, 1]} : vector<64x1xf32> to vector<1x1xf32>
      %c61_i32 = arith.constant 61 : i32
      %812 = vector.broadcast %c61_i32 : i32 to vector<128x128xi32>
      %813 = arith.cmpi eq, %142, %812 : vector<128x128xi32>
      %814 = vector.shape_cast %811 : vector<1x1xf32> to vector<1x1xf32>
      %815 = vector.broadcast %814 : vector<1x1xf32> to vector<128x128xf32>
      %816 = arith.select %813, %815, %805 : vector<128x128xi1>, vector<128x128xf32>
      %c-67_i32 = arith.constant -67 : i32
      %817 = vector.broadcast %c-67_i32 : i32 to vector<128x128xi32>
      %818 = arith.cmpi eq, %142, %817 : vector<128x128xi32>
      %819 = vector.shape_cast %811 : vector<1x1xf32> to vector<1x1xf32>
      %820 = vector.broadcast %819 : vector<1x1xf32> to vector<128x128xf32>
      %821 = arith.select %818, %820, %810 : vector<128x128xi1>, vector<128x128xf32>
      %822 = vector.extract_strided_slice %139 {offsets = [62, 0], sizes = [1, 1], strides = [1, 1]} : vector<64x1xf32> to vector<1x1xf32>
      %c62_i32 = arith.constant 62 : i32
      %823 = vector.broadcast %c62_i32 : i32 to vector<128x128xi32>
      %824 = arith.cmpi eq, %142, %823 : vector<128x128xi32>
      %825 = vector.shape_cast %822 : vector<1x1xf32> to vector<1x1xf32>
      %826 = vector.broadcast %825 : vector<1x1xf32> to vector<128x128xf32>
      %827 = arith.select %824, %826, %816 : vector<128x128xi1>, vector<128x128xf32>
      %c-66_i32 = arith.constant -66 : i32
      %828 = vector.broadcast %c-66_i32 : i32 to vector<128x128xi32>
      %829 = arith.cmpi eq, %142, %828 : vector<128x128xi32>
      %830 = vector.shape_cast %822 : vector<1x1xf32> to vector<1x1xf32>
      %831 = vector.broadcast %830 : vector<1x1xf32> to vector<128x128xf32>
      %832 = arith.select %829, %831, %821 : vector<128x128xi1>, vector<128x128xf32>
      %833 = vector.extract_strided_slice %139 {offsets = [63, 0], sizes = [1, 1], strides = [1, 1]} : vector<64x1xf32> to vector<1x1xf32>
      %c63_i32 = arith.constant 63 : i32
      %834 = vector.broadcast %c63_i32 : i32 to vector<128x128xi32>
      %835 = arith.cmpi eq, %142, %834 : vector<128x128xi32>
      %836 = vector.shape_cast %833 : vector<1x1xf32> to vector<1x1xf32>
      %837 = vector.broadcast %836 : vector<1x1xf32> to vector<128x128xf32>
      %838 = arith.select %835, %837, %827 : vector<128x128xi1>, vector<128x128xf32>
      %c-65_i32 = arith.constant -65 : i32
      %839 = vector.broadcast %c-65_i32 : i32 to vector<128x128xi32>
      %840 = arith.cmpi eq, %142, %839 : vector<128x128xi32>
      %841 = vector.shape_cast %833 : vector<1x1xf32> to vector<1x1xf32>
      %842 = vector.broadcast %841 : vector<1x1xf32> to vector<128x128xf32>
      %843 = arith.select %840, %842, %832 : vector<128x128xi1>, vector<128x128xf32>
      %c0_61 = arith.constant 0 : index
      %c0_62 = arith.constant 0 : index
      %844 = vector.load %arg11[%c0_61, %c0_62] : memref<128x128xf32, #tpu.memory_space<vmem>>, vector<128x128xf32>
      tpu.vector_store %arg11[%c0_61, %c0_62], %838 {strides = array<i32>} : memref<128x128xf32, #tpu.memory_space<vmem>>, vector<128x128xf32>,
      %c0_63 = arith.constant 0 : index
      %c0_64 = arith.constant 0 : index
      %845 = vector.load %arg12[%c0_63, %c0_64] : memref<128x128xf32, #tpu.memory_space<vmem>>, vector<128x128xf32>
      tpu.vector_store %arg12[%c0_63, %c0_64], %843 {strides = array<i32>} : memref<128x128xf32, #tpu.memory_space<vmem>>, vector<128x128xf32>,
      %cst_65 = arith.constant 0.000000e+00 : f32
      %846 = vector.broadcast %cst_65 : f32 to vector<8x128xf32>
      %c0_66 = arith.constant 0 : index
      %c0_67 = arith.constant 0 : index
      %847 = vector.load %arg13[%c0_66, %c0_67] : memref<8x128xf32, #tpu.memory_space<vmem>>, vector<8x128xf32>
      tpu.vector_store %arg13[%c0_66, %c0_67], %846 {strides = array<i32>} : memref<8x128xf32, #tpu.memory_space<vmem>>, vector<8x128xf32>,
    } else {
    }
    %c0 = arith.constant 0 : index
    %c0_1 = arith.constant 0 : index
    %3 = vector.load %arg11[%c0, %c0_1] : memref<128x128xf32, #tpu.memory_space<vmem>>, vector<128x128xf32>
    %c0_2 = arith.constant 0 : index
    %c0_3 = arith.constant 0 : index
    %4 = vector.load %arg12[%c0_2, %c0_3] : memref<128x128xf32, #tpu.memory_space<vmem>>, vector<128x128xf32>
    %c0_4 = arith.constant 0 : index
    %c0_5 = arith.constant 0 : index
    %c0_6 = arith.constant 0 : index
    %5 = vector.load %arg9[%c0_4, %c0_5, %c0_6] : memref<1x8x256xf32, #tpu.memory_space<vmem>>, vector<1x8x128xf32>
    %6 = vector.shape_cast %5 : vector<1x8x128xf32> to vector<8x128xf32>
    %c0_7 = arith.constant 0 : index
    %c0_8 = arith.constant 0 : index
    %7 = vector.load %arg13[%c0_7, %c0_8] : memref<8x128xf32, #tpu.memory_space<vmem>>, vector<8x128xf32>
    %cst = arith.constant dense<0.000000e+00> : vector<8x128xf32>
    %8 = tpu.matmul %6, %3, %cst {dimension_numbers = #tpu.dot_dimension_numbers<[1], [0], [0], [1], [0, 0, 1, 1], [], []>} : vector<8x128xf32>, vector<128x128xf32>, vector<8x128xf32> -> vector<8x128xf32>
    %cst_9 = arith.constant dense<0.000000e+00> : vector<8x128xf32>
    %9 = tpu.matmul %7, %4, %cst_9 {dimension_numbers = #tpu.dot_dimension_numbers<[1], [0], [0], [1], [0, 0, 1, 1], [], []>} : vector<8x128xf32>, vector<128x128xf32>, vector<8x128xf32> -> vector<8x128xf32>
    %10 = arith.addf %8, %9 : vector<8x128xf32>
    %c0_10 = arith.constant 0 : index
    %c0_11 = arith.constant 0 : index
    %c0_12 = arith.constant 0 : index
    %11 = vector.load %arg10[%c0_10, %c0_11, %c0_12] : memref<1x8x256xf32, #tpu.memory_space<vmem>>, vector<1x8x128xf32>
    %12 = vector.shape_cast %11 : vector<1x8x128xf32> to vector<8x128xf32>
    %13 = vector.shape_cast %10 : vector<8x128xf32> to vector<1x8x128xf32>
    tpu.vector_store %arg10[%c0_10, %c0_11, %c0_12], %13 {strides = array<i32>} : memref<1x8x256xf32, #tpu.memory_space<vmem>>, vector<1x8x128xf32>,
    %c0_13 = arith.constant 0 : index
    %c0_14 = arith.constant 0 : index
    %c128 = arith.constant 128 : index
    %14 = vector.load %arg9[%c0_13, %c0_14, %c128] : memref<1x8x256xf32, #tpu.memory_space<vmem>>, vector<1x8x128xf32>
    %15 = vector.shape_cast %14 : vector<1x8x128xf32> to vector<8x128xf32>
    %c0_15 = arith.constant 0 : index
    %c0_16 = arith.constant 0 : index
    %c0_17 = arith.constant 0 : index
    %16 = vector.load %arg9[%c0_15, %c0_16, %c0_17] : memref<1x8x256xf32, #tpu.memory_space<vmem>>, vector<1x8x128xf32>
    %17 = vector.shape_cast %16 : vector<1x8x128xf32> to vector<8x128xf32>
    %cst_18 = arith.constant dense<0.000000e+00> : vector<8x128xf32>
    %18 = tpu.matmul %15, %3, %cst_18 {dimension_numbers = #tpu.dot_dimension_numbers<[1], [0], [0], [1], [0, 0, 1, 1], [], []>} : vector<8x128xf32>, vector<128x128xf32>, vector<8x128xf32> -> vector<8x128xf32>
    %cst_19 = arith.constant dense<0.000000e+00> : vector<8x128xf32>
    %19 = tpu.matmul %17, %4, %cst_19 {dimension_numbers = #tpu.dot_dimension_numbers<[1], [0], [0], [1], [0, 0, 1, 1], [], []>} : vector<8x128xf32>, vector<128x128xf32>, vector<8x128xf32> -> vector<8x128xf32>
    %20 = arith.addf %18, %19 : vector<8x128xf32>
    %c0_20 = arith.constant 0 : index
    %c0_21 = arith.constant 0 : index
    %c128_22 = arith.constant 128 : index
    %21 = vector.load %arg10[%c0_20, %c0_21, %c128_22] : memref<1x8x256xf32, #tpu.memory_space<vmem>>, vector<1x8x128xf32>
    %22 = vector.shape_cast %21 : vector<1x8x128xf32> to vector<8x128xf32>
    %23 = vector.shape_cast %20 : vector<8x128xf32> to vector<1x8x128xf32>
    tpu.vector_store %arg10[%c0_20, %c0_21, %c128_22], %23 {strides = array<i32>} : memref<1x8x256xf32, #tpu.memory_space<vmem>>, vector<1x8x128xf32>,
    %c0_23 = arith.constant 0 : index
    %c0_24 = arith.constant 0 : index
    %24 = vector.load %arg13[%c0_23, %c0_24] : memref<8x128xf32, #tpu.memory_space<vmem>>, vector<8x128xf32>
    tpu.vector_store %arg13[%c0_23, %c0_24], %15 {strides = array<i32>} : memref<8x128xf32, #tpu.memory_space<vmem>>, vector<8x128xf32>,
    return
  }
  func.func @transform_0(%arg0: i32, %arg1: i32) -> (i32, i32, i32) {
    %c0_i32 = arith.constant 0 : i32
    %c0_i32_0 = arith.constant 0 : i32
    %c0_i32_1 = arith.constant 0 : i32
    return %arg0, %c0_i32, %c0_i32_0 : i32, i32, i32
  }
  func.func @transform_1(%arg0: i32, %arg1: i32) -> (i32, i32, i32) {
    %c0_i32 = arith.constant 0 : i32
    %c0_i32_0 = arith.constant 0 : i32
    %c0_i32_1 = arith.constant 0 : i32
    return %arg0, %c0_i32, %c0_i32_0 : i32, i32, i32
  }
  func.func @transform_2(%arg0: i32, %arg1: i32) -> (i32, i32, i32) {
    %c0_i32 = arith.constant 0 : i32
    %c0_i32_0 = arith.constant 0 : i32
    %c0_i32_1 = arith.constant 0 : i32
    return %arg0, %c0_i32, %c0_i32_0 : i32, i32, i32
  }
  func.func @transform_3(%arg0: i32, %arg1: i32) -> (i32, i32) {
    %c0_i32 = arith.constant 0 : i32
    %c0_i32_0 = arith.constant 0 : i32
    %c0_i32_1 = arith.constant 0 : i32
    return %c0_i32, %c0_i32_0 : i32, i32
  }
  func.func @transform_4(%arg0: i32, %arg1: i32) -> (i32, i32) {
    %c0_i32 = arith.constant 0 : i32
    %c0_i32_0 = arith.constant 0 : i32
    %c0_i32_1 = arith.constant 0 : i32
    return %c0_i32, %c0_i32_0 : i32, i32
  }
  func.func @transform_5(%arg0: i32, %arg1: i32) -> (i32, i32) {
    %c0_i32 = arith.constant 0 : i32
    %c0_i32_0 = arith.constant 0 : i32
    %c0_i32_1 = arith.constant 0 : i32
    return %c0_i32, %c0_i32_0 : i32, i32
  }
  func.func @transform_6(%arg0: i32, %arg1: i32) -> (i32, i32) {
    %c0_i32 = arith.constant 0 : i32
    %c0_i32_0 = arith.constant 0 : i32
    %c0_i32_1 = arith.constant 0 : i32
    return %c0_i32, %c0_i32_0 : i32, i32
  }
  func.func @transform_7(%arg0: i32, %arg1: i32) -> (i32, i32, i32) {
    %c0_i32 = arith.constant 0 : i32
    %c0_i32_0 = arith.constant 0 : i32
    return %arg0, %c0_i32, %arg1 : i32, i32, i32
  }
  func.func @transform_8(%arg0: i32, %arg1: i32) -> (i32, i32, i32) {
    %c0_i32 = arith.constant 0 : i32
    %c0_i32_0 = arith.constant 0 : i32
    return %arg0, %c0_i32, %arg1 : i32, i32, i32
  }
}

</mosaic_0001>

<llo_original>
// kernel: tpu_custom_call.1
$region0: #{tpu_custom_call.1}
  #allocation0 [shape = 'u32[]', space=smem, size = 0x4, offset = 0x4, fixed_abs, tag = 'smem constant byte address 0x4 - core index']
  #allocation1 [shape = 'u32[72,128]{1,0:T(1,128)}', space=vmem, size = 0x9000, scoped, tag = 'internal scratch']
  #allocation2 [shape = 'f32[128,128]{1,0:T(8,128)}', space=vmem, size = 0x10000, scoped, tag = 'scratch operand']
  #allocation3 [shape = 'f32[128,128]{1,0:T(8,128)}', space=vmem, size = 0x10000, scoped, tag = 'scratch operand']
  #allocation4 [shape = 'f32[8,128]{1,0:T(8,128)}', space=vmem, size = 0x1000, scoped, tag = 'scratch operand']
  %s0 = inlined_call_operand.vmem [shape: f32[2,2,3], index: 0, kind: input, shape index: {}]
  %s1 = inlined_call_operand.vmem [shape: f32[2,2,1], index: 1, kind: input, shape index: {}]
  %s2 = inlined_call_operand.vmem [shape: f32[2,2,1], index: 2, kind: input, shape index: {}]
  %s3 = inlined_call_operand.vmem [shape: f32[3,33], index: 3, kind: input, shape index: {}]
  %s4 = inlined_call_operand.vmem [shape: f32[3,33], index: 4, kind: input, shape index: {}]
  %s5 = inlined_call_operand.vmem [shape: f32[64,33], index: 5, kind: input, shape index: {}]
  %s6 = inlined_call_operand.vmem [shape: f32[64,33], index: 6, kind: input, shape index: {}]
  %s7 = inlined_call_operand.vmem [shape: f32[2,8,512], index: 7, kind: input, shape index: {}]
  %s8 = inlined_call_operand.hbm [shape: f32[2,8,512], index: 8, kind: output, shape index: {}]
  %s9 = sld [smem:[#allocation0]]
  $region69: #{tpu_custom_call.1} parent=0
    _
  %s11 = ssub.s32 1, %s9
  %s12 = scalar_select 0, %s11, %s9
  $region1: #{tpu_custom_call.1} parent=0
    #allocation5 [shape = 'u8[16384]{0}', space=vmem, size = 0x4000, scoped, tag = 'output window, operand 0']
    #allocation6 [shape = 's32[2]{0}', space=sflag, size = 0x8, scoped, tag = 'scoped memory for tpu_custom_call.1']
    %13 = vsyncpa [#allocation6], 0
    %s14 = scalar_lea.sflag [#allocation6], 1
    %15 = vsyncpa %s14, 0
    loop: start=0, step=1, limit=6
    $region2: #{tpu_custom_call.1} parent=1 // loop_pre_header
      _
    $region3: #{tpu_custom_call.1} parent=1 // loop_header
      %s17 = sphi 0, %s21
      %p18 = scmp.ge.s32.totalorder %s17, 6
      %s24 = sphi 0, %s36
      %s25 = sphi 0, %s32
      %s26 = sphi 0, %s24
      %s27 = sphi 0, %s25
      %s28 = sphi 0, %s26
      %s29 = sphi 0, %s27
      %s39 = sphi 0, %s41
      %s42 = sphi 0, %s39
      %s43 = sphi 0, %s42
      %s59 = sphi 0, %s43
      %s65 = sphi 0, %s67
      %s68 = sphi 0, %s65
      %s69 = sphi 0, %s68
      %s85 = sphi 0, %s69
      %s91 = sphi 0, %s93
      %s94 = sphi 0, %s91
      %s95 = sphi 0, %s94
      %s111 = sphi 0, %s95
      %s115 = sphi 0, %s115
      %s117 = sphi 0, %s115
      %s118 = sphi 0, %s117
      %s132 = sphi 0, %s118
      %s136 = sphi 0, %s136
      %s138 = sphi 0, %s136
      %s139 = sphi 0, %s138
      %s153 = sphi 0, %s139
      %s157 = sphi 0, %s157
      %s159 = sphi 0, %s157
      %s160 = sphi 0, %s159
      %s174 = sphi 0, %s160
      %s178 = sphi 0, %s178
      %s180 = sphi 0, %s178
      %s181 = sphi 0, %s180
      %s195 = sphi 0, %s181
      %s203 = sphi 0, %s205
      %s206 = sphi 0, %s203
      %s207 = sphi 0, %s206
      %s223 = sphi 0, %s207
      %s231 = sphi 0, %s233
      %s234 = sphi 0, %s231
      %s235 = sphi 0, %s234
      %s251 = sphi 0, %s235
    $region4: #{tpu_custom_call.1} parent=1 // loop_header_branch
      %20 = sbr.rel (%p18) target = $region8
    $region5: #{tpu_custom_call.1} parent=1 // loop_body
      %s22 = ssub.s32 %s17, 1
      %s23 = ssub.s32 %s17, 2
      %s30 = sadd.s32 1, %s25
      %p31 = scmp.ge.s32.totalorder %s30, 2
      %s32 = scalar_select %p31, 0, %s30
      %s33 = sadd.s32 1, %s24
      %s34 = scalar_select %p31, %s33, %s24
      %p35 = scmp.ge.s32.totalorder %s34, 2
      %s36 = scalar_select %p35, 0, %s34
      %s37 = ssub.s32 %s24, %s36
      %p38 = scmp.eq.s32.totalorder %s37, 0
      %s40 = sadd.s32 %s39, 1
      %s41 = scalar_select %p38, %s39, %s40
      %p44 = pneg %p38
      %p45 = scmp.eq.s32.totalorder %s17, 3
      %p46 = por %p44, %p45
      %p47 = scmp.ne.s32.totalorder %s39, %s42
      %p48 = scmp.eq.s32.totalorder %s17, 0
      %p49 = por %p47, %p48
      %p50 = scmp.ne.s32.totalorder %s39, %s42
      %p51 = scmp.eq.s32.totalorder %s22, 3
      %p52 = por %p50, %p51
      %p53 = scmp.ne.s32.totalorder %s42, %s43
      %p54 = scmp.eq.s32.totalorder %s22, 0
      %p55 = por %p53, %p54
      %p56 = scmp.ne.s32.totalorder %s42, %s43
      %p57 = scmp.eq.s32.totalorder %s23, 3
      %p58 = por %p56, %p57
      %p60 = scmp.ne.s32.totalorder %s43, %s59
      %p61 = scmp.eq.s32.totalorder %s23, 0
      %p62 = por %p60, %p61
      %s63 = ssub.s32 %s24, %s36
      %p64 = scmp.eq.s32.totalorder %s63, 0
      %s66 = sadd.s32 %s65, 1
      %s67 = scalar_select %p64, %s65, %s66
      %p70 = pneg %p64
      %p71 = scmp.eq.s32.totalorder %s17, 3
      %p72 = por %p70, %p71
      %p73 = scmp.ne.s32.totalorder %s65, %s68
      %p74 = scmp.eq.s32.totalorder %s17, 0
      %p75 = por %p73, %p74
      %p76 = scmp.ne.s32.totalorder %s65, %s68
      %p77 = scmp.eq.s32.totalorder %s22, 3
      %p78 = por %p76, %p77
      %p79 = scmp.ne.s32.totalorder %s68, %s69
      %p80 = scmp.eq.s32.totalorder %s22, 0
      %p81 = por %p79, %p80
      %p82 = scmp.ne.s32.totalorder %s68, %s69
      %p83 = scmp.eq.s32.totalorder %s23, 3
      %p84 = por %p82, %p83
      %p86 = scmp.ne.s32.totalorder %s69, %s85
      %p87 = scmp.eq.s32.totalorder %s23, 0
      %p88 = por %p86, %p87
      %s89 = ssub.s32 %s24, %s36
      %p90 = scmp.eq.s32.totalorder %s89, 0
      %s92 = sadd.s32 %s91, 1
      %s93 = scalar_select %p90, %s91, %s92
      %p96 = pneg %p90
      %p97 = scmp.eq.s32.totalorder %s17, 3
      %p98 = por %p96, %p97
      %p99 = scmp.ne.s32.totalorder %s91, %s94
      %p100 = scmp.eq.s32.totalorder %s17, 0
      %p101 = por %p99, %p100
      %p102 = scmp.ne.s32.totalorder %s91, %s94
      %p103 = scmp.eq.s32.totalorder %s22, 3
      %p104 = por %p102, %p103
      %p105 = scmp.ne.s32.totalorder %s94, %s95
      %p106 = scmp.eq.s32.totalorder %s22, 0
      %p107 = por %p105, %p106
      %p108 = scmp.ne.s32.totalorder %s94, %s95
      %p109 = scmp.eq.s32.totalorder %s23, 3
      %p110 = por %p108, %p109
      %p112 = scmp.ne.s32.totalorder %s95, %s111
      %p113 = scmp.eq.s32.totalorder %s23, 0
      %p114 = por %p112, %p113
      %s116 = sadd.s32 %s115, 1
      %p119 = scmp.eq.s32.totalorder %s17, 3
      %p120 = scmp.ne.s32.totalorder %s115, %s117
      %p121 = scmp.eq.s32.totalorder %s17, 0
      %p122 = por %p120, %p121
      %p123 = scmp.ne.s32.totalorder %s115, %s117
      %p124 = scmp.eq.s32.totalorder %s22, 3
      %p125 = por %p123, %p124
      %p126 = scmp.ne.s32.totalorder %s117, %s118
      %p127 = scmp.eq.s32.totalorder %s22, 0
      %p128 = por %p126, %p127
      %p129 = scmp.ne.s32.totalorder %s117, %s118
      %p130 = scmp.eq.s32.totalorder %s23, 3
      %p131 = por %p129, %p130
      %p133 = scmp.ne.s32.totalorder %s118, %s132
      %p134 = scmp.eq.s32.totalorder %s23, 0
      %p135 = por %p133, %p134
      %s137 = sadd.s32 %s136, 1
      %p140 = scmp.eq.s32.totalorder %s17, 3
      %p141 = scmp.ne.s32.totalorder %s136, %s138
      %p142 = scmp.eq.s32.totalorder %s17, 0
      %p143 = por %p141, %p142
      %p144 = scmp.ne.s32.totalorder %s136, %s138
      %p145 = scmp.eq.s32.totalorder %s22, 3
      %p146 = por %p144, %p145
      %p147 = scmp.ne.s32.totalorder %s138, %s139
      %p148 = scmp.eq.s32.totalorder %s22, 0
      %p149 = por %p147, %p148
      %p150 = scmp.ne.s32.totalorder %s138, %s139
      %p151 = scmp.eq.s32.totalorder %s23, 3
      %p152 = por %p150, %p151
      %p154 = scmp.ne.s32.totalorder %s139, %s153
      %p155 = scmp.eq.s32.totalorder %s23, 0
      %p156 = por %p154, %p155
      %s158 = sadd.s32 %s157, 1
      %p161 = scmp.eq.s32.totalorder %s17, 3
      %p162 = scmp.ne.s32.totalorder %s157, %s159
      %p163 = scmp.eq.s32.totalorder %s17, 0
      %p164 = por %p162, %p163
      %p165 = scmp.ne.s32.totalorder %s157, %s159
      %p166 = scmp.eq.s32.totalorder %s22, 3
      %p167 = por %p165, %p166
      %p168 = scmp.ne.s32.totalorder %s159, %s160
      %p169 = scmp.eq.s32.totalorder %s22, 0
      %p170 = por %p168, %p169
      %p171 = scmp.ne.s32.totalorder %s159, %s160
      %p172 = scmp.eq.s32.totalorder %s23, 3
      %p173 = por %p171, %p172
      %p175 = scmp.ne.s32.totalorder %s160, %s174
      %p176 = scmp.eq.s32.totalorder %s23, 0
      %p177 = por %p175, %p176
      %s179 = sadd.s32 %s178, 1
      %p182 = scmp.eq.s32.totalorder %s17, 3
      %p183 = scmp.ne.s32.totalorder %s178, %s180
      %p184 = scmp.eq.s32.totalorder %s17, 0
      %p185 = por %p183, %p184
      %p186 = scmp.ne.s32.totalorder %s178, %s180
      %p187 = scmp.eq.s32.totalorder %s22, 3
      %p188 = por %p186, %p187
      %p189 = scmp.ne.s32.totalorder %s180, %s181
      %p190 = scmp.eq.s32.totalorder %s22, 0
      %p191 = por %p189, %p190
      %p192 = scmp.ne.s32.totalorder %s180, %s181
      %p193 = scmp.eq.s32.totalorder %s23, 3
      %p194 = por %p192, %p193
      %p196 = scmp.ne.s32.totalorder %s181, %s195
      %p197 = scmp.eq.s32.totalorder %s23, 0
      %p198 = por %p196, %p197
      %s199 = ssub.s32 %s24, %s36
      %s200 = ssub.s32 %s25, %s32
      %s201 = sor.u32 %s199, %s200
      %p202 = scmp.eq.s32.totalorder %s201, 0
      %s204 = sadd.s32 %s203, 1
      %s205 = scalar_select %p202, %s203, %s204
      %p208 = pneg %p202
      %p209 = scmp.eq.s32.totalorder %s17, 3
      %p210 = por %p208, %p209
      %p211 = scmp.ne.s32.totalorder %s203, %s206
      %p212 = scmp.eq.s32.totalorder %s17, 0
      %p213 = por %p211, %p212
      %p214 = scmp.ne.s32.totalorder %s203, %s206
      %p215 = scmp.eq.s32.totalorder %s22, 3
      %p216 = por %p214, %p215
      %p217 = scmp.ne.s32.totalorder %s206, %s207
      %p218 = scmp.eq.s32.totalorder %s22, 0
      %p219 = por %p217, %p218
      %p220 = scmp.ne.s32.totalorder %s206, %s207
      %p221 = scmp.eq.s32.totalorder %s23, 3
      %p222 = por %p220, %p221
      %p224 = scmp.ne.s32.totalorder %s207, %s223
      %p225 = scmp.eq.s32.totalorder %s23, 0
      %p226 = por %p224, %p225
      %s227 = ssub.s32 %s24, %s36
      %s228 = ssub.s32 %s25, %s32
      %s229 = sor.u32 %s227, %s228
      %p230 = scmp.eq.s32.totalorder %s229, 0
      %s232 = sadd.s32 %s231, 1
      %s233 = scalar_select %p230, %s231, %s232
      %p236 = pneg %p230
      %p237 = scmp.eq.s32.totalorder %s17, 3
      %p238 = por %p236, %p237
      %p239 = scmp.ne.s32.totalorder %s231, %s234
      %p240 = scmp.eq.s32.totalorder %s17, 0
      %p241 = por %p239, %p240
      %p242 = scmp.ne.s32.totalorder %s231, %s234
      %p243 = scmp.eq.s32.totalorder %s22, 3
      %p244 = por %p242, %p243
      %p245 = scmp.ne.s32.totalorder %s234, %s235
      %p246 = scmp.eq.s32.totalorder %s22, 0
      %p247 = por %p245, %p246
      %p248 = scmp.ne.s32.totalorder %s234, %s235
      %p249 = scmp.eq.s32.totalorder %s23, 3
      %p250 = por %p248, %p249
      %p252 = scmp.ne.s32.totalorder %s235, %s251
      %p253 = scmp.eq.s32.totalorder %s23, 0
      %p254 = por %p252, %p253
      %p255 = scmp.le.s32.totalorder 1, %s17
      %p256 = scmp.lt.s32.totalorder %s17, 5
      %p257 = pnand %p255, %p256
      %p258 = pneg %p257
      // Predicated region
      $region9: #{tpu_custom_call.1} parent=5 // pred_check
        _
      $region10: #{tpu_custom_call.1} parent=5 // pred_check_branch
        %260 = sbr.rel (%p257) target = $region12
      $region11: #{tpu_custom_call.1} parent=5 // pred_region
        %s261 = ssub.s32 %s17, 1
        // Predicated region
        $region13: #{tpu_custom_call.1} parent=11 // pred_check
          %p262 = pneg %p128
        $region14: #{tpu_custom_call.1} parent=11 // pred_check_branch
          %264 = sbr.rel (%p262) target = $region16
        $region15: #{tpu_custom_call.1} parent=11 // pred_region
          _
        $region16: #{tpu_custom_call.1} parent=11 // pred_fallthru
          _
        // Predicated region
        $region17: #{tpu_custom_call.1} parent=11 // pred_check
          %p265 = pneg %p149
        $region18: #{tpu_custom_call.1} parent=11 // pred_check_branch
          %267 = sbr.rel (%p265) target = $region20
        $region19: #{tpu_custom_call.1} parent=11 // pred_region
          _
        $region20: #{tpu_custom_call.1} parent=11 // pred_fallthru
          _
        // Predicated region
        $region21: #{tpu_custom_call.1} parent=11 // pred_check
          %p268 = pneg %p170
        $region22: #{tpu_custom_call.1} parent=11 // pred_check_branch
          %270 = sbr.rel (%p268) target = $region24
        $region23: #{tpu_custom_call.1} parent=11 // pred_region
          _
        $region24: #{tpu_custom_call.1} parent=11 // pred_fallthru
          _
        // Predicated region
        $region25: #{tpu_custom_call.1} parent=11 // pred_check
          %p271 = pneg %p191
        $region26: #{tpu_custom_call.1} parent=11 // pred_check_branch
          %273 = sbr.rel (%p271) target = $region28
        $region27: #{tpu_custom_call.1} parent=11 // pred_region
          _
        $region28: #{tpu_custom_call.1} parent=11 // pred_fallthru
          _
      $region12: #{tpu_custom_call.1} parent=5 // pred_fallthru
        _
      %p274 = scmp.lt.s32.totalorder %s17, 4
      // Predicated region
      $region29: #{tpu_custom_call.1} parent=5 // pred_check
        %p275 = pneg %p274
      $region30: #{tpu_custom_call.1} parent=5 // pred_check_branch
        %277 = sbr.rel (%p275) target = $region32
      $region31: #{tpu_custom_call.1} parent=5 // pred_region
        // Predicated region
        $region33: #{tpu_custom_call.1} parent=31 // pred_check
          %p278 = pneg %p49
        $region34: #{tpu_custom_call.1} parent=31 // pred_check_branch
          %280 = sbr.rel (%p278) target = $region36
        $region35: #{tpu_custom_call.1} parent=31 // pred_region
          %p281 = scmp.lt.s32.totalorder %s24, 1
          %s282 = scalar_select %p281, %s24, 1
          %s283 = smul.addr %s282, 2
          %s284 = scalar_lea.vmem %s0, %s283
        $region36: #{tpu_custom_call.1} parent=31 // pred_fallthru
          _
        // Predicated region
        $region37: #{tpu_custom_call.1} parent=31 // pred_check
          %p285 = pneg %p75
        $region38: #{tpu_custom_call.1} parent=31 // pred_check_branch
          %287 = sbr.rel (%p285) target = $region40
        $region39: #{tpu_custom_call.1} parent=31 // pred_region
          %p288 = scmp.lt.s32.totalorder %s24, 1
          %s289 = scalar_select %p288, %s24, 1
          %s290 = smul.addr %s289, 2
          %s291 = scalar_lea.vmem %s1, %s290
        $region40: #{tpu_custom_call.1} parent=31 // pred_fallthru
          _
        // Predicated region
        $region41: #{tpu_custom_call.1} parent=31 // pred_check
          %p292 = pneg %p101
        $region42: #{tpu_custom_call.1} parent=31 // pred_check_branch
          %294 = sbr.rel (%p292) target = $region44
        $region43: #{tpu_custom_call.1} parent=31 // pred_region
          %p295 = scmp.lt.s32.totalorder %s24, 1
          %s296 = scalar_select %p295, %s24, 1
          %s297 = smul.addr %s296, 2
          %s298 = scalar_lea.vmem %s2, %s297
        $region44: #{tpu_custom_call.1} parent=31 // pred_fallthru
          _
        // Predicated region
        $region45: #{tpu_custom_call.1} parent=31 // pred_check
          %p299 = pneg %p213
        $region46: #{tpu_custom_call.1} parent=31 // pred_check_branch
          %301 = sbr.rel (%p299) target = $region48
        $region47: #{tpu_custom_call.1} parent=31 // pred_region
          %s302 = smul.u32 2, %s25
          %p303 = scmp.lt.s32.totalorder %s24, 1
          %s304 = scalar_select %p303, %s24, 1
          %p305 = scmp.lt.s32.totalorder %s302, 3
          %s306 = scalar_select %p305, %s302, 3
          %s307 = smul.addr %s304, 4
          %s308 = sadd.s32 %s306, %s307
          %s309 = smul.addr %s308, 8
          %s310 = scalar_lea.vmem %s7, %s309
          %s311 = smul.u32 2, %s25
        $region48: #{tpu_custom_call.1} parent=31 // pred_fallthru
          _
      $region32: #{tpu_custom_call.1} parent=5 // pred_fallthru
        _
      %p312 = scmp.le.s32.totalorder 1, %s17
      %p313 = scmp.lt.s32.totalorder %s17, 5
      %p314 = pnand %p312, %p313
      %p315 = pneg %p314
      // Predicated region
      $region49: #{tpu_custom_call.1} parent=5 // pred_check
        _
      $region50: #{tpu_custom_call.1} parent=5 // pred_check_branch
        %317 = sbr.rel (%p314) target = $region52
      $region51: #{tpu_custom_call.1} parent=5 // pred_region
        %s318 = ssub.s32 %s17, 1
        %p319 = scmp.lt.s32.totalorder %s26, 1
        %s320 = scalar_select %p319, %s26, 1
        %s321 = smul.addr %s320, 2
        %s322 = scalar_lea.vmem %s0, %s321
        %p323 = pneg %p55
        %p324 = pneg %p52
        %p325 = scmp.lt.s32.totalorder %s26, 1
        %s326 = scalar_select %p325, %s26, 1
        %s327 = smul.addr %s326, 2
        %s328 = scalar_lea.vmem %s1, %s327
        %p329 = pneg %p81
        %p330 = pneg %p78
        %p331 = scmp.lt.s32.totalorder %s26, 1
        %s332 = scalar_select %p331, %s26, 1
        %s333 = smul.addr %s332, 2
        %s334 = scalar_lea.vmem %s2, %s333
        %p335 = pneg %p107
        %p336 = pneg %p104
        %p337 = pneg %p128
        %p338 = pneg %p125
        %p339 = pneg %p149
        %p340 = pneg %p146
        %p341 = pneg %p170
        %p342 = pneg %p167
        %p343 = pneg %p191
        %p344 = pneg %p188
        %s345 = smul.u32 2, %s27
        %p346 = scmp.lt.s32.totalorder %s26, 1
        %s347 = scalar_select %p346, %s26, 1
        %p348 = scmp.lt.s32.totalorder %s345, 3
        %s349 = scalar_select %p348, %s345, 3
        %s350 = smul.addr %s347, 4
        %s351 = sadd.s32 %s349, %s350
        %s352 = smul.addr %s351, 8
        %s353 = scalar_lea.vmem %s7, %s352
        %p354 = pneg %p219
        %p355 = pneg %p216
        %p356 = pneg %p247
        %p357 = pneg %p244
        %s358 = sand.u32 %s234, 1
        %s359 = scalar_lea.sflag [#allocation6], %s358
        %s360 = sand.u32 %s234, 1
        %s361 = smul.addr %s360, 16
        %s362 = scalar_lea.vmem [#allocation5], %s361
        %p363 = scmp.lt.s32.totalorder %s26, 1
        %s364 = scalar_select %p363, %s26, 1
        %s365 = smul.addr %s364, 2
        %s366 = scalar_lea.vmem %s0, %s365
        %p367 = scmp.lt.s32.totalorder %s26, 1
        %s368 = scalar_select %p367, %s26, 1
        %s369 = smul.addr %s368, 2
        %s370 = scalar_lea.vmem %s1, %s369
        %p371 = scmp.lt.s32.totalorder %s26, 1
        %s372 = scalar_select %p371, %s26, 1
        %s373 = smul.addr %s372, 2
        %s374 = scalar_lea.vmem %s2, %s373
        %s375 = smul.u32 2, %s27
        %p376 = scmp.lt.s32.totalorder %s26, 1
        %s377 = scalar_select %p376, %s26, 1
        %p378 = scmp.lt.s32.totalorder %s375, 3
        %s379 = scalar_select %p378, %s375, 3
        %s380 = smul.addr %s377, 4
        %s381 = sadd.s32 %s379, %s380
        %s382 = smul.addr %s381, 8
        %s383 = scalar_lea.vmem %s7, %s382
        %s384 = smul.u32 2, %s27
        %s385 = smul.u32 2, %s27
        %p386 = scmp.eq.s32.totalorder %s27, 0
        // Predicated region
        $region53: #{tpu_custom_call.1} parent=51 // pred_check
          %p387 = pneg %p386
        $region54: #{tpu_custom_call.1} parent=51 // pred_check_branch
          %389 = sbr.rel (%p387) target = $region56
        $region55: #{tpu_custom_call.1} parent=51 // pred_region
          %v390 = vld [vmem:[%s366] sm:$0x3]
          %v391 = vadd.f32 %v390, 1.0
          %v392 = vld [vmem:[%s370] sm:$0x3]
          %v393 = vtanh.pop %v392
          %v394 = vmul.f32 %v393, 2.0
          %v395 = vand.u32 2147483647, %v394
          %v396 = vsub.f32 2.0, %v395
          %v397 = vld [vmem:[%s374] sm:$0x3]
          %v398 = vtanh.pop %v397
          %v399 = vmul.f32 %v396, %v398
          %v400 = vadd.f32 %v399, %v395
          %v401 = vmul.f32 %v400, 0.5
          %v402 = vld [vmem:[%s3] sm:$0x1]
          %v403 = vld [vmem:[%s3 + $0x1] sm:$0x1]
          %v404 = vld [vmem:[%s3 + $0x2] sm:$0x1]
          %v405 = vld [vmem:[%s4] sm:$0x1]
          %v406 = vld [vmem:[%s4 + $0x1] sm:$0x1]
          %v407 = vld [vmem:[%s4 + $0x2] sm:$0x1]
          %409 = vset.pattern.permute.xlu0 0
          %410 = vperm.xlu0 %409, %v391
          %v411 = vpop.permute.xlu0 %410
          %v413 = vperm.slane %v402, 0
          %v414 = vmul.f32 %v411, %v413
          %416 = vset.pattern.permute.xlu0 1
          %417 = vperm.xlu0 %416, %v390
          %v418 = vpop.permute.xlu0 %417
          %v420 = vperm.slane %v403, 0
          %v421 = vmul.f32 %v418, %v420
          %v422 = vadd.f32 %v414, %v421
          %423 = vset.pattern.permute.xlu0 2
          %424 = vperm.xlu0 %423, %v390
          %v425 = vpop.permute.xlu0 %424
          %v427 = vperm.slane %v404, 0
          %v428 = vmul.f32 %v425, %v427
          %v429 = vadd.f32 %v422, %v428
          %v430 = vperm.slane %v405, 0
          %v431 = vmul.f32 %v411, %v430
          %v432 = vperm.slane %v406, 0
          %v433 = vmul.f32 %v418, %v432
          %v434 = vadd.f32 %v431, %v433
          %v435 = vperm.slane %v407, 0
          %v436 = vmul.f32 %v425, %v435
          %v437 = vadd.f32 %v434, %v436
          %v438 = vsub.f32 0.0, %v437
          %440 = vset.pattern.permute.xlu0 0
          %441 = vperm.xlu0 %440, %v394
          %v442 = vpop.permute.xlu0 %441
          %v444 = vmul.f32 %v442, %v420
          %v445 = vadd.f32 %v413, %v444
          %447 = vset.pattern.permute.xlu0 0
          %448 = vperm.xlu0 %447, %v401
          %v449 = vpop.permute.xlu0 %448
          %v451 = vmul.f32 %v449, %v427
          %v452 = vadd.f32 %v445, %v451
          %v453 = vmul.f32 %v442, %v432
          %v454 = vadd.f32 %v430, %v453
          %v455 = vmul.f32 %v449, %v435
          %v456 = vadd.f32 %v454, %v455
          %v457 = vsub.f32 0.0, %v456
          %v458 = vmul.f32 %v452, %v452
          %v459 = vmul.f32 %v457, %v457
          %v460 = vadd.f32 %v458, %v459
          %v461 = vrcp.pop %v460
          %v462 = vmul.f32 %v460, %v461
          %v463 = vsub.f32 2.0, %v462
          %v464 = vmul.f32 %v461, %v463
          %v465 = vmul.f32 %v429, %v452
          %v466 = vmul.f32 %v438, %v457
          %v467 = vadd.f32 %v465, %v466
          %v468 = vmul.f32 %v467, %v464
          %v469 = vmul.f32 %v438, %v452
          %v470 = vmul.f32 %v429, %v457
          %v471 = vsub.f32 %v469, %v470
          %v472 = vmul.f32 %v471, %v464
          %v473 = vmul.f32 %v472, 0.0
          %v474 = vsub.f32 %v468, %v473
          %v475 = vmul.f32 %v468, 0.0
          %v476 = vadd.f32 %v472, %v475
          %v478 = vrot.slane %v468, 1
          %v480 = vmul.f32 %v474, %v478
          %v482 = vrot.slane %v472, 1
          %v484 = vmul.f32 %v476, %v482
          %v485 = vsub.f32 %v480, %v484
          %v486 = vmul.f32 %v474, %v482
          %v487 = vmul.f32 %v476, %v478
          %v488 = vadd.f32 %v486, %v487
          %v489 = vld [vmem:[%s5] sm:$0xff]
          %v490 = vld [vmem:[%s5 + $0x8] sm:$0xff]
          %v491 = vld [vmem:[%s5 + $0x10] sm:$0xff]
          %v492 = vld [vmem:[%s5 + $0x18] sm:$0xff]
          %v493 = vld [vmem:[%s5 + $0x20] sm:$0xff]
          %v494 = vld [vmem:[%s5 + $0x28] sm:$0xff]
          %v495 = vld [vmem:[%s5 + $0x30] sm:$0xff]
          %v496 = vld [vmem:[%s5 + $0x38] sm:$0xff]
          %v497 = vperm.slane %v485, 0
          %v498 = vmul.f32 %v497, %v489
          %v499 = vmul.f32 %v497, %v490
          %v500 = vmul.f32 %v497, %v491
          %v501 = vmul.f32 %v497, %v492
          %v502 = vmul.f32 %v497, %v493
          %v503 = vmul.f32 %v497, %v494
          %v504 = vmul.f32 %v497, %v495
          %v505 = vmul.f32 %v497, %v496
          %v506 = vld [vmem:[%s6] sm:$0xff]
          %v507 = vld [vmem:[%s6 + $0x8] sm:$0xff]
          %v508 = vld [vmem:[%s6 + $0x10] sm:$0xff]
          %v509 = vld [vmem:[%s6 + $0x18] sm:$0xff]
          %v510 = vld [vmem:[%s6 + $0x20] sm:$0xff]
          %v511 = vld [vmem:[%s6 + $0x28] sm:$0xff]
          %v512 = vld [vmem:[%s6 + $0x30] sm:$0xff]
          %v513 = vld [vmem:[%s6 + $0x38] sm:$0xff]
          %v514 = vperm.slane %v488, 0
          %v515 = vmul.f32 %v514, %v506
          %v516 = vmul.f32 %v514, %v507
          %v517 = vmul.f32 %v514, %v508
          %v518 = vmul.f32 %v514, %v509
          %v519 = vmul.f32 %v514, %v510
          %v520 = vmul.f32 %v514, %v511
          %v521 = vmul.f32 %v514, %v512
          %v522 = vmul.f32 %v514, %v513
          %v523 = vadd.f32 %v498, %v515
          %v524 = vadd.f32 %v499, %v516
          %v525 = vadd.f32 %v500, %v517
          %v526 = vadd.f32 %v501, %v518
          %v527 = vadd.f32 %v502, %v519
          %v528 = vadd.f32 %v503, %v520
          %v529 = vadd.f32 %v504, %v521
          %v530 = vadd.f32 %v505, %v522
          %vm531 = vcmask 269312
          %v532 = vsel %vm531, %v523, 0.0
          %533 = vadd.xlane.f32.xlu0 %v532
          %v534 = vpop.xlane.xlu0 %533
          %v535 = vsel %vm531, %v524, 0.0
          %536 = vadd.xlane.f32.xlu0 %v535
          %v537 = vpop.xlane.xlu0 %536
          %v538 = vsel %vm531, %v525, 0.0
          %539 = vadd.xlane.f32.xlu0 %v538
          %v540 = vpop.xlane.xlu0 %539
          %v541 = vsel %vm531, %v526, 0.0
          %542 = vadd.xlane.f32.xlu0 %v541
          %v543 = vpop.xlane.xlu0 %542
          %v544 = vsel %vm531, %v527, 0.0
          %545 = vadd.xlane.f32.xlu0 %v544
          %v546 = vpop.xlane.xlu0 %545
          %v547 = vsel %vm531, %v528, 0.0
          %548 = vadd.xlane.f32.xlu0 %v547
          %v549 = vpop.xlane.xlu0 %548
          %v550 = vsel %vm531, %v529, 0.0
          %551 = vadd.xlane.f32.xlu0 %v550
          %v552 = vpop.xlane.xlu0 %551
          %v553 = vsel %vm531, %v530, 0.0
          %554 = vadd.xlane.f32.xlu0 %v553
          %v555 = vpop.xlane.xlu0 %554
          %v556 = vlaneseq
          %v557 = vshrl.u32 %v556, 7
          %v558 = vadd.s32 %v557, 8
          %v559 = vadd.s32 %v557, 16
          %v560 = vadd.s32 %v557, 24
          %v561 = vadd.s32 %v557, 32
          %v562 = vadd.s32 %v557, 40
          %v563 = vadd.s32 %v557, 48
          %v564 = vadd.s32 %v557, 56
          %v565 = vadd.s32 %v557, 64
          %v566 = vadd.s32 %v557, 72
          %v567 = vadd.s32 %v557, 80
          %v568 = vadd.s32 %v557, 88
          %v569 = vadd.s32 %v557, 96
          %v570 = vadd.s32 %v557, 104
          %v571 = vadd.s32 %v557, 112
          %v572 = vadd.s32 %v557, 120
          %v573 = vlaneseq
          %v574 = vand.u32 %v573, 127
          %v575 = vsub.s32 %v574, %v557
          %v576 = vsub.s32 %v574, %v558
          %v577 = vsub.s32 %v574, %v559
          %v578 = vsub.s32 %v574, %v560
          %v579 = vsub.s32 %v574, %v561
          %v580 = vsub.s32 %v574, %v562
          %v581 = vsub.s32 %v574, %v563
          %v582 = vsub.s32 %v574, %v564
          %v583 = vsub.s32 %v574, %v565
          %v584 = vsub.s32 %v574, %v566
          %v585 = vsub.s32 %v574, %v567
          %v586 = vsub.s32 %v574, %v568
          %v587 = vsub.s32 %v574, %v569
          %v588 = vsub.s32 %v574, %v570
          %v589 = vsub.s32 %v574, %v571
          %v590 = vsub.s32 %v574, %v572
          %vm591 = vcmp.eq.s32.totalorder %v575, 0
          %vm592 = vcmp.eq.s32.totalorder %v576, 0
          %vm593 = vcmp.eq.s32.totalorder %v577, 0
          %vm594 = vcmp.eq.s32.totalorder %v578, 0
          %vm595 = vcmp.eq.s32.totalorder %v579, 0
          %vm596 = vcmp.eq.s32.totalorder %v580, 0
          %vm597 = vcmp.eq.s32.totalorder %v581, 0
          %vm598 = vcmp.eq.s32.totalorder %v582, 0
          %vm599 = vcmp.eq.s32.totalorder %v583, 0
          %vm600 = vcmp.eq.s32.totalorder %v584, 0
          %vm601 = vcmp.eq.s32.totalorder %v585, 0
          %vm602 = vcmp.eq.s32.totalorder %v586, 0
          %vm603 = vcmp.eq.s32.totalorder %v587, 0
          %vm604 = vcmp.eq.s32.totalorder %v588, 0
          %vm605 = vcmp.eq.s32.totalorder %v589, 0
          %vm606 = vcmp.eq.s32.totalorder %v590, 0
          %v607 = vperm.slane %v534, 0
          %v608 = vsel %vm591, %v607, 0.0
          %v609 = vsel %vm592, %v607, 0.0
          %v610 = vsel %vm593, %v607, 0.0
          %v611 = vsel %vm594, %v607, 0.0
          %v612 = vsel %vm595, %v607, 0.0
          %v613 = vsel %vm596, %v607, 0.0
          %v614 = vsel %vm597, %v607, 0.0
          %v615 = vsel %vm598, %v607, 0.0
          %v616 = vsel %vm599, %v607, 0.0
          %v617 = vsel %vm600, %v607, 0.0
          %v618 = vsel %vm601, %v607, 0.0
          %v619 = vsel %vm602, %v607, 0.0
          %v620 = vsel %vm603, %v607, 0.0
          %v621 = vsel %vm604, %v607, 0.0
          %v622 = vsel %vm605, %v607, 0.0
          %v623 = vsel %vm606, %v607, 0.0
          %vm624 = vcmp.eq.s32.totalorder %v575, 1
          %vm625 = vcmp.eq.s32.totalorder %v576, 1
          %vm626 = vcmp.eq.s32.totalorder %v577, 1
          %vm627 = vcmp.eq.s32.totalorder %v578, 1
          %vm628 = vcmp.eq.s32.totalorder %v579, 1
          %vm629 = vcmp.eq.s32.totalorder %v580, 1
          %vm630 = vcmp.eq.s32.totalorder %v581, 1
          %vm631 = vcmp.eq.s32.totalorder %v582, 1
          %vm632 = vcmp.eq.s32.totalorder %v583, 1
          %vm633 = vcmp.eq.s32.totalorder %v584, 1
          %vm634 = vcmp.eq.s32.totalorder %v585, 1
          %vm635 = vcmp.eq.s32.totalorder %v586, 1
          %vm636 = vcmp.eq.s32.totalorder %v587, 1
          %vm637 = vcmp.eq.s32.totalorder %v588, 1
          %vm638 = vcmp.eq.s32.totalorder %v589, 1
          %vm639 = vcmp.eq.s32.totalorder %v590, 1
          %v640 = vperm.slane %v534, 1
          %v641 = vsel %vm624, %v640, %v608
          %v642 = vsel %vm625, %v640, %v609
          %v643 = vsel %vm626, %v640, %v610
          %v644 = vsel %vm627, %v640, %v611
          %v645 = vsel %vm628, %v640, %v612
          %v646 = vsel %vm629, %v640, %v613
          %v647 = vsel %vm630, %v640, %v614
          %v648 = vsel %vm631, %v640, %v615
          %v649 = vsel %vm632, %v640, %v616
          %v650 = vsel %vm633, %v640, %v617
          %v651 = vsel %vm634, %v640, %v618
          %v652 = vsel %vm635, %v640, %v619
          %v653 = vsel %vm636, %v640, %v620
          %v654 = vsel %vm637, %v640, %v621
          %v655 = vsel %vm638, %v640, %v622
          %v656 = vsel %vm639, %v640, %v623
          %vm657 = vcmp.eq.s32.totalorder %v575, 4294967169
          %vm658 = vcmp.eq.s32.totalorder %v576, 4294967169
          %vm659 = vcmp.eq.s32.totalorder %v577, 4294967169
          %vm660 = vcmp.eq.s32.totalorder %v578, 4294967169
          %vm661 = vcmp.eq.s32.totalorder %v579, 4294967169
          %vm662 = vcmp.eq.s32.totalorder %v580, 4294967169
          %vm663 = vcmp.eq.s32.totalorder %v581, 4294967169
          %vm664 = vcmp.eq.s32.totalorder %v582, 4294967169
          %vm665 = vcmp.eq.s32.totalorder %v583, 4294967169
          %vm666 = vcmp.eq.s32.totalorder %v584, 4294967169
          %vm667 = vcmp.eq.s32.totalorder %v585, 4294967169
          %vm668 = vcmp.eq.s32.totalorder %v586, 4294967169
          %vm669 = vcmp.eq.s32.totalorder %v587, 4294967169
          %vm670 = vcmp.eq.s32.totalorder %v588, 4294967169
          %vm671 = vcmp.eq.s32.totalorder %v589, 4294967169
          %vm672 = vcmp.eq.s32.totalorder %v590, 4294967169
          %v673 = vsel %vm657, %v640, 0.0
          %v674 = vsel %vm658, %v640, 0.0
          %v675 = vsel %vm659, %v640, 0.0
          %v676 = vsel %vm660, %v640, 0.0
          %v677 = vsel %vm661, %v640, 0.0
          %v678 = vsel %vm662, %v640, 0.0
          %v679 = vsel %vm663, %v640, 0.0
          %v680 = vsel %vm664, %v640, 0.0
          %v681 = vsel %vm665, %v640, 0.0
          %v682 = vsel %vm666, %v640, 0.0
          %v683 = vsel %vm667, %v640, 0.0
          %v684 = vsel %vm668, %v640, 0.0
          %v685 = vsel %vm669, %v640, 0.0
          %v686 = vsel %vm670, %v640, 0.0
          %v687 = vsel %vm671, %v640, 0.0
          %v688 = vsel %vm672, %v640, 0.0
          %vm689 = vcmp.eq.s32.totalorder %v575, 2
          %vm690 = vcmp.eq.s32.totalorder %v576, 2
          %vm691 = vcmp.eq.s32.totalorder %v577, 2
          %vm692 = vcmp.eq.s32.totalorder %v578, 2
          %vm693 = vcmp.eq.s32.totalorder %v579, 2
          %vm694 = vcmp.eq.s32.totalorder %v580, 2
          %vm695 = vcmp.eq.s32.totalorder %v581, 2
          %vm696 = vcmp.eq.s32.totalorder %v582, 2
          %vm697 = vcmp.eq.s32.totalorder %v583, 2
          %vm698 = vcmp.eq.s32.totalorder %v584, 2
          %vm699 = vcmp.eq.s32.totalorder %v585, 2
          %vm700 = vcmp.eq.s32.totalorder %v586, 2
          %vm701 = vcmp.eq.s32.totalorder %v587, 2
          %vm702 = vcmp.eq.s32.totalorder %v588, 2
          %vm703 = vcmp.eq.s32.totalorder %v589, 2
          %vm704 = vcmp.eq.s32.totalorder %v590, 2
          %v705 = vperm.slane %v534, 2
          %v706 = vsel %vm689, %v705, %v641
          %v707 = vsel %vm690, %v705, %v642
          %v708 = vsel %vm691, %v705, %v643
          %v709 = vsel %vm692, %v705, %v644
          %v710 = vsel %vm693, %v705, %v645
          %v711 = vsel %vm694, %v705, %v646
          %v712 = vsel %vm695, %v705, %v647
          %v713 = vsel %vm696, %v705, %v648
          %v714 = vsel %vm697, %v705, %v649
          %v715 = vsel %vm698, %v705, %v650
          %v716 = vsel %vm699, %v705, %v651
          %v717 = vsel %vm700, %v705, %v652
          %v718 = vsel %vm701, %v705, %v653
          %v719 = vsel %vm702, %v705, %v654
          %v720 = vsel %vm703, %v705, %v655
          %v721 = vsel %vm704, %v705, %v656
          %vm722 = vcmp.eq.s32.totalorder %v575, 4294967170
          %vm723 = vcmp.eq.s32.totalorder %v576, 4294967170
          %vm724 = vcmp.eq.s32.totalorder %v577, 4294967170
          %vm725 = vcmp.eq.s32.totalorder %v578, 4294967170
          %vm726 = vcmp.eq.s32.totalorder %v579, 4294967170
          %vm727 = vcmp.eq.s32.totalorder %v580, 4294967170
          %vm728 = vcmp.eq.s32.totalorder %v581, 4294967170
          %vm729 = vcmp.eq.s32.totalorder %v582, 4294967170
          %vm730 = vcmp.eq.s32.totalorder %v583, 4294967170
          %vm731 = vcmp.eq.s32.totalorder %v584, 4294967170
          %vm732 = vcmp.eq.s32.totalorder %v585, 4294967170
          %vm733 = vcmp.eq.s32.totalorder %v586, 4294967170
          %vm734 = vcmp.eq.s32.totalorder %v587, 4294967170
          %vm735 = vcmp.eq.s32.totalorder %v588, 4294967170
          %vm736 = vcmp.eq.s32.totalorder %v589, 4294967170
          %vm737 = vcmp.eq.s32.totalorder %v590, 4294967170
          %v738 = vsel %vm722, %v705, %v673
          %v739 = vsel %vm723, %v705, %v674
          %v740 = vsel %vm724, %v705, %v675
          %v741 = vsel %vm725, %v705, %v676
          %v742 = vsel %vm726, %v705, %v677
          %v743 = vsel %vm727, %v705, %v678
          %v744 = vsel %vm728, %v705, %v679
          %v745 = vsel %vm729, %v705, %v680
          %v746 = vsel %vm730, %v705, %v681
          %v747 = vsel %vm731, %v705, %v682
          %v748 = vsel %vm732, %v705, %v683
          %v749 = vsel %vm733, %v705, %v684
          %v750 = vsel %vm734, %v705, %v685
          %v751 = vsel %vm735, %v705, %v686
          %v752 = vsel %vm736, %v705, %v687
          %v753 = vsel %vm737, %v705, %v688
          %vm754 = vcmp.eq.s32.totalorder %v575, 3
          %vm755 = vcmp.eq.s32.totalorder %v576, 3
          %vm756 = vcmp.eq.s32.totalorder %v577, 3
          %vm757 = vcmp.eq.s32.totalorder %v578, 3
          %vm758 = vcmp.eq.s32.totalorder %v579, 3
          %vm759 = vcmp.eq.s32.totalorder %v580, 3
          %vm760 = vcmp.eq.s32.totalorder %v581, 3
          %vm761 = vcmp.eq.s32.totalorder %v582, 3
          %vm762 = vcmp.eq.s32.totalorder %v583, 3
          %vm763 = vcmp.eq.s32.totalorder %v584, 3
          %vm764 = vcmp.eq.s32.totalorder %v585, 3
          %vm765 = vcmp.eq.s32.totalorder %v586, 3
          %vm766 = vcmp.eq.s32.totalorder %v587, 3
          %vm767 = vcmp.eq.s32.totalorder %v588, 3
          %vm768 = vcmp.eq.s32.totalorder %v589, 3
          %vm769 = vcmp.eq.s32.totalorder %v590, 3
          %v770 = vperm.slane %v534, 3
          %v771 = vsel %vm754, %v770, %v706
          %v772 = vsel %vm755, %v770, %v707
          %v773 = vsel %vm756, %v770, %v708
          %v774 = vsel %vm757, %v770, %v709
          %v775 = vsel %vm758, %v770, %v710
          %v776 = vsel %vm759, %v770, %v711
          %v777 = vsel %vm760, %v770, %v712
          %v778 = vsel %vm761, %v770, %v713
          %v779 = vsel %vm762, %v770, %v714
          %v780 = vsel %vm763, %v770, %v715
          %v781 = vsel %vm764, %v770, %v716
          %v782 = vsel %vm765, %v770, %v717
          %v783 = vsel %vm766, %v770, %v718
          %v784 = vsel %vm767, %v770, %v719
          %v785 = vsel %vm768, %v770, %v720
          %v786 = vsel %vm769, %v770, %v721
          %vm787 = vcmp.eq.s32.totalorder %v575, 4294967171
          %vm788 = vcmp.eq.s32.totalorder %v576, 4294967171
          %vm789 = vcmp.eq.s32.totalorder %v577, 4294967171
          %vm790 = vcmp.eq.s32.totalorder %v578, 4294967171
          %vm791 = vcmp.eq.s32.totalorder %v579, 4294967171
          %vm792 = vcmp.eq.s32.totalorder %v580, 4294967171
          %vm793 = vcmp.eq.s32.totalorder %v581, 4294967171
          %vm794 = vcmp.eq.s32.totalorder %v582, 4294967171
          %vm795 = vcmp.eq.s32.totalorder %v583, 4294967171
          %vm796 = vcmp.eq.s32.totalorder %v584, 4294967171
          %vm797 = vcmp.eq.s32.totalorder %v585, 4294967171
          %vm798 = vcmp.eq.s32.totalorder %v586, 4294967171
          %vm799 = vcmp.eq.s32.totalorder %v587, 4294967171
          %vm800 = vcmp.eq.s32.totalorder %v588, 4294967171
          %vm801 = vcmp.eq.s32.totalorder %v589, 4294967171
          %vm802 = vcmp.eq.s32.totalorder %v590, 4294967171
          %v803 = vsel %vm787, %v770, %v738
          %v804 = vsel %vm788, %v770, %v739
          %v805 = vsel %vm789, %v770, %v740
          %v806 = vsel %vm790, %v770, %v741
          %v807 = vsel %vm791, %v770, %v742
          %v808 = vsel %vm792, %v770, %v743
          %v809 = vsel %vm793, %v770, %v744
          %v810 = vsel %vm794, %v770, %v745
          %v811 = vsel %vm795, %v770, %v746
          %v812 = vsel %vm796, %v770, %v747
          %v813 = vsel %vm797, %v770, %v748
          %v814 = vsel %vm798, %v770, %v749
          %v815 = vsel %vm799, %v770, %v750
          %v816 = vsel %vm800, %v770, %v751
          %v817 = vsel %vm801, %v770, %v752
          %v818 = vsel %vm802, %v770, %v753
          %vm819 = vcmp.eq.s32.totalorder %v575, 4
          %vm820 = vcmp.eq.s32.totalorder %v576, 4
          %vm821 = vcmp.eq.s32.totalorder %v577, 4
          %vm822 = vcmp.eq.s32.totalorder %v578, 4
          %vm823 = vcmp.eq.s32.totalorder %v579, 4
          %vm824 = vcmp.eq.s32.totalorder %v580, 4
          %vm825 = vcmp.eq.s32.totalorder %v581, 4
          %vm826 = vcmp.eq.s32.totalorder %v582, 4
          %vm827 = vcmp.eq.s32.totalorder %v583, 4
          %vm828 = vcmp.eq.s32.totalorder %v584, 4
          %vm829 = vcmp.eq.s32.totalorder %v585, 4
          %vm830 = vcmp.eq.s32.totalorder %v586, 4
          %vm831 = vcmp.eq.s32.totalorder %v587, 4
          %vm832 = vcmp.eq.s32.totalorder %v588, 4
          %vm833 = vcmp.eq.s32.totalorder %v589, 4
          %vm834 = vcmp.eq.s32.totalorder %v590, 4
          %v835 = vperm.slane %v534, 4
          %v836 = vsel %vm819, %v835, %v771
          %v837 = vsel %vm820, %v835, %v772
          %v838 = vsel %vm821, %v835, %v773
          %v839 = vsel %vm822, %v835, %v774
          %v840 = vsel %vm823, %v835, %v775
          %v841 = vsel %vm824, %v835, %v776
          %v842 = vsel %vm825, %v835, %v777
          %v843 = vsel %vm826, %v835, %v778
          %v844 = vsel %vm827, %v835, %v779
          %v845 = vsel %vm828, %v835, %v780
          %v846 = vsel %vm829, %v835, %v781
          %v847 = vsel %vm830, %v835, %v782
          %v848 = vsel %vm831, %v835, %v783
          %v849 = vsel %vm832, %v835, %v784
          %v850 = vsel %vm833, %v835, %v785
          %v851 = vsel %vm834, %v835, %v786
          %vm852 = vcmp.eq.s32.totalorder %v575, 4294967172
          %vm853 = vcmp.eq.s32.totalorder %v576, 4294967172
          %vm854 = vcmp.eq.s32.totalorder %v577, 4294967172
          %vm855 = vcmp.eq.s32.totalorder %v578, 4294967172
          %vm856 = vcmp.eq.s32.totalorder %v579, 4294967172
          %vm857 = vcmp.eq.s32.totalorder %v580, 4294967172
          %vm858 = vcmp.eq.s32.totalorder %v581, 4294967172
          %vm859 = vcmp.eq.s32.totalorder %v582, 4294967172
          %vm860 = vcmp.eq.s32.totalorder %v583, 4294967172
          %vm861 = vcmp.eq.s32.totalorder %v584, 4294967172
          %vm862 = vcmp.eq.s32.totalorder %v585, 4294967172
          %vm863 = vcmp.eq.s32.totalorder %v586, 4294967172
          %vm864 = vcmp.eq.s32.totalorder %v587, 4294967172
          %vm865 = vcmp.eq.s32.totalorder %v588, 4294967172
          %vm866 = vcmp.eq.s32.totalorder %v589, 4294967172
          %vm867 = vcmp.eq.s32.totalorder %v590, 4294967172
          %v868 = vsel %vm852, %v835, %v803
          %v869 = vsel %vm853, %v835, %v804
          %v870 = vsel %vm854, %v835, %v805
          %v871 = vsel %vm855, %v835, %v806
          %v872 = vsel %vm856, %v835, %v807
          %v873 = vsel %vm857, %v835, %v808
          %v874 = vsel %vm858, %v835, %v809
          %v875 = vsel %vm859, %v835, %v810
          %v876 = vsel %vm860, %v835, %v811
          %v877 = vsel %vm861, %v835, %v812
          %v878 = vsel %vm862, %v835, %v813
          %v879 = vsel %vm863, %v835, %v814
          %v880 = vsel %vm864, %v835, %v815
          %v881 = vsel %vm865, %v835, %v816
          %v882 = vsel %vm866, %v835, %v817
          %v883 = vsel %vm867, %v835, %v818
          %vm884 = vcmp.eq.s32.totalorder %v575, 5
          %vm885 = vcmp.eq.s32.totalorder %v576, 5
          %vm886 = vcmp.eq.s32.totalorder %v577, 5
          %vm887 = vcmp.eq.s32.totalorder %v578, 5
          %vm888 = vcmp.eq.s32.totalorder %v579, 5
          %vm889 = vcmp.eq.s32.totalorder %v580, 5
          %vm890 = vcmp.eq.s32.totalorder %v581, 5
          %vm891 = vcmp.eq.s32.totalorder %v582, 5
          %vm892 = vcmp.eq.s32.totalorder %v583, 5
          %vm893 = vcmp.eq.s32.totalorder %v584, 5
          %vm894 = vcmp.eq.s32.totalorder %v585, 5
          %vm895 = vcmp.eq.s32.totalorder %v586, 5
          %vm896 = vcmp.eq.s32.totalorder %v587, 5
          %vm897 = vcmp.eq.s32.totalorder %v588, 5
          %vm898 = vcmp.eq.s32.totalorder %v589, 5
          %vm899 = vcmp.eq.s32.totalorder %v590, 5
          %v900 = vperm.slane %v534, 5
          %v901 = vsel %vm884, %v900, %v836
          %v902 = vsel %vm885, %v900, %v837
          %v903 = vsel %vm886, %v900, %v838
          %v904 = vsel %vm887, %v900, %v839
          %v905 = vsel %vm888, %v900, %v840
          %v906 = vsel %vm889, %v900, %v841
          %v907 = vsel %vm890, %v900, %v842
          %v908 = vsel %vm891, %v900, %v843
          %v909 = vsel %vm892, %v900, %v844
          %v910 = vsel %vm893, %v900, %v845
          %v911 = vsel %vm894, %v900, %v846
          %v912 = vsel %vm895, %v900, %v847
          %v913 = vsel %vm896, %v900, %v848
          %v914 = vsel %vm897, %v900, %v849
          %v915 = vsel %vm898, %v900, %v850
          %v916 = vsel %vm899, %v900, %v851
          %vm917 = vcmp.eq.s32.totalorder %v575, 4294967173
          %vm918 = vcmp.eq.s32.totalorder %v576, 4294967173
          %vm919 = vcmp.eq.s32.totalorder %v577, 4294967173
          %vm920 = vcmp.eq.s32.totalorder %v578, 4294967173
          %vm921 = vcmp.eq.s32.totalorder %v579, 4294967173
          %vm922 = vcmp.eq.s32.totalorder %v580, 4294967173
          %vm923 = vcmp.eq.s32.totalorder %v581, 4294967173
          %vm924 = vcmp.eq.s32.totalorder %v582, 4294967173
          %vm925 = vcmp.eq.s32.totalorder %v583, 4294967173
          %vm926 = vcmp.eq.s32.totalorder %v584, 4294967173
          %vm927 = vcmp.eq.s32.totalorder %v585, 4294967173
          %vm928 = vcmp.eq.s32.totalorder %v586, 4294967173
          %vm929 = vcmp.eq.s32.totalorder %v587, 4294967173
          %vm930 = vcmp.eq.s32.totalorder %v588, 4294967173
          %vm931 = vcmp.eq.s32.totalorder %v589, 4294967173
          %vm932 = vcmp.eq.s32.totalorder %v590, 4294967173
          %v933 = vsel %vm917, %v900, %v868
          %v934 = vsel %vm918, %v900, %v869
          %v935 = vsel %vm919, %v900, %v870
          %v936 = vsel %vm920, %v900, %v871
          %v937 = vsel %vm921, %v900, %v872
          %v938 = vsel %vm922, %v900, %v873
          %v939 = vsel %vm923, %v900, %v874
          %v940 = vsel %vm924, %v900, %v875
          %v941 = vsel %vm925, %v900, %v876
          %v942 = vsel %vm926, %v900, %v877
          %v943 = vsel %vm927, %v900, %v878
          %v944 = vsel %vm928, %v900, %v879
          %v945 = vsel %vm929, %v900, %v880
          %v946 = vsel %vm930, %v900, %v881
          %v947 = vsel %vm931, %v900, %v882
          %v948 = vsel %vm932, %v900, %v883
          %vm949 = vcmp.eq.s32.totalorder %v575, 6
          %vm950 = vcmp.eq.s32.totalorder %v576, 6
          %vm951 = vcmp.eq.s32.totalorder %v577, 6
          %vm952 = vcmp.eq.s32.totalorder %v578, 6
          %vm953 = vcmp.eq.s32.totalorder %v579, 6
          %vm954 = vcmp.eq.s32.totalorder %v580, 6
          %vm955 = vcmp.eq.s32.totalorder %v581, 6
          %vm956 = vcmp.eq.s32.totalorder %v582, 6
          %vm957 = vcmp.eq.s32.totalorder %v583, 6
          %vm958 = vcmp.eq.s32.totalorder %v584, 6
          %vm959 = vcmp.eq.s32.totalorder %v585, 6
          %vm960 = vcmp.eq.s32.totalorder %v586, 6
          %vm961 = vcmp.eq.s32.totalorder %v587, 6
          %vm962 = vcmp.eq.s32.totalorder %v588, 6
          %vm963 = vcmp.eq.s32.totalorder %v589, 6
          %vm964 = vcmp.eq.s32.totalorder %v590, 6
          %v965 = vperm.slane %v534, 6
          %v966 = vsel %vm949, %v965, %v901
          %v967 = vsel %vm950, %v965, %v902
          %v968 = vsel %vm951, %v965, %v903
          %v969 = vsel %vm952, %v965, %v904
          %v970 = vsel %vm953, %v965, %v905
          %v971 = vsel %vm954, %v965, %v906
          %v972 = vsel %vm955, %v965, %v907
          %v973 = vsel %vm956, %v965, %v908
          %v974 = vsel %vm957, %v965, %v909
          %v975 = vsel %vm958, %v965, %v910
          %v976 = vsel %vm959, %v965, %v911
          %v977 = vsel %vm960, %v965, %v912
          %v978 = vsel %vm961, %v965, %v913
          %v979 = vsel %vm962, %v965, %v914
          %v980 = vsel %vm963, %v965, %v915
          %v981 = vsel %vm964, %v965, %v916
          %vm982 = vcmp.eq.s32.totalorder %v575, 4294967174
          %vm983 = vcmp.eq.s32.totalorder %v576, 4294967174
          %vm984 = vcmp.eq.s32.totalorder %v577, 4294967174
          %vm985 = vcmp.eq.s32.totalorder %v578, 4294967174
          %vm986 = vcmp.eq.s32.totalorder %v579, 4294967174
          %vm987 = vcmp.eq.s32.totalorder %v580, 4294967174
          %vm988 = vcmp.eq.s32.totalorder %v581, 4294967174
          %vm989 = vcmp.eq.s32.totalorder %v582, 4294967174
          %vm990 = vcmp.eq.s32.totalorder %v583, 4294967174
          %vm991 = vcmp.eq.s32.totalorder %v584, 4294967174
          %vm992 = vcmp.eq.s32.totalorder %v585, 4294967174
          %vm993 = vcmp.eq.s32.totalorder %v586, 4294967174
          %vm994 = vcmp.eq.s32.totalorder %v587, 4294967174
          %vm995 = vcmp.eq.s32.totalorder %v588, 4294967174
          %vm996 = vcmp.eq.s32.totalorder %v589, 4294967174
          %vm997 = vcmp.eq.s32.totalorder %v590, 4294967174
          %v998 = vsel %vm982, %v965, %v933
          %v999 = vsel %vm983, %v965, %v934
          %v1000 = vsel %vm984, %v965, %v935
          %v1001 = vsel %vm985, %v965, %v936
          %v1002 = vsel %vm986, %v965, %v937
          %v1003 = vsel %vm987, %v965, %v938
          %v1004 = vsel %vm988, %v965, %v939
          %v1005 = vsel %vm989, %v965, %v940
          %v1006 = vsel %vm990, %v965, %v941
          %v1007 = vsel %vm991, %v965, %v942
          %v1008 = vsel %vm992, %v965, %v943
          %v1009 = vsel %vm993, %v965, %v944
          %v1010 = vsel %vm994, %v965, %v945
          %v1011 = vsel %vm995, %v965, %v946
          %v1012 = vsel %vm996, %v965, %v947
          %v1013 = vsel %vm997, %v965, %v948
          %vm1014 = vcmp.eq.s32.totalorder %v575, 7
          %vm1015 = vcmp.eq.s32.totalorder %v576, 7
          %vm1016 = vcmp.eq.s32.totalorder %v577, 7
          %vm1017 = vcmp.eq.s32.totalorder %v578, 7
          %vm1018 = vcmp.eq.s32.totalorder %v579, 7
          %vm1019 = vcmp.eq.s32.totalorder %v580, 7
          %vm1020 = vcmp.eq.s32.totalorder %v581, 7
          %vm1021 = vcmp.eq.s32.totalorder %v582, 7
          %vm1022 = vcmp.eq.s32.totalorder %v583, 7
          %vm1023 = vcmp.eq.s32.totalorder %v584, 7
          %vm1024 = vcmp.eq.s32.totalorder %v585, 7
          %vm1025 = vcmp.eq.s32.totalorder %v586, 7
          %vm1026 = vcmp.eq.s32.totalorder %v587, 7
          %vm1027 = vcmp.eq.s32.totalorder %v588, 7
          %vm1028 = vcmp.eq.s32.totalorder %v589, 7
          %vm1029 = vcmp.eq.s32.totalorder %v590, 7
          %v1030 = vperm.slane %v534, 7
          %v1031 = vsel %vm1014, %v1030, %v966
          %v1032 = vsel %vm1015, %v1030, %v967
          %v1033 = vsel %vm1016, %v1030, %v968
          %v1034 = vsel %vm1017, %v1030, %v969
          %v1035 = vsel %vm1018, %v1030, %v970
          %v1036 = vsel %vm1019, %v1030, %v971
          %v1037 = vsel %vm1020, %v1030, %v972
          %v1038 = vsel %vm1021, %v1030, %v973
          %v1039 = vsel %vm1022, %v1030, %v974
          %v1040 = vsel %vm1023, %v1030, %v975
          %v1041 = vsel %vm1024, %v1030, %v976
          %v1042 = vsel %vm1025, %v1030, %v977
          %v1043 = vsel %vm1026, %v1030, %v978
          %v1044 = vsel %vm1027, %v1030, %v979
          %v1045 = vsel %vm1028, %v1030, %v980
          %v1046 = vsel %vm1029, %v1030, %v981
          %vm1047 = vcmp.eq.s32.totalorder %v575, 4294967175
          %vm1048 = vcmp.eq.s32.totalorder %v576, 4294967175
          %vm1049 = vcmp.eq.s32.totalorder %v577, 4294967175
          %vm1050 = vcmp.eq.s32.totalorder %v578, 4294967175
          %vm1051 = vcmp.eq.s32.totalorder %v579, 4294967175
          %vm1052 = vcmp.eq.s32.totalorder %v580, 4294967175
          %vm1053 = vcmp.eq.s32.totalorder %v581, 4294967175
          %vm1054 = vcmp.eq.s32.totalorder %v582, 4294967175
          %vm1055 = vcmp.eq.s32.totalorder %v583, 4294967175
          %vm1056 = vcmp.eq.s32.totalorder %v584, 4294967175
          %vm1057 = vcmp.eq.s32.totalorder %v585, 4294967175
          %vm1058 = vcmp.eq.s32.totalorder %v586, 4294967175
          %vm1059 = vcmp.eq.s32.totalorder %v587, 4294967175
          %vm1060 = vcmp.eq.s32.totalorder %v588, 4294967175
          %vm1061 = vcmp.eq.s32.totalorder %v589, 4294967175
          %vm1062 = vcmp.eq.s32.totalorder %v590, 4294967175
          %v1063 = vsel %vm1047, %v1030, %v998
          %v1064 = vsel %vm1048, %v1030, %v999
          %v1065 = vsel %vm1049, %v1030, %v1000
          %v1066 = vsel %vm1050, %v1030, %v1001
          %v1067 = vsel %vm1051, %v1030, %v1002
          %v1068 = vsel %vm1052, %v1030, %v1003
          %v1069 = vsel %vm1053, %v1030, %v1004
          %v1070 = vsel %vm1054, %v1030, %v1005
          %v1071 = vsel %vm1055, %v1030, %v1006
          %v1072 = vsel %vm1056, %v1030, %v1007
          %v1073 = vsel %vm1057, %v1030, %v1008
          %v1074 = vsel %vm1058, %v1030, %v1009
          %v1075 = vsel %vm1059, %v1030, %v1010
          %v1076 = vsel %vm1060, %v1030, %v1011
          %v1077 = vsel %vm1061, %v1030, %v1012
          %v1078 = vsel %vm1062, %v1030, %v1013
          %vm1079 = vcmp.eq.s32.totalorder %v575, 8
          %vm1080 = vcmp.eq.s32.totalorder %v576, 8
          %vm1081 = vcmp.eq.s32.totalorder %v577, 8
          %vm1082 = vcmp.eq.s32.totalorder %v578, 8
          %vm1083 = vcmp.eq.s32.totalorder %v579, 8
          %vm1084 = vcmp.eq.s32.totalorder %v580, 8
          %vm1085 = vcmp.eq.s32.totalorder %v581, 8
          %vm1086 = vcmp.eq.s32.totalorder %v582, 8
          %vm1087 = vcmp.eq.s32.totalorder %v583, 8
          %vm1088 = vcmp.eq.s32.totalorder %v584, 8
          %vm1089 = vcmp.eq.s32.totalorder %v585, 8
          %vm1090 = vcmp.eq.s32.totalorder %v586, 8
          %vm1091 = vcmp.eq.s32.totalorder %v587, 8
          %vm1092 = vcmp.eq.s32.totalorder %v588, 8
          %vm1093 = vcmp.eq.s32.totalorder %v589, 8
          %vm1094 = vcmp.eq.s32.totalorder %v590, 8
          %v1095 = vperm.slane %v537, 0
          %v1096 = vsel %vm1079, %v1095, %v1031
          %v1097 = vsel %vm1080, %v1095, %v1032
          %v1098 = vsel %vm1081, %v1095, %v1033
          %v1099 = vsel %vm1082, %v1095, %v1034
          %v1100 = vsel %vm1083, %v1095, %v1035
          %v1101 = vsel %vm1084, %v1095, %v1036
          %v1102 = vsel %vm1085, %v1095, %v1037
          %v1103 = vsel %vm1086, %v1095, %v1038
          %v1104 = vsel %vm1087, %v1095, %v1039
          %v1105 = vsel %vm1088, %v1095, %v1040
          %v1106 = vsel %vm1089, %v1095, %v1041
          %v1107 = vsel %vm1090, %v1095, %v1042
          %v1108 = vsel %vm1091, %v1095, %v1043
          %v1109 = vsel %vm1092, %v1095, %v1044
          %v1110 = vsel %vm1093, %v1095, %v1045
          %v1111 = vsel %vm1094, %v1095, %v1046
          %vm1112 = vcmp.eq.s32.totalorder %v575, 4294967176
          %vm1113 = vcmp.eq.s32.totalorder %v576, 4294967176
          %vm1114 = vcmp.eq.s32.totalorder %v577, 4294967176
          %vm1115 = vcmp.eq.s32.totalorder %v578, 4294967176
          %vm1116 = vcmp.eq.s32.totalorder %v579, 4294967176
          %vm1117 = vcmp.eq.s32.totalorder %v580, 4294967176
          %vm1118 = vcmp.eq.s32.totalorder %v581, 4294967176
          %vm1119 = vcmp.eq.s32.totalorder %v582, 4294967176
          %vm1120 = vcmp.eq.s32.totalorder %v583, 4294967176
          %vm1121 = vcmp.eq.s32.totalorder %v584, 4294967176
          %vm1122 = vcmp.eq.s32.totalorder %v585, 4294967176
          %vm1123 = vcmp.eq.s32.totalorder %v586, 4294967176
          %vm1124 = vcmp.eq.s32.totalorder %v587, 4294967176
          %vm1125 = vcmp.eq.s32.totalorder %v588, 4294967176
          %vm1126 = vcmp.eq.s32.totalorder %v589, 4294967176
          %vm1127 = vcmp.eq.s32.totalorder %v590, 4294967176
          %v1128 = vsel %vm1112, %v1095, %v1063
          %v1129 = vsel %vm1113, %v1095, %v1064
          %v1130 = vsel %vm1114, %v1095, %v1065
          %v1131 = vsel %vm1115, %v1095, %v1066
          %v1132 = vsel %vm1116, %v1095, %v1067
          %v1133 = vsel %vm1117, %v1095, %v1068
          %v1134 = vsel %vm1118, %v1095, %v1069
          %v1135 = vsel %vm1119, %v1095, %v1070
          %v1136 = vsel %vm1120, %v1095, %v1071
          %v1137 = vsel %vm1121, %v1095, %v1072
          %v1138 = vsel %vm1122, %v1095, %v1073
          %v1139 = vsel %vm1123, %v1095, %v1074
          %v1140 = vsel %vm1124, %v1095, %v1075
          %v1141 = vsel %vm1125, %v1095, %v1076
          %v1142 = vsel %vm1126, %v1095, %v1077
          %v1143 = vsel %vm1127, %v1095, %v1078
          %vm1144 = vcmp.eq.s32.totalorder %v575, 9
          %vm1145 = vcmp.eq.s32.totalorder %v576, 9
          %vm1146 = vcmp.eq.s32.totalorder %v577, 9
          %vm1147 = vcmp.eq.s32.totalorder %v578, 9
          %vm1148 = vcmp.eq.s32.totalorder %v579, 9
          %vm1149 = vcmp.eq.s32.totalorder %v580, 9
          %vm1150 = vcmp.eq.s32.totalorder %v581, 9
          %vm1151 = vcmp.eq.s32.totalorder %v582, 9
          %vm1152 = vcmp.eq.s32.totalorder %v583, 9
          %vm1153 = vcmp.eq.s32.totalorder %v584, 9
          %vm1154 = vcmp.eq.s32.totalorder %v585, 9
          %vm1155 = vcmp.eq.s32.totalorder %v586, 9
          %vm1156 = vcmp.eq.s32.totalorder %v587, 9
          %vm1157 = vcmp.eq.s32.totalorder %v588, 9
          %vm1158 = vcmp.eq.s32.totalorder %v589, 9
          %vm1159 = vcmp.eq.s32.totalorder %v590, 9
          %v1160 = vperm.slane %v537, 1
          %v1161 = vsel %vm1144, %v1160, %v1096
          %v1162 = vsel %vm1145, %v1160, %v1097
          %v1163 = vsel %vm1146, %v1160, %v1098
          %v1164 = vsel %vm1147, %v1160, %v1099
          %v1165 = vsel %vm1148, %v1160, %v1100
          %v1166 = vsel %vm1149, %v1160, %v1101
          %v1167 = vsel %vm1150, %v1160, %v1102
          %v1168 = vsel %vm1151, %v1160, %v1103
          %v1169 = vsel %vm1152, %v1160, %v1104
          %v1170 = vsel %vm1153, %v1160, %v1105
          %v1171 = vsel %vm1154, %v1160, %v1106
          %v1172 = vsel %vm1155, %v1160, %v1107
          %v1173 = vsel %vm1156, %v1160, %v1108
          %v1174 = vsel %vm1157, %v1160, %v1109
          %v1175 = vsel %vm1158, %v1160, %v1110
          %v1176 = vsel %vm1159, %v1160, %v1111
          %vm1177 = vcmp.eq.s32.totalorder %v575, 4294967177
          %vm1178 = vcmp.eq.s32.totalorder %v576, 4294967177
          %vm1179 = vcmp.eq.s32.totalorder %v577, 4294967177
          %vm1180 = vcmp.eq.s32.totalorder %v578, 4294967177
          %vm1181 = vcmp.eq.s32.totalorder %v579, 4294967177
          %vm1182 = vcmp.eq.s32.totalorder %v580, 4294967177
          %vm1183 = vcmp.eq.s32.totalorder %v581, 4294967177
          %vm1184 = vcmp.eq.s32.totalorder %v582, 4294967177
          %vm1185 = vcmp.eq.s32.totalorder %v583, 4294967177
          %vm1186 = vcmp.eq.s32.totalorder %v584, 4294967177
          %vm1187 = vcmp.eq.s32.totalorder %v585, 4294967177
          %vm1188 = vcmp.eq.s32.totalorder %v586, 4294967177
          %vm1189 = vcmp.eq.s32.totalorder %v587, 4294967177
          %vm1190 = vcmp.eq.s32.totalorder %v588, 4294967177
          %vm1191 = vcmp.eq.s32.totalorder %v589, 4294967177
          %vm1192 = vcmp.eq.s32.totalorder %v590, 4294967177
          %v1193 = vsel %vm1177, %v1160, %v1128
          %v1194 = vsel %vm1178, %v1160, %v1129
          %v1195 = vsel %vm1179, %v1160, %v1130
          %v1196 = vsel %vm1180, %v1160, %v1131
          %v1197 = vsel %vm1181, %v1160, %v1132
          %v1198 = vsel %vm1182, %v1160, %v1133
          %v1199 = vsel %vm1183, %v1160, %v1134
          %v1200 = vsel %vm1184, %v1160, %v1135
          %v1201 = vsel %vm1185, %v1160, %v1136
          %v1202 = vsel %vm1186, %v1160, %v1137
          %v1203 = vsel %vm1187, %v1160, %v1138
          %v1204 = vsel %vm1188, %v1160, %v1139
          %v1205 = vsel %vm1189, %v1160, %v1140
          %v1206 = vsel %vm1190, %v1160, %v1141
          %v1207 = vsel %vm1191, %v1160, %v1142
          %v1208 = vsel %vm1192, %v1160, %v1143
          %vm1209 = vcmp.eq.s32.totalorder %v575, 10
          %vm1210 = vcmp.eq.s32.totalorder %v576, 10
          %vm1211 = vcmp.eq.s32.totalorder %v577, 10
          %vm1212 = vcmp.eq.s32.totalorder %v578, 10
          %vm1213 = vcmp.eq.s32.totalorder %v579, 10
          %vm1214 = vcmp.eq.s32.totalorder %v580, 10
          %vm1215 = vcmp.eq.s32.totalorder %v581, 10
          %vm1216 = vcmp.eq.s32.totalorder %v582, 10
          %vm1217 = vcmp.eq.s32.totalorder %v583, 10
          %vm1218 = vcmp.eq.s32.totalorder %v584, 10
          %vm1219 = vcmp.eq.s32.totalorder %v585, 10
          %vm1220 = vcmp.eq.s32.totalorder %v586, 10
          %vm1221 = vcmp.eq.s32.totalorder %v587, 10
          %vm1222 = vcmp.eq.s32.totalorder %v588, 10
          %vm1223 = vcmp.eq.s32.totalorder %v589, 10
          %vm1224 = vcmp.eq.s32.totalorder %v590, 10
          %v1225 = vperm.slane %v537, 2
          %v1226 = vsel %vm1209, %v1225, %v1161
          %v1227 = vsel %vm1210, %v1225, %v1162
          %v1228 = vsel %vm1211, %v1225, %v1163
          %v1229 = vsel %vm1212, %v1225, %v1164
          %v1230 = vsel %vm1213, %v1225, %v1165
          %v1231 = vsel %vm1214, %v1225, %v1166
          %v1232 = vsel %vm1215, %v1225, %v1167
          %v1233 = vsel %vm1216, %v1225, %v1168
          %v1234 = vsel %vm1217, %v1225, %v1169
          %v1235 = vsel %vm1218, %v1225, %v1170
          %v1236 = vsel %vm1219, %v1225, %v1171
          %v1237 = vsel %vm1220, %v1225, %v1172
          %v1238 = vsel %vm1221, %v1225, %v1173
          %v1239 = vsel %vm1222, %v1225, %v1174
          %v1240 = vsel %vm1223, %v1225, %v1175
          %v1241 = vsel %vm1224, %v1225, %v1176
          %vm1242 = vcmp.eq.s32.totalorder %v575, 4294967178
          %vm1243 = vcmp.eq.s32.totalorder %v576, 4294967178
          %vm1244 = vcmp.eq.s32.totalorder %v577, 4294967178
          %vm1245 = vcmp.eq.s32.totalorder %v578, 4294967178
          %vm1246 = vcmp.eq.s32.totalorder %v579, 4294967178
          %vm1247 = vcmp.eq.s32.totalorder %v580, 4294967178
          %vm1248 = vcmp.eq.s32.totalorder %v581, 4294967178
          %vm1249 = vcmp.eq.s32.totalorder %v582, 4294967178
          %vm1250 = vcmp.eq.s32.totalorder %v583, 4294967178
          %vm1251 = vcmp.eq.s32.totalorder %v584, 4294967178
          %vm1252 = vcmp.eq.s32.totalorder %v585, 4294967178
          %vm1253 = vcmp.eq.s32.totalorder %v586, 4294967178
          %vm1254 = vcmp.eq.s32.totalorder %v587, 4294967178
          %vm1255 = vcmp.eq.s32.totalorder %v588, 4294967178
          %vm1256 = vcmp.eq.s32.totalorder %v589, 4294967178
          %vm1257 = vcmp.eq.s32.totalorder %v590, 4294967178
          %v1258 = vsel %vm1242, %v1225, %v1193
          %v1259 = vsel %vm1243, %v1225, %v1194
          %v1260 = vsel %vm1244, %v1225, %v1195
          %v1261 = vsel %vm1245, %v1225, %v1196
          %v1262 = vsel %vm1246, %v1225, %v1197
          %v1263 = vsel %vm1247, %v1225, %v1198
          %v1264 = vsel %vm1248, %v1225, %v1199
          %v1265 = vsel %vm1249, %v1225, %v1200
          %v1266 = vsel %vm1250, %v1225, %v1201
          %v1267 = vsel %vm1251, %v1225, %v1202
          %v1268 = vsel %vm1252, %v1225, %v1203
          %v1269 = vsel %vm1253, %v1225, %v1204
          %v1270 = vsel %vm1254, %v1225, %v1205
          %v1271 = vsel %vm1255, %v1225, %v1206
          %v1272 = vsel %vm1256, %v1225, %v1207
          %v1273 = vsel %vm1257, %v1225, %v1208
          %vm1274 = vcmp.eq.s32.totalorder %v575, 11
          %vm1275 = vcmp.eq.s32.totalorder %v576, 11
          %vm1276 = vcmp.eq.s32.totalorder %v577, 11
          %vm1277 = vcmp.eq.s32.totalorder %v578, 11
          %vm1278 = vcmp.eq.s32.totalorder %v579, 11
          %vm1279 = vcmp.eq.s32.totalorder %v580, 11
          %vm1280 = vcmp.eq.s32.totalorder %v581, 11
          %vm1281 = vcmp.eq.s32.totalorder %v582, 11
          %vm1282 = vcmp.eq.s32.totalorder %v583, 11
          %vm1283 = vcmp.eq.s32.totalorder %v584, 11
          %vm1284 = vcmp.eq.s32.totalorder %v585, 11
          %vm1285 = vcmp.eq.s32.totalorder %v586, 11
          %vm1286 = vcmp.eq.s32.totalorder %v587, 11
          %vm1287 = vcmp.eq.s32.totalorder %v588, 11
          %vm1288 = vcmp.eq.s32.totalorder %v589, 11
          %vm1289 = vcmp.eq.s32.totalorder %v590, 11
          %v1290 = vperm.slane %v537, 3
          %v1291 = vsel %vm1274, %v1290, %v1226
          %v1292 = vsel %vm1275, %v1290, %v1227
          %v1293 = vsel %vm1276, %v1290, %v1228
          %v1294 = vsel %vm1277, %v1290, %v1229
          %v1295 = vsel %vm1278, %v1290, %v1230
          %v1296 = vsel %vm1279, %v1290, %v1231
          %v1297 = vsel %vm1280, %v1290, %v1232
          %v1298 = vsel %vm1281, %v1290, %v1233
          %v1299 = vsel %vm1282, %v1290, %v1234
          %v1300 = vsel %vm1283, %v1290, %v1235
          %v1301 = vsel %vm1284, %v1290, %v1236
          %v1302 = vsel %vm1285, %v1290, %v1237
          %v1303 = vsel %vm1286, %v1290, %v1238
          %v1304 = vsel %vm1287, %v1290, %v1239
          %v1305 = vsel %vm1288, %v1290, %v1240
          %v1306 = vsel %vm1289, %v1290, %v1241
          %vm1307 = vcmp.eq.s32.totalorder %v575, 4294967179
          %vm1308 = vcmp.eq.s32.totalorder %v576, 4294967179
          %vm1309 = vcmp.eq.s32.totalorder %v577, 4294967179
          %vm1310 = vcmp.eq.s32.totalorder %v578, 4294967179
          %vm1311 = vcmp.eq.s32.totalorder %v579, 4294967179
          %vm1312 = vcmp.eq.s32.totalorder %v580, 4294967179
          %vm1313 = vcmp.eq.s32.totalorder %v581, 4294967179
          %vm1314 = vcmp.eq.s32.totalorder %v582, 4294967179
          %vm1315 = vcmp.eq.s32.totalorder %v583, 4294967179
          %vm1316 = vcmp.eq.s32.totalorder %v584, 4294967179
          %vm1317 = vcmp.eq.s32.totalorder %v585, 4294967179
          %vm1318 = vcmp.eq.s32.totalorder %v586, 4294967179
          %vm1319 = vcmp.eq.s32.totalorder %v587, 4294967179
          %vm1320 = vcmp.eq.s32.totalorder %v588, 4294967179
          %vm1321 = vcmp.eq.s32.totalorder %v589, 4294967179
          %vm1322 = vcmp.eq.s32.totalorder %v590, 4294967179
          %v1323 = vsel %vm1307, %v1290, %v1258
          %v1324 = vsel %vm1308, %v1290, %v1259
          %v1325 = vsel %vm1309, %v1290, %v1260
          %v1326 = vsel %vm1310, %v1290, %v1261
          %v1327 = vsel %vm1311, %v1290, %v1262
          %v1328 = vsel %vm1312, %v1290, %v1263
          %v1329 = vsel %vm1313, %v1290, %v1264
          %v1330 = vsel %vm1314, %v1290, %v1265
          %v1331 = vsel %vm1315, %v1290, %v1266
          %v1332 = vsel %vm1316, %v1290, %v1267
          %v1333 = vsel %vm1317, %v1290, %v1268
          %v1334 = vsel %vm1318, %v1290, %v1269
          %v1335 = vsel %vm1319, %v1290, %v1270
          %v1336 = vsel %vm1320, %v1290, %v1271
          %v1337 = vsel %vm1321, %v1290, %v1272
          %v1338 = vsel %vm1322, %v1290, %v1273
          %vm1339 = vcmp.eq.s32.totalorder %v575, 12
          %vm1340 = vcmp.eq.s32.totalorder %v576, 12
          %vm1341 = vcmp.eq.s32.totalorder %v577, 12
          %vm1342 = vcmp.eq.s32.totalorder %v578, 12
          %vm1343 = vcmp.eq.s32.totalorder %v579, 12
          %vm1344 = vcmp.eq.s32.totalorder %v580, 12
          %vm1345 = vcmp.eq.s32.totalorder %v581, 12
          %vm1346 = vcmp.eq.s32.totalorder %v582, 12
          %vm1347 = vcmp.eq.s32.totalorder %v583, 12
          %vm1348 = vcmp.eq.s32.totalorder %v584, 12
          %vm1349 = vcmp.eq.s32.totalorder %v585, 12
          %vm1350 = vcmp.eq.s32.totalorder %v586, 12
          %vm1351 = vcmp.eq.s32.totalorder %v587, 12
          %vm1352 = vcmp.eq.s32.totalorder %v588, 12
          %vm1353 = vcmp.eq.s32.totalorder %v589, 12
          %vm1354 = vcmp.eq.s32.totalorder %v590, 12
          %v1355 = vperm.slane %v537, 4
          %v1356 = vsel %vm1339, %v1355, %v1291
          %v1357 = vsel %vm1340, %v1355, %v1292
          %v1358 = vsel %vm1341, %v1355, %v1293
          %v1359 = vsel %vm1342, %v1355, %v1294
          %v1360 = vsel %vm1343, %v1355, %v1295
          %v1361 = vsel %vm1344, %v1355, %v1296
          %v1362 = vsel %vm1345, %v1355, %v1297
          %v1363 = vsel %vm1346, %v1355, %v1298
          %v1364 = vsel %vm1347, %v1355, %v1299
          %v1365 = vsel %vm1348, %v1355, %v1300
          %v1366 = vsel %vm1349, %v1355, %v1301
          %v1367 = vsel %vm1350, %v1355, %v1302
          %v1368 = vsel %vm1351, %v1355, %v1303
          %v1369 = vsel %vm1352, %v1355, %v1304
          %v1370 = vsel %vm1353, %v1355, %v1305
          %v1371 = vsel %vm1354, %v1355, %v1306
          %vm1372 = vcmp.eq.s32.totalorder %v575, 4294967180
          %vm1373 = vcmp.eq.s32.totalorder %v576, 4294967180
          %vm1374 = vcmp.eq.s32.totalorder %v577, 4294967180
          %vm1375 = vcmp.eq.s32.totalorder %v578, 4294967180
          %vm1376 = vcmp.eq.s32.totalorder %v579, 4294967180
          %vm1377 = vcmp.eq.s32.totalorder %v580, 4294967180
          %vm1378 = vcmp.eq.s32.totalorder %v581, 4294967180
          %vm1379 = vcmp.eq.s32.totalorder %v582, 4294967180
          %vm1380 = vcmp.eq.s32.totalorder %v583, 4294967180
          %vm1381 = vcmp.eq.s32.totalorder %v584, 4294967180
          %vm1382 = vcmp.eq.s32.totalorder %v585, 4294967180
          %vm1383 = vcmp.eq.s32.totalorder %v586, 4294967180
          %vm1384 = vcmp.eq.s32.totalorder %v587, 4294967180
          %vm1385 = vcmp.eq.s32.totalorder %v588, 4294967180
          %vm1386 = vcmp.eq.s32.totalorder %v589, 4294967180
          %vm1387 = vcmp.eq.s32.totalorder %v590, 4294967180
          %v1388 = vsel %vm1372, %v1355, %v1323
          %v1389 = vsel %vm1373, %v1355, %v1324
          %v1390 = vsel %vm1374, %v1355, %v1325
          %v1391 = vsel %vm1375, %v1355, %v1326
          %v1392 = vsel %vm1376, %v1355, %v1327
          %v1393 = vsel %vm1377, %v1355, %v1328
          %v1394 = vsel %vm1378, %v1355, %v1329
          %v1395 = vsel %vm1379, %v1355, %v1330
          %v1396 = vsel %vm1380, %v1355, %v1331
          %v1397 = vsel %vm1381, %v1355, %v1332
          %v1398 = vsel %vm1382, %v1355, %v1333
          %v1399 = vsel %vm1383, %v1355, %v1334
          %v1400 = vsel %vm1384, %v1355, %v1335
          %v1401 = vsel %vm1385, %v1355, %v1336
          %v1402 = vsel %vm1386, %v1355, %v1337
          %v1403 = vsel %vm1387, %v1355, %v1338
          %vm1404 = vcmp.eq.s32.totalorder %v575, 13
          %vm1405 = vcmp.eq.s32.totalorder %v576, 13
          %vm1406 = vcmp.eq.s32.totalorder %v577, 13
          %vm1407 = vcmp.eq.s32.totalorder %v578, 13
          %vm1408 = vcmp.eq.s32.totalorder %v579, 13
          %vm1409 = vcmp.eq.s32.totalorder %v580, 13
          %vm1410 = vcmp.eq.s32.totalorder %v581, 13
          %vm1411 = vcmp.eq.s32.totalorder %v582, 13
          %vm1412 = vcmp.eq.s32.totalorder %v583, 13
          %vm1413 = vcmp.eq.s32.totalorder %v584, 13
          %vm1414 = vcmp.eq.s32.totalorder %v585, 13
          %vm1415 = vcmp.eq.s32.totalorder %v586, 13
          %vm1416 = vcmp.eq.s32.totalorder %v587, 13
          %vm1417 = vcmp.eq.s32.totalorder %v588, 13
          %vm1418 = vcmp.eq.s32.totalorder %v589, 13
          %vm1419 = vcmp.eq.s32.totalorder %v590, 13
          %v1420 = vperm.slane %v537, 5
          %v1421 = vsel %vm1404, %v1420, %v1356
          %v1422 = vsel %vm1405, %v1420, %v1357
          %v1423 = vsel %vm1406, %v1420, %v1358
          %v1424 = vsel %vm1407, %v1420, %v1359
          %v1425 = vsel %vm1408, %v1420, %v1360
          %v1426 = vsel %vm1409, %v1420, %v1361
          %v1427 = vsel %vm1410, %v1420, %v1362
          %v1428 = vsel %vm1411, %v1420, %v1363
          %v1429 = vsel %vm1412, %v1420, %v1364
          %v1430 = vsel %vm1413, %v1420, %v1365
          %v1431 = vsel %vm1414, %v1420, %v1366
          %v1432 = vsel %vm1415, %v1420, %v1367
          %v1433 = vsel %vm1416, %v1420, %v1368
          %v1434 = vsel %vm1417, %v1420, %v1369
          %v1435 = vsel %vm1418, %v1420, %v1370
          %v1436 = vsel %vm1419, %v1420, %v1371
          %vm1437 = vcmp.eq.s32.totalorder %v575, 4294967181
          %vm1438 = vcmp.eq.s32.totalorder %v576, 4294967181
          %vm1439 = vcmp.eq.s32.totalorder %v577, 4294967181
          %vm1440 = vcmp.eq.s32.totalorder %v578, 4294967181
          %vm1441 = vcmp.eq.s32.totalorder %v579, 4294967181
          %vm1442 = vcmp.eq.s32.totalorder %v580, 4294967181
          %vm1443 = vcmp.eq.s32.totalorder %v581, 4294967181
          %vm1444 = vcmp.eq.s32.totalorder %v582, 4294967181
          %vm1445 = vcmp.eq.s32.totalorder %v583, 4294967181
          %vm1446 = vcmp.eq.s32.totalorder %v584, 4294967181
          %vm1447 = vcmp.eq.s32.totalorder %v585, 4294967181
          %vm1448 = vcmp.eq.s32.totalorder %v586, 4294967181
          %vm1449 = vcmp.eq.s32.totalorder %v587, 4294967181
          %vm1450 = vcmp.eq.s32.totalorder %v588, 4294967181
          %vm1451 = vcmp.eq.s32.totalorder %v589, 4294967181
          %vm1452 = vcmp.eq.s32.totalorder %v590, 4294967181
          %v1453 = vsel %vm1437, %v1420, %v1388
          %v1454 = vsel %vm1438, %v1420, %v1389
          %v1455 = vsel %vm1439, %v1420, %v1390
          %v1456 = vsel %vm1440, %v1420, %v1391
          %v1457 = vsel %vm1441, %v1420, %v1392
          %v1458 = vsel %vm1442, %v1420, %v1393
          %v1459 = vsel %vm1443, %v1420, %v1394
          %v1460 = vsel %vm1444, %v1420, %v1395
          %v1461 = vsel %vm1445, %v1420, %v1396
          %v1462 = vsel %vm1446, %v1420, %v1397
          %v1463 = vsel %vm1447, %v1420, %v1398
          %v1464 = vsel %vm1448, %v1420, %v1399
          %v1465 = vsel %vm1449, %v1420, %v1400
          %v1466 = vsel %vm1450, %v1420, %v1401
          %v1467 = vsel %vm1451, %v1420, %v1402
          %v1468 = vsel %vm1452, %v1420, %v1403
          %vm1469 = vcmp.eq.s32.totalorder %v575, 14
          %vm1470 = vcmp.eq.s32.totalorder %v576, 14
          %vm1471 = vcmp.eq.s32.totalorder %v577, 14
          %vm1472 = vcmp.eq.s32.totalorder %v578, 14
          %vm1473 = vcmp.eq.s32.totalorder %v579, 14
          %vm1474 = vcmp.eq.s32.totalorder %v580, 14
          %vm1475 = vcmp.eq.s32.totalorder %v581, 14
          %vm1476 = vcmp.eq.s32.totalorder %v582, 14
          %vm1477 = vcmp.eq.s32.totalorder %v583, 14
          %vm1478 = vcmp.eq.s32.totalorder %v584, 14
          %vm1479 = vcmp.eq.s32.totalorder %v585, 14
          %vm1480 = vcmp.eq.s32.totalorder %v586, 14
          %vm1481 = vcmp.eq.s32.totalorder %v587, 14
          %vm1482 = vcmp.eq.s32.totalorder %v588, 14
          %vm1483 = vcmp.eq.s32.totalorder %v589, 14
          %vm1484 = vcmp.eq.s32.totalorder %v590, 14
          %v1485 = vperm.slane %v537, 6
          %v1486 = vsel %vm1469, %v1485, %v1421
          %v1487 = vsel %vm1470, %v1485, %v1422
          %v1488 = vsel %vm1471, %v1485, %v1423
          %v1489 = vsel %vm1472, %v1485, %v1424
          %v1490 = vsel %vm1473, %v1485, %v1425
          %v1491 = vsel %vm1474, %v1485, %v1426
          %v1492 = vsel %vm1475, %v1485, %v1427
          %v1493 = vsel %vm1476, %v1485, %v1428
          %v1494 = vsel %vm1477, %v1485, %v1429
          %v1495 = vsel %vm1478, %v1485, %v1430
          %v1496 = vsel %vm1479, %v1485, %v1431
          %v1497 = vsel %vm1480, %v1485, %v1432
          %v1498 = vsel %vm1481, %v1485, %v1433
          %v1499 = vsel %vm1482, %v1485, %v1434
          %v1500 = vsel %vm1483, %v1485, %v1435
          %v1501 = vsel %vm1484, %v1485, %v1436
          %vm1502 = vcmp.eq.s32.totalorder %v575, 4294967182
          %vm1503 = vcmp.eq.s32.totalorder %v576, 4294967182
          %vm1504 = vcmp.eq.s32.totalorder %v577, 4294967182
          %vm1505 = vcmp.eq.s32.totalorder %v578, 4294967182
          %vm1506 = vcmp.eq.s32.totalorder %v579, 4294967182
          %vm1507 = vcmp.eq.s32.totalorder %v580, 4294967182
          %vm1508 = vcmp.eq.s32.totalorder %v581, 4294967182
          %vm1509 = vcmp.eq.s32.totalorder %v582, 4294967182
          %vm1510 = vcmp.eq.s32.totalorder %v583, 4294967182
          %vm1511 = vcmp.eq.s32.totalorder %v584, 4294967182
          %vm1512 = vcmp.eq.s32.totalorder %v585, 4294967182
          %vm1513 = vcmp.eq.s32.totalorder %v586, 4294967182
          %vm1514 = vcmp.eq.s32.totalorder %v587, 4294967182
          %vm1515 = vcmp.eq.s32.totalorder %v588, 4294967182
          %vm1516 = vcmp.eq.s32.totalorder %v589, 4294967182
          %vm1517 = vcmp.eq.s32.totalorder %v590, 4294967182
          %v1518 = vsel %vm1502, %v1485, %v1453
          %v1519 = vsel %vm1503, %v1485, %v1454
          %v1520 = vsel %vm1504, %v1485, %v1455
          %v1521 = vsel %vm1505, %v1485, %v1456
          %v1522 = vsel %vm1506, %v1485, %v1457
          %v1523 = vsel %vm1507, %v1485, %v1458
          %v1524 = vsel %vm1508, %v1485, %v1459
          %v1525 = vsel %vm1509, %v1485, %v1460
          %v1526 = vsel %vm1510, %v1485, %v1461
          %v1527 = vsel %vm1511, %v1485, %v1462
          %v1528 = vsel %vm1512, %v1485, %v1463
          %v1529 = vsel %vm1513, %v1485, %v1464
          %v1530 = vsel %vm1514, %v1485, %v1465
          %v1531 = vsel %vm1515, %v1485, %v1466
          %v1532 = vsel %vm1516, %v1485, %v1467
          %v1533 = vsel %vm1517, %v1485, %v1468
          %vm1534 = vcmp.eq.s32.totalorder %v575, 15
          %vm1535 = vcmp.eq.s32.totalorder %v576, 15
          %vm1536 = vcmp.eq.s32.totalorder %v577, 15
          %vm1537 = vcmp.eq.s32.totalorder %v578, 15
          %vm1538 = vcmp.eq.s32.totalorder %v579, 15
          %vm1539 = vcmp.eq.s32.totalorder %v580, 15
          %vm1540 = vcmp.eq.s32.totalorder %v581, 15
          %vm1541 = vcmp.eq.s32.totalorder %v582, 15
          %vm1542 = vcmp.eq.s32.totalorder %v583, 15
          %vm1543 = vcmp.eq.s32.totalorder %v584, 15
          %vm1544 = vcmp.eq.s32.totalorder %v585, 15
          %vm1545 = vcmp.eq.s32.totalorder %v586, 15
          %vm1546 = vcmp.eq.s32.totalorder %v587, 15
          %vm1547 = vcmp.eq.s32.totalorder %v588, 15
          %vm1548 = vcmp.eq.s32.totalorder %v589, 15
          %vm1549 = vcmp.eq.s32.totalorder %v590, 15
          %v1550 = vperm.slane %v537, 7
          %v1551 = vsel %vm1534, %v1550, %v1486
          %v1552 = vsel %vm1535, %v1550, %v1487
          %v1553 = vsel %vm1536, %v1550, %v1488
          %v1554 = vsel %vm1537, %v1550, %v1489
          %v1555 = vsel %vm1538, %v1550, %v1490
          %v1556 = vsel %vm1539, %v1550, %v1491
          %v1557 = vsel %vm1540, %v1550, %v1492
          %v1558 = vsel %vm1541, %v1550, %v1493
          %v1559 = vsel %vm1542, %v1550, %v1494
          %v1560 = vsel %vm1543, %v1550, %v1495
          %v1561 = vsel %vm1544, %v1550, %v1496
          %v1562 = vsel %vm1545, %v1550, %v1497
          %v1563 = vsel %vm1546, %v1550, %v1498
          %v1564 = vsel %vm1547, %v1550, %v1499
          %v1565 = vsel %vm1548, %v1550, %v1500
          %v1566 = vsel %vm1549, %v1550, %v1501
          %vm1567 = vcmp.eq.s32.totalorder %v575, 4294967183
          %vm1568 = vcmp.eq.s32.totalorder %v576, 4294967183
          %vm1569 = vcmp.eq.s32.totalorder %v577, 4294967183
          %vm1570 = vcmp.eq.s32.totalorder %v578, 4294967183
          %vm1571 = vcmp.eq.s32.totalorder %v579, 4294967183
          %vm1572 = vcmp.eq.s32.totalorder %v580, 4294967183
          %vm1573 = vcmp.eq.s32.totalorder %v581, 4294967183
          %vm1574 = vcmp.eq.s32.totalorder %v582, 4294967183
          %vm1575 = vcmp.eq.s32.totalorder %v583, 4294967183
          %vm1576 = vcmp.eq.s32.totalorder %v584, 4294967183
          %vm1577 = vcmp.eq.s32.totalorder %v585, 4294967183
          %vm1578 = vcmp.eq.s32.totalorder %v586, 4294967183
          %vm1579 = vcmp.eq.s32.totalorder %v587, 4294967183
          %vm1580 = vcmp.eq.s32.totalorder %v588, 4294967183
          %vm1581 = vcmp.eq.s32.totalorder %v589, 4294967183
          %vm1582 = vcmp.eq.s32.totalorder %v590, 4294967183
          %v1583 = vsel %vm1567, %v1550, %v1518
          %v1584 = vsel %vm1568, %v1550, %v1519
          %v1585 = vsel %vm1569, %v1550, %v1520
          %v1586 = vsel %vm1570, %v1550, %v1521
          %v1587 = vsel %vm1571, %v1550, %v1522
          %v1588 = vsel %vm1572, %v1550, %v1523
          %v1589 = vsel %vm1573, %v1550, %v1524
          %v1590 = vsel %vm1574, %v1550, %v1525
          %v1591 = vsel %vm1575, %v1550, %v1526
          %v1592 = vsel %vm1576, %v1550, %v1527
          %v1593 = vsel %vm1577, %v1550, %v1528
          %v1594 = vsel %vm1578, %v1550, %v1529
          %v1595 = vsel %vm1579, %v1550, %v1530
          %v1596 = vsel %vm1580, %v1550, %v1531
          %v1597 = vsel %vm1581, %v1550, %v1532
          %v1598 = vsel %vm1582, %v1550, %v1533
          %vm1599 = vcmp.eq.s32.totalorder %v575, 16
          %vm1600 = vcmp.eq.s32.totalorder %v576, 16
          %vm1601 = vcmp.eq.s32.totalorder %v577, 16
          %vm1602 = vcmp.eq.s32.totalorder %v578, 16
          %vm1603 = vcmp.eq.s32.totalorder %v579, 16
          %vm1604 = vcmp.eq.s32.totalorder %v580, 16
          %vm1605 = vcmp.eq.s32.totalorder %v581, 16
          %vm1606 = vcmp.eq.s32.totalorder %v582, 16
          %vm1607 = vcmp.eq.s32.totalorder %v583, 16
          %vm1608 = vcmp.eq.s32.totalorder %v584, 16
          %vm1609 = vcmp.eq.s32.totalorder %v585, 16
          %vm1610 = vcmp.eq.s32.totalorder %v586, 16
          %vm1611 = vcmp.eq.s32.totalorder %v587, 16
          %vm1612 = vcmp.eq.s32.totalorder %v588, 16
          %vm1613 = vcmp.eq.s32.totalorder %v589, 16
          %vm1614 = vcmp.eq.s32.totalorder %v590, 16
          %v1615 = vperm.slane %v540, 0
          %v1616 = vsel %vm1599, %v1615, %v1551
          %v1617 = vsel %vm1600, %v1615, %v1552
          %v1618 = vsel %vm1601, %v1615, %v1553
          %v1619 = vsel %vm1602, %v1615, %v1554
          %v1620 = vsel %vm1603, %v1615, %v1555
          %v1621 = vsel %vm1604, %v1615, %v1556
          %v1622 = vsel %vm1605, %v1615, %v1557
          %v1623 = vsel %vm1606, %v1615, %v1558
          %v1624 = vsel %vm1607, %v1615, %v1559
          %v1625 = vsel %vm1608, %v1615, %v1560
          %v1626 = vsel %vm1609, %v1615, %v1561
          %v1627 = vsel %vm1610, %v1615, %v1562
          %v1628 = vsel %vm1611, %v1615, %v1563
          %v1629 = vsel %vm1612, %v1615, %v1564
          %v1630 = vsel %vm1613, %v1615, %v1565
          %v1631 = vsel %vm1614, %v1615, %v1566
          %vm1632 = vcmp.eq.s32.totalorder %v575, 4294967184
          %vm1633 = vcmp.eq.s32.totalorder %v576, 4294967184
          %vm1634 = vcmp.eq.s32.totalorder %v577, 4294967184
          %vm1635 = vcmp.eq.s32.totalorder %v578, 4294967184
          %vm1636 = vcmp.eq.s32.totalorder %v579, 4294967184
          %vm1637 = vcmp.eq.s32.totalorder %v580, 4294967184
          %vm1638 = vcmp.eq.s32.totalorder %v581, 4294967184
          %vm1639 = vcmp.eq.s32.totalorder %v582, 4294967184
          %vm1640 = vcmp.eq.s32.totalorder %v583, 4294967184
          %vm1641 = vcmp.eq.s32.totalorder %v584, 4294967184
          %vm1642 = vcmp.eq.s32.totalorder %v585, 4294967184
          %vm1643 = vcmp.eq.s32.totalorder %v586, 4294967184
          %vm1644 = vcmp.eq.s32.totalorder %v587, 4294967184
          %vm1645 = vcmp.eq.s32.totalorder %v588, 4294967184
          %vm1646 = vcmp.eq.s32.totalorder %v589, 4294967184
          %vm1647 = vcmp.eq.s32.totalorder %v590, 4294967184
          %v1648 = vsel %vm1632, %v1615, %v1583
          %v1649 = vsel %vm1633, %v1615, %v1584
          %v1650 = vsel %vm1634, %v1615, %v1585
          %v1651 = vsel %vm1635, %v1615, %v1586
          %v1652 = vsel %vm1636, %v1615, %v1587
          %v1653 = vsel %vm1637, %v1615, %v1588
          %v1654 = vsel %vm1638, %v1615, %v1589
          %v1655 = vsel %vm1639, %v1615, %v1590
          %v1656 = vsel %vm1640, %v1615, %v1591
          %v1657 = vsel %vm1641, %v1615, %v1592
          %v1658 = vsel %vm1642, %v1615, %v1593
          %v1659 = vsel %vm1643, %v1615, %v1594
          %v1660 = vsel %vm1644, %v1615, %v1595
          %v1661 = vsel %vm1645, %v1615, %v1596
          %v1662 = vsel %vm1646, %v1615, %v1597
          %v1663 = vsel %vm1647, %v1615, %v1598
          %vm1664 = vcmp.eq.s32.totalorder %v575, 17
          %vm1665 = vcmp.eq.s32.totalorder %v576, 17
          %vm1666 = vcmp.eq.s32.totalorder %v577, 17
          %vm1667 = vcmp.eq.s32.totalorder %v578, 17
          %vm1668 = vcmp.eq.s32.totalorder %v579, 17
          %vm1669 = vcmp.eq.s32.totalorder %v580, 17
          %vm1670 = vcmp.eq.s32.totalorder %v581, 17
          %vm1671 = vcmp.eq.s32.totalorder %v582, 17
          %vm1672 = vcmp.eq.s32.totalorder %v583, 17
          %vm1673 = vcmp.eq.s32.totalorder %v584, 17
          %vm1674 = vcmp.eq.s32.totalorder %v585, 17
          %vm1675 = vcmp.eq.s32.totalorder %v586, 17
          %vm1676 = vcmp.eq.s32.totalorder %v587, 17
          %vm1677 = vcmp.eq.s32.totalorder %v588, 17
          %vm1678 = vcmp.eq.s32.totalorder %v589, 17
          %vm1679 = vcmp.eq.s32.totalorder %v590, 17
          %v1680 = vperm.slane %v540, 1
          %v1681 = vsel %vm1664, %v1680, %v1616
          %v1682 = vsel %vm1665, %v1680, %v1617
          %v1683 = vsel %vm1666, %v1680, %v1618
          %v1684 = vsel %vm1667, %v1680, %v1619
          %v1685 = vsel %vm1668, %v1680, %v1620
          %v1686 = vsel %vm1669, %v1680, %v1621
          %v1687 = vsel %vm1670, %v1680, %v1622
          %v1688 = vsel %vm1671, %v1680, %v1623
          %v1689 = vsel %vm1672, %v1680, %v1624
          %v1690 = vsel %vm1673, %v1680, %v1625
          %v1691 = vsel %vm1674, %v1680, %v1626
          %v1692 = vsel %vm1675, %v1680, %v1627
          %v1693 = vsel %vm1676, %v1680, %v1628
          %v1694 = vsel %vm1677, %v1680, %v1629
          %v1695 = vsel %vm1678, %v1680, %v1630
          %v1696 = vsel %vm1679, %v1680, %v1631
          %vm1697 = vcmp.eq.s32.totalorder %v575, 4294967185
          %vm1698 = vcmp.eq.s32.totalorder %v576, 4294967185
          %vm1699 = vcmp.eq.s32.totalorder %v577, 4294967185
          %vm1700 = vcmp.eq.s32.totalorder %v578, 4294967185
          %vm1701 = vcmp.eq.s32.totalorder %v579, 4294967185
          %vm1702 = vcmp.eq.s32.totalorder %v580, 4294967185
          %vm1703 = vcmp.eq.s32.totalorder %v581, 4294967185
          %vm1704 = vcmp.eq.s32.totalorder %v582, 4294967185
          %vm1705 = vcmp.eq.s32.totalorder %v583, 4294967185
          %vm1706 = vcmp.eq.s32.totalorder %v584, 4294967185
          %vm1707 = vcmp.eq.s32.totalorder %v585, 4294967185
          %vm1708 = vcmp.eq.s32.totalorder %v586, 4294967185
          %vm1709 = vcmp.eq.s32.totalorder %v587, 4294967185
          %vm1710 = vcmp.eq.s32.totalorder %v588, 4294967185
          %vm1711 = vcmp.eq.s32.totalorder %v589, 4294967185
          %vm1712 = vcmp.eq.s32.totalorder %v590, 4294967185
          %v1713 = vsel %vm1697, %v1680, %v1648
          %v1714 = vsel %vm1698, %v1680, %v1649
          %v1715 = vsel %vm1699, %v1680, %v1650
          %v1716 = vsel %vm1700, %v1680, %v1651
          %v1717 = vsel %vm1701, %v1680, %v1652
          %v1718 = vsel %vm1702, %v1680, %v1653
          %v1719 = vsel %vm1703, %v1680, %v1654
          %v1720 = vsel %vm1704, %v1680, %v1655
          %v1721 = vsel %vm1705, %v1680, %v1656
          %v1722 = vsel %vm1706, %v1680, %v1657
          %v1723 = vsel %vm1707, %v1680, %v1658
          %v1724 = vsel %vm1708, %v1680, %v1659
          %v1725 = vsel %vm1709, %v1680, %v1660
          %v1726 = vsel %vm1710, %v1680, %v1661
          %v1727 = vsel %vm1711, %v1680, %v1662
          %v1728 = vsel %vm1712, %v1680, %v1663
          %vm1729 = vcmp.eq.s32.totalorder %v575, 18
          %vm1730 = vcmp.eq.s32.totalorder %v576, 18
          %vm1731 = vcmp.eq.s32.totalorder %v577, 18
          %vm1732 = vcmp.eq.s32.totalorder %v578, 18
          %vm1733 = vcmp.eq.s32.totalorder %v579, 18
          %vm1734 = vcmp.eq.s32.totalorder %v580, 18
          %vm1735 = vcmp.eq.s32.totalorder %v581, 18
          %vm1736 = vcmp.eq.s32.totalorder %v582, 18
          %vm1737 = vcmp.eq.s32.totalorder %v583, 18
          %vm1738 = vcmp.eq.s32.totalorder %v584, 18
          %vm1739 = vcmp.eq.s32.totalorder %v585, 18
          %vm1740 = vcmp.eq.s32.totalorder %v586, 18
          %vm1741 = vcmp.eq.s32.totalorder %v587, 18
          %vm1742 = vcmp.eq.s32.totalorder %v588, 18
          %vm1743 = vcmp.eq.s32.totalorder %v589, 18
          %vm1744 = vcmp.eq.s32.totalorder %v590, 18
          %v1745 = vperm.slane %v540, 2
          %v1746 = vsel %vm1729, %v1745, %v1681
          %v1747 = vsel %vm1730, %v1745, %v1682
          %v1748 = vsel %vm1731, %v1745, %v1683
          %v1749 = vsel %vm1732, %v1745, %v1684
          %v1750 = vsel %vm1733, %v1745, %v1685
          %v1751 = vsel %vm1734, %v1745, %v1686
          %v1752 = vsel %vm1735, %v1745, %v1687
          %v1753 = vsel %vm1736, %v1745, %v1688
          %v1754 = vsel %vm1737, %v1745, %v1689
          %v1755 = vsel %vm1738, %v1745, %v1690
          %v1756 = vsel %vm1739, %v1745, %v1691
          %v1757 = vsel %vm1740, %v1745, %v1692
          %v1758 = vsel %vm1741, %v1745, %v1693
          %v1759 = vsel %vm1742, %v1745, %v1694
          %v1760 = vsel %vm1743, %v1745, %v1695
          %v1761 = vsel %vm1744, %v1745, %v1696
          %vm1762 = vcmp.eq.s32.totalorder %v575, 4294967186
          %vm1763 = vcmp.eq.s32.totalorder %v576, 4294967186
          %vm1764 = vcmp.eq.s32.totalorder %v577, 4294967186
          %vm1765 = vcmp.eq.s32.totalorder %v578, 4294967186
          %vm1766 = vcmp.eq.s32.totalorder %v579, 4294967186
          %vm1767 = vcmp.eq.s32.totalorder %v580, 4294967186
          %vm1768 = vcmp.eq.s32.totalorder %v581, 4294967186
          %vm1769 = vcmp.eq.s32.totalorder %v582, 4294967186
          %vm1770 = vcmp.eq.s32.totalorder %v583, 4294967186
          %vm1771 = vcmp.eq.s32.totalorder %v584, 4294967186
          %vm1772 = vcmp.eq.s32.totalorder %v585, 4294967186
          %vm1773 = vcmp.eq.s32.totalorder %v586, 4294967186
          %vm1774 = vcmp.eq.s32.totalorder %v587, 4294967186
          %vm1775 = vcmp.eq.s32.totalorder %v588, 4294967186
          %vm1776 = vcmp.eq.s32.totalorder %v589, 4294967186
          %vm1777 = vcmp.eq.s32.totalorder %v590, 4294967186
          %v1778 = vsel %vm1762, %v1745, %v1713
          %v1779 = vsel %vm1763, %v1745, %v1714
          %v1780 = vsel %vm1764, %v1745, %v1715
          %v1781 = vsel %vm1765, %v1745, %v1716
          %v1782 = vsel %vm1766, %v1745, %v1717
          %v1783 = vsel %vm1767, %v1745, %v1718
          %v1784 = vsel %vm1768, %v1745, %v1719
          %v1785 = vsel %vm1769, %v1745, %v1720
          %v1786 = vsel %vm1770, %v1745, %v1721
          %v1787 = vsel %vm1771, %v1745, %v1722
          %v1788 = vsel %vm1772, %v1745, %v1723
          %v1789 = vsel %vm1773, %v1745, %v1724
          %v1790 = vsel %vm1774, %v1745, %v1725
          %v1791 = vsel %vm1775, %v1745, %v1726
          %v1792 = vsel %vm1776, %v1745, %v1727
          %v1793 = vsel %vm1777, %v1745, %v1728
          %vm1794 = vcmp.eq.s32.totalorder %v575, 19
          %vm1795 = vcmp.eq.s32.totalorder %v576, 19
          %vm1796 = vcmp.eq.s32.totalorder %v577, 19
          %vm1797 = vcmp.eq.s32.totalorder %v578, 19
          %vm1798 = vcmp.eq.s32.totalorder %v579, 19
          %vm1799 = vcmp.eq.s32.totalorder %v580, 19
          %vm1800 = vcmp.eq.s32.totalorder %v581, 19
          %vm1801 = vcmp.eq.s32.totalorder %v582, 19
          %vm1802 = vcmp.eq.s32.totalorder %v583, 19
          %vm1803 = vcmp.eq.s32.totalorder %v584, 19
          %vm1804 = vcmp.eq.s32.totalorder %v585, 19
          %vm1805 = vcmp.eq.s32.totalorder %v586, 19
          %vm1806 = vcmp.eq.s32.totalorder %v587, 19
          %vm1807 = vcmp.eq.s32.totalorder %v588, 19
          %vm1808 = vcmp.eq.s32.totalorder %v589, 19
          %vm1809 = vcmp.eq.s32.totalorder %v590, 19
          %v1810 = vperm.slane %v540, 3
          %v1811 = vsel %vm1794, %v1810, %v1746
          %v1812 = vsel %vm1795, %v1810, %v1747
          %v1813 = vsel %vm1796, %v1810, %v1748
          %v1814 = vsel %vm1797, %v1810, %v1749
          %v1815 = vsel %vm1798, %v1810, %v1750
          %v1816 = vsel %vm1799, %v1810, %v1751
          %v1817 = vsel %vm1800, %v1810, %v1752
          %v1818 = vsel %vm1801, %v1810, %v1753
          %v1819 = vsel %vm1802, %v1810, %v1754
          %v1820 = vsel %vm1803, %v1810, %v1755
          %v1821 = vsel %vm1804, %v1810, %v1756
          %v1822 = vsel %vm1805, %v1810, %v1757
          %v1823 = vsel %vm1806, %v1810, %v1758
          %v1824 = vsel %vm1807, %v1810, %v1759
          %v1825 = vsel %vm1808, %v1810, %v1760
          %v1826 = vsel %vm1809, %v1810, %v1761
          %vm1827 = vcmp.eq.s32.totalorder %v575, 4294967187
          %vm1828 = vcmp.eq.s32.totalorder %v576, 4294967187
          %vm1829 = vcmp.eq.s32.totalorder %v577, 4294967187
          %vm1830 = vcmp.eq.s32.totalorder %v578, 4294967187
          %vm1831 = vcmp.eq.s32.totalorder %v579, 4294967187
          %vm1832 = vcmp.eq.s32.totalorder %v580, 4294967187
          %vm1833 = vcmp.eq.s32.totalorder %v581, 4294967187
          %vm1834 = vcmp.eq.s32.totalorder %v582, 4294967187
          %vm1835 = vcmp.eq.s32.totalorder %v583, 4294967187
          %vm1836 = vcmp.eq.s32.totalorder %v584, 4294967187
          %vm1837 = vcmp.eq.s32.totalorder %v585, 4294967187
          %vm1838 = vcmp.eq.s32.totalorder %v586, 4294967187
          %vm1839 = vcmp.eq.s32.totalorder %v587, 4294967187
          %vm1840 = vcmp.eq.s32.totalorder %v588, 4294967187
          %vm1841 = vcmp.eq.s32.totalorder %v589, 4294967187
          %vm1842 = vcmp.eq.s32.totalorder %v590, 4294967187
          %v1843 = vsel %vm1827, %v1810, %v1778
          %v1844 = vsel %vm1828, %v1810, %v1779
          %v1845 = vsel %vm1829, %v1810, %v1780
          %v1846 = vsel %vm1830, %v1810, %v1781
          %v1847 = vsel %vm1831, %v1810, %v1782
          %v1848 = vsel %vm1832, %v1810, %v1783
          %v1849 = vsel %vm1833, %v1810, %v1784
          %v1850 = vsel %vm1834, %v1810, %v1785
          %v1851 = vsel %vm1835, %v1810, %v1786
          %v1852 = vsel %vm1836, %v1810, %v1787
          %v1853 = vsel %vm1837, %v1810, %v1788
          %v1854 = vsel %vm1838, %v1810, %v1789
          %v1855 = vsel %vm1839, %v1810, %v1790
          %v1856 = vsel %vm1840, %v1810, %v1791
          %v1857 = vsel %vm1841, %v1810, %v1792
          %v1858 = vsel %vm1842, %v1810, %v1793
          %vm1859 = vcmp.eq.s32.totalorder %v575, 20
          %vm1860 = vcmp.eq.s32.totalorder %v576, 20
          %vm1861 = vcmp.eq.s32.totalorder %v577, 20
          %vm1862 = vcmp.eq.s32.totalorder %v578, 20
          %vm1863 = vcmp.eq.s32.totalorder %v579, 20
          %vm1864 = vcmp.eq.s32.totalorder %v580, 20
          %vm1865 = vcmp.eq.s32.totalorder %v581, 20
          %vm1866 = vcmp.eq.s32.totalorder %v582, 20
          %vm1867 = vcmp.eq.s32.totalorder %v583, 20
          %vm1868 = vcmp.eq.s32.totalorder %v584, 20
          %vm1869 = vcmp.eq.s32.totalorder %v585, 20
          %vm1870 = vcmp.eq.s32.totalorder %v586, 20
          %vm1871 = vcmp.eq.s32.totalorder %v587, 20
          %vm1872 = vcmp.eq.s32.totalorder %v588, 20
          %vm1873 = vcmp.eq.s32.totalorder %v589, 20
          %vm1874 = vcmp.eq.s32.totalorder %v590, 20
          %v1875 = vperm.slane %v540, 4
          %v1876 = vsel %vm1859, %v1875, %v1811
          %v1877 = vsel %vm1860, %v1875, %v1812
          %v1878 = vsel %vm1861, %v1875, %v1813
          %v1879 = vsel %vm1862, %v1875, %v1814
          %v1880 = vsel %vm1863, %v1875, %v1815
          %v1881 = vsel %vm1864, %v1875, %v1816
          %v1882 = vsel %vm1865, %v1875, %v1817
          %v1883 = vsel %vm1866, %v1875, %v1818
          %v1884 = vsel %vm1867, %v1875, %v1819
          %v1885 = vsel %vm1868, %v1875, %v1820
          %v1886 = vsel %vm1869, %v1875, %v1821
          %v1887 = vsel %vm1870, %v1875, %v1822
          %v1888 = vsel %vm1871, %v1875, %v1823
          %v1889 = vsel %vm1872, %v1875, %v1824
          %v1890 = vsel %vm1873, %v1875, %v1825
          %v1891 = vsel %vm1874, %v1875, %v1826
          %vm1892 = vcmp.eq.s32.totalorder %v575, 4294967188
          %vm1893 = vcmp.eq.s32.totalorder %v576, 4294967188
          %vm1894 = vcmp.eq.s32.totalorder %v577, 4294967188
          %vm1895 = vcmp.eq.s32.totalorder %v578, 4294967188
          %vm1896 = vcmp.eq.s32.totalorder %v579, 4294967188
          %vm1897 = vcmp.eq.s32.totalorder %v580, 4294967188
          %vm1898 = vcmp.eq.s32.totalorder %v581, 4294967188
          %vm1899 = vcmp.eq.s32.totalorder %v582, 4294967188
          %vm1900 = vcmp.eq.s32.totalorder %v583, 4294967188
          %vm1901 = vcmp.eq.s32.totalorder %v584, 4294967188
          %vm1902 = vcmp.eq.s32.totalorder %v585, 4294967188
          %vm1903 = vcmp.eq.s32.totalorder %v586, 4294967188
          %vm1904 = vcmp.eq.s32.totalorder %v587, 4294967188
          %vm1905 = vcmp.eq.s32.totalorder %v588, 4294967188
          %vm1906 = vcmp.eq.s32.totalorder %v589, 4294967188
          %vm1907 = vcmp.eq.s32.totalorder %v590, 4294967188
          %v1908 = vsel %vm1892, %v1875, %v1843
          %v1909 = vsel %vm1893, %v1875, %v1844
          %v1910 = vsel %vm1894, %v1875, %v1845
          %v1911 = vsel %vm1895, %v1875, %v1846
          %v1912 = vsel %vm1896, %v1875, %v1847
          %v1913 = vsel %vm1897, %v1875, %v1848
          %v1914 = vsel %vm1898, %v1875, %v1849
          %v1915 = vsel %vm1899, %v1875, %v1850
          %v1916 = vsel %vm1900, %v1875, %v1851
          %v1917 = vsel %vm1901, %v1875, %v1852
          %v1918 = vsel %vm1902, %v1875, %v1853
          %v1919 = vsel %vm1903, %v1875, %v1854
          %v1920 = vsel %vm1904, %v1875, %v1855
          %v1921 = vsel %vm1905, %v1875, %v1856
          %v1922 = vsel %vm1906, %v1875, %v1857
          %v1923 = vsel %vm1907, %v1875, %v1858
          %vm1924 = vcmp.eq.s32.totalorder %v575, 21
          %vm1925 = vcmp.eq.s32.totalorder %v576, 21
          %vm1926 = vcmp.eq.s32.totalorder %v577, 21
          %vm1927 = vcmp.eq.s32.totalorder %v578, 21
          %vm1928 = vcmp.eq.s32.totalorder %v579, 21
          %vm1929 = vcmp.eq.s32.totalorder %v580, 21
          %vm1930 = vcmp.eq.s32.totalorder %v581, 21
          %vm1931 = vcmp.eq.s32.totalorder %v582, 21
          %vm1932 = vcmp.eq.s32.totalorder %v583, 21
          %vm1933 = vcmp.eq.s32.totalorder %v584, 21
          %vm1934 = vcmp.eq.s32.totalorder %v585, 21
          %vm1935 = vcmp.eq.s32.totalorder %v586, 21
          %vm1936 = vcmp.eq.s32.totalorder %v587, 21
          %vm1937 = vcmp.eq.s32.totalorder %v588, 21
          %vm1938 = vcmp.eq.s32.totalorder %v589, 21
          %vm1939 = vcmp.eq.s32.totalorder %v590, 21
          %v1940 = vperm.slane %v540, 5
          %v1941 = vsel %vm1924, %v1940, %v1876
          %v1942 = vsel %vm1925, %v1940, %v1877
          %v1943 = vsel %vm1926, %v1940, %v1878
          %v1944 = vsel %vm1927, %v1940, %v1879
          %v1945 = vsel %vm1928, %v1940, %v1880
          %v1946 = vsel %vm1929, %v1940, %v1881
          %v1947 = vsel %vm1930, %v1940, %v1882
          %v1948 = vsel %vm1931, %v1940, %v1883
          %v1949 = vsel %vm1932, %v1940, %v1884
          %v1950 = vsel %vm1933, %v1940, %v1885
          %v1951 = vsel %vm1934, %v1940, %v1886
          %v1952 = vsel %vm1935, %v1940, %v1887
          %v1953 = vsel %vm1936, %v1940, %v1888
          %v1954 = vsel %vm1937, %v1940, %v1889
          %v1955 = vsel %vm1938, %v1940, %v1890
          %v1956 = vsel %vm1939, %v1940, %v1891
          %vm1957 = vcmp.eq.s32.totalorder %v575, 4294967189
          %vm1958 = vcmp.eq.s32.totalorder %v576, 4294967189
          %vm1959 = vcmp.eq.s32.totalorder %v577, 4294967189
          %vm1960 = vcmp.eq.s32.totalorder %v578, 4294967189
          %vm1961 = vcmp.eq.s32.totalorder %v579, 4294967189
          %vm1962 = vcmp.eq.s32.totalorder %v580, 4294967189
          %vm1963 = vcmp.eq.s32.totalorder %v581, 4294967189
          %vm1964 = vcmp.eq.s32.totalorder %v582, 4294967189
          %vm1965 = vcmp.eq.s32.totalorder %v583, 4294967189
          %vm1966 = vcmp.eq.s32.totalorder %v584, 4294967189
          %vm1967 = vcmp.eq.s32.totalorder %v585, 4294967189
          %vm1968 = vcmp.eq.s32.totalorder %v586, 4294967189
          %vm1969 = vcmp.eq.s32.totalorder %v587, 4294967189
          %vm1970 = vcmp.eq.s32.totalorder %v588, 4294967189
          %vm1971 = vcmp.eq.s32.totalorder %v589, 4294967189
          %vm1972 = vcmp.eq.s32.totalorder %v590, 4294967189
          %v1973 = vsel %vm1957, %v1940, %v1908
          %v1974 = vsel %vm1958, %v1940, %v1909
          %v1975 = vsel %vm1959, %v1940, %v1910
          %v1976 = vsel %vm1960, %v1940, %v1911
          %v1977 = vsel %vm1961, %v1940, %v1912
          %v1978 = vsel %vm1962, %v1940, %v1913
          %v1979 = vsel %vm1963, %v1940, %v1914
          %v1980 = vsel %vm1964, %v1940, %v1915
          %v1981 = vsel %vm1965, %v1940, %v1916
          %v1982 = vsel %vm1966, %v1940, %v1917
          %v1983 = vsel %vm1967, %v1940, %v1918
          %v1984 = vsel %vm1968, %v1940, %v1919
          %v1985 = vsel %vm1969, %v1940, %v1920
          %v1986 = vsel %vm1970, %v1940, %v1921
          %v1987 = vsel %vm1971, %v1940, %v1922
          %v1988 = vsel %vm1972, %v1940, %v1923
          %vm1989 = vcmp.eq.s32.totalorder %v575, 22
          %vm1990 = vcmp.eq.s32.totalorder %v576, 22
          %vm1991 = vcmp.eq.s32.totalorder %v577, 22
          %vm1992 = vcmp.eq.s32.totalorder %v578, 22
          %vm1993 = vcmp.eq.s32.totalorder %v579, 22
          %vm1994 = vcmp.eq.s32.totalorder %v580, 22
          %vm1995 = vcmp.eq.s32.totalorder %v581, 22
          %vm1996 = vcmp.eq.s32.totalorder %v582, 22
          %vm1997 = vcmp.eq.s32.totalorder %v583, 22
          %vm1998 = vcmp.eq.s32.totalorder %v584, 22
          %vm1999 = vcmp.eq.s32.totalorder %v585, 22
          %vm2000 = vcmp.eq.s32.totalorder %v586, 22
          %vm2001 = vcmp.eq.s32.totalorder %v587, 22
          %vm2002 = vcmp.eq.s32.totalorder %v588, 22
          %vm2003 = vcmp.eq.s32.totalorder %v589, 22
          %vm2004 = vcmp.eq.s32.totalorder %v590, 22
          %v2005 = vperm.slane %v540, 6
          %v2006 = vsel %vm1989, %v2005, %v1941
          %v2007 = vsel %vm1990, %v2005, %v1942
          %v2008 = vsel %vm1991, %v2005, %v1943
          %v2009 = vsel %vm1992, %v2005, %v1944
          %v2010 = vsel %vm1993, %v2005, %v1945
          %v2011 = vsel %vm1994, %v2005, %v1946
          %v2012 = vsel %vm1995, %v2005, %v1947
          %v2013 = vsel %vm1996, %v2005, %v1948
          %v2014 = vsel %vm1997, %v2005, %v1949
          %v2015 = vsel %vm1998, %v2005, %v1950
          %v2016 = vsel %vm1999, %v2005, %v1951
          %v2017 = vsel %vm2000, %v2005, %v1952
          %v2018 = vsel %vm2001, %v2005, %v1953
          %v2019 = vsel %vm2002, %v2005, %v1954
          %v2020 = vsel %vm2003, %v2005, %v1955
          %v2021 = vsel %vm2004, %v2005, %v1956
          %vm2022 = vcmp.eq.s32.totalorder %v575, 4294967190
          %vm2023 = vcmp.eq.s32.totalorder %v576, 4294967190
          %vm2024 = vcmp.eq.s32.totalorder %v577, 4294967190
          %vm2025 = vcmp.eq.s32.totalorder %v578, 4294967190
          %vm2026 = vcmp.eq.s32.totalorder %v579, 4294967190
          %vm2027 = vcmp.eq.s32.totalorder %v580, 4294967190
          %vm2028 = vcmp.eq.s32.totalorder %v581, 4294967190
          %vm2029 = vcmp.eq.s32.totalorder %v582, 4294967190
          %vm2030 = vcmp.eq.s32.totalorder %v583, 4294967190
          %vm2031 = vcmp.eq.s32.totalorder %v584, 4294967190
          %vm2032 = vcmp.eq.s32.totalorder %v585, 4294967190
          %vm2033 = vcmp.eq.s32.totalorder %v586, 4294967190
          %vm2034 = vcmp.eq.s32.totalorder %v587, 4294967190
          %vm2035 = vcmp.eq.s32.totalorder %v588, 4294967190
          %vm2036 = vcmp.eq.s32.totalorder %v589, 4294967190
          %vm2037 = vcmp.eq.s32.totalorder %v590, 4294967190
          %v2038 = vsel %vm2022, %v2005, %v1973
          %v2039 = vsel %vm2023, %v2005, %v1974
          %v2040 = vsel %vm2024, %v2005, %v1975
          %v2041 = vsel %vm2025, %v2005, %v1976
          %v2042 = vsel %vm2026, %v2005, %v1977
          %v2043 = vsel %vm2027, %v2005, %v1978
          %v2044 = vsel %vm2028, %v2005, %v1979
          %v2045 = vsel %vm2029, %v2005, %v1980
          %v2046 = vsel %vm2030, %v2005, %v1981
          %v2047 = vsel %vm2031, %v2005, %v1982
          %v2048 = vsel %vm2032, %v2005, %v1983
          %v2049 = vsel %vm2033, %v2005, %v1984
          %v2050 = vsel %vm2034, %v2005, %v1985
          %v2051 = vsel %vm2035, %v2005, %v1986
          %v2052 = vsel %vm2036, %v2005, %v1987
          %v2053 = vsel %vm2037, %v2005, %v1988
          %vm2054 = vcmp.eq.s32.totalorder %v575, 23
          %vm2055 = vcmp.eq.s32.totalorder %v576, 23
          %vm2056 = vcmp.eq.s32.totalorder %v577, 23
          %vm2057 = vcmp.eq.s32.totalorder %v578, 23
          %vm2058 = vcmp.eq.s32.totalorder %v579, 23
          %vm2059 = vcmp.eq.s32.totalorder %v580, 23
          %vm2060 = vcmp.eq.s32.totalorder %v581, 23
          %vm2061 = vcmp.eq.s32.totalorder %v582, 23
          %vm2062 = vcmp.eq.s32.totalorder %v583, 23
          %vm2063 = vcmp.eq.s32.totalorder %v584, 23
          %vm2064 = vcmp.eq.s32.totalorder %v585, 23
          %vm2065 = vcmp.eq.s32.totalorder %v586, 23
          %vm2066 = vcmp.eq.s32.totalorder %v587, 23
          %vm2067 = vcmp.eq.s32.totalorder %v588, 23
          %vm2068 = vcmp.eq.s32.totalorder %v589, 23
          %vm2069 = vcmp.eq.s32.totalorder %v590, 23
          %v2070 = vperm.slane %v540, 7
          %v2071 = vsel %vm2054, %v2070, %v2006
          %v2072 = vsel %vm2055, %v2070, %v2007
          %v2073 = vsel %vm2056, %v2070, %v2008
          %v2074 = vsel %vm2057, %v2070, %v2009
          %v2075 = vsel %vm2058, %v2070, %v2010
          %v2076 = vsel %vm2059, %v2070, %v2011
          %v2077 = vsel %vm2060, %v2070, %v2012
          %v2078 = vsel %vm2061, %v2070, %v2013
          %v2079 = vsel %vm2062, %v2070, %v2014
          %v2080 = vsel %vm2063, %v2070, %v2015
          %v2081 = vsel %vm2064, %v2070, %v2016
          %v2082 = vsel %vm2065, %v2070, %v2017
          %v2083 = vsel %vm2066, %v2070, %v2018
          %v2084 = vsel %vm2067, %v2070, %v2019
          %v2085 = vsel %vm2068, %v2070, %v2020
          %v2086 = vsel %vm2069, %v2070, %v2021
          %vm2087 = vcmp.eq.s32.totalorder %v575, 4294967191
          %vm2088 = vcmp.eq.s32.totalorder %v576, 4294967191
          %vm2089 = vcmp.eq.s32.totalorder %v577, 4294967191
          %vm2090 = vcmp.eq.s32.totalorder %v578, 4294967191
          %vm2091 = vcmp.eq.s32.totalorder %v579, 4294967191
          %vm2092 = vcmp.eq.s32.totalorder %v580, 4294967191
          %vm2093 = vcmp.eq.s32.totalorder %v581, 4294967191
          %vm2094 = vcmp.eq.s32.totalorder %v582, 4294967191
          %vm2095 = vcmp.eq.s32.totalorder %v583, 4294967191
          %vm2096 = vcmp.eq.s32.totalorder %v584, 4294967191
          %vm2097 = vcmp.eq.s32.totalorder %v585, 4294967191
          %vm2098 = vcmp.eq.s32.totalorder %v586, 4294967191
          %vm2099 = vcmp.eq.s32.totalorder %v587, 4294967191
          %vm2100 = vcmp.eq.s32.totalorder %v588, 4294967191
          %vm2101 = vcmp.eq.s32.totalorder %v589, 4294967191
          %vm2102 = vcmp.eq.s32.totalorder %v590, 4294967191
          %v2103 = vsel %vm2087, %v2070, %v2038
          %v2104 = vsel %vm2088, %v2070, %v2039
          %v2105 = vsel %vm2089, %v2070, %v2040
          %v2106 = vsel %vm2090, %v2070, %v2041
          %v2107 = vsel %vm2091, %v2070, %v2042
          %v2108 = vsel %vm2092, %v2070, %v2043
          %v2109 = vsel %vm2093, %v2070, %v2044
          %v2110 = vsel %vm2094, %v2070, %v2045
          %v2111 = vsel %vm2095, %v2070, %v2046
          %v2112 = vsel %vm2096, %v2070, %v2047
          %v2113 = vsel %vm2097, %v2070, %v2048
          %v2114 = vsel %vm2098, %v2070, %v2049
          %v2115 = vsel %vm2099, %v2070, %v2050
          %v2116 = vsel %vm2100, %v2070, %v2051
          %v2117 = vsel %vm2101, %v2070, %v2052
          %v2118 = vsel %vm2102, %v2070, %v2053
          %vm2119 = vcmp.eq.s32.totalorder %v575, 24
          %vm2120 = vcmp.eq.s32.totalorder %v576, 24
          %vm2121 = vcmp.eq.s32.totalorder %v577, 24
          %vm2122 = vcmp.eq.s32.totalorder %v578, 24
          %vm2123 = vcmp.eq.s32.totalorder %v579, 24
          %vm2124 = vcmp.eq.s32.totalorder %v580, 24
          %vm2125 = vcmp.eq.s32.totalorder %v581, 24
          %vm2126 = vcmp.eq.s32.totalorder %v582, 24
          %vm2127 = vcmp.eq.s32.totalorder %v583, 24
          %vm2128 = vcmp.eq.s32.totalorder %v584, 24
          %vm2129 = vcmp.eq.s32.totalorder %v585, 24
          %vm2130 = vcmp.eq.s32.totalorder %v586, 24
          %vm2131 = vcmp.eq.s32.totalorder %v587, 24
          %vm2132 = vcmp.eq.s32.totalorder %v588, 24
          %vm2133 = vcmp.eq.s32.totalorder %v589, 24
          %vm2134 = vcmp.eq.s32.totalorder %v590, 24
          %v2135 = vperm.slane %v543, 0
          %v2136 = vsel %vm2119, %v2135, %v2071
          %v2137 = vsel %vm2120, %v2135, %v2072
          %v2138 = vsel %vm2121, %v2135, %v2073
          %v2139 = vsel %vm2122, %v2135, %v2074
          %v2140 = vsel %vm2123, %v2135, %v2075
          %v2141 = vsel %vm2124, %v2135, %v2076
          %v2142 = vsel %vm2125, %v2135, %v2077
          %v2143 = vsel %vm2126, %v2135, %v2078
          %v2144 = vsel %vm2127, %v2135, %v2079
          %v2145 = vsel %vm2128, %v2135, %v2080
          %v2146 = vsel %vm2129, %v2135, %v2081
          %v2147 = vsel %vm2130, %v2135, %v2082
          %v2148 = vsel %vm2131, %v2135, %v2083
          %v2149 = vsel %vm2132, %v2135, %v2084
          %v2150 = vsel %vm2133, %v2135, %v2085
          %v2151 = vsel %vm2134, %v2135, %v2086
          %vm2152 = vcmp.eq.s32.totalorder %v575, 4294967192
          %vm2153 = vcmp.eq.s32.totalorder %v576, 4294967192
          %vm2154 = vcmp.eq.s32.totalorder %v577, 4294967192
          %vm2155 = vcmp.eq.s32.totalorder %v578, 4294967192
          %vm2156 = vcmp.eq.s32.totalorder %v579, 4294967192
          %vm2157 = vcmp.eq.s32.totalorder %v580, 4294967192
          %vm2158 = vcmp.eq.s32.totalorder %v581, 4294967192
          %vm2159 = vcmp.eq.s32.totalorder %v582, 4294967192
          %vm2160 = vcmp.eq.s32.totalorder %v583, 4294967192
          %vm2161 = vcmp.eq.s32.totalorder %v584, 4294967192
          %vm2162 = vcmp.eq.s32.totalorder %v585, 4294967192
          %vm2163 = vcmp.eq.s32.totalorder %v586, 4294967192
          %vm2164 = vcmp.eq.s32.totalorder %v587, 4294967192
          %vm2165 = vcmp.eq.s32.totalorder %v588, 4294967192
          %vm2166 = vcmp.eq.s32.totalorder %v589, 4294967192
          %vm2167 = vcmp.eq.s32.totalorder %v590, 4294967192
          %v2168 = vsel %vm2152, %v2135, %v2103
          %v2169 = vsel %vm2153, %v2135, %v2104
          %v2170 = vsel %vm2154, %v2135, %v2105
          %v2171 = vsel %vm2155, %v2135, %v2106
          %v2172 = vsel %vm2156, %v2135, %v2107
          %v2173 = vsel %vm2157, %v2135, %v2108
          %v2174 = vsel %vm2158, %v2135, %v2109
          %v2175 = vsel %vm2159, %v2135, %v2110
          %v2176 = vsel %vm2160, %v2135, %v2111
          %v2177 = vsel %vm2161, %v2135, %v2112
          %v2178 = vsel %vm2162, %v2135, %v2113
          %v2179 = vsel %vm2163, %v2135, %v2114
          %v2180 = vsel %vm2164, %v2135, %v2115
          %v2181 = vsel %vm2165, %v2135, %v2116
          %v2182 = vsel %vm2166, %v2135, %v2117
          %v2183 = vsel %vm2167, %v2135, %v2118
          %vm2184 = vcmp.eq.s32.totalorder %v575, 25
          %vm2185 = vcmp.eq.s32.totalorder %v576, 25
          %vm2186 = vcmp.eq.s32.totalorder %v577, 25
          %vm2187 = vcmp.eq.s32.totalorder %v578, 25
          %vm2188 = vcmp.eq.s32.totalorder %v579, 25
          %vm2189 = vcmp.eq.s32.totalorder %v580, 25
          %vm2190 = vcmp.eq.s32.totalorder %v581, 25
          %vm2191 = vcmp.eq.s32.totalorder %v582, 25
          %vm2192 = vcmp.eq.s32.totalorder %v583, 25
          %vm2193 = vcmp.eq.s32.totalorder %v584, 25
          %vm2194 = vcmp.eq.s32.totalorder %v585, 25
          %vm2195 = vcmp.eq.s32.totalorder %v586, 25
          %vm2196 = vcmp.eq.s32.totalorder %v587, 25
          %vm2197 = vcmp.eq.s32.totalorder %v588, 25
          %vm2198 = vcmp.eq.s32.totalorder %v589, 25
          %vm2199 = vcmp.eq.s32.totalorder %v590, 25
          %v2200 = vperm.slane %v543, 1
          %v2201 = vsel %vm2184, %v2200, %v2136
          %v2202 = vsel %vm2185, %v2200, %v2137
          %v2203 = vsel %vm2186, %v2200, %v2138
          %v2204 = vsel %vm2187, %v2200, %v2139
          %v2205 = vsel %vm2188, %v2200, %v2140
          %v2206 = vsel %vm2189, %v2200, %v2141
          %v2207 = vsel %vm2190, %v2200, %v2142
          %v2208 = vsel %vm2191, %v2200, %v2143
          %v2209 = vsel %vm2192, %v2200, %v2144
          %v2210 = vsel %vm2193, %v2200, %v2145
          %v2211 = vsel %vm2194, %v2200, %v2146
          %v2212 = vsel %vm2195, %v2200, %v2147
          %v2213 = vsel %vm2196, %v2200, %v2148
          %v2214 = vsel %vm2197, %v2200, %v2149
          %v2215 = vsel %vm2198, %v2200, %v2150
          %v2216 = vsel %vm2199, %v2200, %v2151
          %vm2217 = vcmp.eq.s32.totalorder %v575, 4294967193
          %vm2218 = vcmp.eq.s32.totalorder %v576, 4294967193
          %vm2219 = vcmp.eq.s32.totalorder %v577, 4294967193
          %vm2220 = vcmp.eq.s32.totalorder %v578, 4294967193
          %vm2221 = vcmp.eq.s32.totalorder %v579, 4294967193
          %vm2222 = vcmp.eq.s32.totalorder %v580, 4294967193
          %vm2223 = vcmp.eq.s32.totalorder %v581, 4294967193
          %vm2224 = vcmp.eq.s32.totalorder %v582, 4294967193
          %vm2225 = vcmp.eq.s32.totalorder %v583, 4294967193
          %vm2226 = vcmp.eq.s32.totalorder %v584, 4294967193
          %vm2227 = vcmp.eq.s32.totalorder %v585, 4294967193
          %vm2228 = vcmp.eq.s32.totalorder %v586, 4294967193
          %vm2229 = vcmp.eq.s32.totalorder %v587, 4294967193
          %vm2230 = vcmp.eq.s32.totalorder %v588, 4294967193
          %vm2231 = vcmp.eq.s32.totalorder %v589, 4294967193
          %vm2232 = vcmp.eq.s32.totalorder %v590, 4294967193
          %v2233 = vsel %vm2217, %v2200, %v2168
          %v2234 = vsel %vm2218, %v2200, %v2169
          %v2235 = vsel %vm2219, %v2200, %v2170
          %v2236 = vsel %vm2220, %v2200, %v2171
          %v2237 = vsel %vm2221, %v2200, %v2172
          %v2238 = vsel %vm2222, %v2200, %v2173
          %v2239 = vsel %vm2223, %v2200, %v2174
          %v2240 = vsel %vm2224, %v2200, %v2175
          %v2241 = vsel %vm2225, %v2200, %v2176
          %v2242 = vsel %vm2226, %v2200, %v2177
          %v2243 = vsel %vm2227, %v2200, %v2178
          %v2244 = vsel %vm2228, %v2200, %v2179
          %v2245 = vsel %vm2229, %v2200, %v2180
          %v2246 = vsel %vm2230, %v2200, %v2181
          %v2247 = vsel %vm2231, %v2200, %v2182
          %v2248 = vsel %vm2232, %v2200, %v2183
          %vm2249 = vcmp.eq.s32.totalorder %v575, 26
          %vm2250 = vcmp.eq.s32.totalorder %v576, 26
          %vm2251 = vcmp.eq.s32.totalorder %v577, 26
          %vm2252 = vcmp.eq.s32.totalorder %v578, 26
          %vm2253 = vcmp.eq.s32.totalorder %v579, 26
          %vm2254 = vcmp.eq.s32.totalorder %v580, 26
          %vm2255 = vcmp.eq.s32.totalorder %v581, 26
          %vm2256 = vcmp.eq.s32.totalorder %v582, 26
          %vm2257 = vcmp.eq.s32.totalorder %v583, 26
          %vm2258 = vcmp.eq.s32.totalorder %v584, 26
          %vm2259 = vcmp.eq.s32.totalorder %v585, 26
          %vm2260 = vcmp.eq.s32.totalorder %v586, 26
          %vm2261 = vcmp.eq.s32.totalorder %v587, 26
          %vm2262 = vcmp.eq.s32.totalorder %v588, 26
          %vm2263 = vcmp.eq.s32.totalorder %v589, 26
          %vm2264 = vcmp.eq.s32.totalorder %v590, 26
          %v2265 = vperm.slane %v543, 2
          %v2266 = vsel %vm2249, %v2265, %v2201
          %v2267 = vsel %vm2250, %v2265, %v2202
          %v2268 = vsel %vm2251, %v2265, %v2203
          %v2269 = vsel %vm2252, %v2265, %v2204
          %v2270 = vsel %vm2253, %v2265, %v2205
          %v2271 = vsel %vm2254, %v2265, %v2206
          %v2272 = vsel %vm2255, %v2265, %v2207
          %v2273 = vsel %vm2256, %v2265, %v2208
          %v2274 = vsel %vm2257, %v2265, %v2209
          %v2275 = vsel %vm2258, %v2265, %v2210
          %v2276 = vsel %vm2259, %v2265, %v2211
          %v2277 = vsel %vm2260, %v2265, %v2212
          %v2278 = vsel %vm2261, %v2265, %v2213
          %v2279 = vsel %vm2262, %v2265, %v2214
          %v2280 = vsel %vm2263, %v2265, %v2215
          %v2281 = vsel %vm2264, %v2265, %v2216
          %vm2282 = vcmp.eq.s32.totalorder %v575, 4294967194
          %vm2283 = vcmp.eq.s32.totalorder %v576, 4294967194
          %vm2284 = vcmp.eq.s32.totalorder %v577, 4294967194
          %vm2285 = vcmp.eq.s32.totalorder %v578, 4294967194
          %vm2286 = vcmp.eq.s32.totalorder %v579, 4294967194
          %vm2287 = vcmp.eq.s32.totalorder %v580, 4294967194
          %vm2288 = vcmp.eq.s32.totalorder %v581, 4294967194
          %vm2289 = vcmp.eq.s32.totalorder %v582, 4294967194
          %vm2290 = vcmp.eq.s32.totalorder %v583, 4294967194
          %vm2291 = vcmp.eq.s32.totalorder %v584, 4294967194
          %vm2292 = vcmp.eq.s32.totalorder %v585, 4294967194
          %vm2293 = vcmp.eq.s32.totalorder %v586, 4294967194
          %vm2294 = vcmp.eq.s32.totalorder %v587, 4294967194
          %vm2295 = vcmp.eq.s32.totalorder %v588, 4294967194
          %vm2296 = vcmp.eq.s32.totalorder %v589, 4294967194
          %vm2297 = vcmp.eq.s32.totalorder %v590, 4294967194
          %v2298 = vsel %vm2282, %v2265, %v2233
          %v2299 = vsel %vm2283, %v2265, %v2234
          %v2300 = vsel %vm2284, %v2265, %v2235
          %v2301 = vsel %vm2285, %v2265, %v2236
          %v2302 = vsel %vm2286, %v2265, %v2237
          %v2303 = vsel %vm2287, %v2265, %v2238
          %v2304 = vsel %vm2288, %v2265, %v2239
          %v2305 = vsel %vm2289, %v2265, %v2240
          %v2306 = vsel %vm2290, %v2265, %v2241
          %v2307 = vsel %vm2291, %v2265, %v2242
          %v2308 = vsel %vm2292, %v2265, %v2243
          %v2309 = vsel %vm2293, %v2265, %v2244
          %v2310 = vsel %vm2294, %v2265, %v2245
          %v2311 = vsel %vm2295, %v2265, %v2246
          %v2312 = vsel %vm2296, %v2265, %v2247
          %v2313 = vsel %vm2297, %v2265, %v2248
          %vm2314 = vcmp.eq.s32.totalorder %v575, 27
          %vm2315 = vcmp.eq.s32.totalorder %v576, 27
          %vm2316 = vcmp.eq.s32.totalorder %v577, 27
          %vm2317 = vcmp.eq.s32.totalorder %v578, 27
          %vm2318 = vcmp.eq.s32.totalorder %v579, 27
          %vm2319 = vcmp.eq.s32.totalorder %v580, 27
          %vm2320 = vcmp.eq.s32.totalorder %v581, 27
          %vm2321 = vcmp.eq.s32.totalorder %v582, 27
          %vm2322 = vcmp.eq.s32.totalorder %v583, 27
          %vm2323 = vcmp.eq.s32.totalorder %v584, 27
          %vm2324 = vcmp.eq.s32.totalorder %v585, 27
          %vm2325 = vcmp.eq.s32.totalorder %v586, 27
          %vm2326 = vcmp.eq.s32.totalorder %v587, 27
          %vm2327 = vcmp.eq.s32.totalorder %v588, 27
          %vm2328 = vcmp.eq.s32.totalorder %v589, 27
          %vm2329 = vcmp.eq.s32.totalorder %v590, 27
          %v2330 = vperm.slane %v543, 3
          %v2331 = vsel %vm2314, %v2330, %v2266
          %v2332 = vsel %vm2315, %v2330, %v2267
          %v2333 = vsel %vm2316, %v2330, %v2268
          %v2334 = vsel %vm2317, %v2330, %v2269
          %v2335 = vsel %vm2318, %v2330, %v2270
          %v2336 = vsel %vm2319, %v2330, %v2271
          %v2337 = vsel %vm2320, %v2330, %v2272
          %v2338 = vsel %vm2321, %v2330, %v2273
          %v2339 = vsel %vm2322, %v2330, %v2274
          %v2340 = vsel %vm2323, %v2330, %v2275
          %v2341 = vsel %vm2324, %v2330, %v2276
          %v2342 = vsel %vm2325, %v2330, %v2277
          %v2343 = vsel %vm2326, %v2330, %v2278
          %v2344 = vsel %vm2327, %v2330, %v2279
          %v2345 = vsel %vm2328, %v2330, %v2280
          %v2346 = vsel %vm2329, %v2330, %v2281
          %vm2347 = vcmp.eq.s32.totalorder %v575, 4294967195
          %vm2348 = vcmp.eq.s32.totalorder %v576, 4294967195
          %vm2349 = vcmp.eq.s32.totalorder %v577, 4294967195
          %vm2350 = vcmp.eq.s32.totalorder %v578, 4294967195
          %vm2351 = vcmp.eq.s32.totalorder %v579, 4294967195
          %vm2352 = vcmp.eq.s32.totalorder %v580, 4294967195
          %vm2353 = vcmp.eq.s32.totalorder %v581, 4294967195
          %vm2354 = vcmp.eq.s32.totalorder %v582, 4294967195
          %vm2355 = vcmp.eq.s32.totalorder %v583, 4294967195
          %vm2356 = vcmp.eq.s32.totalorder %v584, 4294967195
          %vm2357 = vcmp.eq.s32.totalorder %v585, 4294967195
          %vm2358 = vcmp.eq.s32.totalorder %v586, 4294967195
          %vm2359 = vcmp.eq.s32.totalorder %v587, 4294967195
          %vm2360 = vcmp.eq.s32.totalorder %v588, 4294967195
          %vm2361 = vcmp.eq.s32.totalorder %v589, 4294967195
          %vm2362 = vcmp.eq.s32.totalorder %v590, 4294967195
          %v2363 = vsel %vm2347, %v2330, %v2298
          %v2364 = vsel %vm2348, %v2330, %v2299
          %v2365 = vsel %vm2349, %v2330, %v2300
          %v2366 = vsel %vm2350, %v2330, %v2301
          %v2367 = vsel %vm2351, %v2330, %v2302
          %v2368 = vsel %vm2352, %v2330, %v2303
          %v2369 = vsel %vm2353, %v2330, %v2304
          %v2370 = vsel %vm2354, %v2330, %v2305
          %v2371 = vsel %vm2355, %v2330, %v2306
          %v2372 = vsel %vm2356, %v2330, %v2307
          %v2373 = vsel %vm2357, %v2330, %v2308
          %v2374 = vsel %vm2358, %v2330, %v2309
          %v2375 = vsel %vm2359, %v2330, %v2310
          %v2376 = vsel %vm2360, %v2330, %v2311
          %v2377 = vsel %vm2361, %v2330, %v2312
          %v2378 = vsel %vm2362, %v2330, %v2313
          %vm2379 = vcmp.eq.s32.totalorder %v575, 28
          %vm2380 = vcmp.eq.s32.totalorder %v576, 28
          %vm2381 = vcmp.eq.s32.totalorder %v577, 28
          %vm2382 = vcmp.eq.s32.totalorder %v578, 28
          %vm2383 = vcmp.eq.s32.totalorder %v579, 28
          %vm2384 = vcmp.eq.s32.totalorder %v580, 28
          %vm2385 = vcmp.eq.s32.totalorder %v581, 28
          %vm2386 = vcmp.eq.s32.totalorder %v582, 28
          %vm2387 = vcmp.eq.s32.totalorder %v583, 28
          %vm2388 = vcmp.eq.s32.totalorder %v584, 28
          %vm2389 = vcmp.eq.s32.totalorder %v585, 28
          %vm2390 = vcmp.eq.s32.totalorder %v586, 28
          %vm2391 = vcmp.eq.s32.totalorder %v587, 28
          %vm2392 = vcmp.eq.s32.totalorder %v588, 28
          %vm2393 = vcmp.eq.s32.totalorder %v589, 28
          %vm2394 = vcmp.eq.s32.totalorder %v590, 28
          %v2395 = vperm.slane %v543, 4
          %v2396 = vsel %vm2379, %v2395, %v2331
          %v2397 = vsel %vm2380, %v2395, %v2332
          %v2398 = vsel %vm2381, %v2395, %v2333
          %v2399 = vsel %vm2382, %v2395, %v2334
          %v2400 = vsel %vm2383, %v2395, %v2335
          %v2401 = vsel %vm2384, %v2395, %v2336
          %v2402 = vsel %vm2385, %v2395, %v2337
          %v2403 = vsel %vm2386, %v2395, %v2338
          %v2404 = vsel %vm2387, %v2395, %v2339
          %v2405 = vsel %vm2388, %v2395, %v2340
          %v2406 = vsel %vm2389, %v2395, %v2341
          %v2407 = vsel %vm2390, %v2395, %v2342
          %v2408 = vsel %vm2391, %v2395, %v2343
          %v2409 = vsel %vm2392, %v2395, %v2344
          %v2410 = vsel %vm2393, %v2395, %v2345
          %v2411 = vsel %vm2394, %v2395, %v2346
          %vm2412 = vcmp.eq.s32.totalorder %v575, 4294967196
          %vm2413 = vcmp.eq.s32.totalorder %v576, 4294967196
          %vm2414 = vcmp.eq.s32.totalorder %v577, 4294967196
          %vm2415 = vcmp.eq.s32.totalorder %v578, 4294967196
          %vm2416 = vcmp.eq.s32.totalorder %v579, 4294967196
          %vm2417 = vcmp.eq.s32.totalorder %v580, 4294967196
          %vm2418 = vcmp.eq.s32.totalorder %v581, 4294967196
          %vm2419 = vcmp.eq.s32.totalorder %v582, 4294967196
          %vm2420 = vcmp.eq.s32.totalorder %v583, 4294967196
          %vm2421 = vcmp.eq.s32.totalorder %v584, 4294967196
          %vm2422 = vcmp.eq.s32.totalorder %v585, 4294967196
          %vm2423 = vcmp.eq.s32.totalorder %v586, 4294967196
          %vm2424 = vcmp.eq.s32.totalorder %v587, 4294967196
          %vm2425 = vcmp.eq.s32.totalorder %v588, 4294967196
          %vm2426 = vcmp.eq.s32.totalorder %v589, 4294967196
          %vm2427 = vcmp.eq.s32.totalorder %v590, 4294967196
          %v2428 = vsel %vm2412, %v2395, %v2363
          %v2429 = vsel %vm2413, %v2395, %v2364
          %v2430 = vsel %vm2414, %v2395, %v2365
          %v2431 = vsel %vm2415, %v2395, %v2366
          %v2432 = vsel %vm2416, %v2395, %v2367
          %v2433 = vsel %vm2417, %v2395, %v2368
          %v2434 = vsel %vm2418, %v2395, %v2369
          %v2435 = vsel %vm2419, %v2395, %v2370
          %v2436 = vsel %vm2420, %v2395, %v2371
          %v2437 = vsel %vm2421, %v2395, %v2372
          %v2438 = vsel %vm2422, %v2395, %v2373
          %v2439 = vsel %vm2423, %v2395, %v2374
          %v2440 = vsel %vm2424, %v2395, %v2375
          %v2441 = vsel %vm2425, %v2395, %v2376
          %v2442 = vsel %vm2426, %v2395, %v2377
          %v2443 = vsel %vm2427, %v2395, %v2378
          %vm2444 = vcmp.eq.s32.totalorder %v575, 29
          %vm2445 = vcmp.eq.s32.totalorder %v576, 29
          %vm2446 = vcmp.eq.s32.totalorder %v577, 29
          %vm2447 = vcmp.eq.s32.totalorder %v578, 29
          %vm2448 = vcmp.eq.s32.totalorder %v579, 29
          %vm2449 = vcmp.eq.s32.totalorder %v580, 29
          %vm2450 = vcmp.eq.s32.totalorder %v581, 29
          %vm2451 = vcmp.eq.s32.totalorder %v582, 29
          %vm2452 = vcmp.eq.s32.totalorder %v583, 29
          %vm2453 = vcmp.eq.s32.totalorder %v584, 29
          %vm2454 = vcmp.eq.s32.totalorder %v585, 29
          %vm2455 = vcmp.eq.s32.totalorder %v586, 29
          %vm2456 = vcmp.eq.s32.totalorder %v587, 29
          %vm2457 = vcmp.eq.s32.totalorder %v588, 29
          %vm2458 = vcmp.eq.s32.totalorder %v589, 29
          %vm2459 = vcmp.eq.s32.totalorder %v590, 29
          %v2460 = vperm.slane %v543, 5
          %v2461 = vsel %vm2444, %v2460, %v2396
          %v2462 = vsel %vm2445, %v2460, %v2397
          %v2463 = vsel %vm2446, %v2460, %v2398
          %v2464 = vsel %vm2447, %v2460, %v2399
          %v2465 = vsel %vm2448, %v2460, %v2400
          %v2466 = vsel %vm2449, %v2460, %v2401
          %v2467 = vsel %vm2450, %v2460, %v2402
          %v2468 = vsel %vm2451, %v2460, %v2403
          %v2469 = vsel %vm2452, %v2460, %v2404
          %v2470 = vsel %vm2453, %v2460, %v2405
          %v2471 = vsel %vm2454, %v2460, %v2406
          %v2472 = vsel %vm2455, %v2460, %v2407
          %v2473 = vsel %vm2456, %v2460, %v2408
          %v2474 = vsel %vm2457, %v2460, %v2409
          %v2475 = vsel %vm2458, %v2460, %v2410
          %v2476 = vsel %vm2459, %v2460, %v2411
          %vm2477 = vcmp.eq.s32.totalorder %v575, 4294967197
          %vm2478 = vcmp.eq.s32.totalorder %v576, 4294967197
          %vm2479 = vcmp.eq.s32.totalorder %v577, 4294967197
          %vm2480 = vcmp.eq.s32.totalorder %v578, 4294967197
          %vm2481 = vcmp.eq.s32.totalorder %v579, 4294967197
          %vm2482 = vcmp.eq.s32.totalorder %v580, 4294967197
          %vm2483 = vcmp.eq.s32.totalorder %v581, 4294967197
          %vm2484 = vcmp.eq.s32.totalorder %v582, 4294967197
          %vm2485 = vcmp.eq.s32.totalorder %v583, 4294967197
          %vm2486 = vcmp.eq.s32.totalorder %v584, 4294967197
          %vm2487 = vcmp.eq.s32.totalorder %v585, 4294967197
          %vm2488 = vcmp.eq.s32.totalorder %v586, 4294967197
          %vm2489 = vcmp.eq.s32.totalorder %v587, 4294967197
          %vm2490 = vcmp.eq.s32.totalorder %v588, 4294967197
          %vm2491 = vcmp.eq.s32.totalorder %v589, 4294967197
          %vm2492 = vcmp.eq.s32.totalorder %v590, 4294967197
          %v2493 = vsel %vm2477, %v2460, %v2428
          %v2494 = vsel %vm2478, %v2460, %v2429
          %v2495 = vsel %vm2479, %v2460, %v2430
          %v2496 = vsel %vm2480, %v2460, %v2431
          %v2497 = vsel %vm2481, %v2460, %v2432
          %v2498 = vsel %vm2482, %v2460, %v2433
          %v2499 = vsel %vm2483, %v2460, %v2434
          %v2500 = vsel %vm2484, %v2460, %v2435
          %v2501 = vsel %vm2485, %v2460, %v2436
          %v2502 = vsel %vm2486, %v2460, %v2437
          %v2503 = vsel %vm2487, %v2460, %v2438
          %v2504 = vsel %vm2488, %v2460, %v2439
          %v2505 = vsel %vm2489, %v2460, %v2440
          %v2506 = vsel %vm2490, %v2460, %v2441
          %v2507 = vsel %vm2491, %v2460, %v2442
          %v2508 = vsel %vm2492, %v2460, %v2443
          %vm2509 = vcmp.eq.s32.totalorder %v575, 30
          %vm2510 = vcmp.eq.s32.totalorder %v576, 30
          %vm2511 = vcmp.eq.s32.totalorder %v577, 30
          %vm2512 = vcmp.eq.s32.totalorder %v578, 30
          %vm2513 = vcmp.eq.s32.totalorder %v579, 30
          %vm2514 = vcmp.eq.s32.totalorder %v580, 30
          %vm2515 = vcmp.eq.s32.totalorder %v581, 30
          %vm2516 = vcmp.eq.s32.totalorder %v582, 30
          %vm2517 = vcmp.eq.s32.totalorder %v583, 30
          %vm2518 = vcmp.eq.s32.totalorder %v584, 30
          %vm2519 = vcmp.eq.s32.totalorder %v585, 30
          %vm2520 = vcmp.eq.s32.totalorder %v586, 30
          %vm2521 = vcmp.eq.s32.totalorder %v587, 30
          %vm2522 = vcmp.eq.s32.totalorder %v588, 30
          %vm2523 = vcmp.eq.s32.totalorder %v589, 30
          %vm2524 = vcmp.eq.s32.totalorder %v590, 30
          %v2525 = vperm.slane %v543, 6
          %v2526 = vsel %vm2509, %v2525, %v2461
          %v2527 = vsel %vm2510, %v2525, %v2462
          %v2528 = vsel %vm2511, %v2525, %v2463
          %v2529 = vsel %vm2512, %v2525, %v2464
          %v2530 = vsel %vm2513, %v2525, %v2465
          %v2531 = vsel %vm2514, %v2525, %v2466
          %v2532 = vsel %vm2515, %v2525, %v2467
          %v2533 = vsel %vm2516, %v2525, %v2468
          %v2534 = vsel %vm2517, %v2525, %v2469
          %v2535 = vsel %vm2518, %v2525, %v2470
          %v2536 = vsel %vm2519, %v2525, %v2471
          %v2537 = vsel %vm2520, %v2525, %v2472
          %v2538 = vsel %vm2521, %v2525, %v2473
          %v2539 = vsel %vm2522, %v2525, %v2474
          %v2540 = vsel %vm2523, %v2525, %v2475
          %v2541 = vsel %vm2524, %v2525, %v2476
          %vm2542 = vcmp.eq.s32.totalorder %v575, 4294967198
          %vm2543 = vcmp.eq.s32.totalorder %v576, 4294967198
          %vm2544 = vcmp.eq.s32.totalorder %v577, 4294967198
          %vm2545 = vcmp.eq.s32.totalorder %v578, 4294967198
          %vm2546 = vcmp.eq.s32.totalorder %v579, 4294967198
          %vm2547 = vcmp.eq.s32.totalorder %v580, 4294967198
          %vm2548 = vcmp.eq.s32.totalorder %v581, 4294967198
          %vm2549 = vcmp.eq.s32.totalorder %v582, 4294967198
          %vm2550 = vcmp.eq.s32.totalorder %v583, 4294967198
          %vm2551 = vcmp.eq.s32.totalorder %v584, 4294967198
          %vm2552 = vcmp.eq.s32.totalorder %v585, 4294967198
          %vm2553 = vcmp.eq.s32.totalorder %v586, 4294967198
          %vm2554 = vcmp.eq.s32.totalorder %v587, 4294967198
          %vm2555 = vcmp.eq.s32.totalorder %v588, 4294967198
          %vm2556 = vcmp.eq.s32.totalorder %v589, 4294967198
          %vm2557 = vcmp.eq.s32.totalorder %v590, 4294967198
          %v2558 = vsel %vm2542, %v2525, %v2493
          %v2559 = vsel %vm2543, %v2525, %v2494
          %v2560 = vsel %vm2544, %v2525, %v2495
          %v2561 = vsel %vm2545, %v2525, %v2496
          %v2562 = vsel %vm2546, %v2525, %v2497
          %v2563 = vsel %vm2547, %v2525, %v2498
          %v2564 = vsel %vm2548, %v2525, %v2499
          %v2565 = vsel %vm2549, %v2525, %v2500
          %v2566 = vsel %vm2550, %v2525, %v2501
          %v2567 = vsel %vm2551, %v2525, %v2502
          %v2568 = vsel %vm2552, %v2525, %v2503
          %v2569 = vsel %vm2553, %v2525, %v2504
          %v2570 = vsel %vm2554, %v2525, %v2505
          %v2571 = vsel %vm2555, %v2525, %v2506
          %v2572 = vsel %vm2556, %v2525, %v2507
          %v2573 = vsel %vm2557, %v2525, %v2508
          %vm2574 = vcmp.eq.s32.totalorder %v575, 31
          %vm2575 = vcmp.eq.s32.totalorder %v576, 31
          %vm2576 = vcmp.eq.s32.totalorder %v577, 31
          %vm2577 = vcmp.eq.s32.totalorder %v578, 31
          %vm2578 = vcmp.eq.s32.totalorder %v579, 31
          %vm2579 = vcmp.eq.s32.totalorder %v580, 31
          %vm2580 = vcmp.eq.s32.totalorder %v581, 31
          %vm2581 = vcmp.eq.s32.totalorder %v582, 31
          %vm2582 = vcmp.eq.s32.totalorder %v583, 31
          %vm2583 = vcmp.eq.s32.totalorder %v584, 31
          %vm2584 = vcmp.eq.s32.totalorder %v585, 31
          %vm2585 = vcmp.eq.s32.totalorder %v586, 31
          %vm2586 = vcmp.eq.s32.totalorder %v587, 31
          %vm2587 = vcmp.eq.s32.totalorder %v588, 31
          %vm2588 = vcmp.eq.s32.totalorder %v589, 31
          %vm2589 = vcmp.eq.s32.totalorder %v590, 31
          %v2590 = vperm.slane %v543, 7
          %v2591 = vsel %vm2574, %v2590, %v2526
          %v2592 = vsel %vm2575, %v2590, %v2527
          %v2593 = vsel %vm2576, %v2590, %v2528
          %v2594 = vsel %vm2577, %v2590, %v2529
          %v2595 = vsel %vm2578, %v2590, %v2530
          %v2596 = vsel %vm2579, %v2590, %v2531
          %v2597 = vsel %vm2580, %v2590, %v2532
          %v2598 = vsel %vm2581, %v2590, %v2533
          %v2599 = vsel %vm2582, %v2590, %v2534
          %v2600 = vsel %vm2583, %v2590, %v2535
          %v2601 = vsel %vm2584, %v2590, %v2536
          %v2602 = vsel %vm2585, %v2590, %v2537
          %v2603 = vsel %vm2586, %v2590, %v2538
          %v2604 = vsel %vm2587, %v2590, %v2539
          %v2605 = vsel %vm2588, %v2590, %v2540
          %v2606 = vsel %vm2589, %v2590, %v2541
          %vm2607 = vcmp.eq.s32.totalorder %v575, 4294967199
          %vm2608 = vcmp.eq.s32.totalorder %v576, 4294967199
          %vm2609 = vcmp.eq.s32.totalorder %v577, 4294967199
          %vm2610 = vcmp.eq.s32.totalorder %v578, 4294967199
          %vm2611 = vcmp.eq.s32.totalorder %v579, 4294967199
          %vm2612 = vcmp.eq.s32.totalorder %v580, 4294967199
          %vm2613 = vcmp.eq.s32.totalorder %v581, 4294967199
          %vm2614 = vcmp.eq.s32.totalorder %v582, 4294967199
          %vm2615 = vcmp.eq.s32.totalorder %v583, 4294967199
          %vm2616 = vcmp.eq.s32.totalorder %v584, 4294967199
          %vm2617 = vcmp.eq.s32.totalorder %v585, 4294967199
          %vm2618 = vcmp.eq.s32.totalorder %v586, 4294967199
          %vm2619 = vcmp.eq.s32.totalorder %v587, 4294967199
          %vm2620 = vcmp.eq.s32.totalorder %v588, 4294967199
          %vm2621 = vcmp.eq.s32.totalorder %v589, 4294967199
          %vm2622 = vcmp.eq.s32.totalorder %v590, 4294967199
          %v2623 = vsel %vm2607, %v2590, %v2558
          %v2624 = vsel %vm2608, %v2590, %v2559
          %v2625 = vsel %vm2609, %v2590, %v2560
          %v2626 = vsel %vm2610, %v2590, %v2561
          %v2627 = vsel %vm2611, %v2590, %v2562
          %v2628 = vsel %vm2612, %v2590, %v2563
          %v2629 = vsel %vm2613, %v2590, %v2564
          %v2630 = vsel %vm2614, %v2590, %v2565
          %v2631 = vsel %vm2615, %v2590, %v2566
          %v2632 = vsel %vm2616, %v2590, %v2567
          %v2633 = vsel %vm2617, %v2590, %v2568
          %v2634 = vsel %vm2618, %v2590, %v2569
          %v2635 = vsel %vm2619, %v2590, %v2570
          %v2636 = vsel %vm2620, %v2590, %v2571
          %v2637 = vsel %vm2621, %v2590, %v2572
          %v2638 = vsel %vm2622, %v2590, %v2573
          %vm2639 = vcmp.eq.s32.totalorder %v575, 32
          %vm2640 = vcmp.eq.s32.totalorder %v576, 32
          %vm2641 = vcmp.eq.s32.totalorder %v577, 32
          %vm2642 = vcmp.eq.s32.totalorder %v578, 32
          %vm2643 = vcmp.eq.s32.totalorder %v579, 32
          %vm2644 = vcmp.eq.s32.totalorder %v580, 32
          %vm2645 = vcmp.eq.s32.totalorder %v581, 32
          %vm2646 = vcmp.eq.s32.totalorder %v582, 32
          %vm2647 = vcmp.eq.s32.totalorder %v583, 32
          %vm2648 = vcmp.eq.s32.totalorder %v584, 32
          %vm2649 = vcmp.eq.s32.totalorder %v585, 32
          %vm2650 = vcmp.eq.s32.totalorder %v586, 32
          %vm2651 = vcmp.eq.s32.totalorder %v587, 32
          %vm2652 = vcmp.eq.s32.totalorder %v588, 32
          %vm2653 = vcmp.eq.s32.totalorder %v589, 32
          %vm2654 = vcmp.eq.s32.totalorder %v590, 32
          %v2655 = vperm.slane %v546, 0
          %v2656 = vsel %vm2639, %v2655, %v2591
          %v2657 = vsel %vm2640, %v2655, %v2592
          %v2658 = vsel %vm2641, %v2655, %v2593
          %v2659 = vsel %vm2642, %v2655, %v2594
          %v2660 = vsel %vm2643, %v2655, %v2595
          %v2661 = vsel %vm2644, %v2655, %v2596
          %v2662 = vsel %vm2645, %v2655, %v2597
          %v2663 = vsel %vm2646, %v2655, %v2598
          %v2664 = vsel %vm2647, %v2655, %v2599
          %v2665 = vsel %vm2648, %v2655, %v2600
          %v2666 = vsel %vm2649, %v2655, %v2601
          %v2667 = vsel %vm2650, %v2655, %v2602
          %v2668 = vsel %vm2651, %v2655, %v2603
          %v2669 = vsel %vm2652, %v2655, %v2604
          %v2670 = vsel %vm2653, %v2655, %v2605
          %v2671 = vsel %vm2654, %v2655, %v2606
          %vm2672 = vcmp.eq.s32.totalorder %v575, 4294967200
          %vm2673 = vcmp.eq.s32.totalorder %v576, 4294967200
          %vm2674 = vcmp.eq.s32.totalorder %v577, 4294967200
          %vm2675 = vcmp.eq.s32.totalorder %v578, 4294967200
          %vm2676 = vcmp.eq.s32.totalorder %v579, 4294967200
          %vm2677 = vcmp.eq.s32.totalorder %v580, 4294967200
          %vm2678 = vcmp.eq.s32.totalorder %v581, 4294967200
          %vm2679 = vcmp.eq.s32.totalorder %v582, 4294967200
          %vm2680 = vcmp.eq.s32.totalorder %v583, 4294967200
          %vm2681 = vcmp.eq.s32.totalorder %v584, 4294967200
          %vm2682 = vcmp.eq.s32.totalorder %v585, 4294967200
          %vm2683 = vcmp.eq.s32.totalorder %v586, 4294967200
          %vm2684 = vcmp.eq.s32.totalorder %v587, 4294967200
          %vm2685 = vcmp.eq.s32.totalorder %v588, 4294967200
          %vm2686 = vcmp.eq.s32.totalorder %v589, 4294967200
          %vm2687 = vcmp.eq.s32.totalorder %v590, 4294967200
          %v2688 = vsel %vm2672, %v2655, %v2623
          %v2689 = vsel %vm2673, %v2655, %v2624
          %v2690 = vsel %vm2674, %v2655, %v2625
          %v2691 = vsel %vm2675, %v2655, %v2626
          %v2692 = vsel %vm2676, %v2655, %v2627
          %v2693 = vsel %vm2677, %v2655, %v2628
          %v2694 = vsel %vm2678, %v2655, %v2629
          %v2695 = vsel %vm2679, %v2655, %v2630
          %v2696 = vsel %vm2680, %v2655, %v2631
          %v2697 = vsel %vm2681, %v2655, %v2632
          %v2698 = vsel %vm2682, %v2655, %v2633
          %v2699 = vsel %vm2683, %v2655, %v2634
          %v2700 = vsel %vm2684, %v2655, %v2635
          %v2701 = vsel %vm2685, %v2655, %v2636
          %v2702 = vsel %vm2686, %v2655, %v2637
          %v2703 = vsel %vm2687, %v2655, %v2638
          %vm2704 = vcmp.eq.s32.totalorder %v575, 33
          %vm2705 = vcmp.eq.s32.totalorder %v576, 33
          %vm2706 = vcmp.eq.s32.totalorder %v577, 33
          %vm2707 = vcmp.eq.s32.totalorder %v578, 33
          %vm2708 = vcmp.eq.s32.totalorder %v579, 33
          %vm2709 = vcmp.eq.s32.totalorder %v580, 33
          %vm2710 = vcmp.eq.s32.totalorder %v581, 33
          %vm2711 = vcmp.eq.s32.totalorder %v582, 33
          %vm2712 = vcmp.eq.s32.totalorder %v583, 33
          %vm2713 = vcmp.eq.s32.totalorder %v584, 33
          %vm2714 = vcmp.eq.s32.totalorder %v585, 33
          %vm2715 = vcmp.eq.s32.totalorder %v586, 33
          %vm2716 = vcmp.eq.s32.totalorder %v587, 33
          %vm2717 = vcmp.eq.s32.totalorder %v588, 33
          %vm2718 = vcmp.eq.s32.totalorder %v589, 33
          %vm2719 = vcmp.eq.s32.totalorder %v590, 33
          %v2720 = vperm.slane %v546, 1
          %v2721 = vsel %vm2704, %v2720, %v2656
          %v2722 = vsel %vm2705, %v2720, %v2657
          %v2723 = vsel %vm2706, %v2720, %v2658
          %v2724 = vsel %vm2707, %v2720, %v2659
          %v2725 = vsel %vm2708, %v2720, %v2660
          %v2726 = vsel %vm2709, %v2720, %v2661
          %v2727 = vsel %vm2710, %v2720, %v2662
          %v2728 = vsel %vm2711, %v2720, %v2663
          %v2729 = vsel %vm2712, %v2720, %v2664
          %v2730 = vsel %vm2713, %v2720, %v2665
          %v2731 = vsel %vm2714, %v2720, %v2666
          %v2732 = vsel %vm2715, %v2720, %v2667
          %v2733 = vsel %vm2716, %v2720, %v2668
          %v2734 = vsel %vm2717, %v2720, %v2669
          %v2735 = vsel %vm2718, %v2720, %v2670
          %v2736 = vsel %vm2719, %v2720, %v2671
          %vm2737 = vcmp.eq.s32.totalorder %v575, 4294967201
          %vm2738 = vcmp.eq.s32.totalorder %v576, 4294967201
          %vm2739 = vcmp.eq.s32.totalorder %v577, 4294967201
          %vm2740 = vcmp.eq.s32.totalorder %v578, 4294967201
          %vm2741 = vcmp.eq.s32.totalorder %v579, 4294967201
          %vm2742 = vcmp.eq.s32.totalorder %v580, 4294967201
          %vm2743 = vcmp.eq.s32.totalorder %v581, 4294967201
          %vm2744 = vcmp.eq.s32.totalorder %v582, 4294967201
          %vm2745 = vcmp.eq.s32.totalorder %v583, 4294967201
          %vm2746 = vcmp.eq.s32.totalorder %v584, 4294967201
          %vm2747 = vcmp.eq.s32.totalorder %v585, 4294967201
          %vm2748 = vcmp.eq.s32.totalorder %v586, 4294967201
          %vm2749 = vcmp.eq.s32.totalorder %v587, 4294967201
          %vm2750 = vcmp.eq.s32.totalorder %v588, 4294967201
          %vm2751 = vcmp.eq.s32.totalorder %v589, 4294967201
          %vm2752 = vcmp.eq.s32.totalorder %v590, 4294967201
          %v2753 = vsel %vm2737, %v2720, %v2688
          %v2754 = vsel %vm2738, %v2720, %v2689
          %v2755 = vsel %vm2739, %v2720, %v2690
          %v2756 = vsel %vm2740, %v2720, %v2691
          %v2757 = vsel %vm2741, %v2720, %v2692
          %v2758 = vsel %vm2742, %v2720, %v2693
          %v2759 = vsel %vm2743, %v2720, %v2694
          %v2760 = vsel %vm2744, %v2720, %v2695
          %v2761 = vsel %vm2745, %v2720, %v2696
          %v2762 = vsel %vm2746, %v2720, %v2697
          %v2763 = vsel %vm2747, %v2720, %v2698
          %v2764 = vsel %vm2748, %v2720, %v2699
          %v2765 = vsel %vm2749, %v2720, %v2700
          %v2766 = vsel %vm2750, %v2720, %v2701
          %v2767 = vsel %vm2751, %v2720, %v2702
          %v2768 = vsel %vm2752, %v2720, %v2703
          %vm2769 = vcmp.eq.s32.totalorder %v575, 34
          %vm2770 = vcmp.eq.s32.totalorder %v576, 34
          %vm2771 = vcmp.eq.s32.totalorder %v577, 34
          %vm2772 = vcmp.eq.s32.totalorder %v578, 34
          %vm2773 = vcmp.eq.s32.totalorder %v579, 34
          %vm2774 = vcmp.eq.s32.totalorder %v580, 34
          %vm2775 = vcmp.eq.s32.totalorder %v581, 34
          %vm2776 = vcmp.eq.s32.totalorder %v582, 34
          %vm2777 = vcmp.eq.s32.totalorder %v583, 34
          %vm2778 = vcmp.eq.s32.totalorder %v584, 34
          %vm2779 = vcmp.eq.s32.totalorder %v585, 34
          %vm2780 = vcmp.eq.s32.totalorder %v586, 34
          %vm2781 = vcmp.eq.s32.totalorder %v587, 34
          %vm2782 = vcmp.eq.s32.totalorder %v588, 34
          %vm2783 = vcmp.eq.s32.totalorder %v589, 34
          %vm2784 = vcmp.eq.s32.totalorder %v590, 34
          %v2785 = vperm.slane %v546, 2
          %v2786 = vsel %vm2769, %v2785, %v2721
          %v2787 = vsel %vm2770, %v2785, %v2722
          %v2788 = vsel %vm2771, %v2785, %v2723
          %v2789 = vsel %vm2772, %v2785, %v2724
          %v2790 = vsel %vm2773, %v2785, %v2725
          %v2791 = vsel %vm2774, %v2785, %v2726
          %v2792 = vsel %vm2775, %v2785, %v2727
          %v2793 = vsel %vm2776, %v2785, %v2728
          %v2794 = vsel %vm2777, %v2785, %v2729
          %v2795 = vsel %vm2778, %v2785, %v2730
          %v2796 = vsel %vm2779, %v2785, %v2731
          %v2797 = vsel %vm2780, %v2785, %v2732
          %v2798 = vsel %vm2781, %v2785, %v2733
          %v2799 = vsel %vm2782, %v2785, %v2734
          %v2800 = vsel %vm2783, %v2785, %v2735
          %v2801 = vsel %vm2784, %v2785, %v2736
          %vm2802 = vcmp.eq.s32.totalorder %v575, 4294967202
          %vm2803 = vcmp.eq.s32.totalorder %v576, 4294967202
          %vm2804 = vcmp.eq.s32.totalorder %v577, 4294967202
          %vm2805 = vcmp.eq.s32.totalorder %v578, 4294967202
          %vm2806 = vcmp.eq.s32.totalorder %v579, 4294967202
          %vm2807 = vcmp.eq.s32.totalorder %v580, 4294967202
          %vm2808 = vcmp.eq.s32.totalorder %v581, 4294967202
          %vm2809 = vcmp.eq.s32.totalorder %v582, 4294967202
          %vm2810 = vcmp.eq.s32.totalorder %v583, 4294967202
          %vm2811 = vcmp.eq.s32.totalorder %v584, 4294967202
          %vm2812 = vcmp.eq.s32.totalorder %v585, 4294967202
          %vm2813 = vcmp.eq.s32.totalorder %v586, 4294967202
          %vm2814 = vcmp.eq.s32.totalorder %v587, 4294967202
          %vm2815 = vcmp.eq.s32.totalorder %v588, 4294967202
          %vm2816 = vcmp.eq.s32.totalorder %v589, 4294967202
          %vm2817 = vcmp.eq.s32.totalorder %v590, 4294967202
          %v2818 = vsel %vm2802, %v2785, %v2753
          %v2819 = vsel %vm2803, %v2785, %v2754
          %v2820 = vsel %vm2804, %v2785, %v2755
          %v2821 = vsel %vm2805, %v2785, %v2756
          %v2822 = vsel %vm2806, %v2785, %v2757
          %v2823 = vsel %vm2807, %v2785, %v2758
          %v2824 = vsel %vm2808, %v2785, %v2759
          %v2825 = vsel %vm2809, %v2785, %v2760
          %v2826 = vsel %vm2810, %v2785, %v2761
          %v2827 = vsel %vm2811, %v2785, %v2762
          %v2828 = vsel %vm2812, %v2785, %v2763
          %v2829 = vsel %vm2813, %v2785, %v2764
          %v2830 = vsel %vm2814, %v2785, %v2765
          %v2831 = vsel %vm2815, %v2785, %v2766
          %v2832 = vsel %vm2816, %v2785, %v2767
          %v2833 = vsel %vm2817, %v2785, %v2768
          %vm2834 = vcmp.eq.s32.totalorder %v575, 35
          %vm2835 = vcmp.eq.s32.totalorder %v576, 35
          %vm2836 = vcmp.eq.s32.totalorder %v577, 35
          %vm2837 = vcmp.eq.s32.totalorder %v578, 35
          %vm2838 = vcmp.eq.s32.totalorder %v579, 35
          %vm2839 = vcmp.eq.s32.totalorder %v580, 35
          %vm2840 = vcmp.eq.s32.totalorder %v581, 35
          %vm2841 = vcmp.eq.s32.totalorder %v582, 35
          %vm2842 = vcmp.eq.s32.totalorder %v583, 35
          %vm2843 = vcmp.eq.s32.totalorder %v584, 35
          %vm2844 = vcmp.eq.s32.totalorder %v585, 35
          %vm2845 = vcmp.eq.s32.totalorder %v586, 35
          %vm2846 = vcmp.eq.s32.totalorder %v587, 35
          %vm2847 = vcmp.eq.s32.totalorder %v588, 35
          %vm2848 = vcmp.eq.s32.totalorder %v589, 35
          %vm2849 = vcmp.eq.s32.totalorder %v590, 35
          %v2850 = vperm.slane %v546, 3
          %v2851 = vsel %vm2834, %v2850, %v2786
          %v2852 = vsel %vm2835, %v2850, %v2787
          %v2853 = vsel %vm2836, %v2850, %v2788
          %v2854 = vsel %vm2837, %v2850, %v2789
          %v2855 = vsel %vm2838, %v2850, %v2790
          %v2856 = vsel %vm2839, %v2850, %v2791
          %v2857 = vsel %vm2840, %v2850, %v2792
          %v2858 = vsel %vm2841, %v2850, %v2793
          %v2859 = vsel %vm2842, %v2850, %v2794
          %v2860 = vsel %vm2843, %v2850, %v2795
          %v2861 = vsel %vm2844, %v2850, %v2796
          %v2862 = vsel %vm2845, %v2850, %v2797
          %v2863 = vsel %vm2846, %v2850, %v2798
          %v2864 = vsel %vm2847, %v2850, %v2799
          %v2865 = vsel %vm2848, %v2850, %v2800
          %v2866 = vsel %vm2849, %v2850, %v2801
          %vm2867 = vcmp.eq.s32.totalorder %v575, 4294967203
          %vm2868 = vcmp.eq.s32.totalorder %v576, 4294967203
          %vm2869 = vcmp.eq.s32.totalorder %v577, 4294967203
          %vm2870 = vcmp.eq.s32.totalorder %v578, 4294967203
          %vm2871 = vcmp.eq.s32.totalorder %v579, 4294967203
          %vm2872 = vcmp.eq.s32.totalorder %v580, 4294967203
          %vm2873 = vcmp.eq.s32.totalorder %v581, 4294967203
          %vm2874 = vcmp.eq.s32.totalorder %v582, 4294967203
          %vm2875 = vcmp.eq.s32.totalorder %v583, 4294967203
          %vm2876 = vcmp.eq.s32.totalorder %v584, 4294967203
          %vm2877 = vcmp.eq.s32.totalorder %v585, 4294967203
          %vm2878 = vcmp.eq.s32.totalorder %v586, 4294967203
          %vm2879 = vcmp.eq.s32.totalorder %v587, 4294967203
          %vm2880 = vcmp.eq.s32.totalorder %v588, 4294967203
          %vm2881 = vcmp.eq.s32.totalorder %v589, 4294967203
          %vm2882 = vcmp.eq.s32.totalorder %v590, 4294967203
          %v2883 = vsel %vm2867, %v2850, %v2818
          %v2884 = vsel %vm2868, %v2850, %v2819
          %v2885 = vsel %vm2869, %v2850, %v2820
          %v2886 = vsel %vm2870, %v2850, %v2821
          %v2887 = vsel %vm2871, %v2850, %v2822
          %v2888 = vsel %vm2872, %v2850, %v2823
          %v2889 = vsel %vm2873, %v2850, %v2824
          %v2890 = vsel %vm2874, %v2850, %v2825
          %v2891 = vsel %vm2875, %v2850, %v2826
          %v2892 = vsel %vm2876, %v2850, %v2827
          %v2893 = vsel %vm2877, %v2850, %v2828
          %v2894 = vsel %vm2878, %v2850, %v2829
          %v2895 = vsel %vm2879, %v2850, %v2830
          %v2896 = vsel %vm2880, %v2850, %v2831
          %v2897 = vsel %vm2881, %v2850, %v2832
          %v2898 = vsel %vm2882, %v2850, %v2833
          %vm2899 = vcmp.eq.s32.totalorder %v575, 36
          %vm2900 = vcmp.eq.s32.totalorder %v576, 36
          %vm2901 = vcmp.eq.s32.totalorder %v577, 36
          %vm2902 = vcmp.eq.s32.totalorder %v578, 36
          %vm2903 = vcmp.eq.s32.totalorder %v579, 36
          %vm2904 = vcmp.eq.s32.totalorder %v580, 36
          %vm2905 = vcmp.eq.s32.totalorder %v581, 36
          %vm2906 = vcmp.eq.s32.totalorder %v582, 36
          %vm2907 = vcmp.eq.s32.totalorder %v583, 36
          %vm2908 = vcmp.eq.s32.totalorder %v584, 36
          %vm2909 = vcmp.eq.s32.totalorder %v585, 36
          %vm2910 = vcmp.eq.s32.totalorder %v586, 36
          %vm2911 = vcmp.eq.s32.totalorder %v587, 36
          %vm2912 = vcmp.eq.s32.totalorder %v588, 36
          %vm2913 = vcmp.eq.s32.totalorder %v589, 36
          %vm2914 = vcmp.eq.s32.totalorder %v590, 36
          %v2915 = vperm.slane %v546, 4
          %v2916 = vsel %vm2899, %v2915, %v2851
          %v2917 = vsel %vm2900, %v2915, %v2852
          %v2918 = vsel %vm2901, %v2915, %v2853
          %v2919 = vsel %vm2902, %v2915, %v2854
          %v2920 = vsel %vm2903, %v2915, %v2855
          %v2921 = vsel %vm2904, %v2915, %v2856
          %v2922 = vsel %vm2905, %v2915, %v2857
          %v2923 = vsel %vm2906, %v2915, %v2858
          %v2924 = vsel %vm2907, %v2915, %v2859
          %v2925 = vsel %vm2908, %v2915, %v2860
          %v2926 = vsel %vm2909, %v2915, %v2861
          %v2927 = vsel %vm2910, %v2915, %v2862
          %v2928 = vsel %vm2911, %v2915, %v2863
          %v2929 = vsel %vm2912, %v2915, %v2864
          %v2930 = vsel %vm2913, %v2915, %v2865
          %v2931 = vsel %vm2914, %v2915, %v2866
          %vm2932 = vcmp.eq.s32.totalorder %v575, 4294967204
          %vm2933 = vcmp.eq.s32.totalorder %v576, 4294967204
          %vm2934 = vcmp.eq.s32.totalorder %v577, 4294967204
          %vm2935 = vcmp.eq.s32.totalorder %v578, 4294967204
          %vm2936 = vcmp.eq.s32.totalorder %v579, 4294967204
          %vm2937 = vcmp.eq.s32.totalorder %v580, 4294967204
          %vm2938 = vcmp.eq.s32.totalorder %v581, 4294967204
          %vm2939 = vcmp.eq.s32.totalorder %v582, 4294967204
          %vm2940 = vcmp.eq.s32.totalorder %v583, 4294967204
          %vm2941 = vcmp.eq.s32.totalorder %v584, 4294967204
          %vm2942 = vcmp.eq.s32.totalorder %v585, 4294967204
          %vm2943 = vcmp.eq.s32.totalorder %v586, 4294967204
          %vm2944 = vcmp.eq.s32.totalorder %v587, 4294967204
          %vm2945 = vcmp.eq.s32.totalorder %v588, 4294967204
          %vm2946 = vcmp.eq.s32.totalorder %v589, 4294967204
          %vm2947 = vcmp.eq.s32.totalorder %v590, 4294967204
          %v2948 = vsel %vm2932, %v2915, %v2883
          %v2949 = vsel %vm2933, %v2915, %v2884
          %v2950 = vsel %vm2934, %v2915, %v2885
          %v2951 = vsel %vm2935, %v2915, %v2886
          %v2952 = vsel %vm2936, %v2915, %v2887
          %v2953 = vsel %vm2937, %v2915, %v2888
          %v2954 = vsel %vm2938, %v2915, %v2889
          %v2955 = vsel %vm2939, %v2915, %v2890
          %v2956 = vsel %vm2940, %v2915, %v2891
          %v2957 = vsel %vm2941, %v2915, %v2892
          %v2958 = vsel %vm2942, %v2915, %v2893
          %v2959 = vsel %vm2943, %v2915, %v2894
          %v2960 = vsel %vm2944, %v2915, %v2895
          %v2961 = vsel %vm2945, %v2915, %v2896
          %v2962 = vsel %vm2946, %v2915, %v2897
          %v2963 = vsel %vm2947, %v2915, %v2898
          %vm2964 = vcmp.eq.s32.totalorder %v575, 37
          %vm2965 = vcmp.eq.s32.totalorder %v576, 37
          %vm2966 = vcmp.eq.s32.totalorder %v577, 37
          %vm2967 = vcmp.eq.s32.totalorder %v578, 37
          %vm2968 = vcmp.eq.s32.totalorder %v579, 37
          %vm2969 = vcmp.eq.s32.totalorder %v580, 37
          %vm2970 = vcmp.eq.s32.totalorder %v581, 37
          %vm2971 = vcmp.eq.s32.totalorder %v582, 37
          %vm2972 = vcmp.eq.s32.totalorder %v583, 37
          %vm2973 = vcmp.eq.s32.totalorder %v584, 37
          %vm2974 = vcmp.eq.s32.totalorder %v585, 37
          %vm2975 = vcmp.eq.s32.totalorder %v586, 37
          %vm2976 = vcmp.eq.s32.totalorder %v587, 37
          %vm2977 = vcmp.eq.s32.totalorder %v588, 37
          %vm2978 = vcmp.eq.s32.totalorder %v589, 37
          %vm2979 = vcmp.eq.s32.totalorder %v590, 37
          %v2980 = vperm.slane %v546, 5
          %v2981 = vsel %vm2964, %v2980, %v2916
          %v2982 = vsel %vm2965, %v2980, %v2917
          %v2983 = vsel %vm2966, %v2980, %v2918
          %v2984 = vsel %vm2967, %v2980, %v2919
          %v2985 = vsel %vm2968, %v2980, %v2920
          %v2986 = vsel %vm2969, %v2980, %v2921
          %v2987 = vsel %vm2970, %v2980, %v2922
          %v2988 = vsel %vm2971, %v2980, %v2923
          %v2989 = vsel %vm2972, %v2980, %v2924
          %v2990 = vsel %vm2973, %v2980, %v2925
          %v2991 = vsel %vm2974, %v2980, %v2926
          %v2992 = vsel %vm2975, %v2980, %v2927
          %v2993 = vsel %vm2976, %v2980, %v2928
          %v2994 = vsel %vm2977, %v2980, %v2929
          %v2995 = vsel %vm2978, %v2980, %v2930
          %v2996 = vsel %vm2979, %v2980, %v2931
          %vm2997 = vcmp.eq.s32.totalorder %v575, 4294967205
          %vm2998 = vcmp.eq.s32.totalorder %v576, 4294967205
          %vm2999 = vcmp.eq.s32.totalorder %v577, 4294967205
          %vm3000 = vcmp.eq.s32.totalorder %v578, 4294967205
          %vm3001 = vcmp.eq.s32.totalorder %v579, 4294967205
          %vm3002 = vcmp.eq.s32.totalorder %v580, 4294967205
          %vm3003 = vcmp.eq.s32.totalorder %v581, 4294967205
          %vm3004 = vcmp.eq.s32.totalorder %v582, 4294967205
          %vm3005 = vcmp.eq.s32.totalorder %v583, 4294967205
          %vm3006 = vcmp.eq.s32.totalorder %v584, 4294967205
          %vm3007 = vcmp.eq.s32.totalorder %v585, 4294967205
          %vm3008 = vcmp.eq.s32.totalorder %v586, 4294967205
          %vm3009 = vcmp.eq.s32.totalorder %v587, 4294967205
          %vm3010 = vcmp.eq.s32.totalorder %v588, 4294967205
          %vm3011 = vcmp.eq.s32.totalorder %v589, 4294967205
          %vm3012 = vcmp.eq.s32.totalorder %v590, 4294967205
          %v3013 = vsel %vm2997, %v2980, %v2948
          %v3014 = vsel %vm2998, %v2980, %v2949
          %v3015 = vsel %vm2999, %v2980, %v2950
          %v3016 = vsel %vm3000, %v2980, %v2951
          %v3017 = vsel %vm3001, %v2980, %v2952
          %v3018 = vsel %vm3002, %v2980, %v2953
          %v3019 = vsel %vm3003, %v2980, %v2954
          %v3020 = vsel %vm3004, %v2980, %v2955
          %v3021 = vsel %vm3005, %v2980, %v2956
          %v3022 = vsel %vm3006, %v2980, %v2957
          %v3023 = vsel %vm3007, %v2980, %v2958
          %v3024 = vsel %vm3008, %v2980, %v2959
          %v3025 = vsel %vm3009, %v2980, %v2960
          %v3026 = vsel %vm3010, %v2980, %v2961
          %v3027 = vsel %vm3011, %v2980, %v2962
          %v3028 = vsel %vm3012, %v2980, %v2963
          %vm3029 = vcmp.eq.s32.totalorder %v575, 38
          %vm3030 = vcmp.eq.s32.totalorder %v576, 38
          %vm3031 = vcmp.eq.s32.totalorder %v577, 38
          %vm3032 = vcmp.eq.s32.totalorder %v578, 38
          %vm3033 = vcmp.eq.s32.totalorder %v579, 38
          %vm3034 = vcmp.eq.s32.totalorder %v580, 38
          %vm3035 = vcmp.eq.s32.totalorder %v581, 38
          %vm3036 = vcmp.eq.s32.totalorder %v582, 38
          %vm3037 = vcmp.eq.s32.totalorder %v583, 38
          %vm3038 = vcmp.eq.s32.totalorder %v584, 38
          %vm3039 = vcmp.eq.s32.totalorder %v585, 38
          %vm3040 = vcmp.eq.s32.totalorder %v586, 38
          %vm3041 = vcmp.eq.s32.totalorder %v587, 38
          %vm3042 = vcmp.eq.s32.totalorder %v588, 38
          %vm3043 = vcmp.eq.s32.totalorder %v589, 38
          %vm3044 = vcmp.eq.s32.totalorder %v590, 38
          %v3045 = vperm.slane %v546, 6
          %v3046 = vsel %vm3029, %v3045, %v2981
          %v3047 = vsel %vm3030, %v3045, %v2982
          %v3048 = vsel %vm3031, %v3045, %v2983
          %v3049 = vsel %vm3032, %v3045, %v2984
          %v3050 = vsel %vm3033, %v3045, %v2985
          %v3051 = vsel %vm3034, %v3045, %v2986
          %v3052 = vsel %vm3035, %v3045, %v2987
          %v3053 = vsel %vm3036, %v3045, %v2988
          %v3054 = vsel %vm3037, %v3045, %v2989
          %v3055 = vsel %vm3038, %v3045, %v2990
          %v3056 = vsel %vm3039, %v3045, %v2991
          %v3057 = vsel %vm3040, %v3045, %v2992
          %v3058 = vsel %vm3041, %v3045, %v2993
          %v3059 = vsel %vm3042, %v3045, %v2994
          %v3060 = vsel %vm3043, %v3045, %v2995
          %v3061 = vsel %vm3044, %v3045, %v2996
          %vm3062 = vcmp.eq.s32.totalorder %v575, 4294967206
          %vm3063 = vcmp.eq.s32.totalorder %v576, 4294967206
          %vm3064 = vcmp.eq.s32.totalorder %v577, 4294967206
          %vm3065 = vcmp.eq.s32.totalorder %v578, 4294967206
          %vm3066 = vcmp.eq.s32.totalorder %v579, 4294967206
          %vm3067 = vcmp.eq.s32.totalorder %v580, 4294967206
          %vm3068 = vcmp.eq.s32.totalorder %v581, 4294967206
          %vm3069 = vcmp.eq.s32.totalorder %v582, 4294967206
          %vm3070 = vcmp.eq.s32.totalorder %v583, 4294967206
          %vm3071 = vcmp.eq.s32.totalorder %v584, 4294967206
          %vm3072 = vcmp.eq.s32.totalorder %v585, 4294967206
          %vm3073 = vcmp.eq.s32.totalorder %v586, 4294967206
          %vm3074 = vcmp.eq.s32.totalorder %v587, 4294967206
          %vm3075 = vcmp.eq.s32.totalorder %v588, 4294967206
          %vm3076 = vcmp.eq.s32.totalorder %v589, 4294967206
          %vm3077 = vcmp.eq.s32.totalorder %v590, 4294967206
          %v3078 = vsel %vm3062, %v3045, %v3013
          %v3079 = vsel %vm3063, %v3045, %v3014
          %v3080 = vsel %vm3064, %v3045, %v3015
          %v3081 = vsel %vm3065, %v3045, %v3016
          %v3082 = vsel %vm3066, %v3045, %v3017
          %v3083 = vsel %vm3067, %v3045, %v3018
          %v3084 = vsel %vm3068, %v3045, %v3019
          %v3085 = vsel %vm3069, %v3045, %v3020
          %v3086 = vsel %vm3070, %v3045, %v3021
          %v3087 = vsel %vm3071, %v3045, %v3022
          %v3088 = vsel %vm3072, %v3045, %v3023
          %v3089 = vsel %vm3073, %v3045, %v3024
          %v3090 = vsel %vm3074, %v3045, %v3025
          %v3091 = vsel %vm3075, %v3045, %v3026
          %v3092 = vsel %vm3076, %v3045, %v3027
          %v3093 = vsel %vm3077, %v3045, %v3028
          %vm3094 = vcmp.eq.s32.totalorder %v575, 39
          %vm3095 = vcmp.eq.s32.totalorder %v576, 39
          %vm3096 = vcmp.eq.s32.totalorder %v577, 39
          %vm3097 = vcmp.eq.s32.totalorder %v578, 39
          %vm3098 = vcmp.eq.s32.totalorder %v579, 39
          %vm3099 = vcmp.eq.s32.totalorder %v580, 39
          %vm3100 = vcmp.eq.s32.totalorder %v581, 39
          %vm3101 = vcmp.eq.s32.totalorder %v582, 39
          %vm3102 = vcmp.eq.s32.totalorder %v583, 39
          %vm3103 = vcmp.eq.s32.totalorder %v584, 39
          %vm3104 = vcmp.eq.s32.totalorder %v585, 39
          %vm3105 = vcmp.eq.s32.totalorder %v586, 39
          %vm3106 = vcmp.eq.s32.totalorder %v587, 39
          %vm3107 = vcmp.eq.s32.totalorder %v588, 39
          %vm3108 = vcmp.eq.s32.totalorder %v589, 39
          %vm3109 = vcmp.eq.s32.totalorder %v590, 39
          %v3110 = vperm.slane %v546, 7
          %v3111 = vsel %vm3094, %v3110, %v3046
          %v3112 = vsel %vm3095, %v3110, %v3047
          %v3113 = vsel %vm3096, %v3110, %v3048
          %v3114 = vsel %vm3097, %v3110, %v3049
          %v3115 = vsel %vm3098, %v3110, %v3050
          %v3116 = vsel %vm3099, %v3110, %v3051
          %v3117 = vsel %vm3100, %v3110, %v3052
          %v3118 = vsel %vm3101, %v3110, %v3053
          %v3119 = vsel %vm3102, %v3110, %v3054
          %v3120 = vsel %vm3103, %v3110, %v3055
          %v3121 = vsel %vm3104, %v3110, %v3056
          %v3122 = vsel %vm3105, %v3110, %v3057
          %v3123 = vsel %vm3106, %v3110, %v3058
          %v3124 = vsel %vm3107, %v3110, %v3059
          %v3125 = vsel %vm3108, %v3110, %v3060
          %v3126 = vsel %vm3109, %v3110, %v3061
          %vm3127 = vcmp.eq.s32.totalorder %v575, 4294967207
          %vm3128 = vcmp.eq.s32.totalorder %v576, 4294967207
          %vm3129 = vcmp.eq.s32.totalorder %v577, 4294967207
          %vm3130 = vcmp.eq.s32.totalorder %v578, 4294967207
          %vm3131 = vcmp.eq.s32.totalorder %v579, 4294967207
          %vm3132 = vcmp.eq.s32.totalorder %v580, 4294967207
          %vm3133 = vcmp.eq.s32.totalorder %v581, 4294967207
          %vm3134 = vcmp.eq.s32.totalorder %v582, 4294967207
          %vm3135 = vcmp.eq.s32.totalorder %v583, 4294967207
          %vm3136 = vcmp.eq.s32.totalorder %v584, 4294967207
          %vm3137 = vcmp.eq.s32.totalorder %v585, 4294967207
          %vm3138 = vcmp.eq.s32.totalorder %v586, 4294967207
          %vm3139 = vcmp.eq.s32.totalorder %v587, 4294967207
          %vm3140 = vcmp.eq.s32.totalorder %v588, 4294967207
          %vm3141 = vcmp.eq.s32.totalorder %v589, 4294967207
          %vm3142 = vcmp.eq.s32.totalorder %v590, 4294967207
          %v3143 = vsel %vm3127, %v3110, %v3078
          %v3144 = vsel %vm3128, %v3110, %v3079
          %v3145 = vsel %vm3129, %v3110, %v3080
          %v3146 = vsel %vm3130, %v3110, %v3081
          %v3147 = vsel %vm3131, %v3110, %v3082
          %v3148 = vsel %vm3132, %v3110, %v3083
          %v3149 = vsel %vm3133, %v3110, %v3084
          %v3150 = vsel %vm3134, %v3110, %v3085
          %v3151 = vsel %vm3135, %v3110, %v3086
          %v3152 = vsel %vm3136, %v3110, %v3087
          %v3153 = vsel %vm3137, %v3110, %v3088
          %v3154 = vsel %vm3138, %v3110, %v3089
          %v3155 = vsel %vm3139, %v3110, %v3090
          %v3156 = vsel %vm3140, %v3110, %v3091
          %v3157 = vsel %vm3141, %v3110, %v3092
          %v3158 = vsel %vm3142, %v3110, %v3093
          %vm3159 = vcmp.eq.s32.totalorder %v575, 40
          %vm3160 = vcmp.eq.s32.totalorder %v576, 40
          %vm3161 = vcmp.eq.s32.totalorder %v577, 40
          %vm3162 = vcmp.eq.s32.totalorder %v578, 40
          %vm3163 = vcmp.eq.s32.totalorder %v579, 40
          %vm3164 = vcmp.eq.s32.totalorder %v580, 40
          %vm3165 = vcmp.eq.s32.totalorder %v581, 40
          %vm3166 = vcmp.eq.s32.totalorder %v582, 40
          %vm3167 = vcmp.eq.s32.totalorder %v583, 40
          %vm3168 = vcmp.eq.s32.totalorder %v584, 40
          %vm3169 = vcmp.eq.s32.totalorder %v585, 40
          %vm3170 = vcmp.eq.s32.totalorder %v586, 40
          %vm3171 = vcmp.eq.s32.totalorder %v587, 40
          %vm3172 = vcmp.eq.s32.totalorder %v588, 40
          %vm3173 = vcmp.eq.s32.totalorder %v589, 40
          %vm3174 = vcmp.eq.s32.totalorder %v590, 40
          %v3175 = vperm.slane %v549, 0
          %v3176 = vsel %vm3159, %v3175, %v3111
          %v3177 = vsel %vm3160, %v3175, %v3112
          %v3178 = vsel %vm3161, %v3175, %v3113
          %v3179 = vsel %vm3162, %v3175, %v3114
          %v3180 = vsel %vm3163, %v3175, %v3115
          %v3181 = vsel %vm3164, %v3175, %v3116
          %v3182 = vsel %vm3165, %v3175, %v3117
          %v3183 = vsel %vm3166, %v3175, %v3118
          %v3184 = vsel %vm3167, %v3175, %v3119
          %v3185 = vsel %vm3168, %v3175, %v3120
          %v3186 = vsel %vm3169, %v3175, %v3121
          %v3187 = vsel %vm3170, %v3175, %v3122
          %v3188 = vsel %vm3171, %v3175, %v3123
          %v3189 = vsel %vm3172, %v3175, %v3124
          %v3190 = vsel %vm3173, %v3175, %v3125
          %v3191 = vsel %vm3174, %v3175, %v3126
          %vm3192 = vcmp.eq.s32.totalorder %v575, 4294967208
          %vm3193 = vcmp.eq.s32.totalorder %v576, 4294967208
          %vm3194 = vcmp.eq.s32.totalorder %v577, 4294967208
          %vm3195 = vcmp.eq.s32.totalorder %v578, 4294967208
          %vm3196 = vcmp.eq.s32.totalorder %v579, 4294967208
          %vm3197 = vcmp.eq.s32.totalorder %v580, 4294967208
          %vm3198 = vcmp.eq.s32.totalorder %v581, 4294967208
          %vm3199 = vcmp.eq.s32.totalorder %v582, 4294967208
          %vm3200 = vcmp.eq.s32.totalorder %v583, 4294967208
          %vm3201 = vcmp.eq.s32.totalorder %v584, 4294967208
          %vm3202 = vcmp.eq.s32.totalorder %v585, 4294967208
          %vm3203 = vcmp.eq.s32.totalorder %v586, 4294967208
          %vm3204 = vcmp.eq.s32.totalorder %v587, 4294967208
          %vm3205 = vcmp.eq.s32.totalorder %v588, 4294967208
          %vm3206 = vcmp.eq.s32.totalorder %v589, 4294967208
          %vm3207 = vcmp.eq.s32.totalorder %v590, 4294967208
          %v3208 = vsel %vm3192, %v3175, %v3143
          %v3209 = vsel %vm3193, %v3175, %v3144
          %v3210 = vsel %vm3194, %v3175, %v3145
          %v3211 = vsel %vm3195, %v3175, %v3146
          %v3212 = vsel %vm3196, %v3175, %v3147
          %v3213 = vsel %vm3197, %v3175, %v3148
          %v3214 = vsel %vm3198, %v3175, %v3149
          %v3215 = vsel %vm3199, %v3175, %v3150
          %v3216 = vsel %vm3200, %v3175, %v3151
          %v3217 = vsel %vm3201, %v3175, %v3152
          %v3218 = vsel %vm3202, %v3175, %v3153
          %v3219 = vsel %vm3203, %v3175, %v3154
          %v3220 = vsel %vm3204, %v3175, %v3155
          %v3221 = vsel %vm3205, %v3175, %v3156
          %v3222 = vsel %vm3206, %v3175, %v3157
          %v3223 = vsel %vm3207, %v3175, %v3158
          %vm3224 = vcmp.eq.s32.totalorder %v575, 41
          %vm3225 = vcmp.eq.s32.totalorder %v576, 41
          %vm3226 = vcmp.eq.s32.totalorder %v577, 41
          %vm3227 = vcmp.eq.s32.totalorder %v578, 41
          %vm3228 = vcmp.eq.s32.totalorder %v579, 41
          %vm3229 = vcmp.eq.s32.totalorder %v580, 41
          %vm3230 = vcmp.eq.s32.totalorder %v581, 41
          %vm3231 = vcmp.eq.s32.totalorder %v582, 41
          %vm3232 = vcmp.eq.s32.totalorder %v583, 41
          %vm3233 = vcmp.eq.s32.totalorder %v584, 41
          %vm3234 = vcmp.eq.s32.totalorder %v585, 41
          %vm3235 = vcmp.eq.s32.totalorder %v586, 41
          %vm3236 = vcmp.eq.s32.totalorder %v587, 41
          %vm3237 = vcmp.eq.s32.totalorder %v588, 41
          %vm3238 = vcmp.eq.s32.totalorder %v589, 41
          %vm3239 = vcmp.eq.s32.totalorder %v590, 41
          %v3240 = vperm.slane %v549, 1
          %v3241 = vsel %vm3224, %v3240, %v3176
          %v3242 = vsel %vm3225, %v3240, %v3177
          %v3243 = vsel %vm3226, %v3240, %v3178
          %v3244 = vsel %vm3227, %v3240, %v3179
          %v3245 = vsel %vm3228, %v3240, %v3180
          %v3246 = vsel %vm3229, %v3240, %v3181
          %v3247 = vsel %vm3230, %v3240, %v3182
          %v3248 = vsel %vm3231, %v3240, %v3183
          %v3249 = vsel %vm3232, %v3240, %v3184
          %v3250 = vsel %vm3233, %v3240, %v3185
          %v3251 = vsel %vm3234, %v3240, %v3186
          %v3252 = vsel %vm3235, %v3240, %v3187
          %v3253 = vsel %vm3236, %v3240, %v3188
          %v3254 = vsel %vm3237, %v3240, %v3189
          %v3255 = vsel %vm3238, %v3240, %v3190
          %v3256 = vsel %vm3239, %v3240, %v3191
          %vm3257 = vcmp.eq.s32.totalorder %v575, 4294967209
          %vm3258 = vcmp.eq.s32.totalorder %v576, 4294967209
          %vm3259 = vcmp.eq.s32.totalorder %v577, 4294967209
          %vm3260 = vcmp.eq.s32.totalorder %v578, 4294967209
          %vm3261 = vcmp.eq.s32.totalorder %v579, 4294967209
          %vm3262 = vcmp.eq.s32.totalorder %v580, 4294967209
          %vm3263 = vcmp.eq.s32.totalorder %v581, 4294967209
          %vm3264 = vcmp.eq.s32.totalorder %v582, 4294967209
          %vm3265 = vcmp.eq.s32.totalorder %v583, 4294967209
          %vm3266 = vcmp.eq.s32.totalorder %v584, 4294967209
          %vm3267 = vcmp.eq.s32.totalorder %v585, 4294967209
          %vm3268 = vcmp.eq.s32.totalorder %v586, 4294967209
          %vm3269 = vcmp.eq.s32.totalorder %v587, 4294967209
          %vm3270 = vcmp.eq.s32.totalorder %v588, 4294967209
          %vm3271 = vcmp.eq.s32.totalorder %v589, 4294967209
          %vm3272 = vcmp.eq.s32.totalorder %v590, 4294967209
          %v3273 = vsel %vm3257, %v3240, %v3208
          %v3274 = vsel %vm3258, %v3240, %v3209
          %v3275 = vsel %vm3259, %v3240, %v3210
          %v3276 = vsel %vm3260, %v3240, %v3211
          %v3277 = vsel %vm3261, %v3240, %v3212
          %v3278 = vsel %vm3262, %v3240, %v3213
          %v3279 = vsel %vm3263, %v3240, %v3214
          %v3280 = vsel %vm3264, %v3240, %v3215
          %v3281 = vsel %vm3265, %v3240, %v3216
          %v3282 = vsel %vm3266, %v3240, %v3217
          %v3283 = vsel %vm3267, %v3240, %v3218
          %v3284 = vsel %vm3268, %v3240, %v3219
          %v3285 = vsel %vm3269, %v3240, %v3220
          %v3286 = vsel %vm3270, %v3240, %v3221
          %v3287 = vsel %vm3271, %v3240, %v3222
          %v3288 = vsel %vm3272, %v3240, %v3223
          %vm3289 = vcmp.eq.s32.totalorder %v575, 42
          %vm3290 = vcmp.eq.s32.totalorder %v576, 42
          %vm3291 = vcmp.eq.s32.totalorder %v577, 42
          %vm3292 = vcmp.eq.s32.totalorder %v578, 42
          %vm3293 = vcmp.eq.s32.totalorder %v579, 42
          %vm3294 = vcmp.eq.s32.totalorder %v580, 42
          %vm3295 = vcmp.eq.s32.totalorder %v581, 42
          %vm3296 = vcmp.eq.s32.totalorder %v582, 42
          %vm3297 = vcmp.eq.s32.totalorder %v583, 42
          %vm3298 = vcmp.eq.s32.totalorder %v584, 42
          %vm3299 = vcmp.eq.s32.totalorder %v585, 42
          %vm3300 = vcmp.eq.s32.totalorder %v586, 42
          %vm3301 = vcmp.eq.s32.totalorder %v587, 42
          %vm3302 = vcmp.eq.s32.totalorder %v588, 42
          %vm3303 = vcmp.eq.s32.totalorder %v589, 42
          %vm3304 = vcmp.eq.s32.totalorder %v590, 42
          %v3305 = vperm.slane %v549, 2
          %v3306 = vsel %vm3289, %v3305, %v3241
          %v3307 = vsel %vm3290, %v3305, %v3242
          %v3308 = vsel %vm3291, %v3305, %v3243
          %v3309 = vsel %vm3292, %v3305, %v3244
          %v3310 = vsel %vm3293, %v3305, %v3245
          %v3311 = vsel %vm3294, %v3305, %v3246
          %v3312 = vsel %vm3295, %v3305, %v3247
          %v3313 = vsel %vm3296, %v3305, %v3248
          %v3314 = vsel %vm3297, %v3305, %v3249
          %v3315 = vsel %vm3298, %v3305, %v3250
          %v3316 = vsel %vm3299, %v3305, %v3251
          %v3317 = vsel %vm3300, %v3305, %v3252
          %v3318 = vsel %vm3301, %v3305, %v3253
          %v3319 = vsel %vm3302, %v3305, %v3254
          %v3320 = vsel %vm3303, %v3305, %v3255
          %v3321 = vsel %vm3304, %v3305, %v3256
          %vm3322 = vcmp.eq.s32.totalorder %v575, 4294967210
          %vm3323 = vcmp.eq.s32.totalorder %v576, 4294967210
          %vm3324 = vcmp.eq.s32.totalorder %v577, 4294967210
          %vm3325 = vcmp.eq.s32.totalorder %v578, 4294967210
          %vm3326 = vcmp.eq.s32.totalorder %v579, 4294967210
          %vm3327 = vcmp.eq.s32.totalorder %v580, 4294967210
          %vm3328 = vcmp.eq.s32.totalorder %v581, 4294967210
          %vm3329 = vcmp.eq.s32.totalorder %v582, 4294967210
          %vm3330 = vcmp.eq.s32.totalorder %v583, 4294967210
          %vm3331 = vcmp.eq.s32.totalorder %v584, 4294967210
          %vm3332 = vcmp.eq.s32.totalorder %v585, 4294967210
          %vm3333 = vcmp.eq.s32.totalorder %v586, 4294967210
          %vm3334 = vcmp.eq.s32.totalorder %v587, 4294967210
          %vm3335 = vcmp.eq.s32.totalorder %v588, 4294967210
          %vm3336 = vcmp.eq.s32.totalorder %v589, 4294967210
          %vm3337 = vcmp.eq.s32.totalorder %v590, 4294967210
          %v3338 = vsel %vm3322, %v3305, %v3273
          %v3339 = vsel %vm3323, %v3305, %v3274
          %v3340 = vsel %vm3324, %v3305, %v3275
          %v3341 = vsel %vm3325, %v3305, %v3276
          %v3342 = vsel %vm3326, %v3305, %v3277
          %v3343 = vsel %vm3327, %v3305, %v3278
          %v3344 = vsel %vm3328, %v3305, %v3279
          %v3345 = vsel %vm3329, %v3305, %v3280
          %v3346 = vsel %vm3330, %v3305, %v3281
          %v3347 = vsel %vm3331, %v3305, %v3282
          %v3348 = vsel %vm3332, %v3305, %v3283
          %v3349 = vsel %vm3333, %v3305, %v3284
          %v3350 = vsel %vm3334, %v3305, %v3285
          %v3351 = vsel %vm3335, %v3305, %v3286
          %v3352 = vsel %vm3336, %v3305, %v3287
          %v3353 = vsel %vm3337, %v3305, %v3288
          %vm3354 = vcmp.eq.s32.totalorder %v575, 43
          %vm3355 = vcmp.eq.s32.totalorder %v576, 43
          %vm3356 = vcmp.eq.s32.totalorder %v577, 43
          %vm3357 = vcmp.eq.s32.totalorder %v578, 43
          %vm3358 = vcmp.eq.s32.totalorder %v579, 43
          %vm3359 = vcmp.eq.s32.totalorder %v580, 43
          %vm3360 = vcmp.eq.s32.totalorder %v581, 43
          %vm3361 = vcmp.eq.s32.totalorder %v582, 43
          %vm3362 = vcmp.eq.s32.totalorder %v583, 43
          %vm3363 = vcmp.eq.s32.totalorder %v584, 43
          %vm3364 = vcmp.eq.s32.totalorder %v585, 43
          %vm3365 = vcmp.eq.s32.totalorder %v586, 43
          %vm3366 = vcmp.eq.s32.totalorder %v587, 43
          %vm3367 = vcmp.eq.s32.totalorder %v588, 43
          %vm3368 = vcmp.eq.s32.totalorder %v589, 43
          %vm3369 = vcmp.eq.s32.totalorder %v590, 43
          %v3370 = vperm.slane %v549, 3
          %v3371 = vsel %vm3354, %v3370, %v3306
          %v3372 = vsel %vm3355, %v3370, %v3307
          %v3373 = vsel %vm3356, %v3370, %v3308
          %v3374 = vsel %vm3357, %v3370, %v3309
          %v3375 = vsel %vm3358, %v3370, %v3310
          %v3376 = vsel %vm3359, %v3370, %v3311
          %v3377 = vsel %vm3360, %v3370, %v3312
          %v3378 = vsel %vm3361, %v3370, %v3313
          %v3379 = vsel %vm3362, %v3370, %v3314
          %v3380 = vsel %vm3363, %v3370, %v3315
          %v3381 = vsel %vm3364, %v3370, %v3316
          %v3382 = vsel %vm3365, %v3370, %v3317
          %v3383 = vsel %vm3366, %v3370, %v3318
          %v3384 = vsel %vm3367, %v3370, %v3319
          %v3385 = vsel %vm3368, %v3370, %v3320
          %v3386 = vsel %vm3369, %v3370, %v3321
          %vm3387 = vcmp.eq.s32.totalorder %v575, 4294967211
          %vm3388 = vcmp.eq.s32.totalorder %v576, 4294967211
          %vm3389 = vcmp.eq.s32.totalorder %v577, 4294967211
          %vm3390 = vcmp.eq.s32.totalorder %v578, 4294967211
          %vm3391 = vcmp.eq.s32.totalorder %v579, 4294967211
          %vm3392 = vcmp.eq.s32.totalorder %v580, 4294967211
          %vm3393 = vcmp.eq.s32.totalorder %v581, 4294967211
          %vm3394 = vcmp.eq.s32.totalorder %v582, 4294967211
          %vm3395 = vcmp.eq.s32.totalorder %v583, 4294967211
          %vm3396 = vcmp.eq.s32.totalorder %v584, 4294967211
          %vm3397 = vcmp.eq.s32.totalorder %v585, 4294967211
          %vm3398 = vcmp.eq.s32.totalorder %v586, 4294967211
          %vm3399 = vcmp.eq.s32.totalorder %v587, 4294967211
          %vm3400 = vcmp.eq.s32.totalorder %v588, 4294967211
          %vm3401 = vcmp.eq.s32.totalorder %v589, 4294967211
          %vm3402 = vcmp.eq.s32.totalorder %v590, 4294967211
          %v3403 = vsel %vm3387, %v3370, %v3338
          %v3404 = vsel %vm3388, %v3370, %v3339
          %v3405 = vsel %vm3389, %v3370, %v3340
          %v3406 = vsel %vm3390, %v3370, %v3341
          %v3407 = vsel %vm3391, %v3370, %v3342
          %v3408 = vsel %vm3392, %v3370, %v3343
          %v3409 = vsel %vm3393, %v3370, %v3344
          %v3410 = vsel %vm3394, %v3370, %v3345
          %v3411 = vsel %vm3395, %v3370, %v3346
          %v3412 = vsel %vm3396, %v3370, %v3347
          %v3413 = vsel %vm3397, %v3370, %v3348
          %v3414 = vsel %vm3398, %v3370, %v3349
          %v3415 = vsel %vm3399, %v3370, %v3350
          %v3416 = vsel %vm3400, %v3370, %v3351
          %v3417 = vsel %vm3401, %v3370, %v3352
          %v3418 = vsel %vm3402, %v3370, %v3353
          %vm3419 = vcmp.eq.s32.totalorder %v575, 44
          %vm3420 = vcmp.eq.s32.totalorder %v576, 44
          %vm3421 = vcmp.eq.s32.totalorder %v577, 44
          %vm3422 = vcmp.eq.s32.totalorder %v578, 44
          %vm3423 = vcmp.eq.s32.totalorder %v579, 44
          %vm3424 = vcmp.eq.s32.totalorder %v580, 44
          %vm3425 = vcmp.eq.s32.totalorder %v581, 44
          %vm3426 = vcmp.eq.s32.totalorder %v582, 44
          %vm3427 = vcmp.eq.s32.totalorder %v583, 44
          %vm3428 = vcmp.eq.s32.totalorder %v584, 44
          %vm3429 = vcmp.eq.s32.totalorder %v585, 44
          %vm3430 = vcmp.eq.s32.totalorder %v586, 44
          %vm3431 = vcmp.eq.s32.totalorder %v587, 44
          %vm3432 = vcmp.eq.s32.totalorder %v588, 44
          %vm3433 = vcmp.eq.s32.totalorder %v589, 44
          %vm3434 = vcmp.eq.s32.totalorder %v590, 44
          %v3435 = vperm.slane %v549, 4
          %v3436 = vsel %vm3419, %v3435, %v3371
          %v3437 = vsel %vm3420, %v3435, %v3372
          %v3438 = vsel %vm3421, %v3435, %v3373
          %v3439 = vsel %vm3422, %v3435, %v3374
          %v3440 = vsel %vm3423, %v3435, %v3375
          %v3441 = vsel %vm3424, %v3435, %v3376
          %v3442 = vsel %vm3425, %v3435, %v3377
          %v3443 = vsel %vm3426, %v3435, %v3378
          %v3444 = vsel %vm3427, %v3435, %v3379
          %v3445 = vsel %vm3428, %v3435, %v3380
          %v3446 = vsel %vm3429, %v3435, %v3381
          %v3447 = vsel %vm3430, %v3435, %v3382
          %v3448 = vsel %vm3431, %v3435, %v3383
          %v3449 = vsel %vm3432, %v3435, %v3384
          %v3450 = vsel %vm3433, %v3435, %v3385
          %v3451 = vsel %vm3434, %v3435, %v3386
          %vm3452 = vcmp.eq.s32.totalorder %v575, 4294967212
          %vm3453 = vcmp.eq.s32.totalorder %v576, 4294967212
          %vm3454 = vcmp.eq.s32.totalorder %v577, 4294967212
          %vm3455 = vcmp.eq.s32.totalorder %v578, 4294967212
          %vm3456 = vcmp.eq.s32.totalorder %v579, 4294967212
          %vm3457 = vcmp.eq.s32.totalorder %v580, 4294967212
          %vm3458 = vcmp.eq.s32.totalorder %v581, 4294967212
          %vm3459 = vcmp.eq.s32.totalorder %v582, 4294967212
          %vm3460 = vcmp.eq.s32.totalorder %v583, 4294967212
          %vm3461 = vcmp.eq.s32.totalorder %v584, 4294967212
          %vm3462 = vcmp.eq.s32.totalorder %v585, 4294967212
          %vm3463 = vcmp.eq.s32.totalorder %v586, 4294967212
          %vm3464 = vcmp.eq.s32.totalorder %v587, 4294967212
          %vm3465 = vcmp.eq.s32.totalorder %v588, 4294967212
          %vm3466 = vcmp.eq.s32.totalorder %v589, 4294967212
          %vm3467 = vcmp.eq.s32.totalorder %v590, 4294967212
          %v3468 = vsel %vm3452, %v3435, %v3403
          %v3469 = vsel %vm3453, %v3435, %v3404
          %v3470 = vsel %vm3454, %v3435, %v3405
          %v3471 = vsel %vm3455, %v3435, %v3406
          %v3472 = vsel %vm3456, %v3435, %v3407
          %v3473 = vsel %vm3457, %v3435, %v3408
          %v3474 = vsel %vm3458, %v3435, %v3409
          %v3475 = vsel %vm3459, %v3435, %v3410
          %v3476 = vsel %vm3460, %v3435, %v3411
          %v3477 = vsel %vm3461, %v3435, %v3412
          %v3478 = vsel %vm3462, %v3435, %v3413
          %v3479 = vsel %vm3463, %v3435, %v3414
          %v3480 = vsel %vm3464, %v3435, %v3415
          %v3481 = vsel %vm3465, %v3435, %v3416
          %v3482 = vsel %vm3466, %v3435, %v3417
          %v3483 = vsel %vm3467, %v3435, %v3418
          %vm3484 = vcmp.eq.s32.totalorder %v575, 45
          %vm3485 = vcmp.eq.s32.totalorder %v576, 45
          %vm3486 = vcmp.eq.s32.totalorder %v577, 45
          %vm3487 = vcmp.eq.s32.totalorder %v578, 45
          %vm3488 = vcmp.eq.s32.totalorder %v579, 45
          %vm3489 = vcmp.eq.s32.totalorder %v580, 45
          %vm3490 = vcmp.eq.s32.totalorder %v581, 45
          %vm3491 = vcmp.eq.s32.totalorder %v582, 45
          %vm3492 = vcmp.eq.s32.totalorder %v583, 45
          %vm3493 = vcmp.eq.s32.totalorder %v584, 45
          %vm3494 = vcmp.eq.s32.totalorder %v585, 45
          %vm3495 = vcmp.eq.s32.totalorder %v586, 45
          %vm3496 = vcmp.eq.s32.totalorder %v587, 45
          %vm3497 = vcmp.eq.s32.totalorder %v588, 45
          %vm3498 = vcmp.eq.s32.totalorder %v589, 45
          %vm3499 = vcmp.eq.s32.totalorder %v590, 45
          %v3500 = vperm.slane %v549, 5
          %v3501 = vsel %vm3484, %v3500, %v3436
          %v3502 = vsel %vm3485, %v3500, %v3437
          %v3503 = vsel %vm3486, %v3500, %v3438
          %v3504 = vsel %vm3487, %v3500, %v3439
          %v3505 = vsel %vm3488, %v3500, %v3440
          %v3506 = vsel %vm3489, %v3500, %v3441
          %v3507 = vsel %vm3490, %v3500, %v3442
          %v3508 = vsel %vm3491, %v3500, %v3443
          %v3509 = vsel %vm3492, %v3500, %v3444
          %v3510 = vsel %vm3493, %v3500, %v3445
          %v3511 = vsel %vm3494, %v3500, %v3446
          %v3512 = vsel %vm3495, %v3500, %v3447
          %v3513 = vsel %vm3496, %v3500, %v3448
          %v3514 = vsel %vm3497, %v3500, %v3449
          %v3515 = vsel %vm3498, %v3500, %v3450
          %v3516 = vsel %vm3499, %v3500, %v3451
          %vm3517 = vcmp.eq.s32.totalorder %v575, 4294967213
          %vm3518 = vcmp.eq.s32.totalorder %v576, 4294967213
          %vm3519 = vcmp.eq.s32.totalorder %v577, 4294967213
          %vm3520 = vcmp.eq.s32.totalorder %v578, 4294967213
          %vm3521 = vcmp.eq.s32.totalorder %v579, 4294967213
          %vm3522 = vcmp.eq.s32.totalorder %v580, 4294967213
          %vm3523 = vcmp.eq.s32.totalorder %v581, 4294967213
          %vm3524 = vcmp.eq.s32.totalorder %v582, 4294967213
          %vm3525 = vcmp.eq.s32.totalorder %v583, 4294967213
          %vm3526 = vcmp.eq.s32.totalorder %v584, 4294967213
          %vm3527 = vcmp.eq.s32.totalorder %v585, 4294967213
          %vm3528 = vcmp.eq.s32.totalorder %v586, 4294967213
          %vm3529 = vcmp.eq.s32.totalorder %v587, 4294967213
          %vm3530 = vcmp.eq.s32.totalorder %v588, 4294967213
          %vm3531 = vcmp.eq.s32.totalorder %v589, 4294967213
          %vm3532 = vcmp.eq.s32.totalorder %v590, 4294967213
          %v3533 = vsel %vm3517, %v3500, %v3468
          %v3534 = vsel %vm3518, %v3500, %v3469
          %v3535 = vsel %vm3519, %v3500, %v3470
          %v3536 = vsel %vm3520, %v3500, %v3471
          %v3537 = vsel %vm3521, %v3500, %v3472
          %v3538 = vsel %vm3522, %v3500, %v3473
          %v3539 = vsel %vm3523, %v3500, %v3474
          %v3540 = vsel %vm3524, %v3500, %v3475
          %v3541 = vsel %vm3525, %v3500, %v3476
          %v3542 = vsel %vm3526, %v3500, %v3477
          %v3543 = vsel %vm3527, %v3500, %v3478
          %v3544 = vsel %vm3528, %v3500, %v3479
          %v3545 = vsel %vm3529, %v3500, %v3480
          %v3546 = vsel %vm3530, %v3500, %v3481
          %v3547 = vsel %vm3531, %v3500, %v3482
          %v3548 = vsel %vm3532, %v3500, %v3483
          %vm3549 = vcmp.eq.s32.totalorder %v575, 46
          %vm3550 = vcmp.eq.s32.totalorder %v576, 46
          %vm3551 = vcmp.eq.s32.totalorder %v577, 46
          %vm3552 = vcmp.eq.s32.totalorder %v578, 46
          %vm3553 = vcmp.eq.s32.totalorder %v579, 46
          %vm3554 = vcmp.eq.s32.totalorder %v580, 46
          %vm3555 = vcmp.eq.s32.totalorder %v581, 46
          %vm3556 = vcmp.eq.s32.totalorder %v582, 46
          %vm3557 = vcmp.eq.s32.totalorder %v583, 46
          %vm3558 = vcmp.eq.s32.totalorder %v584, 46
          %vm3559 = vcmp.eq.s32.totalorder %v585, 46
          %vm3560 = vcmp.eq.s32.totalorder %v586, 46
          %vm3561 = vcmp.eq.s32.totalorder %v587, 46
          %vm3562 = vcmp.eq.s32.totalorder %v588, 46
          %vm3563 = vcmp.eq.s32.totalorder %v589, 46
          %vm3564 = vcmp.eq.s32.totalorder %v590, 46
          %v3565 = vperm.slane %v549, 6
          %v3566 = vsel %vm3549, %v3565, %v3501
          %v3567 = vsel %vm3550, %v3565, %v3502
          %v3568 = vsel %vm3551, %v3565, %v3503
          %v3569 = vsel %vm3552, %v3565, %v3504
          %v3570 = vsel %vm3553, %v3565, %v3505
          %v3571 = vsel %vm3554, %v3565, %v3506
          %v3572 = vsel %vm3555, %v3565, %v3507
          %v3573 = vsel %vm3556, %v3565, %v3508
          %v3574 = vsel %vm3557, %v3565, %v3509
          %v3575 = vsel %vm3558, %v3565, %v3510
          %v3576 = vsel %vm3559, %v3565, %v3511
          %v3577 = vsel %vm3560, %v3565, %v3512
          %v3578 = vsel %vm3561, %v3565, %v3513
          %v3579 = vsel %vm3562, %v3565, %v3514
          %v3580 = vsel %vm3563, %v3565, %v3515
          %v3581 = vsel %vm3564, %v3565, %v3516
          %vm3582 = vcmp.eq.s32.totalorder %v575, 4294967214
          %vm3583 = vcmp.eq.s32.totalorder %v576, 4294967214
          %vm3584 = vcmp.eq.s32.totalorder %v577, 4294967214
          %vm3585 = vcmp.eq.s32.totalorder %v578, 4294967214
          %vm3586 = vcmp.eq.s32.totalorder %v579, 4294967214
          %vm3587 = vcmp.eq.s32.totalorder %v580, 4294967214
          %vm3588 = vcmp.eq.s32.totalorder %v581, 4294967214
          %vm3589 = vcmp.eq.s32.totalorder %v582, 4294967214
          %vm3590 = vcmp.eq.s32.totalorder %v583, 4294967214
          %vm3591 = vcmp.eq.s32.totalorder %v584, 4294967214
          %vm3592 = vcmp.eq.s32.totalorder %v585, 4294967214
          %vm3593 = vcmp.eq.s32.totalorder %v586, 4294967214
          %vm3594 = vcmp.eq.s32.totalorder %v587, 4294967214
          %vm3595 = vcmp.eq.s32.totalorder %v588, 4294967214
          %vm3596 = vcmp.eq.s32.totalorder %v589, 4294967214
          %vm3597 = vcmp.eq.s32.totalorder %v590, 4294967214
          %v3598 = vsel %vm3582, %v3565, %v3533
          %v3599 = vsel %vm3583, %v3565, %v3534
          %v3600 = vsel %vm3584, %v3565, %v3535
          %v3601 = vsel %vm3585, %v3565, %v3536
          %v3602 = vsel %vm3586, %v3565, %v3537
          %v3603 = vsel %vm3587, %v3565, %v3538
          %v3604 = vsel %vm3588, %v3565, %v3539
          %v3605 = vsel %vm3589, %v3565, %v3540
          %v3606 = vsel %vm3590, %v3565, %v3541
          %v3607 = vsel %vm3591, %v3565, %v3542
          %v3608 = vsel %vm3592, %v3565, %v3543
          %v3609 = vsel %vm3593, %v3565, %v3544
          %v3610 = vsel %vm3594, %v3565, %v3545
          %v3611 = vsel %vm3595, %v3565, %v3546
          %v3612 = vsel %vm3596, %v3565, %v3547
          %v3613 = vsel %vm3597, %v3565, %v3548
          %vm3614 = vcmp.eq.s32.totalorder %v575, 47
          %vm3615 = vcmp.eq.s32.totalorder %v576, 47
          %vm3616 = vcmp.eq.s32.totalorder %v577, 47
          %vm3617 = vcmp.eq.s32.totalorder %v578, 47
          %vm3618 = vcmp.eq.s32.totalorder %v579, 47
          %vm3619 = vcmp.eq.s32.totalorder %v580, 47
          %vm3620 = vcmp.eq.s32.totalorder %v581, 47
          %vm3621 = vcmp.eq.s32.totalorder %v582, 47
          %vm3622 = vcmp.eq.s32.totalorder %v583, 47
          %vm3623 = vcmp.eq.s32.totalorder %v584, 47
          %vm3624 = vcmp.eq.s32.totalorder %v585, 47
          %vm3625 = vcmp.eq.s32.totalorder %v586, 47
          %vm3626 = vcmp.eq.s32.totalorder %v587, 47
          %vm3627 = vcmp.eq.s32.totalorder %v588, 47
          %vm3628 = vcmp.eq.s32.totalorder %v589, 47
          %vm3629 = vcmp.eq.s32.totalorder %v590, 47
          %v3630 = vperm.slane %v549, 7
          %v3631 = vsel %vm3614, %v3630, %v3566
          %v3632 = vsel %vm3615, %v3630, %v3567
          %v3633 = vsel %vm3616, %v3630, %v3568
          %v3634 = vsel %vm3617, %v3630, %v3569
          %v3635 = vsel %vm3618, %v3630, %v3570
          %v3636 = vsel %vm3619, %v3630, %v3571
          %v3637 = vsel %vm3620, %v3630, %v3572
          %v3638 = vsel %vm3621, %v3630, %v3573
          %v3639 = vsel %vm3622, %v3630, %v3574
          %v3640 = vsel %vm3623, %v3630, %v3575
          %v3641 = vsel %vm3624, %v3630, %v3576
          %v3642 = vsel %vm3625, %v3630, %v3577
          %v3643 = vsel %vm3626, %v3630, %v3578
          %v3644 = vsel %vm3627, %v3630, %v3579
          %v3645 = vsel %vm3628, %v3630, %v3580
          %v3646 = vsel %vm3629, %v3630, %v3581
          %vm3647 = vcmp.eq.s32.totalorder %v575, 4294967215
          %vm3648 = vcmp.eq.s32.totalorder %v576, 4294967215
          %vm3649 = vcmp.eq.s32.totalorder %v577, 4294967215
          %vm3650 = vcmp.eq.s32.totalorder %v578, 4294967215
          %vm3651 = vcmp.eq.s32.totalorder %v579, 4294967215
          %vm3652 = vcmp.eq.s32.totalorder %v580, 4294967215
          %vm3653 = vcmp.eq.s32.totalorder %v581, 4294967215
          %vm3654 = vcmp.eq.s32.totalorder %v582, 4294967215
          %vm3655 = vcmp.eq.s32.totalorder %v583, 4294967215
          %vm3656 = vcmp.eq.s32.totalorder %v584, 4294967215
          %vm3657 = vcmp.eq.s32.totalorder %v585, 4294967215
          %vm3658 = vcmp.eq.s32.totalorder %v586, 4294967215
          %vm3659 = vcmp.eq.s32.totalorder %v587, 4294967215
          %vm3660 = vcmp.eq.s32.totalorder %v588, 4294967215
          %vm3661 = vcmp.eq.s32.totalorder %v589, 4294967215
          %vm3662 = vcmp.eq.s32.totalorder %v590, 4294967215
          %v3663 = vsel %vm3647, %v3630, %v3598
          %v3664 = vsel %vm3648, %v3630, %v3599
          %v3665 = vsel %vm3649, %v3630, %v3600
          %v3666 = vsel %vm3650, %v3630, %v3601
          %v3667 = vsel %vm3651, %v3630, %v3602
          %v3668 = vsel %vm3652, %v3630, %v3603
          %v3669 = vsel %vm3653, %v3630, %v3604
          %v3670 = vsel %vm3654, %v3630, %v3605
          %v3671 = vsel %vm3655, %v3630, %v3606
          %v3672 = vsel %vm3656, %v3630, %v3607
          %v3673 = vsel %vm3657, %v3630, %v3608
          %v3674 = vsel %vm3658, %v3630, %v3609
          %v3675 = vsel %vm3659, %v3630, %v3610
          %v3676 = vsel %vm3660, %v3630, %v3611
          %v3677 = vsel %vm3661, %v3630, %v3612
          %v3678 = vsel %vm3662, %v3630, %v3613
          %vm3679 = vcmp.eq.s32.totalorder %v575, 48
          %vm3680 = vcmp.eq.s32.totalorder %v576, 48
          %vm3681 = vcmp.eq.s32.totalorder %v577, 48
          %vm3682 = vcmp.eq.s32.totalorder %v578, 48
          %vm3683 = vcmp.eq.s32.totalorder %v579, 48
          %vm3684 = vcmp.eq.s32.totalorder %v580, 48
          %vm3685 = vcmp.eq.s32.totalorder %v581, 48
          %vm3686 = vcmp.eq.s32.totalorder %v582, 48
          %vm3687 = vcmp.eq.s32.totalorder %v583, 48
          %vm3688 = vcmp.eq.s32.totalorder %v584, 48
          %vm3689 = vcmp.eq.s32.totalorder %v585, 48
          %vm3690 = vcmp.eq.s32.totalorder %v586, 48
          %vm3691 = vcmp.eq.s32.totalorder %v587, 48
          %vm3692 = vcmp.eq.s32.totalorder %v588, 48
          %vm3693 = vcmp.eq.s32.totalorder %v589, 48
          %vm3694 = vcmp.eq.s32.totalorder %v590, 48
          %v3695 = vperm.slane %v552, 0
          %v3696 = vsel %vm3679, %v3695, %v3631
          %v3697 = vsel %vm3680, %v3695, %v3632
          %v3698 = vsel %vm3681, %v3695, %v3633
          %v3699 = vsel %vm3682, %v3695, %v3634
          %v3700 = vsel %vm3683, %v3695, %v3635
          %v3701 = vsel %vm3684, %v3695, %v3636
          %v3702 = vsel %vm3685, %v3695, %v3637
          %v3703 = vsel %vm3686, %v3695, %v3638
          %v3704 = vsel %vm3687, %v3695, %v3639
          %v3705 = vsel %vm3688, %v3695, %v3640
          %v3706 = vsel %vm3689, %v3695, %v3641
          %v3707 = vsel %vm3690, %v3695, %v3642
          %v3708 = vsel %vm3691, %v3695, %v3643
          %v3709 = vsel %vm3692, %v3695, %v3644
          %v3710 = vsel %vm3693, %v3695, %v3645
          %v3711 = vsel %vm3694, %v3695, %v3646
          %vm3712 = vcmp.eq.s32.totalorder %v575, 4294967216
          %vm3713 = vcmp.eq.s32.totalorder %v576, 4294967216
          %vm3714 = vcmp.eq.s32.totalorder %v577, 4294967216
          %vm3715 = vcmp.eq.s32.totalorder %v578, 4294967216
          %vm3716 = vcmp.eq.s32.totalorder %v579, 4294967216
          %vm3717 = vcmp.eq.s32.totalorder %v580, 4294967216
          %vm3718 = vcmp.eq.s32.totalorder %v581, 4294967216
          %vm3719 = vcmp.eq.s32.totalorder %v582, 4294967216
          %vm3720 = vcmp.eq.s32.totalorder %v583, 4294967216
          %vm3721 = vcmp.eq.s32.totalorder %v584, 4294967216
          %vm3722 = vcmp.eq.s32.totalorder %v585, 4294967216
          %vm3723 = vcmp.eq.s32.totalorder %v586, 4294967216
          %vm3724 = vcmp.eq.s32.totalorder %v587, 4294967216
          %vm3725 = vcmp.eq.s32.totalorder %v588, 4294967216
          %vm3726 = vcmp.eq.s32.totalorder %v589, 4294967216
          %vm3727 = vcmp.eq.s32.totalorder %v590, 4294967216
          %v3728 = vsel %vm3712, %v3695, %v3663
          %v3729 = vsel %vm3713, %v3695, %v3664
          %v3730 = vsel %vm3714, %v3695, %v3665
          %v3731 = vsel %vm3715, %v3695, %v3666
          %v3732 = vsel %vm3716, %v3695, %v3667
          %v3733 = vsel %vm3717, %v3695, %v3668
          %v3734 = vsel %vm3718, %v3695, %v3669
          %v3735 = vsel %vm3719, %v3695, %v3670
          %v3736 = vsel %vm3720, %v3695, %v3671
          %v3737 = vsel %vm3721, %v3695, %v3672
          %v3738 = vsel %vm3722, %v3695, %v3673
          %v3739 = vsel %vm3723, %v3695, %v3674
          %v3740 = vsel %vm3724, %v3695, %v3675
          %v3741 = vsel %vm3725, %v3695, %v3676
          %v3742 = vsel %vm3726, %v3695, %v3677
          %v3743 = vsel %vm3727, %v3695, %v3678
          %vm3744 = vcmp.eq.s32.totalorder %v575, 49
          %vm3745 = vcmp.eq.s32.totalorder %v576, 49
          %vm3746 = vcmp.eq.s32.totalorder %v577, 49
          %vm3747 = vcmp.eq.s32.totalorder %v578, 49
          %vm3748 = vcmp.eq.s32.totalorder %v579, 49
          %vm3749 = vcmp.eq.s32.totalorder %v580, 49
          %vm3750 = vcmp.eq.s32.totalorder %v581, 49
          %vm3751 = vcmp.eq.s32.totalorder %v582, 49
          %vm3752 = vcmp.eq.s32.totalorder %v583, 49
          %vm3753 = vcmp.eq.s32.totalorder %v584, 49
          %vm3754 = vcmp.eq.s32.totalorder %v585, 49
          %vm3755 = vcmp.eq.s32.totalorder %v586, 49
          %vm3756 = vcmp.eq.s32.totalorder %v587, 49
          %vm3757 = vcmp.eq.s32.totalorder %v588, 49
          %vm3758 = vcmp.eq.s32.totalorder %v589, 49
          %vm3759 = vcmp.eq.s32.totalorder %v590, 49
          %v3760 = vperm.slane %v552, 1
          %v3761 = vsel %vm3744, %v3760, %v3696
          %v3762 = vsel %vm3745, %v3760, %v3697
          %v3763 = vsel %vm3746, %v3760, %v3698
          %v3764 = vsel %vm3747, %v3760, %v3699
          %v3765 = vsel %vm3748, %v3760, %v3700
          %v3766 = vsel %vm3749, %v3760, %v3701
          %v3767 = vsel %vm3750, %v3760, %v3702
          %v3768 = vsel %vm3751, %v3760, %v3703
          %v3769 = vsel %vm3752, %v3760, %v3704
          %v3770 = vsel %vm3753, %v3760, %v3705
          %v3771 = vsel %vm3754, %v3760, %v3706
          %v3772 = vsel %vm3755, %v3760, %v3707
          %v3773 = vsel %vm3756, %v3760, %v3708
          %v3774 = vsel %vm3757, %v3760, %v3709
          %v3775 = vsel %vm3758, %v3760, %v3710
          %v3776 = vsel %vm3759, %v3760, %v3711
          %vm3777 = vcmp.eq.s32.totalorder %v575, 4294967217
          %vm3778 = vcmp.eq.s32.totalorder %v576, 4294967217
          %vm3779 = vcmp.eq.s32.totalorder %v577, 4294967217
          %vm3780 = vcmp.eq.s32.totalorder %v578, 4294967217
          %vm3781 = vcmp.eq.s32.totalorder %v579, 4294967217
          %vm3782 = vcmp.eq.s32.totalorder %v580, 4294967217
          %vm3783 = vcmp.eq.s32.totalorder %v581, 4294967217
          %vm3784 = vcmp.eq.s32.totalorder %v582, 4294967217
          %vm3785 = vcmp.eq.s32.totalorder %v583, 4294967217
          %vm3786 = vcmp.eq.s32.totalorder %v584, 4294967217
          %vm3787 = vcmp.eq.s32.totalorder %v585, 4294967217
          %vm3788 = vcmp.eq.s32.totalorder %v586, 4294967217
          %vm3789 = vcmp.eq.s32.totalorder %v587, 4294967217
          %vm3790 = vcmp.eq.s32.totalorder %v588, 4294967217
          %vm3791 = vcmp.eq.s32.totalorder %v589, 4294967217
          %vm3792 = vcmp.eq.s32.totalorder %v590, 4294967217
          %v3793 = vsel %vm3777, %v3760, %v3728
          %v3794 = vsel %vm3778, %v3760, %v3729
          %v3795 = vsel %vm3779, %v3760, %v3730
          %v3796 = vsel %vm3780, %v3760, %v3731
          %v3797 = vsel %vm3781, %v3760, %v3732
          %v3798 = vsel %vm3782, %v3760, %v3733
          %v3799 = vsel %vm3783, %v3760, %v3734
          %v3800 = vsel %vm3784, %v3760, %v3735
          %v3801 = vsel %vm3785, %v3760, %v3736
          %v3802 = vsel %vm3786, %v3760, %v3737
          %v3803 = vsel %vm3787, %v3760, %v3738
          %v3804 = vsel %vm3788, %v3760, %v3739
          %v3805 = vsel %vm3789, %v3760, %v3740
          %v3806 = vsel %vm3790, %v3760, %v3741
          %v3807 = vsel %vm3791, %v3760, %v3742
          %v3808 = vsel %vm3792, %v3760, %v3743
          %vm3809 = vcmp.eq.s32.totalorder %v575, 50
          %vm3810 = vcmp.eq.s32.totalorder %v576, 50
          %vm3811 = vcmp.eq.s32.totalorder %v577, 50
          %vm3812 = vcmp.eq.s32.totalorder %v578, 50
          %vm3813 = vcmp.eq.s32.totalorder %v579, 50
          %vm3814 = vcmp.eq.s32.totalorder %v580, 50
          %vm3815 = vcmp.eq.s32.totalorder %v581, 50
          %vm3816 = vcmp.eq.s32.totalorder %v582, 50
          %vm3817 = vcmp.eq.s32.totalorder %v583, 50
          %vm3818 = vcmp.eq.s32.totalorder %v584, 50
          %vm3819 = vcmp.eq.s32.totalorder %v585, 50
          %vm3820 = vcmp.eq.s32.totalorder %v586, 50
          %vm3821 = vcmp.eq.s32.totalorder %v587, 50
          %vm3822 = vcmp.eq.s32.totalorder %v588, 50
          %vm3823 = vcmp.eq.s32.totalorder %v589, 50
          %vm3824 = vcmp.eq.s32.totalorder %v590, 50
          %v3825 = vperm.slane %v552, 2
          %v3826 = vsel %vm3809, %v3825, %v3761
          %v3827 = vsel %vm3810, %v3825, %v3762
          %v3828 = vsel %vm3811, %v3825, %v3763
          %v3829 = vsel %vm3812, %v3825, %v3764
          %v3830 = vsel %vm3813, %v3825, %v3765
          %v3831 = vsel %vm3814, %v3825, %v3766
          %v3832 = vsel %vm3815, %v3825, %v3767
          %v3833 = vsel %vm3816, %v3825, %v3768
          %v3834 = vsel %vm3817, %v3825, %v3769
          %v3835 = vsel %vm3818, %v3825, %v3770
          %v3836 = vsel %vm3819, %v3825, %v3771
          %v3837 = vsel %vm3820, %v3825, %v3772
          %v3838 = vsel %vm3821, %v3825, %v3773
          %v3839 = vsel %vm3822, %v3825, %v3774
          %v3840 = vsel %vm3823, %v3825, %v3775
          %v3841 = vsel %vm3824, %v3825, %v3776
          %vm3842 = vcmp.eq.s32.totalorder %v575, 4294967218
          %vm3843 = vcmp.eq.s32.totalorder %v576, 4294967218
          %vm3844 = vcmp.eq.s32.totalorder %v577, 4294967218
          %vm3845 = vcmp.eq.s32.totalorder %v578, 4294967218
          %vm3846 = vcmp.eq.s32.totalorder %v579, 4294967218
          %vm3847 = vcmp.eq.s32.totalorder %v580, 4294967218
          %vm3848 = vcmp.eq.s32.totalorder %v581, 4294967218
          %vm3849 = vcmp.eq.s32.totalorder %v582, 4294967218
          %vm3850 = vcmp.eq.s32.totalorder %v583, 4294967218
          %vm3851 = vcmp.eq.s32.totalorder %v584, 4294967218
          %vm3852 = vcmp.eq.s32.totalorder %v585, 4294967218
          %vm3853 = vcmp.eq.s32.totalorder %v586, 4294967218
          %vm3854 = vcmp.eq.s32.totalorder %v587, 4294967218
          %vm3855 = vcmp.eq.s32.totalorder %v588, 4294967218
          %vm3856 = vcmp.eq.s32.totalorder %v589, 4294967218
          %vm3857 = vcmp.eq.s32.totalorder %v590, 4294967218
          %v3858 = vsel %vm3842, %v3825, %v3793
          %v3859 = vsel %vm3843, %v3825, %v3794
          %v3860 = vsel %vm3844, %v3825, %v3795
          %v3861 = vsel %vm3845, %v3825, %v3796
          %v3862 = vsel %vm3846, %v3825, %v3797
          %v3863 = vsel %vm3847, %v3825, %v3798
          %v3864 = vsel %vm3848, %v3825, %v3799
          %v3865 = vsel %vm3849, %v3825, %v3800
          %v3866 = vsel %vm3850, %v3825, %v3801
          %v3867 = vsel %vm3851, %v3825, %v3802
          %v3868 = vsel %vm3852, %v3825, %v3803
          %v3869 = vsel %vm3853, %v3825, %v3804
          %v3870 = vsel %vm3854, %v3825, %v3805
          %v3871 = vsel %vm3855, %v3825, %v3806
          %v3872 = vsel %vm3856, %v3825, %v3807
          %v3873 = vsel %vm3857, %v3825, %v3808
          %vm3874 = vcmp.eq.s32.totalorder %v575, 51
          %vm3875 = vcmp.eq.s32.totalorder %v576, 51
          %vm3876 = vcmp.eq.s32.totalorder %v577, 51
          %vm3877 = vcmp.eq.s32.totalorder %v578, 51
          %vm3878 = vcmp.eq.s32.totalorder %v579, 51
          %vm3879 = vcmp.eq.s32.totalorder %v580, 51
          %vm3880 = vcmp.eq.s32.totalorder %v581, 51
          %vm3881 = vcmp.eq.s32.totalorder %v582, 51
          %vm3882 = vcmp.eq.s32.totalorder %v583, 51
          %vm3883 = vcmp.eq.s32.totalorder %v584, 51
          %vm3884 = vcmp.eq.s32.totalorder %v585, 51
          %vm3885 = vcmp.eq.s32.totalorder %v586, 51
          %vm3886 = vcmp.eq.s32.totalorder %v587, 51
          %vm3887 = vcmp.eq.s32.totalorder %v588, 51
          %vm3888 = vcmp.eq.s32.totalorder %v589, 51
          %vm3889 = vcmp.eq.s32.totalorder %v590, 51
          %v3890 = vperm.slane %v552, 3
          %v3891 = vsel %vm3874, %v3890, %v3826
          %v3892 = vsel %vm3875, %v3890, %v3827
          %v3893 = vsel %vm3876, %v3890, %v3828
          %v3894 = vsel %vm3877, %v3890, %v3829
          %v3895 = vsel %vm3878, %v3890, %v3830
          %v3896 = vsel %vm3879, %v3890, %v3831
          %v3897 = vsel %vm3880, %v3890, %v3832
          %v3898 = vsel %vm3881, %v3890, %v3833
          %v3899 = vsel %vm3882, %v3890, %v3834
          %v3900 = vsel %vm3883, %v3890, %v3835
          %v3901 = vsel %vm3884, %v3890, %v3836
          %v3902 = vsel %vm3885, %v3890, %v3837
          %v3903 = vsel %vm3886, %v3890, %v3838
          %v3904 = vsel %vm3887, %v3890, %v3839
          %v3905 = vsel %vm3888, %v3890, %v3840
          %v3906 = vsel %vm3889, %v3890, %v3841
          %vm3907 = vcmp.eq.s32.totalorder %v575, 4294967219
          %vm3908 = vcmp.eq.s32.totalorder %v576, 4294967219
          %vm3909 = vcmp.eq.s32.totalorder %v577, 4294967219
          %vm3910 = vcmp.eq.s32.totalorder %v578, 4294967219
          %vm3911 = vcmp.eq.s32.totalorder %v579, 4294967219
          %vm3912 = vcmp.eq.s32.totalorder %v580, 4294967219
          %vm3913 = vcmp.eq.s32.totalorder %v581, 4294967219
          %vm3914 = vcmp.eq.s32.totalorder %v582, 4294967219
          %vm3915 = vcmp.eq.s32.totalorder %v583, 4294967219
          %vm3916 = vcmp.eq.s32.totalorder %v584, 4294967219
          %vm3917 = vcmp.eq.s32.totalorder %v585, 4294967219
          %vm3918 = vcmp.eq.s32.totalorder %v586, 4294967219
          %vm3919 = vcmp.eq.s32.totalorder %v587, 4294967219
          %vm3920 = vcmp.eq.s32.totalorder %v588, 4294967219
          %vm3921 = vcmp.eq.s32.totalorder %v589, 4294967219
          %vm3922 = vcmp.eq.s32.totalorder %v590, 4294967219
          %v3923 = vsel %vm3907, %v3890, %v3858
          %v3924 = vsel %vm3908, %v3890, %v3859
          %v3925 = vsel %vm3909, %v3890, %v3860
          %v3926 = vsel %vm3910, %v3890, %v3861
          %v3927 = vsel %vm3911, %v3890, %v3862
          %v3928 = vsel %vm3912, %v3890, %v3863
          %v3929 = vsel %vm3913, %v3890, %v3864
          %v3930 = vsel %vm3914, %v3890, %v3865
          %v3931 = vsel %vm3915, %v3890, %v3866
          %v3932 = vsel %vm3916, %v3890, %v3867
          %v3933 = vsel %vm3917, %v3890, %v3868
          %v3934 = vsel %vm3918, %v3890, %v3869
          %v3935 = vsel %vm3919, %v3890, %v3870
          %v3936 = vsel %vm3920, %v3890, %v3871
          %v3937 = vsel %vm3921, %v3890, %v3872
          %v3938 = vsel %vm3922, %v3890, %v3873
          %vm3939 = vcmp.eq.s32.totalorder %v575, 52
          %vm3940 = vcmp.eq.s32.totalorder %v576, 52
          %vm3941 = vcmp.eq.s32.totalorder %v577, 52
          %vm3942 = vcmp.eq.s32.totalorder %v578, 52
          %vm3943 = vcmp.eq.s32.totalorder %v579, 52
          %vm3944 = vcmp.eq.s32.totalorder %v580, 52
          %vm3945 = vcmp.eq.s32.totalorder %v581, 52
          %vm3946 = vcmp.eq.s32.totalorder %v582, 52
          %vm3947 = vcmp.eq.s32.totalorder %v583, 52
          %vm3948 = vcmp.eq.s32.totalorder %v584, 52
          %vm3949 = vcmp.eq.s32.totalorder %v585, 52
          %vm3950 = vcmp.eq.s32.totalorder %v586, 52
          %vm3951 = vcmp.eq.s32.totalorder %v587, 52
          %vm3952 = vcmp.eq.s32.totalorder %v588, 52
          %vm3953 = vcmp.eq.s32.totalorder %v589, 52
          %vm3954 = vcmp.eq.s32.totalorder %v590, 52
          %v3955 = vperm.slane %v552, 4
          %v3956 = vsel %vm3939, %v3955, %v3891
          %v3957 = vsel %vm3940, %v3955, %v3892
          %v3958 = vsel %vm3941, %v3955, %v3893
          %v3959 = vsel %vm3942, %v3955, %v3894
          %v3960 = vsel %vm3943, %v3955, %v3895
          %v3961 = vsel %vm3944, %v3955, %v3896
          %v3962 = vsel %vm3945, %v3955, %v3897
          %v3963 = vsel %vm3946, %v3955, %v3898
          %v3964 = vsel %vm3947, %v3955, %v3899
          %v3965 = vsel %vm3948, %v3955, %v3900
          %v3966 = vsel %vm3949, %v3955, %v3901
          %v3967 = vsel %vm3950, %v3955, %v3902
          %v3968 = vsel %vm3951, %v3955, %v3903
          %v3969 = vsel %vm3952, %v3955, %v3904
          %v3970 = vsel %vm3953, %v3955, %v3905
          %v3971 = vsel %vm3954, %v3955, %v3906
          %vm3972 = vcmp.eq.s32.totalorder %v575, 4294967220
          %vm3973 = vcmp.eq.s32.totalorder %v576, 4294967220
          %vm3974 = vcmp.eq.s32.totalorder %v577, 4294967220
          %vm3975 = vcmp.eq.s32.totalorder %v578, 4294967220
          %vm3976 = vcmp.eq.s32.totalorder %v579, 4294967220
          %vm3977 = vcmp.eq.s32.totalorder %v580, 4294967220
          %vm3978 = vcmp.eq.s32.totalorder %v581, 4294967220
          %vm3979 = vcmp.eq.s32.totalorder %v582, 4294967220
          %vm3980 = vcmp.eq.s32.totalorder %v583, 4294967220
          %vm3981 = vcmp.eq.s32.totalorder %v584, 4294967220
          %vm3982 = vcmp.eq.s32.totalorder %v585, 4294967220
          %vm3983 = vcmp.eq.s32.totalorder %v586, 4294967220
          %vm3984 = vcmp.eq.s32.totalorder %v587, 4294967220
          %vm3985 = vcmp.eq.s32.totalorder %v588, 4294967220
          %vm3986 = vcmp.eq.s32.totalorder %v589, 4294967220
          %vm3987 = vcmp.eq.s32.totalorder %v590, 4294967220
          %v3988 = vsel %vm3972, %v3955, %v3923
          %v3989 = vsel %vm3973, %v3955, %v3924
          %v3990 = vsel %vm3974, %v3955, %v3925
          %v3991 = vsel %vm3975, %v3955, %v3926
          %v3992 = vsel %vm3976, %v3955, %v3927
          %v3993 = vsel %vm3977, %v3955, %v3928
          %v3994 = vsel %vm3978, %v3955, %v3929
          %v3995 = vsel %vm3979, %v3955, %v3930
          %v3996 = vsel %vm3980, %v3955, %v3931
          %v3997 = vsel %vm3981, %v3955, %v3932
          %v3998 = vsel %vm3982, %v3955, %v3933
          %v3999 = vsel %vm3983, %v3955, %v3934
          %v4000 = vsel %vm3984, %v3955, %v3935
          %v4001 = vsel %vm3985, %v3955, %v3936
          %v4002 = vsel %vm3986, %v3955, %v3937
          %v4003 = vsel %vm3987, %v3955, %v3938
          %vm4004 = vcmp.eq.s32.totalorder %v575, 53
          %vm4005 = vcmp.eq.s32.totalorder %v576, 53
          %vm4006 = vcmp.eq.s32.totalorder %v577, 53
          %vm4007 = vcmp.eq.s32.totalorder %v578, 53
          %vm4008 = vcmp.eq.s32.totalorder %v579, 53
          %vm4009 = vcmp.eq.s32.totalorder %v580, 53
          %vm4010 = vcmp.eq.s32.totalorder %v581, 53
          %vm4011 = vcmp.eq.s32.totalorder %v582, 53
          %vm4012 = vcmp.eq.s32.totalorder %v583, 53
          %vm4013 = vcmp.eq.s32.totalorder %v584, 53
          %vm4014 = vcmp.eq.s32.totalorder %v585, 53
          %vm4015 = vcmp.eq.s32.totalorder %v586, 53
          %vm4016 = vcmp.eq.s32.totalorder %v587, 53
          %vm4017 = vcmp.eq.s32.totalorder %v588, 53
          %vm4018 = vcmp.eq.s32.totalorder %v589, 53
          %vm4019 = vcmp.eq.s32.totalorder %v590, 53
          %v4020 = vperm.slane %v552, 5
          %v4021 = vsel %vm4004, %v4020, %v3956
          %v4022 = vsel %vm4005, %v4020, %v3957
          %v4023 = vsel %vm4006, %v4020, %v3958
          %v4024 = vsel %vm4007, %v4020, %v3959
          %v4025 = vsel %vm4008, %v4020, %v3960
          %v4026 = vsel %vm4009, %v4020, %v3961
          %v4027 = vsel %vm4010, %v4020, %v3962
          %v4028 = vsel %vm4011, %v4020, %v3963
          %v4029 = vsel %vm4012, %v4020, %v3964
          %v4030 = vsel %vm4013, %v4020, %v3965
          %v4031 = vsel %vm4014, %v4020, %v3966
          %v4032 = vsel %vm4015, %v4020, %v3967
          %v4033 = vsel %vm4016, %v4020, %v3968
          %v4034 = vsel %vm4017, %v4020, %v3969
          %v4035 = vsel %vm4018, %v4020, %v3970
          %v4036 = vsel %vm4019, %v4020, %v3971
          %vm4037 = vcmp.eq.s32.totalorder %v575, 4294967221
          %vm4038 = vcmp.eq.s32.totalorder %v576, 4294967221
          %vm4039 = vcmp.eq.s32.totalorder %v577, 4294967221
          %vm4040 = vcmp.eq.s32.totalorder %v578, 4294967221
          %vm4041 = vcmp.eq.s32.totalorder %v579, 4294967221
          %vm4042 = vcmp.eq.s32.totalorder %v580, 4294967221
          %vm4043 = vcmp.eq.s32.totalorder %v581, 4294967221
          %vm4044 = vcmp.eq.s32.totalorder %v582, 4294967221
          %vm4045 = vcmp.eq.s32.totalorder %v583, 4294967221
          %vm4046 = vcmp.eq.s32.totalorder %v584, 4294967221
          %vm4047 = vcmp.eq.s32.totalorder %v585, 4294967221
          %vm4048 = vcmp.eq.s32.totalorder %v586, 4294967221
          %vm4049 = vcmp.eq.s32.totalorder %v587, 4294967221
          %vm4050 = vcmp.eq.s32.totalorder %v588, 4294967221
          %vm4051 = vcmp.eq.s32.totalorder %v589, 4294967221
          %vm4052 = vcmp.eq.s32.totalorder %v590, 4294967221
          %v4053 = vsel %vm4037, %v4020, %v3988
          %v4054 = vsel %vm4038, %v4020, %v3989
          %v4055 = vsel %vm4039, %v4020, %v3990
          %v4056 = vsel %vm4040, %v4020, %v3991
          %v4057 = vsel %vm4041, %v4020, %v3992
          %v4058 = vsel %vm4042, %v4020, %v3993
          %v4059 = vsel %vm4043, %v4020, %v3994
          %v4060 = vsel %vm4044, %v4020, %v3995
          %v4061 = vsel %vm4045, %v4020, %v3996
          %v4062 = vsel %vm4046, %v4020, %v3997
          %v4063 = vsel %vm4047, %v4020, %v3998
          %v4064 = vsel %vm4048, %v4020, %v3999
          %v4065 = vsel %vm4049, %v4020, %v4000
          %v4066 = vsel %vm4050, %v4020, %v4001
          %v4067 = vsel %vm4051, %v4020, %v4002
          %v4068 = vsel %vm4052, %v4020, %v4003
          %vm4069 = vcmp.eq.s32.totalorder %v575, 54
          %vm4070 = vcmp.eq.s32.totalorder %v576, 54
          %vm4071 = vcmp.eq.s32.totalorder %v577, 54
          %vm4072 = vcmp.eq.s32.totalorder %v578, 54
          %vm4073 = vcmp.eq.s32.totalorder %v579, 54
          %vm4074 = vcmp.eq.s32.totalorder %v580, 54
          %vm4075 = vcmp.eq.s32.totalorder %v581, 54
          %vm4076 = vcmp.eq.s32.totalorder %v582, 54
          %vm4077 = vcmp.eq.s32.totalorder %v583, 54
          %vm4078 = vcmp.eq.s32.totalorder %v584, 54
          %vm4079 = vcmp.eq.s32.totalorder %v585, 54
          %vm4080 = vcmp.eq.s32.totalorder %v586, 54
          %vm4081 = vcmp.eq.s32.totalorder %v587, 54
          %vm4082 = vcmp.eq.s32.totalorder %v588, 54
          %vm4083 = vcmp.eq.s32.totalorder %v589, 54
          %vm4084 = vcmp.eq.s32.totalorder %v590, 54
          %v4085 = vperm.slane %v552, 6
          %v4086 = vsel %vm4069, %v4085, %v4021
          %v4087 = vsel %vm4070, %v4085, %v4022
          %v4088 = vsel %vm4071, %v4085, %v4023
          %v4089 = vsel %vm4072, %v4085, %v4024
          %v4090 = vsel %vm4073, %v4085, %v4025
          %v4091 = vsel %vm4074, %v4085, %v4026
          %v4092 = vsel %vm4075, %v4085, %v4027
          %v4093 = vsel %vm4076, %v4085, %v4028
          %v4094 = vsel %vm4077, %v4085, %v4029
          %v4095 = vsel %vm4078, %v4085, %v4030
          %v4096 = vsel %vm4079, %v4085, %v4031
          %v4097 = vsel %vm4080, %v4085, %v4032
          %v4098 = vsel %vm4081, %v4085, %v4033
          %v4099 = vsel %vm4082, %v4085, %v4034
          %v4100 = vsel %vm4083, %v4085, %v4035
          %v4101 = vsel %vm4084, %v4085, %v4036
          %vm4102 = vcmp.eq.s32.totalorder %v575, 4294967222
          %vm4103 = vcmp.eq.s32.totalorder %v576, 4294967222
          %vm4104 = vcmp.eq.s32.totalorder %v577, 4294967222
          %vm4105 = vcmp.eq.s32.totalorder %v578, 4294967222
          %vm4106 = vcmp.eq.s32.totalorder %v579, 4294967222
          %vm4107 = vcmp.eq.s32.totalorder %v580, 4294967222
          %vm4108 = vcmp.eq.s32.totalorder %v581, 4294967222
          %vm4109 = vcmp.eq.s32.totalorder %v582, 4294967222
          %vm4110 = vcmp.eq.s32.totalorder %v583, 4294967222
          %vm4111 = vcmp.eq.s32.totalorder %v584, 4294967222
          %vm4112 = vcmp.eq.s32.totalorder %v585, 4294967222
          %vm4113 = vcmp.eq.s32.totalorder %v586, 4294967222
          %vm4114 = vcmp.eq.s32.totalorder %v587, 4294967222
          %vm4115 = vcmp.eq.s32.totalorder %v588, 4294967222
          %vm4116 = vcmp.eq.s32.totalorder %v589, 4294967222
          %vm4117 = vcmp.eq.s32.totalorder %v590, 4294967222
          %v4118 = vsel %vm4102, %v4085, %v4053
          %v4119 = vsel %vm4103, %v4085, %v4054
          %v4120 = vsel %vm4104, %v4085, %v4055
          %v4121 = vsel %vm4105, %v4085, %v4056
          %v4122 = vsel %vm4106, %v4085, %v4057
          %v4123 = vsel %vm4107, %v4085, %v4058
          %v4124 = vsel %vm4108, %v4085, %v4059
          %v4125 = vsel %vm4109, %v4085, %v4060
          %v4126 = vsel %vm4110, %v4085, %v4061
          %v4127 = vsel %vm4111, %v4085, %v4062
          %v4128 = vsel %vm4112, %v4085, %v4063
          %v4129 = vsel %vm4113, %v4085, %v4064
          %v4130 = vsel %vm4114, %v4085, %v4065
          %v4131 = vsel %vm4115, %v4085, %v4066
          %v4132 = vsel %vm4116, %v4085, %v4067
          %v4133 = vsel %vm4117, %v4085, %v4068
          %vm4134 = vcmp.eq.s32.totalorder %v575, 55
          %vm4135 = vcmp.eq.s32.totalorder %v576, 55
          %vm4136 = vcmp.eq.s32.totalorder %v577, 55
          %vm4137 = vcmp.eq.s32.totalorder %v578, 55
          %vm4138 = vcmp.eq.s32.totalorder %v579, 55
          %vm4139 = vcmp.eq.s32.totalorder %v580, 55
          %vm4140 = vcmp.eq.s32.totalorder %v581, 55
          %vm4141 = vcmp.eq.s32.totalorder %v582, 55
          %vm4142 = vcmp.eq.s32.totalorder %v583, 55
          %vm4143 = vcmp.eq.s32.totalorder %v584, 55
          %vm4144 = vcmp.eq.s32.totalorder %v585, 55
          %vm4145 = vcmp.eq.s32.totalorder %v586, 55
          %vm4146 = vcmp.eq.s32.totalorder %v587, 55
          %vm4147 = vcmp.eq.s32.totalorder %v588, 55
          %vm4148 = vcmp.eq.s32.totalorder %v589, 55
          %vm4149 = vcmp.eq.s32.totalorder %v590, 55
          %v4150 = vperm.slane %v552, 7
          %v4151 = vsel %vm4134, %v4150, %v4086
          %v4152 = vsel %vm4135, %v4150, %v4087
          %v4153 = vsel %vm4136, %v4150, %v4088
          %v4154 = vsel %vm4137, %v4150, %v4089
          %v4155 = vsel %vm4138, %v4150, %v4090
          %v4156 = vsel %vm4139, %v4150, %v4091
          %v4157 = vsel %vm4140, %v4150, %v4092
          %v4158 = vsel %vm4141, %v4150, %v4093
          %v4159 = vsel %vm4142, %v4150, %v4094
          %v4160 = vsel %vm4143, %v4150, %v4095
          %v4161 = vsel %vm4144, %v4150, %v4096
          %v4162 = vsel %vm4145, %v4150, %v4097
          %v4163 = vsel %vm4146, %v4150, %v4098
          %v4164 = vsel %vm4147, %v4150, %v4099
          %v4165 = vsel %vm4148, %v4150, %v4100
          %v4166 = vsel %vm4149, %v4150, %v4101
          %vm4167 = vcmp.eq.s32.totalorder %v575, 4294967223
          %vm4168 = vcmp.eq.s32.totalorder %v576, 4294967223
          %vm4169 = vcmp.eq.s32.totalorder %v577, 4294967223
          %vm4170 = vcmp.eq.s32.totalorder %v578, 4294967223
          %vm4171 = vcmp.eq.s32.totalorder %v579, 4294967223
          %vm4172 = vcmp.eq.s32.totalorder %v580, 4294967223
          %vm4173 = vcmp.eq.s32.totalorder %v581, 4294967223
          %vm4174 = vcmp.eq.s32.totalorder %v582, 4294967223
          %vm4175 = vcmp.eq.s32.totalorder %v583, 4294967223
          %vm4176 = vcmp.eq.s32.totalorder %v584, 4294967223
          %vm4177 = vcmp.eq.s32.totalorder %v585, 4294967223
          %vm4178 = vcmp.eq.s32.totalorder %v586, 4294967223
          %vm4179 = vcmp.eq.s32.totalorder %v587, 4294967223
          %vm4180 = vcmp.eq.s32.totalorder %v588, 4294967223
          %vm4181 = vcmp.eq.s32.totalorder %v589, 4294967223
          %vm4182 = vcmp.eq.s32.totalorder %v590, 4294967223
          %v4183 = vsel %vm4167, %v4150, %v4118
          %v4184 = vsel %vm4168, %v4150, %v4119
          %v4185 = vsel %vm4169, %v4150, %v4120
          %v4186 = vsel %vm4170, %v4150, %v4121
          %v4187 = vsel %vm4171, %v4150, %v4122
          %v4188 = vsel %vm4172, %v4150, %v4123
          %v4189 = vsel %vm4173, %v4150, %v4124
          %v4190 = vsel %vm4174, %v4150, %v4125
          %v4191 = vsel %vm4175, %v4150, %v4126
          %v4192 = vsel %vm4176, %v4150, %v4127
          %v4193 = vsel %vm4177, %v4150, %v4128
          %v4194 = vsel %vm4178, %v4150, %v4129
          %v4195 = vsel %vm4179, %v4150, %v4130
          %v4196 = vsel %vm4180, %v4150, %v4131
          %v4197 = vsel %vm4181, %v4150, %v4132
          %v4198 = vsel %vm4182, %v4150, %v4133
          %vm4199 = vcmp.eq.s32.totalorder %v575, 56
          %vm4200 = vcmp.eq.s32.totalorder %v576, 56
          %vm4201 = vcmp.eq.s32.totalorder %v577, 56
          %vm4202 = vcmp.eq.s32.totalorder %v578, 56
          %vm4203 = vcmp.eq.s32.totalorder %v579, 56
          %vm4204 = vcmp.eq.s32.totalorder %v580, 56
          %vm4205 = vcmp.eq.s32.totalorder %v581, 56
          %vm4206 = vcmp.eq.s32.totalorder %v582, 56
          %vm4207 = vcmp.eq.s32.totalorder %v583, 56
          %vm4208 = vcmp.eq.s32.totalorder %v584, 56
          %vm4209 = vcmp.eq.s32.totalorder %v585, 56
          %vm4210 = vcmp.eq.s32.totalorder %v586, 56
          %vm4211 = vcmp.eq.s32.totalorder %v587, 56
          %vm4212 = vcmp.eq.s32.totalorder %v588, 56
          %vm4213 = vcmp.eq.s32.totalorder %v589, 56
          %vm4214 = vcmp.eq.s32.totalorder %v590, 56
          %v4215 = vperm.slane %v555, 0
          %v4216 = vsel %vm4199, %v4215, %v4151
          %v4217 = vsel %vm4200, %v4215, %v4152
          %v4218 = vsel %vm4201, %v4215, %v4153
          %v4219 = vsel %vm4202, %v4215, %v4154
          %v4220 = vsel %vm4203, %v4215, %v4155
          %v4221 = vsel %vm4204, %v4215, %v4156
          %v4222 = vsel %vm4205, %v4215, %v4157
          %v4223 = vsel %vm4206, %v4215, %v4158
          %v4224 = vsel %vm4207, %v4215, %v4159
          %v4225 = vsel %vm4208, %v4215, %v4160
          %v4226 = vsel %vm4209, %v4215, %v4161
          %v4227 = vsel %vm4210, %v4215, %v4162
          %v4228 = vsel %vm4211, %v4215, %v4163
          %v4229 = vsel %vm4212, %v4215, %v4164
          %v4230 = vsel %vm4213, %v4215, %v4165
          %v4231 = vsel %vm4214, %v4215, %v4166
          %vm4232 = vcmp.eq.s32.totalorder %v575, 4294967224
          %vm4233 = vcmp.eq.s32.totalorder %v576, 4294967224
          %vm4234 = vcmp.eq.s32.totalorder %v577, 4294967224
          %vm4235 = vcmp.eq.s32.totalorder %v578, 4294967224
          %vm4236 = vcmp.eq.s32.totalorder %v579, 4294967224
          %vm4237 = vcmp.eq.s32.totalorder %v580, 4294967224
          %vm4238 = vcmp.eq.s32.totalorder %v581, 4294967224
          %vm4239 = vcmp.eq.s32.totalorder %v582, 4294967224
          %vm4240 = vcmp.eq.s32.totalorder %v583, 4294967224
          %vm4241 = vcmp.eq.s32.totalorder %v584, 4294967224
          %vm4242 = vcmp.eq.s32.totalorder %v585, 4294967224
          %vm4243 = vcmp.eq.s32.totalorder %v586, 4294967224
          %vm4244 = vcmp.eq.s32.totalorder %v587, 4294967224
          %vm4245 = vcmp.eq.s32.totalorder %v588, 4294967224
          %vm4246 = vcmp.eq.s32.totalorder %v589, 4294967224
          %vm4247 = vcmp.eq.s32.totalorder %v590, 4294967224
          %v4248 = vsel %vm4232, %v4215, %v4183
          %v4249 = vsel %vm4233, %v4215, %v4184
          %v4250 = vsel %vm4234, %v4215, %v4185
          %v4251 = vsel %vm4235, %v4215, %v4186
          %v4252 = vsel %vm4236, %v4215, %v4187
          %v4253 = vsel %vm4237, %v4215, %v4188
          %v4254 = vsel %vm4238, %v4215, %v4189
          %v4255 = vsel %vm4239, %v4215, %v4190
          %v4256 = vsel %vm4240, %v4215, %v4191
          %v4257 = vsel %vm4241, %v4215, %v4192
          %v4258 = vsel %vm4242, %v4215, %v4193
          %v4259 = vsel %vm4243, %v4215, %v4194
          %v4260 = vsel %vm4244, %v4215, %v4195
          %v4261 = vsel %vm4245, %v4215, %v4196
          %v4262 = vsel %vm4246, %v4215, %v4197
          %v4263 = vsel %vm4247, %v4215, %v4198
          %vm4264 = vcmp.eq.s32.totalorder %v575, 57
          %vm4265 = vcmp.eq.s32.totalorder %v576, 57
          %vm4266 = vcmp.eq.s32.totalorder %v577, 57
          %vm4267 = vcmp.eq.s32.totalorder %v578, 57
          %vm4268 = vcmp.eq.s32.totalorder %v579, 57
          %vm4269 = vcmp.eq.s32.totalorder %v580, 57
          %vm4270 = vcmp.eq.s32.totalorder %v581, 57
          %vm4271 = vcmp.eq.s32.totalorder %v582, 57
          %vm4272 = vcmp.eq.s32.totalorder %v583, 57
          %vm4273 = vcmp.eq.s32.totalorder %v584, 57
          %vm4274 = vcmp.eq.s32.totalorder %v585, 57
          %vm4275 = vcmp.eq.s32.totalorder %v586, 57
          %vm4276 = vcmp.eq.s32.totalorder %v587, 57
          %vm4277 = vcmp.eq.s32.totalorder %v588, 57
          %vm4278 = vcmp.eq.s32.totalorder %v589, 57
          %vm4279 = vcmp.eq.s32.totalorder %v590, 57
          %v4280 = vperm.slane %v555, 1
          %v4281 = vsel %vm4264, %v4280, %v4216
          %v4282 = vsel %vm4265, %v4280, %v4217
          %v4283 = vsel %vm4266, %v4280, %v4218
          %v4284 = vsel %vm4267, %v4280, %v4219
          %v4285 = vsel %vm4268, %v4280, %v4220
          %v4286 = vsel %vm4269, %v4280, %v4221
          %v4287 = vsel %vm4270, %v4280, %v4222
          %v4288 = vsel %vm4271, %v4280, %v4223
          %v4289 = vsel %vm4272, %v4280, %v4224
          %v4290 = vsel %vm4273, %v4280, %v4225
          %v4291 = vsel %vm4274, %v4280, %v4226
          %v4292 = vsel %vm4275, %v4280, %v4227
          %v4293 = vsel %vm4276, %v4280, %v4228
          %v4294 = vsel %vm4277, %v4280, %v4229
          %v4295 = vsel %vm4278, %v4280, %v4230
          %v4296 = vsel %vm4279, %v4280, %v4231
          %vm4297 = vcmp.eq.s32.totalorder %v575, 4294967225
          %vm4298 = vcmp.eq.s32.totalorder %v576, 4294967225
          %vm4299 = vcmp.eq.s32.totalorder %v577, 4294967225
          %vm4300 = vcmp.eq.s32.totalorder %v578, 4294967225
          %vm4301 = vcmp.eq.s32.totalorder %v579, 4294967225
          %vm4302 = vcmp.eq.s32.totalorder %v580, 4294967225
          %vm4303 = vcmp.eq.s32.totalorder %v581, 4294967225
          %vm4304 = vcmp.eq.s32.totalorder %v582, 4294967225
          %vm4305 = vcmp.eq.s32.totalorder %v583, 4294967225
          %vm4306 = vcmp.eq.s32.totalorder %v584, 4294967225
          %vm4307 = vcmp.eq.s32.totalorder %v585, 4294967225
          %vm4308 = vcmp.eq.s32.totalorder %v586, 4294967225
          %vm4309 = vcmp.eq.s32.totalorder %v587, 4294967225
          %vm4310 = vcmp.eq.s32.totalorder %v588, 4294967225
          %vm4311 = vcmp.eq.s32.totalorder %v589, 4294967225
          %vm4312 = vcmp.eq.s32.totalorder %v590, 4294967225
          %v4313 = vsel %vm4297, %v4280, %v4248
          %v4314 = vsel %vm4298, %v4280, %v4249
          %v4315 = vsel %vm4299, %v4280, %v4250
          %v4316 = vsel %vm4300, %v4280, %v4251
          %v4317 = vsel %vm4301, %v4280, %v4252
          %v4318 = vsel %vm4302, %v4280, %v4253
          %v4319 = vsel %vm4303, %v4280, %v4254
          %v4320 = vsel %vm4304, %v4280, %v4255
          %v4321 = vsel %vm4305, %v4280, %v4256
          %v4322 = vsel %vm4306, %v4280, %v4257
          %v4323 = vsel %vm4307, %v4280, %v4258
          %v4324 = vsel %vm4308, %v4280, %v4259
          %v4325 = vsel %vm4309, %v4280, %v4260
          %v4326 = vsel %vm4310, %v4280, %v4261
          %v4327 = vsel %vm4311, %v4280, %v4262
          %v4328 = vsel %vm4312, %v4280, %v4263
          %vm4329 = vcmp.eq.s32.totalorder %v575, 58
          %vm4330 = vcmp.eq.s32.totalorder %v576, 58
          %vm4331 = vcmp.eq.s32.totalorder %v577, 58
          %vm4332 = vcmp.eq.s32.totalorder %v578, 58
          %vm4333 = vcmp.eq.s32.totalorder %v579, 58
          %vm4334 = vcmp.eq.s32.totalorder %v580, 58
          %vm4335 = vcmp.eq.s32.totalorder %v581, 58
          %vm4336 = vcmp.eq.s32.totalorder %v582, 58
          %vm4337 = vcmp.eq.s32.totalorder %v583, 58
          %vm4338 = vcmp.eq.s32.totalorder %v584, 58
          %vm4339 = vcmp.eq.s32.totalorder %v585, 58
          %vm4340 = vcmp.eq.s32.totalorder %v586, 58
          %vm4341 = vcmp.eq.s32.totalorder %v587, 58
          %vm4342 = vcmp.eq.s32.totalorder %v588, 58
          %vm4343 = vcmp.eq.s32.totalorder %v589, 58
          %vm4344 = vcmp.eq.s32.totalorder %v590, 58
          %v4345 = vperm.slane %v555, 2
          %v4346 = vsel %vm4329, %v4345, %v4281
          %v4347 = vsel %vm4330, %v4345, %v4282
          %v4348 = vsel %vm4331, %v4345, %v4283
          %v4349 = vsel %vm4332, %v4345, %v4284
          %v4350 = vsel %vm4333, %v4345, %v4285
          %v4351 = vsel %vm4334, %v4345, %v4286
          %v4352 = vsel %vm4335, %v4345, %v4287
          %v4353 = vsel %vm4336, %v4345, %v4288
          %v4354 = vsel %vm4337, %v4345, %v4289
          %v4355 = vsel %vm4338, %v4345, %v4290
          %v4356 = vsel %vm4339, %v4345, %v4291
          %v4357 = vsel %vm4340, %v4345, %v4292
          %v4358 = vsel %vm4341, %v4345, %v4293
          %v4359 = vsel %vm4342, %v4345, %v4294
          %v4360 = vsel %vm4343, %v4345, %v4295
          %v4361 = vsel %vm4344, %v4345, %v4296
          %vm4362 = vcmp.eq.s32.totalorder %v575, 4294967226
          %vm4363 = vcmp.eq.s32.totalorder %v576, 4294967226
          %vm4364 = vcmp.eq.s32.totalorder %v577, 4294967226
          %vm4365 = vcmp.eq.s32.totalorder %v578, 4294967226
          %vm4366 = vcmp.eq.s32.totalorder %v579, 4294967226
          %vm4367 = vcmp.eq.s32.totalorder %v580, 4294967226
          %vm4368 = vcmp.eq.s32.totalorder %v581, 4294967226
          %vm4369 = vcmp.eq.s32.totalorder %v582, 4294967226
          %vm4370 = vcmp.eq.s32.totalorder %v583, 4294967226
          %vm4371 = vcmp.eq.s32.totalorder %v584, 4294967226
          %vm4372 = vcmp.eq.s32.totalorder %v585, 4294967226
          %vm4373 = vcmp.eq.s32.totalorder %v586, 4294967226
          %vm4374 = vcmp.eq.s32.totalorder %v587, 4294967226
          %vm4375 = vcmp.eq.s32.totalorder %v588, 4294967226
          %vm4376 = vcmp.eq.s32.totalorder %v589, 4294967226
          %vm4377 = vcmp.eq.s32.totalorder %v590, 4294967226
          %v4378 = vsel %vm4362, %v4345, %v4313
          %v4379 = vsel %vm4363, %v4345, %v4314
          %v4380 = vsel %vm4364, %v4345, %v4315
          %v4381 = vsel %vm4365, %v4345, %v4316
          %v4382 = vsel %vm4366, %v4345, %v4317
          %v4383 = vsel %vm4367, %v4345, %v4318
          %v4384 = vsel %vm4368, %v4345, %v4319
          %v4385 = vsel %vm4369, %v4345, %v4320
          %v4386 = vsel %vm4370, %v4345, %v4321
          %v4387 = vsel %vm4371, %v4345, %v4322
          %v4388 = vsel %vm4372, %v4345, %v4323
          %v4389 = vsel %vm4373, %v4345, %v4324
          %v4390 = vsel %vm4374, %v4345, %v4325
          %v4391 = vsel %vm4375, %v4345, %v4326
          %v4392 = vsel %vm4376, %v4345, %v4327
          %v4393 = vsel %vm4377, %v4345, %v4328
          %vm4394 = vcmp.eq.s32.totalorder %v575, 59
          %vm4395 = vcmp.eq.s32.totalorder %v576, 59
          %vm4396 = vcmp.eq.s32.totalorder %v577, 59
          %vm4397 = vcmp.eq.s32.totalorder %v578, 59
          %vm4398 = vcmp.eq.s32.totalorder %v579, 59
          %vm4399 = vcmp.eq.s32.totalorder %v580, 59
          %vm4400 = vcmp.eq.s32.totalorder %v581, 59
          %vm4401 = vcmp.eq.s32.totalorder %v582, 59
          %vm4402 = vcmp.eq.s32.totalorder %v583, 59
          %vm4403 = vcmp.eq.s32.totalorder %v584, 59
          %vm4404 = vcmp.eq.s32.totalorder %v585, 59
          %vm4405 = vcmp.eq.s32.totalorder %v586, 59
          %vm4406 = vcmp.eq.s32.totalorder %v587, 59
          %vm4407 = vcmp.eq.s32.totalorder %v588, 59
          %vm4408 = vcmp.eq.s32.totalorder %v589, 59
          %vm4409 = vcmp.eq.s32.totalorder %v590, 59
          %v4410 = vperm.slane %v555, 3
          %v4411 = vsel %vm4394, %v4410, %v4346
          %v4412 = vsel %vm4395, %v4410, %v4347
          %v4413 = vsel %vm4396, %v4410, %v4348
          %v4414 = vsel %vm4397, %v4410, %v4349
          %v4415 = vsel %vm4398, %v4410, %v4350
          %v4416 = vsel %vm4399, %v4410, %v4351
          %v4417 = vsel %vm4400, %v4410, %v4352
          %v4418 = vsel %vm4401, %v4410, %v4353
          %v4419 = vsel %vm4402, %v4410, %v4354
          %v4420 = vsel %vm4403, %v4410, %v4355
          %v4421 = vsel %vm4404, %v4410, %v4356
          %v4422 = vsel %vm4405, %v4410, %v4357
          %v4423 = vsel %vm4406, %v4410, %v4358
          %v4424 = vsel %vm4407, %v4410, %v4359
          %v4425 = vsel %vm4408, %v4410, %v4360
          %v4426 = vsel %vm4409, %v4410, %v4361
          %vm4427 = vcmp.eq.s32.totalorder %v575, 4294967227
          %vm4428 = vcmp.eq.s32.totalorder %v576, 4294967227
          %vm4429 = vcmp.eq.s32.totalorder %v577, 4294967227
          %vm4430 = vcmp.eq.s32.totalorder %v578, 4294967227
          %vm4431 = vcmp.eq.s32.totalorder %v579, 4294967227
          %vm4432 = vcmp.eq.s32.totalorder %v580, 4294967227
          %vm4433 = vcmp.eq.s32.totalorder %v581, 4294967227
          %vm4434 = vcmp.eq.s32.totalorder %v582, 4294967227
          %vm4435 = vcmp.eq.s32.totalorder %v583, 4294967227
          %vm4436 = vcmp.eq.s32.totalorder %v584, 4294967227
          %vm4437 = vcmp.eq.s32.totalorder %v585, 4294967227
          %vm4438 = vcmp.eq.s32.totalorder %v586, 4294967227
          %vm4439 = vcmp.eq.s32.totalorder %v587, 4294967227
          %vm4440 = vcmp.eq.s32.totalorder %v588, 4294967227
          %vm4441 = vcmp.eq.s32.totalorder %v589, 4294967227
          %vm4442 = vcmp.eq.s32.totalorder %v590, 4294967227
          %v4443 = vsel %vm4427, %v4410, %v4378
          %v4444 = vsel %vm4428, %v4410, %v4379
          %v4445 = vsel %vm4429, %v4410, %v4380
          %v4446 = vsel %vm4430, %v4410, %v4381
          %v4447 = vsel %vm4431, %v4410, %v4382
          %v4448 = vsel %vm4432, %v4410, %v4383
          %v4449 = vsel %vm4433, %v4410, %v4384
          %v4450 = vsel %vm4434, %v4410, %v4385
          %v4451 = vsel %vm4435, %v4410, %v4386
          %v4452 = vsel %vm4436, %v4410, %v4387
          %v4453 = vsel %vm4437, %v4410, %v4388
          %v4454 = vsel %vm4438, %v4410, %v4389
          %v4455 = vsel %vm4439, %v4410, %v4390
          %v4456 = vsel %vm4440, %v4410, %v4391
          %v4457 = vsel %vm4441, %v4410, %v4392
          %v4458 = vsel %vm4442, %v4410, %v4393
          %vm4459 = vcmp.eq.s32.totalorder %v575, 60
          %vm4460 = vcmp.eq.s32.totalorder %v576, 60
          %vm4461 = vcmp.eq.s32.totalorder %v577, 60
          %vm4462 = vcmp.eq.s32.totalorder %v578, 60
          %vm4463 = vcmp.eq.s32.totalorder %v579, 60
          %vm4464 = vcmp.eq.s32.totalorder %v580, 60
          %vm4465 = vcmp.eq.s32.totalorder %v581, 60
          %vm4466 = vcmp.eq.s32.totalorder %v582, 60
          %vm4467 = vcmp.eq.s32.totalorder %v583, 60
          %vm4468 = vcmp.eq.s32.totalorder %v584, 60
          %vm4469 = vcmp.eq.s32.totalorder %v585, 60
          %vm4470 = vcmp.eq.s32.totalorder %v586, 60
          %vm4471 = vcmp.eq.s32.totalorder %v587, 60
          %vm4472 = vcmp.eq.s32.totalorder %v588, 60
          %vm4473 = vcmp.eq.s32.totalorder %v589, 60
          %vm4474 = vcmp.eq.s32.totalorder %v590, 60
          %v4475 = vperm.slane %v555, 4
          %v4476 = vsel %vm4459, %v4475, %v4411
          %v4477 = vsel %vm4460, %v4475, %v4412
          %v4478 = vsel %vm4461, %v4475, %v4413
          %v4479 = vsel %vm4462, %v4475, %v4414
          %v4480 = vsel %vm4463, %v4475, %v4415
          %v4481 = vsel %vm4464, %v4475, %v4416
          %v4482 = vsel %vm4465, %v4475, %v4417
          %v4483 = vsel %vm4466, %v4475, %v4418
          %v4484 = vsel %vm4467, %v4475, %v4419
          %v4485 = vsel %vm4468, %v4475, %v4420
          %v4486 = vsel %vm4469, %v4475, %v4421
          %v4487 = vsel %vm4470, %v4475, %v4422
          %v4488 = vsel %vm4471, %v4475, %v4423
          %v4489 = vsel %vm4472, %v4475, %v4424
          %v4490 = vsel %vm4473, %v4475, %v4425
          %v4491 = vsel %vm4474, %v4475, %v4426
          %vm4492 = vcmp.eq.s32.totalorder %v575, 4294967228
          %vm4493 = vcmp.eq.s32.totalorder %v576, 4294967228
          %vm4494 = vcmp.eq.s32.totalorder %v577, 4294967228
          %vm4495 = vcmp.eq.s32.totalorder %v578, 4294967228
          %vm4496 = vcmp.eq.s32.totalorder %v579, 4294967228
          %vm4497 = vcmp.eq.s32.totalorder %v580, 4294967228
          %vm4498 = vcmp.eq.s32.totalorder %v581, 4294967228
          %vm4499 = vcmp.eq.s32.totalorder %v582, 4294967228
          %vm4500 = vcmp.eq.s32.totalorder %v583, 4294967228
          %vm4501 = vcmp.eq.s32.totalorder %v584, 4294967228
          %vm4502 = vcmp.eq.s32.totalorder %v585, 4294967228
          %vm4503 = vcmp.eq.s32.totalorder %v586, 4294967228
          %vm4504 = vcmp.eq.s32.totalorder %v587, 4294967228
          %vm4505 = vcmp.eq.s32.totalorder %v588, 4294967228
          %vm4506 = vcmp.eq.s32.totalorder %v589, 4294967228
          %vm4507 = vcmp.eq.s32.totalorder %v590, 4294967228
          %v4508 = vsel %vm4492, %v4475, %v4443
          %v4509 = vsel %vm4493, %v4475, %v4444
          %v4510 = vsel %vm4494, %v4475, %v4445
          %v4511 = vsel %vm4495, %v4475, %v4446
          %v4512 = vsel %vm4496, %v4475, %v4447
          %v4513 = vsel %vm4497, %v4475, %v4448
          %v4514 = vsel %vm4498, %v4475, %v4449
          %v4515 = vsel %vm4499, %v4475, %v4450
          %v4516 = vsel %vm4500, %v4475, %v4451
          %v4517 = vsel %vm4501, %v4475, %v4452
          %v4518 = vsel %vm4502, %v4475, %v4453
          %v4519 = vsel %vm4503, %v4475, %v4454
          %v4520 = vsel %vm4504, %v4475, %v4455
          %v4521 = vsel %vm4505, %v4475, %v4456
          %v4522 = vsel %vm4506, %v4475, %v4457
          %v4523 = vsel %vm4507, %v4475, %v4458
          %vm4524 = vcmp.eq.s32.totalorder %v575, 61
          %vm4525 = vcmp.eq.s32.totalorder %v576, 61
          %vm4526 = vcmp.eq.s32.totalorder %v577, 61
          %vm4527 = vcmp.eq.s32.totalorder %v578, 61
          %vm4528 = vcmp.eq.s32.totalorder %v579, 61
          %vm4529 = vcmp.eq.s32.totalorder %v580, 61
          %vm4530 = vcmp.eq.s32.totalorder %v581, 61
          %vm4531 = vcmp.eq.s32.totalorder %v582, 61
          %vm4532 = vcmp.eq.s32.totalorder %v583, 61
          %vm4533 = vcmp.eq.s32.totalorder %v584, 61
          %vm4534 = vcmp.eq.s32.totalorder %v585, 61
          %vm4535 = vcmp.eq.s32.totalorder %v586, 61
          %vm4536 = vcmp.eq.s32.totalorder %v587, 61
          %vm4537 = vcmp.eq.s32.totalorder %v588, 61
          %vm4538 = vcmp.eq.s32.totalorder %v589, 61
          %vm4539 = vcmp.eq.s32.totalorder %v590, 61
          %v4540 = vperm.slane %v555, 5
          %v4541 = vsel %vm4524, %v4540, %v4476
          %v4542 = vsel %vm4525, %v4540, %v4477
          %v4543 = vsel %vm4526, %v4540, %v4478
          %v4544 = vsel %vm4527, %v4540, %v4479
          %v4545 = vsel %vm4528, %v4540, %v4480
          %v4546 = vsel %vm4529, %v4540, %v4481
          %v4547 = vsel %vm4530, %v4540, %v4482
          %v4548 = vsel %vm4531, %v4540, %v4483
          %v4549 = vsel %vm4532, %v4540, %v4484
          %v4550 = vsel %vm4533, %v4540, %v4485
          %v4551 = vsel %vm4534, %v4540, %v4486
          %v4552 = vsel %vm4535, %v4540, %v4487
          %v4553 = vsel %vm4536, %v4540, %v4488
          %v4554 = vsel %vm4537, %v4540, %v4489
          %v4555 = vsel %vm4538, %v4540, %v4490
          %v4556 = vsel %vm4539, %v4540, %v4491
          %vm4557 = vcmp.eq.s32.totalorder %v575, 4294967229
          %vm4558 = vcmp.eq.s32.totalorder %v576, 4294967229
          %vm4559 = vcmp.eq.s32.totalorder %v577, 4294967229
          %vm4560 = vcmp.eq.s32.totalorder %v578, 4294967229
          %vm4561 = vcmp.eq.s32.totalorder %v579, 4294967229
          %vm4562 = vcmp.eq.s32.totalorder %v580, 4294967229
          %vm4563 = vcmp.eq.s32.totalorder %v581, 4294967229
          %vm4564 = vcmp.eq.s32.totalorder %v582, 4294967229
          %vm4565 = vcmp.eq.s32.totalorder %v583, 4294967229
          %vm4566 = vcmp.eq.s32.totalorder %v584, 4294967229
          %vm4567 = vcmp.eq.s32.totalorder %v585, 4294967229
          %vm4568 = vcmp.eq.s32.totalorder %v586, 4294967229
          %vm4569 = vcmp.eq.s32.totalorder %v587, 4294967229
          %vm4570 = vcmp.eq.s32.totalorder %v588, 4294967229
          %vm4571 = vcmp.eq.s32.totalorder %v589, 4294967229
          %vm4572 = vcmp.eq.s32.totalorder %v590, 4294967229
          %v4573 = vsel %vm4557, %v4540, %v4508
          %v4574 = vsel %vm4558, %v4540, %v4509
          %v4575 = vsel %vm4559, %v4540, %v4510
          %v4576 = vsel %vm4560, %v4540, %v4511
          %v4577 = vsel %vm4561, %v4540, %v4512
          %v4578 = vsel %vm4562, %v4540, %v4513
          %v4579 = vsel %vm4563, %v4540, %v4514
          %v4580 = vsel %vm4564, %v4540, %v4515
          %v4581 = vsel %vm4565, %v4540, %v4516
          %v4582 = vsel %vm4566, %v4540, %v4517
          %v4583 = vsel %vm4567, %v4540, %v4518
          %v4584 = vsel %vm4568, %v4540, %v4519
          %v4585 = vsel %vm4569, %v4540, %v4520
          %v4586 = vsel %vm4570, %v4540, %v4521
          %v4587 = vsel %vm4571, %v4540, %v4522
          %v4588 = vsel %vm4572, %v4540, %v4523
          %vm4589 = vcmp.eq.s32.totalorder %v575, 62
          %vm4590 = vcmp.eq.s32.totalorder %v576, 62
          %vm4591 = vcmp.eq.s32.totalorder %v577, 62
          %vm4592 = vcmp.eq.s32.totalorder %v578, 62
          %vm4593 = vcmp.eq.s32.totalorder %v579, 62
          %vm4594 = vcmp.eq.s32.totalorder %v580, 62
          %vm4595 = vcmp.eq.s32.totalorder %v581, 62
          %vm4596 = vcmp.eq.s32.totalorder %v582, 62
          %vm4597 = vcmp.eq.s32.totalorder %v583, 62
          %vm4598 = vcmp.eq.s32.totalorder %v584, 62
          %vm4599 = vcmp.eq.s32.totalorder %v585, 62
          %vm4600 = vcmp.eq.s32.totalorder %v586, 62
          %vm4601 = vcmp.eq.s32.totalorder %v587, 62
          %vm4602 = vcmp.eq.s32.totalorder %v588, 62
          %vm4603 = vcmp.eq.s32.totalorder %v589, 62
          %vm4604 = vcmp.eq.s32.totalorder %v590, 62
          %v4605 = vperm.slane %v555, 6
          %v4606 = vsel %vm4589, %v4605, %v4541
          %v4607 = vsel %vm4590, %v4605, %v4542
          %v4608 = vsel %vm4591, %v4605, %v4543
          %v4609 = vsel %vm4592, %v4605, %v4544
          %v4610 = vsel %vm4593, %v4605, %v4545
          %v4611 = vsel %vm4594, %v4605, %v4546
          %v4612 = vsel %vm4595, %v4605, %v4547
          %v4613 = vsel %vm4596, %v4605, %v4548
          %v4614 = vsel %vm4597, %v4605, %v4549
          %v4615 = vsel %vm4598, %v4605, %v4550
          %v4616 = vsel %vm4599, %v4605, %v4551
          %v4617 = vsel %vm4600, %v4605, %v4552
          %v4618 = vsel %vm4601, %v4605, %v4553
          %v4619 = vsel %vm4602, %v4605, %v4554
          %v4620 = vsel %vm4603, %v4605, %v4555
          %v4621 = vsel %vm4604, %v4605, %v4556
          %vm4622 = vcmp.eq.s32.totalorder %v575, 4294967230
          %vm4623 = vcmp.eq.s32.totalorder %v576, 4294967230
          %vm4624 = vcmp.eq.s32.totalorder %v577, 4294967230
          %vm4625 = vcmp.eq.s32.totalorder %v578, 4294967230
          %vm4626 = vcmp.eq.s32.totalorder %v579, 4294967230
          %vm4627 = vcmp.eq.s32.totalorder %v580, 4294967230
          %vm4628 = vcmp.eq.s32.totalorder %v581, 4294967230
          %vm4629 = vcmp.eq.s32.totalorder %v582, 4294967230
          %vm4630 = vcmp.eq.s32.totalorder %v583, 4294967230
          %vm4631 = vcmp.eq.s32.totalorder %v584, 4294967230
          %vm4632 = vcmp.eq.s32.totalorder %v585, 4294967230
          %vm4633 = vcmp.eq.s32.totalorder %v586, 4294967230
          %vm4634 = vcmp.eq.s32.totalorder %v587, 4294967230
          %vm4635 = vcmp.eq.s32.totalorder %v588, 4294967230
          %vm4636 = vcmp.eq.s32.totalorder %v589, 4294967230
          %vm4637 = vcmp.eq.s32.totalorder %v590, 4294967230
          %v4638 = vsel %vm4622, %v4605, %v4573
          %v4639 = vsel %vm4623, %v4605, %v4574
          %v4640 = vsel %vm4624, %v4605, %v4575
          %v4641 = vsel %vm4625, %v4605, %v4576
          %v4642 = vsel %vm4626, %v4605, %v4577
          %v4643 = vsel %vm4627, %v4605, %v4578
          %v4644 = vsel %vm4628, %v4605, %v4579
          %v4645 = vsel %vm4629, %v4605, %v4580
          %v4646 = vsel %vm4630, %v4605, %v4581
          %v4647 = vsel %vm4631, %v4605, %v4582
          %v4648 = vsel %vm4632, %v4605, %v4583
          %v4649 = vsel %vm4633, %v4605, %v4584
          %v4650 = vsel %vm4634, %v4605, %v4585
          %v4651 = vsel %vm4635, %v4605, %v4586
          %v4652 = vsel %vm4636, %v4605, %v4587
          %v4653 = vsel %vm4637, %v4605, %v4588
          %vm4654 = vcmp.eq.s32.totalorder %v575, 63
          %vm4655 = vcmp.eq.s32.totalorder %v576, 63
          %vm4656 = vcmp.eq.s32.totalorder %v577, 63
          %vm4657 = vcmp.eq.s32.totalorder %v578, 63
          %vm4658 = vcmp.eq.s32.totalorder %v579, 63
          %vm4659 = vcmp.eq.s32.totalorder %v580, 63
          %vm4660 = vcmp.eq.s32.totalorder %v581, 63
          %vm4661 = vcmp.eq.s32.totalorder %v582, 63
          %vm4662 = vcmp.eq.s32.totalorder %v583, 63
          %vm4663 = vcmp.eq.s32.totalorder %v584, 63
          %vm4664 = vcmp.eq.s32.totalorder %v585, 63
          %vm4665 = vcmp.eq.s32.totalorder %v586, 63
          %vm4666 = vcmp.eq.s32.totalorder %v587, 63
          %vm4667 = vcmp.eq.s32.totalorder %v588, 63
          %vm4668 = vcmp.eq.s32.totalorder %v589, 63
          %vm4669 = vcmp.eq.s32.totalorder %v590, 63
          %v4670 = vperm.slane %v555, 7
          %v4671 = vsel %vm4654, %v4670, %v4606
          %v4672 = vsel %vm4655, %v4670, %v4607
          %v4673 = vsel %vm4656, %v4670, %v4608
          %v4674 = vsel %vm4657, %v4670, %v4609
          %v4675 = vsel %vm4658, %v4670, %v4610
          %v4676 = vsel %vm4659, %v4670, %v4611
          %v4677 = vsel %vm4660, %v4670, %v4612
          %v4678 = vsel %vm4661, %v4670, %v4613
          %v4679 = vsel %vm4662, %v4670, %v4614
          %v4680 = vsel %vm4663, %v4670, %v4615
          %v4681 = vsel %vm4664, %v4670, %v4616
          %v4682 = vsel %vm4665, %v4670, %v4617
          %v4683 = vsel %vm4666, %v4670, %v4618
          %v4684 = vsel %vm4667, %v4670, %v4619
          %v4685 = vsel %vm4668, %v4670, %v4620
          %v4686 = vsel %vm4669, %v4670, %v4621
          %vm4687 = vcmp.eq.s32.totalorder %v575, 4294967231
          %vm4688 = vcmp.eq.s32.totalorder %v576, 4294967231
          %vm4689 = vcmp.eq.s32.totalorder %v577, 4294967231
          %vm4690 = vcmp.eq.s32.totalorder %v578, 4294967231
          %vm4691 = vcmp.eq.s32.totalorder %v579, 4294967231
          %vm4692 = vcmp.eq.s32.totalorder %v580, 4294967231
          %vm4693 = vcmp.eq.s32.totalorder %v581, 4294967231
          %vm4694 = vcmp.eq.s32.totalorder %v582, 4294967231
          %vm4695 = vcmp.eq.s32.totalorder %v583, 4294967231
          %vm4696 = vcmp.eq.s32.totalorder %v584, 4294967231
          %vm4697 = vcmp.eq.s32.totalorder %v585, 4294967231
          %vm4698 = vcmp.eq.s32.totalorder %v586, 4294967231
          %vm4699 = vcmp.eq.s32.totalorder %v587, 4294967231
          %vm4700 = vcmp.eq.s32.totalorder %v588, 4294967231
          %vm4701 = vcmp.eq.s32.totalorder %v589, 4294967231
          %vm4702 = vcmp.eq.s32.totalorder %v590, 4294967231
          %v4703 = vsel %vm4687, %v4670, %v4638
          %v4704 = vsel %vm4688, %v4670, %v4639
          %v4705 = vsel %vm4689, %v4670, %v4640
          %v4706 = vsel %vm4690, %v4670, %v4641
          %v4707 = vsel %vm4691, %v4670, %v4642
          %v4708 = vsel %vm4692, %v4670, %v4643
          %v4709 = vsel %vm4693, %v4670, %v4644
          %v4710 = vsel %vm4694, %v4670, %v4645
          %v4711 = vsel %vm4695, %v4670, %v4646
          %v4712 = vsel %vm4696, %v4670, %v4647
          %v4713 = vsel %vm4697, %v4670, %v4648
          %v4714 = vsel %vm4698, %v4670, %v4649
          %v4715 = vsel %vm4699, %v4670, %v4650
          %v4716 = vsel %vm4700, %v4670, %v4651
          %v4717 = vsel %vm4701, %v4670, %v4652
          %v4718 = vsel %vm4702, %v4670, %v4653
          %4719 = vst [vmem:[#allocation2] sm:$0xff] %v4671
          %4720 = vst [vmem:[#allocation2 + $0x8] sm:$0xff] %v4672
          %4721 = vst [vmem:[#allocation2 + $0x10] sm:$0xff] %v4673
          %4722 = vst [vmem:[#allocation2 + $0x18] sm:$0xff] %v4674
          %4723 = vst [vmem:[#allocation2 + $0x20] sm:$0xff] %v4675
          %4724 = vst [vmem:[#allocation2 + $0x28] sm:$0xff] %v4676
          %4725 = vst [vmem:[#allocation2 + $0x30] sm:$0xff] %v4677
          %4726 = vst [vmem:[#allocation2 + $0x38] sm:$0xff] %v4678
          %4727 = vst [vmem:[#allocation2 + $0x40] sm:$0xff] %v4679
          %4728 = vst [vmem:[#allocation2 + $0x48] sm:$0xff] %v4680
          %4729 = vst [vmem:[#allocation2 + $0x50] sm:$0xff] %v4681
          %4730 = vst [vmem:[#allocation2 + $0x58] sm:$0xff] %v4682
          %4731 = vst [vmem:[#allocation2 + $0x60] sm:$0xff] %v4683
          %4732 = vst [vmem:[#allocation2 + $0x68] sm:$0xff] %v4684
          %4733 = vst [vmem:[#allocation2 + $0x70] sm:$0xff] %v4685
          %4734 = vst [vmem:[#allocation2 + $0x78] sm:$0xff] %v4686
          %4735 = vst [vmem:[#allocation3] sm:$0xff] %v4703
          %4736 = vst [vmem:[#allocation3 + $0x8] sm:$0xff] %v4704
          %4737 = vst [vmem:[#allocation3 + $0x10] sm:$0xff] %v4705
          %4738 = vst [vmem:[#allocation3 + $0x18] sm:$0xff] %v4706
          %4739 = vst [vmem:[#allocation3 + $0x20] sm:$0xff] %v4707
          %4740 = vst [vmem:[#allocation3 + $0x28] sm:$0xff] %v4708
          %4741 = vst [vmem:[#allocation3 + $0x30] sm:$0xff] %v4709
          %4742 = vst [vmem:[#allocation3 + $0x38] sm:$0xff] %v4710
          %4743 = vst [vmem:[#allocation3 + $0x40] sm:$0xff] %v4711
          %4744 = vst [vmem:[#allocation3 + $0x48] sm:$0xff] %v4712
          %4745 = vst [vmem:[#allocation3 + $0x50] sm:$0xff] %v4713
          %4746 = vst [vmem:[#allocation3 + $0x58] sm:$0xff] %v4714
          %4747 = vst [vmem:[#allocation3 + $0x60] sm:$0xff] %v4715
          %4748 = vst [vmem:[#allocation3 + $0x68] sm:$0xff] %v4716
          %4749 = vst [vmem:[#allocation3 + $0x70] sm:$0xff] %v4717
          %4750 = vst [vmem:[#allocation3 + $0x78] sm:$0xff] %v4718
          %4751 = vst [vmem:[#allocation4] sm:$0xff] 0.0
        $region56: #{tpu_custom_call.1} parent=51 // pred_fallthru
          _
        %v4752 = vld [vmem:[#allocation2] sm:$0xff]
        %v4753 = vld [vmem:[#allocation2 + $0x8] sm:$0xff]
        %v4754 = vld [vmem:[#allocation2 + $0x10] sm:$0xff]
        %v4755 = vld [vmem:[#allocation2 + $0x18] sm:$0xff]
        %v4756 = vld [vmem:[#allocation2 + $0x20] sm:$0xff]
        %v4757 = vld [vmem:[#allocation2 + $0x28] sm:$0xff]
        %v4758 = vld [vmem:[#allocation2 + $0x30] sm:$0xff]
        %v4759 = vld [vmem:[#allocation2 + $0x38] sm:$0xff]
        %v4760 = vld [vmem:[#allocation2 + $0x40] sm:$0xff]
        %v4761 = vld [vmem:[#allocation2 + $0x48] sm:$0xff]
        %v4762 = vld [vmem:[#allocation2 + $0x50] sm:$0xff]
        %v4763 = vld [vmem:[#allocation2 + $0x58] sm:$0xff]
        %v4764 = vld [vmem:[#allocation2 + $0x60] sm:$0xff]
        %v4765 = vld [vmem:[#allocation2 + $0x68] sm:$0xff]
        %v4766 = vld [vmem:[#allocation2 + $0x70] sm:$0xff]
        %v4767 = vld [vmem:[#allocation2 + $0x78] sm:$0xff]
        %v4768 = vld [vmem:[#allocation3] sm:$0xff]
        %v4769 = vld [vmem:[#allocation3 + $0x8] sm:$0xff]
        %v4770 = vld [vmem:[#allocation3 + $0x10] sm:$0xff]
        %v4771 = vld [vmem:[#allocation3 + $0x18] sm:$0xff]
        %v4772 = vld [vmem:[#allocation3 + $0x20] sm:$0xff]
        %v4773 = vld [vmem:[#allocation3 + $0x28] sm:$0xff]
        %v4774 = vld [vmem:[#allocation3 + $0x30] sm:$0xff]
        %v4775 = vld [vmem:[#allocation3 + $0x38] sm:$0xff]
        %v4776 = vld [vmem:[#allocation3 + $0x40] sm:$0xff]
        %v4777 = vld [vmem:[#allocation3 + $0x48] sm:$0xff]
        %v4778 = vld [vmem:[#allocation3 + $0x50] sm:$0xff]
        %v4779 = vld [vmem:[#allocation3 + $0x58] sm:$0xff]
        %v4780 = vld [vmem:[#allocation3 + $0x60] sm:$0xff]
        %v4781 = vld [vmem:[#allocation3 + $0x68] sm:$0xff]
        %v4782 = vld [vmem:[#allocation3 + $0x70] sm:$0xff]
        %v4783 = vld [vmem:[#allocation3 + $0x78] sm:$0xff]
        %v4784 = vld [vmem:[%s383] sm:$0xff]
        %v4785 = vld [vmem:[#allocation4] sm:$0xff]
        %4786 = vmatpush.msra.mxu0 %v4783
        %4787 = vmatpush.msra.mxu0 %v4782
        %4788 = vmatpush.msra.mxu0 %v4781
        %4789 = vmatpush.msra.mxu0 %v4780
        %4790 = vmatpush.msra.mxu0 %v4779
        %4791 = vmatpush.msra.mxu0 %v4778
        %4792 = vmatpush.msra.mxu0 %v4777
        %4793 = vmatpush.msra.mxu0 %v4776
        %4794 = vmatpush.msra.mxu0 %v4775
        %4795 = vmatpush.msra.mxu0 %v4774
        %4796 = vmatpush.msra.mxu0 %v4773
        %4797 = vmatpush.msra.mxu0 %v4772
        %4798 = vmatpush.msra.mxu0 %v4771
        %4799 = vmatpush.msra.mxu0 %v4770
        %4800 = vmatpush.msra.mxu0 %v4769
        %4801 = vmatpush.msra.mxu0 %v4768
        %4802 = vmatmul.f32.gmra.mxu0 %v4785
        %v4803 = vpop.f32.mrf.mxu0
        %v4804 = vadd.f32 0.0, %v4803
        %4805 = vdwg.mxu0
        %4806 = vmatpush.msra.mxu0 %v4767
        %4807 = vmatpush.msra.mxu0 %v4766
        %4808 = vmatpush.msra.mxu0 %v4765
        %4809 = vmatpush.msra.mxu0 %v4764
        %4810 = vmatpush.msra.mxu0 %v4763
        %4811 = vmatpush.msra.mxu0 %v4762
        %4812 = vmatpush.msra.mxu0 %v4761
        %4813 = vmatpush.msra.mxu0 %v4760
        %4814 = vmatpush.msra.mxu0 %v4759
        %4815 = vmatpush.msra.mxu0 %v4758
        %4816 = vmatpush.msra.mxu0 %v4757
        %4817 = vmatpush.msra.mxu0 %v4756
        %4818 = vmatpush.msra.mxu0 %v4755
        %4819 = vmatpush.msra.mxu0 %v4754
        %4820 = vmatpush.msra.mxu0 %v4753
        %4821 = vmatpush.msra.mxu0 %v4752
        %4822 = vmatmul.f32.gmra.mxu0 %v4784
        %v4823 = vpop.f32.mrf.mxu0
        %v4824 = vadd.f32 %v4804, %v4823
        %4825 = vdwg.mxu0
        %4826 = vst [vmem:[%s362] sm:$0xff] %v4824
        %v4827 = vld [vmem:[%s383 + $0x8] sm:$0xff]
        %v4828 = vld [vmem:[%s383] sm:$0xff]
        %4829 = vmatpush.msra.mxu0 %v4783
        %4830 = vmatpush.msra.mxu0 %v4782
        %4831 = vmatpush.msra.mxu0 %v4781
        %4832 = vmatpush.msra.mxu0 %v4780
        %4833 = vmatpush.msra.mxu0 %v4779
        %4834 = vmatpush.msra.mxu0 %v4778
        %4835 = vmatpush.msra.mxu0 %v4777
        %4836 = vmatpush.msra.mxu0 %v4776
        %4837 = vmatpush.msra.mxu0 %v4775
        %4838 = vmatpush.msra.mxu0 %v4774
        %4839 = vmatpush.msra.mxu0 %v4773
        %4840 = vmatpush.msra.mxu0 %v4772
        %4841 = vmatpush.msra.mxu0 %v4771
        %4842 = vmatpush.msra.mxu0 %v4770
        %4843 = vmatpush.msra.mxu0 %v4769
        %4844 = vmatpush.msra.mxu0 %v4768
        %4845 = vmatmul.f32.gmra.mxu0 %v4828
        %v4846 = vpop.f32.mrf.mxu0
        %v4847 = vadd.f32 0.0, %v4846
        %4848 = vdwg.mxu0
        %4849 = vmatpush.msra.mxu0 %v4767
        %4850 = vmatpush.msra.mxu0 %v4766
        %4851 = vmatpush.msra.mxu0 %v4765
        %4852 = vmatpush.msra.mxu0 %v4764
        %4853 = vmatpush.msra.mxu0 %v4763
        %4854 = vmatpush.msra.mxu0 %v4762
        %4855 = vmatpush.msra.mxu0 %v4761
        %4856 = vmatpush.msra.mxu0 %v4760
        %4857 = vmatpush.msra.mxu0 %v4759
        %4858 = vmatpush.msra.mxu0 %v4758
        %4859 = vmatpush.msra.mxu0 %v4757
        %4860 = vmatpush.msra.mxu0 %v4756
        %4861 = vmatpush.msra.mxu0 %v4755
        %4862 = vmatpush.msra.mxu0 %v4754
        %4863 = vmatpush.msra.mxu0 %v4753
        %4864 = vmatpush.msra.mxu0 %v4752
        %4865 = vmatmul.f32.gmra.mxu0 %v4827
        %v4866 = vpop.f32.mrf.mxu0
        %v4867 = vadd.f32 %v4847, %v4866
        %4868 = vdwg.mxu0
        %4869 = vst [vmem:[%s362 + $0x8] sm:$0xff] %v4867
        %4870 = vst [vmem:[#allocation4] sm:$0xff] %v4827
        %s4871 = sand.u32 %s234, 1
        %s4872 = scalar_lea.sflag [#allocation6], %s4871
        %s4873 = sand.u32 %s234, 1
        %s4874 = smul.addr %s4873, 16
        %s4875 = scalar_lea.vmem [#allocation5], %s4874
        // Predicated region
        $region57: #{tpu_custom_call.1} parent=51 // pred_check
          %p4876 = pneg %p244
        $region58: #{tpu_custom_call.1} parent=51 // pred_check_branch
          %4878 = sbr.rel (%p4876) target = $region60
        $region59: #{tpu_custom_call.1} parent=51 // pred_region
          %s4879 = smul.u32 2, %s27
          %4881 = vsyncadd %s4872, 0
          %s4882 = smul.addr %s26, 4
          %s4883 = sadd.s32 %s4879, %s4882
          %s4884 = smul.addr %s4883, 8
          %s4885 = scalar_lea.hbm %s8, %s4884
          %s4887 = sshll.u32 %s4875, 4
          %s4888 = int_to_ptr.vmem [resolvable:$true] %s4887
          %s4889 = sshll.u32 %s4885, 4
          %s4890 = int_to_ptr.hbm [resolvable:$true] %s4889
          %4892 = dma.vmem_to_hbm [thread:$0]  %s4888, 256, %s4890, %s4872
        $region60: #{tpu_custom_call.1} parent=51 // pred_fallthru
          _
      $region52: #{tpu_custom_call.1} parent=5 // pred_fallthru
        _
      %p4893 = scmp.le.s32.totalorder 2, %s17
      // Predicated region
      $region61: #{tpu_custom_call.1} parent=5 // pred_check
        %p4894 = pneg %p4893
      $region62: #{tpu_custom_call.1} parent=5 // pred_check_branch
        %4896 = sbr.rel (%p4894) target = $region64
      $region63: #{tpu_custom_call.1} parent=5 // pred_region
        %s4897 = ssub.s32 %s17, 2
        // Predicated region
        $region65: #{tpu_custom_call.1} parent=63 // pred_check
          %p4898 = pneg %p250
        $region66: #{tpu_custom_call.1} parent=63 // pred_check_branch
          %4900 = sbr.rel (%p4898) target = $region68
        $region67: #{tpu_custom_call.1} parent=63 // pred_region
          %s4901 = sand.u32 %s235, 1
          %s4902 = scalar_lea.sflag [#allocation6], %s4901
          %s4903 = sand.u32 %s235, 1
          %s4904 = smul.addr %s4903, 16
          %s4905 = scalar_lea.vmem [#allocation5], %s4904
          %4907 = dma.done %s4902, 256
        $region68: #{tpu_custom_call.1} parent=63 // pred_fallthru
          _
      $region64: #{tpu_custom_call.1} parent=5 // pred_fallthru
        _
    $region6: #{tpu_custom_call.1} parent=1 // loop_footer
      %s21 = sadd.s32 1, %s17
    $region7: #{tpu_custom_call.1} parent=1 // loop_footer_branch
      %16 = sbr.rel target = $region3
    $region8: #{tpu_custom_call.1} parent=1 // loop_exit
      _
    %4908 = vsyncpa [#allocation6], 1
    %s4909 = scalar_lea.sflag [#allocation6], 1
    %4910 = vsyncpa %s4909, 1

</llo_original>
